<compile_context>
chip_gen: v7x
topology: tpu7x:2x2x1
jax: 0.10.0
libtpu: 0.0.40
codegen_flags: <defaults>
</compile_context>

<pallas_src>
import functools

import jax
import jax.numpy as jnp
from jax import lax
from jax.experimental import pallas as pl
from jax.experimental.pallas import tpu as pltpu


def _one_layer(x, wqkv, bqkv, wposb, mask_s, v_ref, *,
               heads, qd, u, vd, h, w, rk, eps, neg_slope):
    """One LambdaLayer + InstanceNorm2d + LeakyReLU on a (c, h*w) slab."""
    f32 = jnp.float32
    n = h * w
    nq = qd * heads
    nk = qd * u
    nshift = u * rk * rk
    pad = rk // 2

    # Fused q/k/v 1x1-conv projections (single MXU pass; BN folded into w/b).
    qkv = jnp.dot(wqkv, x, preferred_element_type=f32) + bqkv
    q_all = qkv[:nq, :]
    k_all = qkv[nq:nq + nk, :]
    v_ref[...] = qkv[nq + nk:, :]                    # park v in VMEM scratch

    # softmax(k) over the spatial dim, all u groups in one shot.
    k_all = k_all - jnp.max(k_all, axis=1, keepdims=True)
    e = jnp.exp(k_all)
    k_soft = e * pl.reciprocal(jnp.sum(e, axis=1, keepdims=True), approx=True)

    # content lambda  λc[k, v] = Σ_{u,m} softmax(k)[u,k,m] * v[u,v,m]
    lam_c = jnp.zeros((qd, vd), f32)
    for uu in range(u):
        lam_c = lam_c + lax.dot_general(
            k_soft[uu * qd:(uu + 1) * qd, :],
            v_ref[pl.ds(uu * vd, vd), :],
            (((1,), (1,)), ((), ())), preferred_element_type=f32)

    # Per head: Yc, and the positional kernel folded through q
    # (wpos & bpos fused in one matmul); edge mask folded into A once.
    yc, a_m, acc = [], [], []
    for hh in range(heads):
        q_h = q_all[hh * qd:(hh + 1) * qd, :]
        yc.append(lax.dot_general(lam_c, q_h, (((0,), (0,)), ((), ())),
                                  preferred_element_type=f32))        # (vd, n)
        ab = jnp.dot(wposb, q_h, preferred_element_type=f32)          # (nshift+1, n)
        a_m.append(ab[:nshift, :] * mask_s)
        acc.append(jnp.broadcast_to(ab[nshift:nshift + 1, :], (vd, n)))

    # positional lambda: 3x3 neighbourhood as lane rolls of v (head
    # independent, reused across heads).  Wrapped edge lanes contribute
    # nothing because the validity mask zeroed the matching rows of a_m.
    for uu in range(u):
        v_u = v_ref[pl.ds(uu * vd, vd), :]
        for i in range(rk):
            for j in range(rk):
                d = (i - pad) * w + (j - pad)
                sv = v_u if d == 0 else pltpu.roll(v_u, shift=(-d) % n, axis=1)
                s_idx = uu * rk * rk + i * rk + j
                for hh in range(heads):
                    acc[hh] = acc[hh] + a_m[hh][s_idx:s_idx + 1, :] * sv

    if heads == 1:
        y = yc[0] + acc[0]
    else:
        y = jnp.concatenate([yc[hh] + acc[hh] for hh in range(heads)], axis=0)

    # InstanceNorm2d (biased var over spatial) + LeakyReLU(neg_slope)
    mu = jnp.mean(y, axis=1, keepdims=True)
    ycen = y - mu
    var = jnp.mean(ycen * ycen, axis=1, keepdims=True)
    y_n = ycen * lax.rsqrt(var + eps)
    return jnp.where(y_n >= 0, y_n, neg_slope * y_n)


def lambda_block_kernel(x_ref, mask_ref,
                        wqkv1_ref, bqkv1_ref, wposb1_ref,
                        wqkv2_ref, bqkv2_ref, wposb2_ref,
                        o_ref, v_scr, *,
                        heads, qd, u, vd, h, w, rk, eps, neg_slope):
    """One batch element: [LambdaLayer + IN + LeakyReLU] x 2, fused."""
    mask_s = mask_ref[...]
    cfg = dict(heads=heads, qd=qd, u=u, vd=vd, h=h, w=w, rk=rk,
               eps=eps, neg_slope=neg_slope)
    y1 = _one_layer(x_ref[0].astype(jnp.float32),
                    wqkv1_ref[...], bqkv1_ref[...], wposb1_ref[...],
                    mask_s, v_scr, **cfg)
    # Dropout2d -> identity (eval mode).
    y2 = _one_layer(y1,
                    wqkv2_ref[...], bqkv2_ref[...], wposb2_ref[...],
                    mask_s, v_scr, **cfg)
    o_ref[0] = y2.astype(o_ref.dtype)


def _fuse_params(params):
    """Concat (wq, wk, wv) -> one matmul weight; (wpos, bpos) -> one matmul."""
    wq, bq, wk, wv, bv, wpos_r, bpos_r = params
    wqkv = jnp.concatenate([wq, wk, wv], axis=0)
    bqkv = jnp.concatenate(
        [bq, jnp.zeros((wk.shape[0], 1), wk.dtype), bv], axis=0)
    wposb = jnp.concatenate([wpos_r, bpos_r], axis=0)
    return wqkv, bqkv, wposb


def _shift_mask(h, w, rk, u):
    """(u*rk*rk, h*w) validity mask for the rolled 3x3 neighbourhood."""
    n = h * w
    pad = rk // 2
    row = (jnp.arange(n, dtype=jnp.int32) // w).reshape(1, n)
    col = (jnp.arange(n, dtype=jnp.int32) % w).reshape(1, n)
    rows = []
    for i in range(rk):
        for j in range(rk):
            dy, dx = i - pad, j - pad
            m = ((row + dy >= 0) & (row + dy < h) &
                 (col + dx >= 0) & (col + dx < w))
            rows.append(m)
    m9 = jnp.concatenate(rows, axis=0).astype(jnp.float32)   # (rk*rk, n)
    return jnp.tile(m9, (u, 1))                              # (u*rk*rk, n)


def lambda_block(x, params1, params2, *, heads, qd, u, vd, rk,
                 eps=1e-5, neg_slope=0.2):
    """Fused LambdaBlock forward: both layers in one pallas_call."""
    b, c, hgt, wdt = x.shape
    n = hgt * wdt
    out_c = heads * vd
    x2 = x.reshape(b, c, n).astype(jnp.float32)

    wqkv1, bqkv1, wposb1 = _fuse_params(params1)
    wqkv2, bqkv2, wposb2 = _fuse_params(params2)
    mask_s = _shift_mask(hgt, wdt, rk, u)

    kern = functools.partial(
        lambda_block_kernel, heads=heads, qd=qd, u=u, vd=vd,
        h=hgt, w=wdt, rk=rk, eps=eps, neg_slope=neg_slope)

    def _full(a):
        nd = a.ndim
        return pl.BlockSpec(a.shape, lambda i, _nd=nd: (0,) * _nd)

    out = pl.pallas_call(
        kern,
        out_shape=jax.ShapeDtypeStruct((b, out_c, n), jnp.float32),
        grid=(b,),
        in_specs=[
            pl.BlockSpec((1, c, n), lambda i: (i, 0, 0)),
            _full(mask_s),
            _full(wqkv1), _full(bqkv1), _full(wposb1),
            _full(wqkv2), _full(bqkv2), _full(wposb2),
        ],
        out_specs=pl.BlockSpec((1, out_c, n), lambda i: (i, 0, 0)),
        scratch_shapes=[pltpu.VMEM((u * vd, n), jnp.float32)],
        compiler_params=pltpu.CompilerParams(
            dimension_semantics=("parallel",),
            vmem_limit_bytes=64 * 1024 * 1024),
    )(x2, mask_s, wqkv1, bqkv1, wposb1, wqkv2, bqkv2, wposb2)
    return out.reshape(b, out_c, hgt, wdt)


def make_lambda_layer_params(key, in_ch, out_ch, qd, u, rk, heads):
    """Deterministic synthetic parameters; BN (eval, fresh stats) folded in."""
    vd = out_ch // heads
    k1, k2, k3, k4, k5 = jax.random.split(key, 5)
    scale = 0.1
    wq = jax.random.normal(k1, (qd * heads, in_ch), jnp.float32) * scale
    wk = jax.random.normal(k2, (qd * u, in_ch), jnp.float32) * scale
    wv = jax.random.normal(k3, (vd * u, in_ch), jnp.float32) * scale
    wpos = jax.random.normal(k4, (qd, u, 1, rk, rk), jnp.float32) * scale
    bpos = jax.random.normal(k5, (qd,), jnp.float32) * scale

    # BatchNorm2d eval with fresh init: gamma=1, beta=0, mean=0, var=1.
    eps_bn = 1e-5
    bn_scale = 1.0 / jnp.sqrt(1.0 + eps_bn)
    wq_eff = wq * bn_scale
    bq_eff = jnp.zeros((qd * heads, 1), jnp.float32)
    wv_eff = wv * bn_scale
    bv_eff = jnp.zeros((vd * u, 1), jnp.float32)

    # pos_conv weights reshaped to (u*rk*rk, qd): row = (u, i, j), col = k
    wpos_r = jnp.transpose(wpos[:, :, 0, :, :], (1, 2, 3, 0)).reshape(
        u * rk * rk, qd)
    bpos_r = bpos.reshape(1, qd)
    return (wq_eff, bq_eff, wk, wv_eff, bv_eff, wpos_r, bpos_r)


# ------------------------- pure-JAX reference ------------------------------
def ref_layer(x, params, *, heads, qd, u, vd, rk, eps=1e-5, neg_slope=0.2):
    wq, bq, wk, wv, bv, wpos_r, bpos_r = params
    b, c, hgt, wdt = x.shape
    n = hgt * wdt
    x2 = x.reshape(b, c, n)
    q = jnp.einsum('oc,bcn->bon', wq, x2) + bq[None]
    k = jnp.einsum('oc,bcn->bon', wk, x2)
    v = jnp.einsum('oc,bcn->bon', wv, x2) + bv[None]
    q = q.reshape(b, heads, qd, n)
    k = jax.nn.softmax(k.reshape(b, u, qd, n), axis=-1)
    v = v.reshape(b, u, vd, n)
    lam_c = jnp.einsum('bukm,buvm->bkv', k, v)
    yc = jnp.einsum('bhkn,bkv->bhvn', q, lam_c)

    wpos = jnp.transpose(wpos_r.reshape(u, rk, rk, qd), (3, 0, 1, 2))
    v_p = v.reshape(b, u, vd, hgt, wdt)
    v_pc = jnp.transpose(v_p, (0, 2, 1, 3, 4)).reshape(b * vd, u, hgt, wdt)
    lam_p = lax.conv_general_dilated(
        v_pc, wpos, (1, 1), [(rk // 2, rk // 2)] * 2,
        dimension_numbers=('NCHW', 'OIHW', 'NCHW'))
    lam_p = lam_p + bpos_r.reshape(1, qd, 1, 1)
    lam_p = lam_p.reshape(b, vd, qd, n).transpose(0, 2, 1, 3)
    yp = jnp.einsum('bhkn,bkvn->bhvn', q, lam_p)

    y = (yc + yp).reshape(b, heads * vd, hgt, wdt)
    mu = y.mean(axis=(2, 3), keepdims=True)
    var = ((y - mu) ** 2).mean(axis=(2, 3), keepdims=True)
    y = (y - mu) / jnp.sqrt(var + eps)
    return jnp.where(y >= 0, y, neg_slope * y)


def ref_block(x, p1, p2, *, heads, qd, u, vd, rk):
    y = ref_layer(x, p1, heads=heads, qd=qd, u=u, vd=vd, rk=rk)
    return ref_layer(y, p2, heads=heads, qd=qd, u=u, vd=vd, rk=rk)


if __name__ == "__main__":
    key = jax.random.PRNGKey(0)
    in_chans, out_chans = 4, 32
    qd, u, rk = 16, 4, 3                      # query_depth, intra_depth, receptive_kernel
    heads = max(1, out_chans // 32)           # LambdaBlock: heads = max(1, out_chans // 32)
    vd = out_chans // heads
    b, hgt, wdt = 2, 16, 16

    kx, k1, k2 = jax.random.split(key, 3)
    x = jax.random.normal(kx, (b, in_chans, hgt, wdt), jnp.float32)
    p1 = make_lambda_layer_params(k1, in_chans, out_chans, qd, u, rk, heads)
    p2 = make_lambda_layer_params(k2, out_chans, out_chans, qd, u, rk, heads)

    y = lambda_block(x, p1, p2, heads=heads, qd=qd, u=u, vd=vd, rk=rk)
    y = jax.block_until_ready(y)

    y_ref = ref_block(x, p1, p2, heads=heads, qd=qd, u=u, vd=vd, rk=rk)
    y_ref = jax.block_until_ready(y_ref)
    assert y.shape == (b, out_chans, hgt, wdt)
    assert jnp.allclose(y, y_ref, rtol=2e-2, atol=2e-2), \
        float(jnp.max(jnp.abs(y - y_ref)))

    print("KERNEL_OK")
</pallas_src>

<mosaic_0001>
module attributes {stable_mosaic.version = 11 : i64} {
  func.func @lambda_block_kernel(%arg0: i32, %arg1: memref<1x4x256xf32, #tpu.memory_space<vmem>>, %arg2: memref<36x256xf32, #tpu.memory_space<vmem>>, %arg3: memref<208x4xf32, #tpu.memory_space<vmem>>, %arg4: memref<208x1xf32, #tpu.memory_space<vmem>>, %arg5: memref<37x16xf32, #tpu.memory_space<vmem>>, %arg6: memref<208x32xf32, #tpu.memory_space<vmem>>, %arg7: memref<208x1xf32, #tpu.memory_space<vmem>>, %arg8: memref<37x16xf32, #tpu.memory_space<vmem>>, %arg9: memref<1x32x256xf32, #tpu.memory_space<vmem>>, %arg10: memref<128x256xf32, #tpu.memory_space<vmem>>) attributes {dimension_semantics = [#tpu.dimension_semantics<parallel>], iteration_bounds = array<i64: 2>, scalar_prefetch = 0 : i64, scratch_operands = 1 : i64, tpu.core_type = #tpu.core_type<tc>, window_params = [{transform_indices = @transform_0, window_bounds = array<i64: 1, 4, 256>}, {pipeline_mode = #tpu.pipeline_mode<synchronous>, transform_indices = @transform_1, window_bounds = array<i64: 36, 256>}, {pipeline_mode = #tpu.pipeline_mode<synchronous>, transform_indices = @transform_2, window_bounds = array<i64: 208, 4>}, {pipeline_mode = #tpu.pipeline_mode<synchronous>, transform_indices = @transform_3, window_bounds = array<i64: 208, 1>}, {pipeline_mode = #tpu.pipeline_mode<synchronous>, transform_indices = @transform_4, window_bounds = array<i64: 37, 16>}, {pipeline_mode = #tpu.pipeline_mode<synchronous>, transform_indices = @transform_5, window_bounds = array<i64: 208, 32>}, {pipeline_mode = #tpu.pipeline_mode<synchronous>, transform_indices = @transform_6, window_bounds = array<i64: 208, 1>}, {pipeline_mode = #tpu.pipeline_mode<synchronous>, transform_indices = @transform_7, window_bounds = array<i64: 37, 16>}, {transform_indices = @transform_8, window_bounds = array<i64: 1, 32, 256>}]} {
    %c0 = arith.constant 0 : index
    %c0_0 = arith.constant 0 : index
    %0 = vector.load %arg2[%c0, %c0_0] : memref<36x256xf32, #tpu.memory_space<vmem>>, vector<36x256xf32>
    %c0_1 = arith.constant 0 : index
    %c0_2 = arith.constant 0 : index
    %c0_3 = arith.constant 0 : index
    %1 = vector.load %arg1[%c0_1, %c0_2, %c0_3] : memref<1x4x256xf32, #tpu.memory_space<vmem>>, vector<1x4x256xf32>
    %2 = vector.shape_cast %1 : vector<1x4x256xf32> to vector<4x256xf32>
    %c0_4 = arith.constant 0 : index
    %c0_5 = arith.constant 0 : index
    %3 = vector.load %arg3[%c0_4, %c0_5] : memref<208x4xf32, #tpu.memory_space<vmem>>, vector<208x4xf32>
    %c0_6 = arith.constant 0 : index
    %c0_7 = arith.constant 0 : index
    %4 = vector.load %arg4[%c0_6, %c0_7] : memref<208x1xf32, #tpu.memory_space<vmem>>, vector<208x1xf32>
    %c0_8 = arith.constant 0 : index
    %c0_9 = arith.constant 0 : index
    %5 = vector.load %arg5[%c0_8, %c0_9] : memref<37x16xf32, #tpu.memory_space<vmem>>, vector<37x16xf32>
    %cst = arith.constant dense<0.000000e+00> : vector<208x256xf32>
    %6 = tpu.matmul %3, %2, %cst {dimension_numbers = #tpu.dot_dimension_numbers<[1], [0], [0], [1], [0, 0, 1, 1], [], []>} : vector<208x4xf32>, vector<4x256xf32>, vector<208x256xf32> -> vector<208x256xf32>
    %7 = vector.broadcast %4 : vector<208x1xf32> to vector<208x256xf32>
    %8 = arith.addf %6, %7 : vector<208x256xf32>
    %9 = vector.extract_strided_slice %8 {offsets = [0, 0], sizes = [16, 256], strides = [1, 1]} : vector<208x256xf32> to vector<16x256xf32>
    %10 = vector.extract_strided_slice %8 {offsets = [16, 0], sizes = [64, 256], strides = [1, 1]} : vector<208x256xf32> to vector<64x256xf32>
    %11 = vector.extract_strided_slice %8 {offsets = [80, 0], sizes = [128, 256], strides = [1, 1]} : vector<208x256xf32> to vector<128x256xf32>
    %c0_10 = arith.constant 0 : index
    %c0_11 = arith.constant 0 : index
    %12 = vector.load %arg10[%c0_10, %c0_11] : memref<128x256xf32, #tpu.memory_space<vmem>>, vector<128x256xf32>
    tpu.vector_store %arg10[%c0_10, %c0_11], %11 {strides = array<i32>} : memref<128x256xf32, #tpu.memory_space<vmem>>, vector<128x256xf32>,
    %cst_12 = arith.constant dense<0xFF800000> : vector<64xf32>
    %13 = vector.multi_reduction <maximumf>, %10, %cst_12 [1] : vector<64x256xf32> to vector<64xf32>
    %14 = vector.shape_cast %13 : vector<64xf32> to vector<64x1xf32>
    %15 = vector.broadcast %14 : vector<64x1xf32> to vector<64x256xf32>
    %16 = arith.subf %10, %15 : vector<64x256xf32>
    %17 = math.exp %16 : vector<64x256xf32>
    %cst_13 = arith.constant dense<0.000000e+00> : vector<64xf32>
    %18 = vector.multi_reduction <add>, %17, %cst_13 [1] : vector<64x256xf32> to vector<64xf32>
    %19 = vector.shape_cast %18 : vector<64xf32> to vector<64x1xf32>
    %20 = tpu.reciprocal %19 {approx = true} : vector<64x1xf32> -> vector<64x1xf32>
    %21 = vector.broadcast %20 : vector<64x1xf32> to vector<64x256xf32>
    %22 = arith.mulf %17, %21 : vector<64x256xf32>
    %cst_14 = arith.constant 0.000000e+00 : f32
    %23 = vector.broadcast %cst_14 : f32 to vector<16x32xf32>
    %24 = vector.extract_strided_slice %22 {offsets = [0, 0], sizes = [16, 256], strides = [1, 1]} : vector<64x256xf32> to vector<16x256xf32>
    %c0_15 = arith.constant 0 : index
    %c0_16 = arith.constant 0 : index
    %25 = vector.load %arg10[%c0_15, %c0_16] : memref<128x256xf32, #tpu.memory_space<vmem>>, vector<32x256xf32>
    %cst_17 = arith.constant dense<0.000000e+00> : vector<16x32xf32>
    %26 = tpu.matmul %24, %25, %cst_17 {dimension_numbers = #tpu.dot_dimension_numbers<[1], [1], [0], [0], [0, 0, 1, 0], [], []>} : vector<16x256xf32>, vector<32x256xf32>, vector<16x32xf32> -> vector<16x32xf32>
    %27 = arith.addf %23, %26 : vector<16x32xf32>
    %28 = vector.extract_strided_slice %22 {offsets = [16, 0], sizes = [16, 256], strides = [1, 1]} : vector<64x256xf32> to vector<16x256xf32>
    %c32 = arith.constant 32 : index
    %c0_18 = arith.constant 0 : index
    %29 = vector.load %arg10[%c32, %c0_18] : memref<128x256xf32, #tpu.memory_space<vmem>>, vector<32x256xf32>
    %cst_19 = arith.constant dense<0.000000e+00> : vector<16x32xf32>
    %30 = tpu.matmul %28, %29, %cst_19 {dimension_numbers = #tpu.dot_dimension_numbers<[1], [1], [0], [0], [0, 0, 1, 0], [], []>} : vector<16x256xf32>, vector<32x256xf32>, vector<16x32xf32> -> vector<16x32xf32>
    %31 = arith.addf %27, %30 : vector<16x32xf32>
    %32 = vector.extract_strided_slice %22 {offsets = [32, 0], sizes = [16, 256], strides = [1, 1]} : vector<64x256xf32> to vector<16x256xf32>
    %c64 = arith.constant 64 : index
    %c0_20 = arith.constant 0 : index
    %33 = vector.load %arg10[%c64, %c0_20] : memref<128x256xf32, #tpu.memory_space<vmem>>, vector<32x256xf32>
    %cst_21 = arith.constant dense<0.000000e+00> : vector<16x32xf32>
    %34 = tpu.matmul %32, %33, %cst_21 {dimension_numbers = #tpu.dot_dimension_numbers<[1], [1], [0], [0], [0, 0, 1, 0], [], []>} : vector<16x256xf32>, vector<32x256xf32>, vector<16x32xf32> -> vector<16x32xf32>
    %35 = arith.addf %31, %34 : vector<16x32xf32>
    %36 = vector.extract_strided_slice %22 {offsets = [48, 0], sizes = [16, 256], strides = [1, 1]} : vector<64x256xf32> to vector<16x256xf32>
    %c96 = arith.constant 96 : index
    %c0_22 = arith.constant 0 : index
    %37 = vector.load %arg10[%c96, %c0_22] : memref<128x256xf32, #tpu.memory_space<vmem>>, vector<32x256xf32>
    %cst_23 = arith.constant dense<0.000000e+00> : vector<16x32xf32>
    %38 = tpu.matmul %36, %37, %cst_23 {dimension_numbers = #tpu.dot_dimension_numbers<[1], [1], [0], [0], [0, 0, 1, 0], [], []>} : vector<16x256xf32>, vector<32x256xf32>, vector<16x32xf32> -> vector<16x32xf32>
    %39 = arith.addf %35, %38 : vector<16x32xf32>
    %cst_24 = arith.constant dense<0.000000e+00> : vector<32x256xf32>
    %40 = tpu.matmul %39, %9, %cst_24 {dimension_numbers = #tpu.dot_dimension_numbers<[0], [0], [1], [1], [0, 1, 1, 1], [], []>} : vector<16x32xf32>, vector<16x256xf32>, vector<32x256xf32> -> vector<32x256xf32>
    %cst_25 = arith.constant dense<0.000000e+00> : vector<37x256xf32>
    %41 = tpu.matmul %5, %9, %cst_25 {dimension_numbers = #tpu.dot_dimension_numbers<[1], [0], [0], [1], [0, 0, 1, 1], [], []>} : vector<37x16xf32>, vector<16x256xf32>, vector<37x256xf32> -> vector<37x256xf32>
    %42 = vector.extract_strided_slice %41 {offsets = [0, 0], sizes = [36, 256], strides = [1, 1]} : vector<37x256xf32> to vector<36x256xf32>
    %43 = arith.mulf %42, %0 : vector<36x256xf32>
    %44 = vector.extract_strided_slice %41 {offsets = [36, 0], sizes = [1, 256], strides = [1, 1]} : vector<37x256xf32> to vector<1x256xf32>
    %45 = vector.shape_cast %44 : vector<1x256xf32> to vector<1x256xf32>
    %46 = vector.broadcast %45 : vector<1x256xf32> to vector<32x256xf32>
    %c0_26 = arith.constant 0 : index
    %c0_27 = arith.constant 0 : index
    %47 = vector.load %arg10[%c0_26, %c0_27] : memref<128x256xf32, #tpu.memory_space<vmem>>, vector<32x256xf32>
    %c17_i32 = arith.constant 17 : i32
    %48 = tpu.dynamic_rotate %47 by %c17_i32 dim 1 : vector<32x256xf32>, i32 -> vector<32x256xf32>
    %49 = vector.extract_strided_slice %43 {offsets = [0, 0], sizes = [1, 256], strides = [1, 1]} : vector<36x256xf32> to vector<1x256xf32>
    %50 = vector.broadcast %49 : vector<1x256xf32> to vector<32x256xf32>
    %51 = arith.mulf %50, %48 : vector<32x256xf32>
    %52 = arith.addf %46, %51 : vector<32x256xf32>
    %c16_i32 = arith.constant 16 : i32
    %53 = tpu.dynamic_rotate %47 by %c16_i32 dim 1 : vector<32x256xf32>, i32 -> vector<32x256xf32>
    %54 = vector.extract_strided_slice %43 {offsets = [1, 0], sizes = [1, 256], strides = [1, 1]} : vector<36x256xf32> to vector<1x256xf32>
    %55 = vector.broadcast %54 : vector<1x256xf32> to vector<32x256xf32>
    %56 = arith.mulf %55, %53 : vector<32x256xf32>
    %57 = arith.addf %52, %56 : vector<32x256xf32>
    %c15_i32 = arith.constant 15 : i32
    %58 = tpu.dynamic_rotate %47 by %c15_i32 dim 1 : vector<32x256xf32>, i32 -> vector<32x256xf32>
    %59 = vector.extract_strided_slice %43 {offsets = [2, 0], sizes = [1, 256], strides = [1, 1]} : vector<36x256xf32> to vector<1x256xf32>
    %60 = vector.broadcast %59 : vector<1x256xf32> to vector<32x256xf32>
    %61 = arith.mulf %60, %58 : vector<32x256xf32>
    %62 = arith.addf %57, %61 : vector<32x256xf32>
    %c1_i32 = arith.constant 1 : i32
    %63 = tpu.dynamic_rotate %47 by %c1_i32 dim 1 : vector<32x256xf32>, i32 -> vector<32x256xf32>
    %64 = vector.extract_strided_slice %43 {offsets = [3, 0], sizes = [1, 256], strides = [1, 1]} : vector<36x256xf32> to vector<1x256xf32>
    %65 = vector.broadcast %64 : vector<1x256xf32> to vector<32x256xf32>
    %66 = arith.mulf %65, %63 : vector<32x256xf32>
    %67 = arith.addf %62, %66 : vector<32x256xf32>
    %68 = vector.extract_strided_slice %43 {offsets = [4, 0], sizes = [1, 256], strides = [1, 1]} : vector<36x256xf32> to vector<1x256xf32>
    %69 = vector.broadcast %68 : vector<1x256xf32> to vector<32x256xf32>
    %70 = arith.mulf %69, %47 : vector<32x256xf32>
    %71 = arith.addf %67, %70 : vector<32x256xf32>
    %c255_i32 = arith.constant 255 : i32
    %72 = tpu.dynamic_rotate %47 by %c255_i32 dim 1 : vector<32x256xf32>, i32 -> vector<32x256xf32>
    %73 = vector.extract_strided_slice %43 {offsets = [5, 0], sizes = [1, 256], strides = [1, 1]} : vector<36x256xf32> to vector<1x256xf32>
    %74 = vector.broadcast %73 : vector<1x256xf32> to vector<32x256xf32>
    %75 = arith.mulf %74, %72 : vector<32x256xf32>
    %76 = arith.addf %71, %75 : vector<32x256xf32>
    %c241_i32 = arith.constant 241 : i32
    %77 = tpu.dynamic_rotate %47 by %c241_i32 dim 1 : vector<32x256xf32>, i32 -> vector<32x256xf32>
    %78 = vector.extract_strided_slice %43 {offsets = [6, 0], sizes = [1, 256], strides = [1, 1]} : vector<36x256xf32> to vector<1x256xf32>
    %79 = vector.broadcast %78 : vector<1x256xf32> to vector<32x256xf32>
    %80 = arith.mulf %79, %77 : vector<32x256xf32>
    %81 = arith.addf %76, %80 : vector<32x256xf32>
    %c240_i32 = arith.constant 240 : i32
    %82 = tpu.dynamic_rotate %47 by %c240_i32 dim 1 : vector<32x256xf32>, i32 -> vector<32x256xf32>
    %83 = vector.extract_strided_slice %43 {offsets = [7, 0], sizes = [1, 256], strides = [1, 1]} : vector<36x256xf32> to vector<1x256xf32>
    %84 = vector.broadcast %83 : vector<1x256xf32> to vector<32x256xf32>
    %85 = arith.mulf %84, %82 : vector<32x256xf32>
    %86 = arith.addf %81, %85 : vector<32x256xf32>
    %c239_i32 = arith.constant 239 : i32
    %87 = tpu.dynamic_rotate %47 by %c239_i32 dim 1 : vector<32x256xf32>, i32 -> vector<32x256xf32>
    %88 = vector.extract_strided_slice %43 {offsets = [8, 0], sizes = [1, 256], strides = [1, 1]} : vector<36x256xf32> to vector<1x256xf32>
    %89 = vector.broadcast %88 : vector<1x256xf32> to vector<32x256xf32>
    %90 = arith.mulf %89, %87 : vector<32x256xf32>
    %91 = arith.addf %86, %90 : vector<32x256xf32>
    %c32_28 = arith.constant 32 : index
    %c0_29 = arith.constant 0 : index
    %92 = vector.load %arg10[%c32_28, %c0_29] : memref<128x256xf32, #tpu.memory_space<vmem>>, vector<32x256xf32>
    %c17_i32_30 = arith.constant 17 : i32
    %93 = tpu.dynamic_rotate %92 by %c17_i32_30 dim 1 : vector<32x256xf32>, i32 -> vector<32x256xf32>
    %94 = vector.extract_strided_slice %43 {offsets = [9, 0], sizes = [1, 256], strides = [1, 1]} : vector<36x256xf32> to vector<1x256xf32>
    %95 = vector.broadcast %94 : vector<1x256xf32> to vector<32x256xf32>
    %96 = arith.mulf %95, %93 : vector<32x256xf32>
    %97 = arith.addf %91, %96 : vector<32x256xf32>
    %c16_i32_31 = arith.constant 16 : i32
    %98 = tpu.dynamic_rotate %92 by %c16_i32_31 dim 1 : vector<32x256xf32>, i32 -> vector<32x256xf32>
    %99 = vector.extract_strided_slice %43 {offsets = [10, 0], sizes = [1, 256], strides = [1, 1]} : vector<36x256xf32> to vector<1x256xf32>
    %100 = vector.broadcast %99 : vector<1x256xf32> to vector<32x256xf32>
    %101 = arith.mulf %100, %98 : vector<32x256xf32>
    %102 = arith.addf %97, %101 : vector<32x256xf32>
    %c15_i32_32 = arith.constant 15 : i32
    %103 = tpu.dynamic_rotate %92 by %c15_i32_32 dim 1 : vector<32x256xf32>, i32 -> vector<32x256xf32>
    %104 = vector.extract_strided_slice %43 {offsets = [11, 0], sizes = [1, 256], strides = [1, 1]} : vector<36x256xf32> to vector<1x256xf32>
    %105 = vector.broadcast %104 : vector<1x256xf32> to vector<32x256xf32>
    %106 = arith.mulf %105, %103 : vector<32x256xf32>
    %107 = arith.addf %102, %106 : vector<32x256xf32>
    %c1_i32_33 = arith.constant 1 : i32
    %108 = tpu.dynamic_rotate %92 by %c1_i32_33 dim 1 : vector<32x256xf32>, i32 -> vector<32x256xf32>
    %109 = vector.extract_strided_slice %43 {offsets = [12, 0], sizes = [1, 256], strides = [1, 1]} : vector<36x256xf32> to vector<1x256xf32>
    %110 = vector.broadcast %109 : vector<1x256xf32> to vector<32x256xf32>
    %111 = arith.mulf %110, %108 : vector<32x256xf32>
    %112 = arith.addf %107, %111 : vector<32x256xf32>
    %113 = vector.extract_strided_slice %43 {offsets = [13, 0], sizes = [1, 256], strides = [1, 1]} : vector<36x256xf32> to vector<1x256xf32>
    %114 = vector.broadcast %113 : vector<1x256xf32> to vector<32x256xf32>
    %115 = arith.mulf %114, %92 : vector<32x256xf32>
    %116 = arith.addf %112, %115 : vector<32x256xf32>
    %c255_i32_34 = arith.constant 255 : i32
    %117 = tpu.dynamic_rotate %92 by %c255_i32_34 dim 1 : vector<32x256xf32>, i32 -> vector<32x256xf32>
    %118 = vector.extract_strided_slice %43 {offsets = [14, 0], sizes = [1, 256], strides = [1, 1]} : vector<36x256xf32> to vector<1x256xf32>
    %119 = vector.broadcast %118 : vector<1x256xf32> to vector<32x256xf32>
    %120 = arith.mulf %119, %117 : vector<32x256xf32>
    %121 = arith.addf %116, %120 : vector<32x256xf32>
    %c241_i32_35 = arith.constant 241 : i32
    %122 = tpu.dynamic_rotate %92 by %c241_i32_35 dim 1 : vector<32x256xf32>, i32 -> vector<32x256xf32>
    %123 = vector.extract_strided_slice %43 {offsets = [15, 0], sizes = [1, 256], strides = [1, 1]} : vector<36x256xf32> to vector<1x256xf32>
    %124 = vector.broadcast %123 : vector<1x256xf32> to vector<32x256xf32>
    %125 = arith.mulf %124, %122 : vector<32x256xf32>
    %126 = arith.addf %121, %125 : vector<32x256xf32>
    %c240_i32_36 = arith.constant 240 : i32
    %127 = tpu.dynamic_rotate %92 by %c240_i32_36 dim 1 : vector<32x256xf32>, i32 -> vector<32x256xf32>
    %128 = vector.extract_strided_slice %43 {offsets = [16, 0], sizes = [1, 256], strides = [1, 1]} : vector<36x256xf32> to vector<1x256xf32>
    %129 = vector.broadcast %128 : vector<1x256xf32> to vector<32x256xf32>
    %130 = arith.mulf %129, %127 : vector<32x256xf32>
    %131 = arith.addf %126, %130 : vector<32x256xf32>
    %c239_i32_37 = arith.constant 239 : i32
    %132 = tpu.dynamic_rotate %92 by %c239_i32_37 dim 1 : vector<32x256xf32>, i32 -> vector<32x256xf32>
    %133 = vector.extract_strided_slice %43 {offsets = [17, 0], sizes = [1, 256], strides = [1, 1]} : vector<36x256xf32> to vector<1x256xf32>
    %134 = vector.broadcast %133 : vector<1x256xf32> to vector<32x256xf32>
    %135 = arith.mulf %134, %132 : vector<32x256xf32>
    %136 = arith.addf %131, %135 : vector<32x256xf32>
    %c64_38 = arith.constant 64 : index
    %c0_39 = arith.constant 0 : index
    %137 = vector.load %arg10[%c64_38, %c0_39] : memref<128x256xf32, #tpu.memory_space<vmem>>, vector<32x256xf32>
    %c17_i32_40 = arith.constant 17 : i32
    %138 = tpu.dynamic_rotate %137 by %c17_i32_40 dim 1 : vector<32x256xf32>, i32 -> vector<32x256xf32>
    %139 = vector.extract_strided_slice %43 {offsets = [18, 0], sizes = [1, 256], strides = [1, 1]} : vector<36x256xf32> to vector<1x256xf32>
    %140 = vector.broadcast %139 : vector<1x256xf32> to vector<32x256xf32>
    %141 = arith.mulf %140, %138 : vector<32x256xf32>
    %142 = arith.addf %136, %141 : vector<32x256xf32>
    %c16_i32_41 = arith.constant 16 : i32
    %143 = tpu.dynamic_rotate %137 by %c16_i32_41 dim 1 : vector<32x256xf32>, i32 -> vector<32x256xf32>
    %144 = vector.extract_strided_slice %43 {offsets = [19, 0], sizes = [1, 256], strides = [1, 1]} : vector<36x256xf32> to vector<1x256xf32>
    %145 = vector.broadcast %144 : vector<1x256xf32> to vector<32x256xf32>
    %146 = arith.mulf %145, %143 : vector<32x256xf32>
    %147 = arith.addf %142, %146 : vector<32x256xf32>
    %c15_i32_42 = arith.constant 15 : i32
    %148 = tpu.dynamic_rotate %137 by %c15_i32_42 dim 1 : vector<32x256xf32>, i32 -> vector<32x256xf32>
    %149 = vector.extract_strided_slice %43 {offsets = [20, 0], sizes = [1, 256], strides = [1, 1]} : vector<36x256xf32> to vector<1x256xf32>
    %150 = vector.broadcast %149 : vector<1x256xf32> to vector<32x256xf32>
    %151 = arith.mulf %150, %148 : vector<32x256xf32>
    %152 = arith.addf %147, %151 : vector<32x256xf32>
    %c1_i32_43 = arith.constant 1 : i32
    %153 = tpu.dynamic_rotate %137 by %c1_i32_43 dim 1 : vector<32x256xf32>, i32 -> vector<32x256xf32>
    %154 = vector.extract_strided_slice %43 {offsets = [21, 0], sizes = [1, 256], strides = [1, 1]} : vector<36x256xf32> to vector<1x256xf32>
    %155 = vector.broadcast %154 : vector<1x256xf32> to vector<32x256xf32>
    %156 = arith.mulf %155, %153 : vector<32x256xf32>
    %157 = arith.addf %152, %156 : vector<32x256xf32>
    %158 = vector.extract_strided_slice %43 {offsets = [22, 0], sizes = [1, 256], strides = [1, 1]} : vector<36x256xf32> to vector<1x256xf32>
    %159 = vector.broadcast %158 : vector<1x256xf32> to vector<32x256xf32>
    %160 = arith.mulf %159, %137 : vector<32x256xf32>
    %161 = arith.addf %157, %160 : vector<32x256xf32>
    %c255_i32_44 = arith.constant 255 : i32
    %162 = tpu.dynamic_rotate %137 by %c255_i32_44 dim 1 : vector<32x256xf32>, i32 -> vector<32x256xf32>
    %163 = vector.extract_strided_slice %43 {offsets = [23, 0], sizes = [1, 256], strides = [1, 1]} : vector<36x256xf32> to vector<1x256xf32>
    %164 = vector.broadcast %163 : vector<1x256xf32> to vector<32x256xf32>
    %165 = arith.mulf %164, %162 : vector<32x256xf32>
    %166 = arith.addf %161, %165 : vector<32x256xf32>
    %c241_i32_45 = arith.constant 241 : i32
    %167 = tpu.dynamic_rotate %137 by %c241_i32_45 dim 1 : vector<32x256xf32>, i32 -> vector<32x256xf32>
    %168 = vector.extract_strided_slice %43 {offsets = [24, 0], sizes = [1, 256], strides = [1, 1]} : vector<36x256xf32> to vector<1x256xf32>
    %169 = vector.broadcast %168 : vector<1x256xf32> to vector<32x256xf32>
    %170 = arith.mulf %169, %167 : vector<32x256xf32>
    %171 = arith.addf %166, %170 : vector<32x256xf32>
    %c240_i32_46 = arith.constant 240 : i32
    %172 = tpu.dynamic_rotate %137 by %c240_i32_46 dim 1 : vector<32x256xf32>, i32 -> vector<32x256xf32>
    %173 = vector.extract_strided_slice %43 {offsets = [25, 0], sizes = [1, 256], strides = [1, 1]} : vector<36x256xf32> to vector<1x256xf32>
    %174 = vector.broadcast %173 : vector<1x256xf32> to vector<32x256xf32>
    %175 = arith.mulf %174, %172 : vector<32x256xf32>
    %176 = arith.addf %171, %175 : vector<32x256xf32>
    %c239_i32_47 = arith.constant 239 : i32
    %177 = tpu.dynamic_rotate %137 by %c239_i32_47 dim 1 : vector<32x256xf32>, i32 -> vector<32x256xf32>
    %178 = vector.extract_strided_slice %43 {offsets = [26, 0], sizes = [1, 256], strides = [1, 1]} : vector<36x256xf32> to vector<1x256xf32>
    %179 = vector.broadcast %178 : vector<1x256xf32> to vector<32x256xf32>
    %180 = arith.mulf %179, %177 : vector<32x256xf32>
    %181 = arith.addf %176, %180 : vector<32x256xf32>
    %c96_48 = arith.constant 96 : index
    %c0_49 = arith.constant 0 : index
    %182 = vector.load %arg10[%c96_48, %c0_49] : memref<128x256xf32, #tpu.memory_space<vmem>>, vector<32x256xf32>
    %c17_i32_50 = arith.constant 17 : i32
    %183 = tpu.dynamic_rotate %182 by %c17_i32_50 dim 1 : vector<32x256xf32>, i32 -> vector<32x256xf32>
    %184 = vector.extract_strided_slice %43 {offsets = [27, 0], sizes = [1, 256], strides = [1, 1]} : vector<36x256xf32> to vector<1x256xf32>
    %185 = vector.broadcast %184 : vector<1x256xf32> to vector<32x256xf32>
    %186 = arith.mulf %185, %183 : vector<32x256xf32>
    %187 = arith.addf %181, %186 : vector<32x256xf32>
    %c16_i32_51 = arith.constant 16 : i32
    %188 = tpu.dynamic_rotate %182 by %c16_i32_51 dim 1 : vector<32x256xf32>, i32 -> vector<32x256xf32>
    %189 = vector.extract_strided_slice %43 {offsets = [28, 0], sizes = [1, 256], strides = [1, 1]} : vector<36x256xf32> to vector<1x256xf32>
    %190 = vector.broadcast %189 : vector<1x256xf32> to vector<32x256xf32>
    %191 = arith.mulf %190, %188 : vector<32x256xf32>
    %192 = arith.addf %187, %191 : vector<32x256xf32>
    %c15_i32_52 = arith.constant 15 : i32
    %193 = tpu.dynamic_rotate %182 by %c15_i32_52 dim 1 : vector<32x256xf32>, i32 -> vector<32x256xf32>
    %194 = vector.extract_strided_slice %43 {offsets = [29, 0], sizes = [1, 256], strides = [1, 1]} : vector<36x256xf32> to vector<1x256xf32>
    %195 = vector.broadcast %194 : vector<1x256xf32> to vector<32x256xf32>
    %196 = arith.mulf %195, %193 : vector<32x256xf32>
    %197 = arith.addf %192, %196 : vector<32x256xf32>
    %c1_i32_53 = arith.constant 1 : i32
    %198 = tpu.dynamic_rotate %182 by %c1_i32_53 dim 1 : vector<32x256xf32>, i32 -> vector<32x256xf32>
    %199 = vector.extract_strided_slice %43 {offsets = [30, 0], sizes = [1, 256], strides = [1, 1]} : vector<36x256xf32> to vector<1x256xf32>
    %200 = vector.broadcast %199 : vector<1x256xf32> to vector<32x256xf32>
    %201 = arith.mulf %200, %198 : vector<32x256xf32>
    %202 = arith.addf %197, %201 : vector<32x256xf32>
    %203 = vector.extract_strided_slice %43 {offsets = [31, 0], sizes = [1, 256], strides = [1, 1]} : vector<36x256xf32> to vector<1x256xf32>
    %204 = vector.broadcast %203 : vector<1x256xf32> to vector<32x256xf32>
    %205 = arith.mulf %204, %182 : vector<32x256xf32>
    %206 = arith.addf %202, %205 : vector<32x256xf32>
    %c255_i32_54 = arith.constant 255 : i32
    %207 = tpu.dynamic_rotate %182 by %c255_i32_54 dim 1 : vector<32x256xf32>, i32 -> vector<32x256xf32>
    %208 = vector.extract_strided_slice %43 {offsets = [32, 0], sizes = [1, 256], strides = [1, 1]} : vector<36x256xf32> to vector<1x256xf32>
    %209 = vector.broadcast %208 : vector<1x256xf32> to vector<32x256xf32>
    %210 = arith.mulf %209, %207 : vector<32x256xf32>
    %211 = arith.addf %206, %210 : vector<32x256xf32>
    %c241_i32_55 = arith.constant 241 : i32
    %212 = tpu.dynamic_rotate %182 by %c241_i32_55 dim 1 : vector<32x256xf32>, i32 -> vector<32x256xf32>
    %213 = vector.extract_strided_slice %43 {offsets = [33, 0], sizes = [1, 256], strides = [1, 1]} : vector<36x256xf32> to vector<1x256xf32>
    %214 = vector.broadcast %213 : vector<1x256xf32> to vector<32x256xf32>
    %215 = arith.mulf %214, %212 : vector<32x256xf32>
    %216 = arith.addf %211, %215 : vector<32x256xf32>
    %c240_i32_56 = arith.constant 240 : i32
    %217 = tpu.dynamic_rotate %182 by %c240_i32_56 dim 1 : vector<32x256xf32>, i32 -> vector<32x256xf32>
    %218 = vector.extract_strided_slice %43 {offsets = [34, 0], sizes = [1, 256], strides = [1, 1]} : vector<36x256xf32> to vector<1x256xf32>
    %219 = vector.broadcast %218 : vector<1x256xf32> to vector<32x256xf32>
    %220 = arith.mulf %219, %217 : vector<32x256xf32>
    %221 = arith.addf %216, %220 : vector<32x256xf32>
    %c239_i32_57 = arith.constant 239 : i32
    %222 = tpu.dynamic_rotate %182 by %c239_i32_57 dim 1 : vector<32x256xf32>, i32 -> vector<32x256xf32>
    %223 = vector.extract_strided_slice %43 {offsets = [35, 0], sizes = [1, 256], strides = [1, 1]} : vector<36x256xf32> to vector<1x256xf32>
    %224 = vector.broadcast %223 : vector<1x256xf32> to vector<32x256xf32>
    %225 = arith.mulf %224, %222 : vector<32x256xf32>
    %226 = arith.addf %221, %225 : vector<32x256xf32>
    %227 = arith.addf %40, %226 : vector<32x256xf32>
    %cst_58 = arith.constant dense<0.000000e+00> : vector<32xf32>
    %228 = vector.multi_reduction <add>, %227, %cst_58 [1] : vector<32x256xf32> to vector<32xf32>
    %229 = vector.shape_cast %228 : vector<32xf32> to vector<32x1xf32>
    %cst_59 = arith.constant 2.560000e+02 : f32
    %230 = vector.broadcast %cst_59 : f32 to vector<32x1xf32>
    %231 = arith.divf %229, %230 : vector<32x1xf32>
    %232 = vector.broadcast %231 : vector<32x1xf32> to vector<32x256xf32>
    %233 = arith.subf %227, %232 : vector<32x256xf32>
    %234 = arith.mulf %233, %233 : vector<32x256xf32>
    %cst_60 = arith.constant dense<0.000000e+00> : vector<32xf32>
    %235 = vector.multi_reduction <add>, %234, %cst_60 [1] : vector<32x256xf32> to vector<32xf32>
    %236 = vector.shape_cast %235 : vector<32xf32> to vector<32x1xf32>
    %cst_61 = arith.constant 2.560000e+02 : f32
    %237 = vector.broadcast %cst_61 : f32 to vector<32x1xf32>
    %238 = arith.divf %236, %237 : vector<32x1xf32>
    %cst_62 = arith.constant 9.99999974E-6 : f32
    %239 = vector.broadcast %cst_62 : f32 to vector<32x1xf32>
    %240 = arith.addf %238, %239 : vector<32x1xf32>
    %241 = math.rsqrt %240 : vector<32x1xf32>
    %242 = vector.broadcast %241 : vector<32x1xf32> to vector<32x256xf32>
    %243 = arith.mulf %233, %242 : vector<32x256xf32>
    %cst_63 = arith.constant 0.000000e+00 : f32
    %244 = vector.broadcast %cst_63 : f32 to vector<32x256xf32>
    %245 = arith.cmpf oge, %243, %244 : vector<32x256xf32>
    %cst_64 = arith.constant 2.000000e-01 : f32
    %246 = vector.broadcast %cst_64 : f32 to vector<32x256xf32>
    %247 = arith.mulf %246, %243 : vector<32x256xf32>
    %248 = arith.select %245, %243, %247 : vector<32x256xi1>, vector<32x256xf32>
    %c0_65 = arith.constant 0 : index
    %c0_66 = arith.constant 0 : index
    %249 = vector.load %arg6[%c0_65, %c0_66] : memref<208x32xf32, #tpu.memory_space<vmem>>, vector<208x32xf32>
    %c0_67 = arith.constant 0 : index
    %c0_68 = arith.constant 0 : index
    %250 = vector.load %arg7[%c0_67, %c0_68] : memref<208x1xf32, #tpu.memory_space<vmem>>, vector<208x1xf32>
    %c0_69 = arith.constant 0 : index
    %c0_70 = arith.constant 0 : index
    %251 = vector.load %arg8[%c0_69, %c0_70] : memref<37x16xf32, #tpu.memory_space<vmem>>, vector<37x16xf32>
    %cst_71 = arith.constant dense<0.000000e+00> : vector<208x256xf32>
    %252 = tpu.matmul %249, %248, %cst_71 {dimension_numbers = #tpu.dot_dimension_numbers<[1], [0], [0], [1], [0, 0, 1, 1], [], []>} : vector<208x32xf32>, vector<32x256xf32>, vector<208x256xf32> -> vector<208x256xf32>
    %253 = vector.broadcast %250 : vector<208x1xf32> to vector<208x256xf32>
    %254 = arith.addf %252, %253 : vector<208x256xf32>
    %255 = vector.extract_strided_slice %254 {offsets = [0, 0], sizes = [16, 256], strides = [1, 1]} : vector<208x256xf32> to vector<16x256xf32>
    %256 = vector.extract_strided_slice %254 {offsets = [16, 0], sizes = [64, 256], strides = [1, 1]} : vector<208x256xf32> to vector<64x256xf32>
    %257 = vector.extract_strided_slice %254 {offsets = [80, 0], sizes = [128, 256], strides = [1, 1]} : vector<208x256xf32> to vector<128x256xf32>
    %c0_72 = arith.constant 0 : index
    %c0_73 = arith.constant 0 : index
    %258 = vector.load %arg10[%c0_72, %c0_73] : memref<128x256xf32, #tpu.memory_space<vmem>>, vector<128x256xf32>
    tpu.vector_store %arg10[%c0_72, %c0_73], %257 {strides = array<i32>} : memref<128x256xf32, #tpu.memory_space<vmem>>, vector<128x256xf32>,
    %cst_74 = arith.constant dense<0xFF800000> : vector<64xf32>
    %259 = vector.multi_reduction <maximumf>, %256, %cst_74 [1] : vector<64x256xf32> to vector<64xf32>
    %260 = vector.shape_cast %259 : vector<64xf32> to vector<64x1xf32>
    %261 = vector.broadcast %260 : vector<64x1xf32> to vector<64x256xf32>
    %262 = arith.subf %256, %261 : vector<64x256xf32>
    %263 = math.exp %262 : vector<64x256xf32>
    %cst_75 = arith.constant dense<0.000000e+00> : vector<64xf32>
    %264 = vector.multi_reduction <add>, %263, %cst_75 [1] : vector<64x256xf32> to vector<64xf32>
    %265 = vector.shape_cast %264 : vector<64xf32> to vector<64x1xf32>
    %266 = tpu.reciprocal %265 {approx = true} : vector<64x1xf32> -> vector<64x1xf32>
    %267 = vector.broadcast %266 : vector<64x1xf32> to vector<64x256xf32>
    %268 = arith.mulf %263, %267 : vector<64x256xf32>
    %cst_76 = arith.constant 0.000000e+00 : f32
    %269 = vector.broadcast %cst_76 : f32 to vector<16x32xf32>
    %270 = vector.extract_strided_slice %268 {offsets = [0, 0], sizes = [16, 256], strides = [1, 1]} : vector<64x256xf32> to vector<16x256xf32>
    %c0_77 = arith.constant 0 : index
    %c0_78 = arith.constant 0 : index
    %271 = vector.load %arg10[%c0_77, %c0_78] : memref<128x256xf32, #tpu.memory_space<vmem>>, vector<32x256xf32>
    %cst_79 = arith.constant dense<0.000000e+00> : vector<16x32xf32>
    %272 = tpu.matmul %270, %271, %cst_79 {dimension_numbers = #tpu.dot_dimension_numbers<[1], [1], [0], [0], [0, 0, 1, 0], [], []>} : vector<16x256xf32>, vector<32x256xf32>, vector<16x32xf32> -> vector<16x32xf32>
    %273 = arith.addf %269, %272 : vector<16x32xf32>
    %274 = vector.extract_strided_slice %268 {offsets = [16, 0], sizes = [16, 256], strides = [1, 1]} : vector<64x256xf32> to vector<16x256xf32>
    %c32_80 = arith.constant 32 : index
    %c0_81 = arith.constant 0 : index
    %275 = vector.load %arg10[%c32_80, %c0_81] : memref<128x256xf32, #tpu.memory_space<vmem>>, vector<32x256xf32>
    %cst_82 = arith.constant dense<0.000000e+00> : vector<16x32xf32>
    %276 = tpu.matmul %274, %275, %cst_82 {dimension_numbers = #tpu.dot_dimension_numbers<[1], [1], [0], [0], [0, 0, 1, 0], [], []>} : vector<16x256xf32>, vector<32x256xf32>, vector<16x32xf32> -> vector<16x32xf32>
    %277 = arith.addf %273, %276 : vector<16x32xf32>
    %278 = vector.extract_strided_slice %268 {offsets = [32, 0], sizes = [16, 256], strides = [1, 1]} : vector<64x256xf32> to vector<16x256xf32>
    %c64_83 = arith.constant 64 : index
    %c0_84 = arith.constant 0 : index
    %279 = vector.load %arg10[%c64_83, %c0_84] : memref<128x256xf32, #tpu.memory_space<vmem>>, vector<32x256xf32>
    %cst_85 = arith.constant dense<0.000000e+00> : vector<16x32xf32>
    %280 = tpu.matmul %278, %279, %cst_85 {dimension_numbers = #tpu.dot_dimension_numbers<[1], [1], [0], [0], [0, 0, 1, 0], [], []>} : vector<16x256xf32>, vector<32x256xf32>, vector<16x32xf32> -> vector<16x32xf32>
    %281 = arith.addf %277, %280 : vector<16x32xf32>
    %282 = vector.extract_strided_slice %268 {offsets = [48, 0], sizes = [16, 256], strides = [1, 1]} : vector<64x256xf32> to vector<16x256xf32>
    %c96_86 = arith.constant 96 : index
    %c0_87 = arith.constant 0 : index
    %283 = vector.load %arg10[%c96_86, %c0_87] : memref<128x256xf32, #tpu.memory_space<vmem>>, vector<32x256xf32>
    %cst_88 = arith.constant dense<0.000000e+00> : vector<16x32xf32>
    %284 = tpu.matmul %282, %283, %cst_88 {dimension_numbers = #tpu.dot_dimension_numbers<[1], [1], [0], [0], [0, 0, 1, 0], [], []>} : vector<16x256xf32>, vector<32x256xf32>, vector<16x32xf32> -> vector<16x32xf32>
    %285 = arith.addf %281, %284 : vector<16x32xf32>
    %cst_89 = arith.constant dense<0.000000e+00> : vector<32x256xf32>
    %286 = tpu.matmul %285, %255, %cst_89 {dimension_numbers = #tpu.dot_dimension_numbers<[0], [0], [1], [1], [0, 1, 1, 1], [], []>} : vector<16x32xf32>, vector<16x256xf32>, vector<32x256xf32> -> vector<32x256xf32>
    %cst_90 = arith.constant dense<0.000000e+00> : vector<37x256xf32>
    %287 = tpu.matmul %251, %255, %cst_90 {dimension_numbers = #tpu.dot_dimension_numbers<[1], [0], [0], [1], [0, 0, 1, 1], [], []>} : vector<37x16xf32>, vector<16x256xf32>, vector<37x256xf32> -> vector<37x256xf32>
    %288 = vector.extract_strided_slice %287 {offsets = [0, 0], sizes = [36, 256], strides = [1, 1]} : vector<37x256xf32> to vector<36x256xf32>
    %289 = arith.mulf %288, %0 : vector<36x256xf32>
    %290 = vector.extract_strided_slice %287 {offsets = [36, 0], sizes = [1, 256], strides = [1, 1]} : vector<37x256xf32> to vector<1x256xf32>
    %291 = vector.shape_cast %290 : vector<1x256xf32> to vector<1x256xf32>
    %292 = vector.broadcast %291 : vector<1x256xf32> to vector<32x256xf32>
    %c0_91 = arith.constant 0 : index
    %c0_92 = arith.constant 0 : index
    %293 = vector.load %arg10[%c0_91, %c0_92] : memref<128x256xf32, #tpu.memory_space<vmem>>, vector<32x256xf32>
    %c17_i32_93 = arith.constant 17 : i32
    %294 = tpu.dynamic_rotate %293 by %c17_i32_93 dim 1 : vector<32x256xf32>, i32 -> vector<32x256xf32>
    %295 = vector.extract_strided_slice %289 {offsets = [0, 0], sizes = [1, 256], strides = [1, 1]} : vector<36x256xf32> to vector<1x256xf32>
    %296 = vector.broadcast %295 : vector<1x256xf32> to vector<32x256xf32>
    %297 = arith.mulf %296, %294 : vector<32x256xf32>
    %298 = arith.addf %292, %297 : vector<32x256xf32>
    %c16_i32_94 = arith.constant 16 : i32
    %299 = tpu.dynamic_rotate %293 by %c16_i32_94 dim 1 : vector<32x256xf32>, i32 -> vector<32x256xf32>
    %300 = vector.extract_strided_slice %289 {offsets = [1, 0], sizes = [1, 256], strides = [1, 1]} : vector<36x256xf32> to vector<1x256xf32>
    %301 = vector.broadcast %300 : vector<1x256xf32> to vector<32x256xf32>
    %302 = arith.mulf %301, %299 : vector<32x256xf32>
    %303 = arith.addf %298, %302 : vector<32x256xf32>
    %c15_i32_95 = arith.constant 15 : i32
    %304 = tpu.dynamic_rotate %293 by %c15_i32_95 dim 1 : vector<32x256xf32>, i32 -> vector<32x256xf32>
    %305 = vector.extract_strided_slice %289 {offsets = [2, 0], sizes = [1, 256], strides = [1, 1]} : vector<36x256xf32> to vector<1x256xf32>
    %306 = vector.broadcast %305 : vector<1x256xf32> to vector<32x256xf32>
    %307 = arith.mulf %306, %304 : vector<32x256xf32>
    %308 = arith.addf %303, %307 : vector<32x256xf32>
    %c1_i32_96 = arith.constant 1 : i32
    %309 = tpu.dynamic_rotate %293 by %c1_i32_96 dim 1 : vector<32x256xf32>, i32 -> vector<32x256xf32>
    %310 = vector.extract_strided_slice %289 {offsets = [3, 0], sizes = [1, 256], strides = [1, 1]} : vector<36x256xf32> to vector<1x256xf32>
    %311 = vector.broadcast %310 : vector<1x256xf32> to vector<32x256xf32>
    %312 = arith.mulf %311, %309 : vector<32x256xf32>
    %313 = arith.addf %308, %312 : vector<32x256xf32>
    %314 = vector.extract_strided_slice %289 {offsets = [4, 0], sizes = [1, 256], strides = [1, 1]} : vector<36x256xf32> to vector<1x256xf32>
    %315 = vector.broadcast %314 : vector<1x256xf32> to vector<32x256xf32>
    %316 = arith.mulf %315, %293 : vector<32x256xf32>
    %317 = arith.addf %313, %316 : vector<32x256xf32>
    %c255_i32_97 = arith.constant 255 : i32
    %318 = tpu.dynamic_rotate %293 by %c255_i32_97 dim 1 : vector<32x256xf32>, i32 -> vector<32x256xf32>
    %319 = vector.extract_strided_slice %289 {offsets = [5, 0], sizes = [1, 256], strides = [1, 1]} : vector<36x256xf32> to vector<1x256xf32>
    %320 = vector.broadcast %319 : vector<1x256xf32> to vector<32x256xf32>
    %321 = arith.mulf %320, %318 : vector<32x256xf32>
    %322 = arith.addf %317, %321 : vector<32x256xf32>
    %c241_i32_98 = arith.constant 241 : i32
    %323 = tpu.dynamic_rotate %293 by %c241_i32_98 dim 1 : vector<32x256xf32>, i32 -> vector<32x256xf32>
    %324 = vector.extract_strided_slice %289 {offsets = [6, 0], sizes = [1, 256], strides = [1, 1]} : vector<36x256xf32> to vector<1x256xf32>
    %325 = vector.broadcast %324 : vector<1x256xf32> to vector<32x256xf32>
    %326 = arith.mulf %325, %323 : vector<32x256xf32>
    %327 = arith.addf %322, %326 : vector<32x256xf32>
    %c240_i32_99 = arith.constant 240 : i32
    %328 = tpu.dynamic_rotate %293 by %c240_i32_99 dim 1 : vector<32x256xf32>, i32 -> vector<32x256xf32>
    %329 = vector.extract_strided_slice %289 {offsets = [7, 0], sizes = [1, 256], strides = [1, 1]} : vector<36x256xf32> to vector<1x256xf32>
    %330 = vector.broadcast %329 : vector<1x256xf32> to vector<32x256xf32>
    %331 = arith.mulf %330, %328 : vector<32x256xf32>
    %332 = arith.addf %327, %331 : vector<32x256xf32>
    %c239_i32_100 = arith.constant 239 : i32
    %333 = tpu.dynamic_rotate %293 by %c239_i32_100 dim 1 : vector<32x256xf32>, i32 -> vector<32x256xf32>
    %334 = vector.extract_strided_slice %289 {offsets = [8, 0], sizes = [1, 256], strides = [1, 1]} : vector<36x256xf32> to vector<1x256xf32>
    %335 = vector.broadcast %334 : vector<1x256xf32> to vector<32x256xf32>
    %336 = arith.mulf %335, %333 : vector<32x256xf32>
    %337 = arith.addf %332, %336 : vector<32x256xf32>
    %c32_101 = arith.constant 32 : index
    %c0_102 = arith.constant 0 : index
    %338 = vector.load %arg10[%c32_101, %c0_102] : memref<128x256xf32, #tpu.memory_space<vmem>>, vector<32x256xf32>
    %c17_i32_103 = arith.constant 17 : i32
    %339 = tpu.dynamic_rotate %338 by %c17_i32_103 dim 1 : vector<32x256xf32>, i32 -> vector<32x256xf32>
    %340 = vector.extract_strided_slice %289 {offsets = [9, 0], sizes = [1, 256], strides = [1, 1]} : vector<36x256xf32> to vector<1x256xf32>
    %341 = vector.broadcast %340 : vector<1x256xf32> to vector<32x256xf32>
    %342 = arith.mulf %341, %339 : vector<32x256xf32>
    %343 = arith.addf %337, %342 : vector<32x256xf32>
    %c16_i32_104 = arith.constant 16 : i32
    %344 = tpu.dynamic_rotate %338 by %c16_i32_104 dim 1 : vector<32x256xf32>, i32 -> vector<32x256xf32>
    %345 = vector.extract_strided_slice %289 {offsets = [10, 0], sizes = [1, 256], strides = [1, 1]} : vector<36x256xf32> to vector<1x256xf32>
    %346 = vector.broadcast %345 : vector<1x256xf32> to vector<32x256xf32>
    %347 = arith.mulf %346, %344 : vector<32x256xf32>
    %348 = arith.addf %343, %347 : vector<32x256xf32>
    %c15_i32_105 = arith.constant 15 : i32
    %349 = tpu.dynamic_rotate %338 by %c15_i32_105 dim 1 : vector<32x256xf32>, i32 -> vector<32x256xf32>
    %350 = vector.extract_strided_slice %289 {offsets = [11, 0], sizes = [1, 256], strides = [1, 1]} : vector<36x256xf32> to vector<1x256xf32>
    %351 = vector.broadcast %350 : vector<1x256xf32> to vector<32x256xf32>
    %352 = arith.mulf %351, %349 : vector<32x256xf32>
    %353 = arith.addf %348, %352 : vector<32x256xf32>
    %c1_i32_106 = arith.constant 1 : i32
    %354 = tpu.dynamic_rotate %338 by %c1_i32_106 dim 1 : vector<32x256xf32>, i32 -> vector<32x256xf32>
    %355 = vector.extract_strided_slice %289 {offsets = [12, 0], sizes = [1, 256], strides = [1, 1]} : vector<36x256xf32> to vector<1x256xf32>
    %356 = vector.broadcast %355 : vector<1x256xf32> to vector<32x256xf32>
    %357 = arith.mulf %356, %354 : vector<32x256xf32>
    %358 = arith.addf %353, %357 : vector<32x256xf32>
    %359 = vector.extract_strided_slice %289 {offsets = [13, 0], sizes = [1, 256], strides = [1, 1]} : vector<36x256xf32> to vector<1x256xf32>
    %360 = vector.broadcast %359 : vector<1x256xf32> to vector<32x256xf32>
    %361 = arith.mulf %360, %338 : vector<32x256xf32>
    %362 = arith.addf %358, %361 : vector<32x256xf32>
    %c255_i32_107 = arith.constant 255 : i32
    %363 = tpu.dynamic_rotate %338 by %c255_i32_107 dim 1 : vector<32x256xf32>, i32 -> vector<32x256xf32>
    %364 = vector.extract_strided_slice %289 {offsets = [14, 0], sizes = [1, 256], strides = [1, 1]} : vector<36x256xf32> to vector<1x256xf32>
    %365 = vector.broadcast %364 : vector<1x256xf32> to vector<32x256xf32>
    %366 = arith.mulf %365, %363 : vector<32x256xf32>
    %367 = arith.addf %362, %366 : vector<32x256xf32>
    %c241_i32_108 = arith.constant 241 : i32
    %368 = tpu.dynamic_rotate %338 by %c241_i32_108 dim 1 : vector<32x256xf32>, i32 -> vector<32x256xf32>
    %369 = vector.extract_strided_slice %289 {offsets = [15, 0], sizes = [1, 256], strides = [1, 1]} : vector<36x256xf32> to vector<1x256xf32>
    %370 = vector.broadcast %369 : vector<1x256xf32> to vector<32x256xf32>
    %371 = arith.mulf %370, %368 : vector<32x256xf32>
    %372 = arith.addf %367, %371 : vector<32x256xf32>
    %c240_i32_109 = arith.constant 240 : i32
    %373 = tpu.dynamic_rotate %338 by %c240_i32_109 dim 1 : vector<32x256xf32>, i32 -> vector<32x256xf32>
    %374 = vector.extract_strided_slice %289 {offsets = [16, 0], sizes = [1, 256], strides = [1, 1]} : vector<36x256xf32> to vector<1x256xf32>
    %375 = vector.broadcast %374 : vector<1x256xf32> to vector<32x256xf32>
    %376 = arith.mulf %375, %373 : vector<32x256xf32>
    %377 = arith.addf %372, %376 : vector<32x256xf32>
    %c239_i32_110 = arith.constant 239 : i32
    %378 = tpu.dynamic_rotate %338 by %c239_i32_110 dim 1 : vector<32x256xf32>, i32 -> vector<32x256xf32>
    %379 = vector.extract_strided_slice %289 {offsets = [17, 0], sizes = [1, 256], strides = [1, 1]} : vector<36x256xf32> to vector<1x256xf32>
    %380 = vector.broadcast %379 : vector<1x256xf32> to vector<32x256xf32>
    %381 = arith.mulf %380, %378 : vector<32x256xf32>
    %382 = arith.addf %377, %381 : vector<32x256xf32>
    %c64_111 = arith.constant 64 : index
    %c0_112 = arith.constant 0 : index
    %383 = vector.load %arg10[%c64_111, %c0_112] : memref<128x256xf32, #tpu.memory_space<vmem>>, vector<32x256xf32>
    %c17_i32_113 = arith.constant 17 : i32
    %384 = tpu.dynamic_rotate %383 by %c17_i32_113 dim 1 : vector<32x256xf32>, i32 -> vector<32x256xf32>
    %385 = vector.extract_strided_slice %289 {offsets = [18, 0], sizes = [1, 256], strides = [1, 1]} : vector<36x256xf32> to vector<1x256xf32>
    %386 = vector.broadcast %385 : vector<1x256xf32> to vector<32x256xf32>
    %387 = arith.mulf %386, %384 : vector<32x256xf32>
    %388 = arith.addf %382, %387 : vector<32x256xf32>
    %c16_i32_114 = arith.constant 16 : i32
    %389 = tpu.dynamic_rotate %383 by %c16_i32_114 dim 1 : vector<32x256xf32>, i32 -> vector<32x256xf32>
    %390 = vector.extract_strided_slice %289 {offsets = [19, 0], sizes = [1, 256], strides = [1, 1]} : vector<36x256xf32> to vector<1x256xf32>
    %391 = vector.broadcast %390 : vector<1x256xf32> to vector<32x256xf32>
    %392 = arith.mulf %391, %389 : vector<32x256xf32>
    %393 = arith.addf %388, %392 : vector<32x256xf32>
    %c15_i32_115 = arith.constant 15 : i32
    %394 = tpu.dynamic_rotate %383 by %c15_i32_115 dim 1 : vector<32x256xf32>, i32 -> vector<32x256xf32>
    %395 = vector.extract_strided_slice %289 {offsets = [20, 0], sizes = [1, 256], strides = [1, 1]} : vector<36x256xf32> to vector<1x256xf32>
    %396 = vector.broadcast %395 : vector<1x256xf32> to vector<32x256xf32>
    %397 = arith.mulf %396, %394 : vector<32x256xf32>
    %398 = arith.addf %393, %397 : vector<32x256xf32>
    %c1_i32_116 = arith.constant 1 : i32
    %399 = tpu.dynamic_rotate %383 by %c1_i32_116 dim 1 : vector<32x256xf32>, i32 -> vector<32x256xf32>
    %400 = vector.extract_strided_slice %289 {offsets = [21, 0], sizes = [1, 256], strides = [1, 1]} : vector<36x256xf32> to vector<1x256xf32>
    %401 = vector.broadcast %400 : vector<1x256xf32> to vector<32x256xf32>
    %402 = arith.mulf %401, %399 : vector<32x256xf32>
    %403 = arith.addf %398, %402 : vector<32x256xf32>
    %404 = vector.extract_strided_slice %289 {offsets = [22, 0], sizes = [1, 256], strides = [1, 1]} : vector<36x256xf32> to vector<1x256xf32>
    %405 = vector.broadcast %404 : vector<1x256xf32> to vector<32x256xf32>
    %406 = arith.mulf %405, %383 : vector<32x256xf32>
    %407 = arith.addf %403, %406 : vector<32x256xf32>
    %c255_i32_117 = arith.constant 255 : i32
    %408 = tpu.dynamic_rotate %383 by %c255_i32_117 dim 1 : vector<32x256xf32>, i32 -> vector<32x256xf32>
    %409 = vector.extract_strided_slice %289 {offsets = [23, 0], sizes = [1, 256], strides = [1, 1]} : vector<36x256xf32> to vector<1x256xf32>
    %410 = vector.broadcast %409 : vector<1x256xf32> to vector<32x256xf32>
    %411 = arith.mulf %410, %408 : vector<32x256xf32>
    %412 = arith.addf %407, %411 : vector<32x256xf32>
    %c241_i32_118 = arith.constant 241 : i32
    %413 = tpu.dynamic_rotate %383 by %c241_i32_118 dim 1 : vector<32x256xf32>, i32 -> vector<32x256xf32>
    %414 = vector.extract_strided_slice %289 {offsets = [24, 0], sizes = [1, 256], strides = [1, 1]} : vector<36x256xf32> to vector<1x256xf32>
    %415 = vector.broadcast %414 : vector<1x256xf32> to vector<32x256xf32>
    %416 = arith.mulf %415, %413 : vector<32x256xf32>
    %417 = arith.addf %412, %416 : vector<32x256xf32>
    %c240_i32_119 = arith.constant 240 : i32
    %418 = tpu.dynamic_rotate %383 by %c240_i32_119 dim 1 : vector<32x256xf32>, i32 -> vector<32x256xf32>
    %419 = vector.extract_strided_slice %289 {offsets = [25, 0], sizes = [1, 256], strides = [1, 1]} : vector<36x256xf32> to vector<1x256xf32>
    %420 = vector.broadcast %419 : vector<1x256xf32> to vector<32x256xf32>
    %421 = arith.mulf %420, %418 : vector<32x256xf32>
    %422 = arith.addf %417, %421 : vector<32x256xf32>
    %c239_i32_120 = arith.constant 239 : i32
    %423 = tpu.dynamic_rotate %383 by %c239_i32_120 dim 1 : vector<32x256xf32>, i32 -> vector<32x256xf32>
    %424 = vector.extract_strided_slice %289 {offsets = [26, 0], sizes = [1, 256], strides = [1, 1]} : vector<36x256xf32> to vector<1x256xf32>
    %425 = vector.broadcast %424 : vector<1x256xf32> to vector<32x256xf32>
    %426 = arith.mulf %425, %423 : vector<32x256xf32>
    %427 = arith.addf %422, %426 : vector<32x256xf32>
    %c96_121 = arith.constant 96 : index
    %c0_122 = arith.constant 0 : index
    %428 = vector.load %arg10[%c96_121, %c0_122] : memref<128x256xf32, #tpu.memory_space<vmem>>, vector<32x256xf32>
    %c17_i32_123 = arith.constant 17 : i32
    %429 = tpu.dynamic_rotate %428 by %c17_i32_123 dim 1 : vector<32x256xf32>, i32 -> vector<32x256xf32>
    %430 = vector.extract_strided_slice %289 {offsets = [27, 0], sizes = [1, 256], strides = [1, 1]} : vector<36x256xf32> to vector<1x256xf32>
    %431 = vector.broadcast %430 : vector<1x256xf32> to vector<32x256xf32>
    %432 = arith.mulf %431, %429 : vector<32x256xf32>
    %433 = arith.addf %427, %432 : vector<32x256xf32>
    %c16_i32_124 = arith.constant 16 : i32
    %434 = tpu.dynamic_rotate %428 by %c16_i32_124 dim 1 : vector<32x256xf32>, i32 -> vector<32x256xf32>
    %435 = vector.extract_strided_slice %289 {offsets = [28, 0], sizes = [1, 256], strides = [1, 1]} : vector<36x256xf32> to vector<1x256xf32>
    %436 = vector.broadcast %435 : vector<1x256xf32> to vector<32x256xf32>
    %437 = arith.mulf %436, %434 : vector<32x256xf32>
    %438 = arith.addf %433, %437 : vector<32x256xf32>
    %c15_i32_125 = arith.constant 15 : i32
    %439 = tpu.dynamic_rotate %428 by %c15_i32_125 dim 1 : vector<32x256xf32>, i32 -> vector<32x256xf32>
    %440 = vector.extract_strided_slice %289 {offsets = [29, 0], sizes = [1, 256], strides = [1, 1]} : vector<36x256xf32> to vector<1x256xf32>
    %441 = vector.broadcast %440 : vector<1x256xf32> to vector<32x256xf32>
    %442 = arith.mulf %441, %439 : vector<32x256xf32>
    %443 = arith.addf %438, %442 : vector<32x256xf32>
    %c1_i32_126 = arith.constant 1 : i32
    %444 = tpu.dynamic_rotate %428 by %c1_i32_126 dim 1 : vector<32x256xf32>, i32 -> vector<32x256xf32>
    %445 = vector.extract_strided_slice %289 {offsets = [30, 0], sizes = [1, 256], strides = [1, 1]} : vector<36x256xf32> to vector<1x256xf32>
    %446 = vector.broadcast %445 : vector<1x256xf32> to vector<32x256xf32>
    %447 = arith.mulf %446, %444 : vector<32x256xf32>
    %448 = arith.addf %443, %447 : vector<32x256xf32>
    %449 = vector.extract_strided_slice %289 {offsets = [31, 0], sizes = [1, 256], strides = [1, 1]} : vector<36x256xf32> to vector<1x256xf32>
    %450 = vector.broadcast %449 : vector<1x256xf32> to vector<32x256xf32>
    %451 = arith.mulf %450, %428 : vector<32x256xf32>
    %452 = arith.addf %448, %451 : vector<32x256xf32>
    %c255_i32_127 = arith.constant 255 : i32
    %453 = tpu.dynamic_rotate %428 by %c255_i32_127 dim 1 : vector<32x256xf32>, i32 -> vector<32x256xf32>
    %454 = vector.extract_strided_slice %289 {offsets = [32, 0], sizes = [1, 256], strides = [1, 1]} : vector<36x256xf32> to vector<1x256xf32>
    %455 = vector.broadcast %454 : vector<1x256xf32> to vector<32x256xf32>
    %456 = arith.mulf %455, %453 : vector<32x256xf32>
    %457 = arith.addf %452, %456 : vector<32x256xf32>
    %c241_i32_128 = arith.constant 241 : i32
    %458 = tpu.dynamic_rotate %428 by %c241_i32_128 dim 1 : vector<32x256xf32>, i32 -> vector<32x256xf32>
    %459 = vector.extract_strided_slice %289 {offsets = [33, 0], sizes = [1, 256], strides = [1, 1]} : vector<36x256xf32> to vector<1x256xf32>
    %460 = vector.broadcast %459 : vector<1x256xf32> to vector<32x256xf32>
    %461 = arith.mulf %460, %458 : vector<32x256xf32>
    %462 = arith.addf %457, %461 : vector<32x256xf32>
    %c240_i32_129 = arith.constant 240 : i32
    %463 = tpu.dynamic_rotate %428 by %c240_i32_129 dim 1 : vector<32x256xf32>, i32 -> vector<32x256xf32>
    %464 = vector.extract_strided_slice %289 {offsets = [34, 0], sizes = [1, 256], strides = [1, 1]} : vector<36x256xf32> to vector<1x256xf32>
    %465 = vector.broadcast %464 : vector<1x256xf32> to vector<32x256xf32>
    %466 = arith.mulf %465, %463 : vector<32x256xf32>
    %467 = arith.addf %462, %466 : vector<32x256xf32>
    %c239_i32_130 = arith.constant 239 : i32
    %468 = tpu.dynamic_rotate %428 by %c239_i32_130 dim 1 : vector<32x256xf32>, i32 -> vector<32x256xf32>
    %469 = vector.extract_strided_slice %289 {offsets = [35, 0], sizes = [1, 256], strides = [1, 1]} : vector<36x256xf32> to vector<1x256xf32>
    %470 = vector.broadcast %469 : vector<1x256xf32> to vector<32x256xf32>
    %471 = arith.mulf %470, %468 : vector<32x256xf32>
    %472 = arith.addf %467, %471 : vector<32x256xf32>
    %473 = arith.addf %286, %472 : vector<32x256xf32>
    %cst_131 = arith.constant dense<0.000000e+00> : vector<32xf32>
    %474 = vector.multi_reduction <add>, %473, %cst_131 [1] : vector<32x256xf32> to vector<32xf32>
    %475 = vector.shape_cast %474 : vector<32xf32> to vector<32x1xf32>
    %cst_132 = arith.constant 2.560000e+02 : f32
    %476 = vector.broadcast %cst_132 : f32 to vector<32x1xf32>
    %477 = arith.divf %475, %476 : vector<32x1xf32>
    %478 = vector.broadcast %477 : vector<32x1xf32> to vector<32x256xf32>
    %479 = arith.subf %473, %478 : vector<32x256xf32>
    %480 = arith.mulf %479, %479 : vector<32x256xf32>
    %cst_133 = arith.constant dense<0.000000e+00> : vector<32xf32>
    %481 = vector.multi_reduction <add>, %480, %cst_133 [1] : vector<32x256xf32> to vector<32xf32>
    %482 = vector.shape_cast %481 : vector<32xf32> to vector<32x1xf32>
    %cst_134 = arith.constant 2.560000e+02 : f32
    %483 = vector.broadcast %cst_134 : f32 to vector<32x1xf32>
    %484 = arith.divf %482, %483 : vector<32x1xf32>
    %cst_135 = arith.constant 9.99999974E-6 : f32
    %485 = vector.broadcast %cst_135 : f32 to vector<32x1xf32>
    %486 = arith.addf %484, %485 : vector<32x1xf32>
    %487 = math.rsqrt %486 : vector<32x1xf32>
    %488 = vector.broadcast %487 : vector<32x1xf32> to vector<32x256xf32>
    %489 = arith.mulf %479, %488 : vector<32x256xf32>
    %cst_136 = arith.constant 0.000000e+00 : f32
    %490 = vector.broadcast %cst_136 : f32 to vector<32x256xf32>
    %491 = arith.cmpf oge, %489, %490 : vector<32x256xf32>
    %cst_137 = arith.constant 2.000000e-01 : f32
    %492 = vector.broadcast %cst_137 : f32 to vector<32x256xf32>
    %493 = arith.mulf %492, %489 : vector<32x256xf32>
    %494 = arith.select %491, %489, %493 : vector<32x256xi1>, vector<32x256xf32>
    %c0_138 = arith.constant 0 : index
    %c0_139 = arith.constant 0 : index
    %c0_140 = arith.constant 0 : index
    %495 = vector.load %arg9[%c0_138, %c0_139, %c0_140] : memref<1x32x256xf32, #tpu.memory_space<vmem>>, vector<1x32x256xf32>
    %496 = vector.shape_cast %495 : vector<1x32x256xf32> to vector<32x256xf32>
    %497 = vector.shape_cast %494 : vector<32x256xf32> to vector<1x32x256xf32>
    tpu.vector_store %arg9[%c0_138, %c0_139, %c0_140], %497 {strides = array<i32>} : memref<1x32x256xf32, #tpu.memory_space<vmem>>, vector<1x32x256xf32>,
    return
  }
  func.func @transform_0(%arg0: i32) -> (i32, i32, i32) {
    %c0_i32 = arith.constant 0 : i32
    %c0_i32_0 = arith.constant 0 : i32
    %c0_i32_1 = arith.constant 0 : i32
    return %arg0, %c0_i32, %c0_i32_0 : i32, i32, i32
  }
  func.func @transform_1(%arg0: i32) -> (i32, i32) {
    %c0_i32 = arith.constant 0 : i32
    %c0_i32_0 = arith.constant 0 : i32
    %c0_i32_1 = arith.constant 0 : i32
    return %c0_i32, %c0_i32_0 : i32, i32
  }
  func.func @transform_2(%arg0: i32) -> (i32, i32) {
    %c0_i32 = arith.constant 0 : i32
    %c0_i32_0 = arith.constant 0 : i32
    %c0_i32_1 = arith.constant 0 : i32
    return %c0_i32, %c0_i32_0 : i32, i32
  }
  func.func @transform_3(%arg0: i32) -> (i32, i32) {
    %c0_i32 = arith.constant 0 : i32
    %c0_i32_0 = arith.constant 0 : i32
    %c0_i32_1 = arith.constant 0 : i32
    return %c0_i32, %c0_i32_0 : i32, i32
  }
  func.func @transform_4(%arg0: i32) -> (i32, i32) {
    %c0_i32 = arith.constant 0 : i32
    %c0_i32_0 = arith.constant 0 : i32
    %c0_i32_1 = arith.constant 0 : i32
    return %c0_i32, %c0_i32_0 : i32, i32
  }
  func.func @transform_5(%arg0: i32) -> (i32, i32) {
    %c0_i32 = arith.constant 0 : i32
    %c0_i32_0 = arith.constant 0 : i32
    %c0_i32_1 = arith.constant 0 : i32
    return %c0_i32, %c0_i32_0 : i32, i32
  }
  func.func @transform_6(%arg0: i32) -> (i32, i32) {
    %c0_i32 = arith.constant 0 : i32
    %c0_i32_0 = arith.constant 0 : i32
    %c0_i32_1 = arith.constant 0 : i32
    return %c0_i32, %c0_i32_0 : i32, i32
  }
  func.func @transform_7(%arg0: i32) -> (i32, i32) {
    %c0_i32 = arith.constant 0 : i32
    %c0_i32_0 = arith.constant 0 : i32
    %c0_i32_1 = arith.constant 0 : i32
    return %c0_i32, %c0_i32_0 : i32, i32
  }
  func.func @transform_8(%arg0: i32) -> (i32, i32, i32) {
    %c0_i32 = arith.constant 0 : i32
    %c0_i32_0 = arith.constant 0 : i32
    %c0_i32_1 = arith.constant 0 : i32
    return %arg0, %c0_i32, %c0_i32_0 : i32, i32, i32
  }
}

</mosaic_0001>

<llo_original>
// kernel: tpu_custom_call.1
$region0: #{tpu_custom_call.1}
  #allocation0 [shape = 'u32[]', space=smem, size = 0x4, offset = 0x4, fixed_abs, tag = 'smem constant byte address 0x4 - core index']
  #allocation1 [shape = 'u32[144,128]{1,0:T(1,128)}', space=vmem, size = 0x12000, scoped, tag = 'internal scratch']
  #allocation2 [shape = 'f32[128,256]{1,0:T(8,128)}', space=vmem, size = 0x20000, scoped, tag = 'scratch operand']
  %s0 = inlined_call_operand.hbm [shape: f32[2,4,256], index: 0, kind: input, shape index: {}]
  %s1 = inlined_call_operand.hbm [shape: f32[36,256], index: 1, kind: input, shape index: {}]
  %s2 = inlined_call_operand.hbm [shape: f32[208,4], index: 2, kind: input, shape index: {}]
  %s3 = inlined_call_operand.hbm [shape: f32[208,1], index: 3, kind: input, shape index: {}]
  %s4 = inlined_call_operand.hbm [shape: f32[37,16], index: 4, kind: input, shape index: {}]
  %s5 = inlined_call_operand.hbm [shape: f32[208,32], index: 5, kind: input, shape index: {}]
  %s6 = inlined_call_operand.hbm [shape: f32[208,1], index: 6, kind: input, shape index: {}]
  %s7 = inlined_call_operand.hbm [shape: f32[37,16], index: 7, kind: input, shape index: {}]
  %s8 = inlined_call_operand.hbm [shape: f32[2,32,256], index: 8, kind: output, shape index: {}]
  %s9 = sld [smem:[#allocation0]]
  $region97: #{tpu_custom_call.1} parent=0
    _
  %s11 = ssub.s32 1, %s9
  %s12 = scalar_select 0, %s11, %s9
  $region1: #{tpu_custom_call.1} parent=0
    #allocation3 [shape = 'u8[8192]{0}', space=vmem, size = 0x2000, scoped, tag = 'input window, operand 0']
    #allocation4 [shape = 's32[2]{0}', space=sflag, size = 0x8, scoped, tag = 'scoped memory for tpu_custom_call.1']
    #allocation5 [shape = 's32[2]{0}', space=sflag, size = 0x8, scoped, tag = 'scoped memory for tpu_custom_call.1']
    #allocation6 [shape = 'u8[40960]{0}', space=vmem, size = 0xa000, scoped, tag = 'input window, operand 1, single buffered']
    #allocation7 [shape = 's32[1]{0}', space=sflag, size = 0x4, scoped, tag = 'scoped memory for tpu_custom_call.1']
    #allocation8 [shape = 'u8[106496]{0}', space=vmem, size = 0x1a000, scoped, tag = 'input window, operand 2, single buffered']
    #allocation9 [shape = 'u8[106496]{0}', space=vmem, size = 0x1a000, scoped, tag = 'input window, operand 3, single buffered']
    #allocation10 [shape = 's32[1]{0}', space=sflag, size = 0x4, scoped, tag = 'scoped memory for tpu_custom_call.1']
    #allocation11 [shape = 'u8[20480]{0}', space=vmem, size = 0x5000, scoped, tag = 'input window, operand 4, single buffered']
    #allocation12 [shape = 'u8[106496]{0}', space=vmem, size = 0x1a000, scoped, tag = 'input window, operand 5, single buffered']
    #allocation13 [shape = 's32[1]{0}', space=sflag, size = 0x4, scoped, tag = 'scoped memory for tpu_custom_call.1']
    #allocation14 [shape = 'u8[106496]{0}', space=vmem, size = 0x1a000, scoped, tag = 'input window, operand 6, single buffered']
    #allocation15 [shape = 'u8[20480]{0}', space=vmem, size = 0x5000, scoped, tag = 'input window, operand 7, single buffered']
    #allocation16 [shape = 's32[1]{0}', space=sflag, size = 0x4, scoped, tag = 'scoped memory for tpu_custom_call.1']
    #allocation17 [shape = 'u8[65536]{0}', space=vmem, size = 0x10000, scoped, tag = 'output window, operand 0']
    %13 = vsyncpa [#allocation4], 0
    %s14 = scalar_lea.sflag [#allocation4], 1
    %15 = vsyncpa %s14, 0
    %16 = vsyncpa [#allocation7], 0
    %17 = vsyncpa [#allocation10], 0
    %18 = vsyncpa [#allocation13], 0
    %19 = vsyncpa [#allocation16], 0
    %20 = vsyncpa [#allocation5], 0
    %s21 = scalar_lea.sflag [#allocation5], 1
    %22 = vsyncpa %s21, 0
    loop: start=0, step=1, limit=4
    $region2: #{tpu_custom_call.1} parent=1 // loop_pre_header
      _
    $region3: #{tpu_custom_call.1} parent=1 // loop_header
      %s24 = sphi 0, %s28
      %p25 = scmp.ge.s32.totalorder %s24, 4
      %s34 = sphi 0, %s36
      %s37 = sphi 0, %s34
      %s38 = sphi 0, %s37
      %s54 = sphi 0, %s38
      %s58 = sphi 0, %s58
      %s60 = sphi 0, %s58
      %s61 = sphi 0, %s60
      %s75 = sphi 0, %s61
      %s79 = sphi 0, %s79
      %s81 = sphi 0, %s79
      %s82 = sphi 0, %s81
      %s96 = sphi 0, %s82
      %s100 = sphi 0, %s100
      %s102 = sphi 0, %s100
      %s103 = sphi 0, %s102
      %s117 = sphi 0, %s103
      %s121 = sphi 0, %s121
      %s123 = sphi 0, %s121
      %s124 = sphi 0, %s123
      %s138 = sphi 0, %s124
      %s142 = sphi 0, %s142
      %s144 = sphi 0, %s142
      %s145 = sphi 0, %s144
      %s159 = sphi 0, %s145
      %s163 = sphi 0, %s163
      %s165 = sphi 0, %s163
      %s166 = sphi 0, %s165
      %s180 = sphi 0, %s166
      %s184 = sphi 0, %s184
      %s186 = sphi 0, %s184
      %s187 = sphi 0, %s186
      %s201 = sphi 0, %s187
      %s207 = sphi 0, %s209
      %s210 = sphi 0, %s207
      %s211 = sphi 0, %s210
      %s227 = sphi 0, %s211
    $region4: #{tpu_custom_call.1} parent=1 // loop_header_branch
      %27 = sbr.rel (%p25) target = $region8
    $region5: #{tpu_custom_call.1} parent=1 // loop_body
      %s29 = ssub.s32 %s24, 1
      %s30 = ssub.s32 %s24, 2
      %s31 = sadd.s32 %s24, 1
      %s32 = ssub.s32 %s24, %s31
      %p33 = scmp.eq.s32.totalorder %s32, 0
      %s35 = sadd.s32 %s34, 1
      %s36 = scalar_select %p33, %s34, %s35
      %p39 = pneg %p33
      %p40 = scmp.eq.s32.totalorder %s24, 1
      %p41 = por %p39, %p40
      %p42 = scmp.ne.s32.totalorder %s34, %s37
      %p43 = scmp.eq.s32.totalorder %s24, 0
      %p44 = por %p42, %p43
      %p45 = scmp.ne.s32.totalorder %s34, %s37
      %p46 = scmp.eq.s32.totalorder %s29, 1
      %p47 = por %p45, %p46
      %p48 = scmp.ne.s32.totalorder %s37, %s38
      %p49 = scmp.eq.s32.totalorder %s29, 0
      %p50 = por %p48, %p49
      %p51 = scmp.ne.s32.totalorder %s37, %s38
      %p52 = scmp.eq.s32.totalorder %s30, 1
      %p53 = por %p51, %p52
      %p55 = scmp.ne.s32.totalorder %s38, %s54
      %p56 = scmp.eq.s32.totalorder %s30, 0
      %p57 = por %p55, %p56
      %s59 = sadd.s32 %s58, 1
      %p62 = scmp.eq.s32.totalorder %s24, 1
      %p63 = scmp.ne.s32.totalorder %s58, %s60
      %p64 = scmp.eq.s32.totalorder %s24, 0
      %p65 = por %p63, %p64
      %p66 = scmp.ne.s32.totalorder %s58, %s60
      %p67 = scmp.eq.s32.totalorder %s29, 1
      %p68 = por %p66, %p67
      %p69 = scmp.ne.s32.totalorder %s60, %s61
      %p70 = scmp.eq.s32.totalorder %s29, 0
      %p71 = por %p69, %p70
      %p72 = scmp.ne.s32.totalorder %s60, %s61
      %p73 = scmp.eq.s32.totalorder %s30, 1
      %p74 = por %p72, %p73
      %p76 = scmp.ne.s32.totalorder %s61, %s75
      %p77 = scmp.eq.s32.totalorder %s30, 0
      %p78 = por %p76, %p77
      %s80 = sadd.s32 %s79, 1
      %p83 = scmp.eq.s32.totalorder %s24, 1
      %p84 = scmp.ne.s32.totalorder %s79, %s81
      %p85 = scmp.eq.s32.totalorder %s24, 0
      %p86 = por %p84, %p85
      %p87 = scmp.ne.s32.totalorder %s79, %s81
      %p88 = scmp.eq.s32.totalorder %s29, 1
      %p89 = por %p87, %p88
      %p90 = scmp.ne.s32.totalorder %s81, %s82
      %p91 = scmp.eq.s32.totalorder %s29, 0
      %p92 = por %p90, %p91
      %p93 = scmp.ne.s32.totalorder %s81, %s82
      %p94 = scmp.eq.s32.totalorder %s30, 1
      %p95 = por %p93, %p94
      %p97 = scmp.ne.s32.totalorder %s82, %s96
      %p98 = scmp.eq.s32.totalorder %s30, 0
      %p99 = por %p97, %p98
      %s101 = sadd.s32 %s100, 1
      %p104 = scmp.eq.s32.totalorder %s24, 1
      %p105 = scmp.ne.s32.totalorder %s100, %s102
      %p106 = scmp.eq.s32.totalorder %s24, 0
      %p107 = por %p105, %p106
      %p108 = scmp.ne.s32.totalorder %s100, %s102
      %p109 = scmp.eq.s32.totalorder %s29, 1
      %p110 = por %p108, %p109
      %p111 = scmp.ne.s32.totalorder %s102, %s103
      %p112 = scmp.eq.s32.totalorder %s29, 0
      %p113 = por %p111, %p112
      %p114 = scmp.ne.s32.totalorder %s102, %s103
      %p115 = scmp.eq.s32.totalorder %s30, 1
      %p116 = por %p114, %p115
      %p118 = scmp.ne.s32.totalorder %s103, %s117
      %p119 = scmp.eq.s32.totalorder %s30, 0
      %p120 = por %p118, %p119
      %s122 = sadd.s32 %s121, 1
      %p125 = scmp.eq.s32.totalorder %s24, 1
      %p126 = scmp.ne.s32.totalorder %s121, %s123
      %p127 = scmp.eq.s32.totalorder %s24, 0
      %p128 = por %p126, %p127
      %p129 = scmp.ne.s32.totalorder %s121, %s123
      %p130 = scmp.eq.s32.totalorder %s29, 1
      %p131 = por %p129, %p130
      %p132 = scmp.ne.s32.totalorder %s123, %s124
      %p133 = scmp.eq.s32.totalorder %s29, 0
      %p134 = por %p132, %p133
      %p135 = scmp.ne.s32.totalorder %s123, %s124
      %p136 = scmp.eq.s32.totalorder %s30, 1
      %p137 = por %p135, %p136
      %p139 = scmp.ne.s32.totalorder %s124, %s138
      %p140 = scmp.eq.s32.totalorder %s30, 0
      %p141 = por %p139, %p140
      %s143 = sadd.s32 %s142, 1
      %p146 = scmp.eq.s32.totalorder %s24, 1
      %p147 = scmp.ne.s32.totalorder %s142, %s144
      %p148 = scmp.eq.s32.totalorder %s24, 0
      %p149 = por %p147, %p148
      %p150 = scmp.ne.s32.totalorder %s142, %s144
      %p151 = scmp.eq.s32.totalorder %s29, 1
      %p152 = por %p150, %p151
      %p153 = scmp.ne.s32.totalorder %s144, %s145
      %p154 = scmp.eq.s32.totalorder %s29, 0
      %p155 = por %p153, %p154
      %p156 = scmp.ne.s32.totalorder %s144, %s145
      %p157 = scmp.eq.s32.totalorder %s30, 1
      %p158 = por %p156, %p157
      %p160 = scmp.ne.s32.totalorder %s145, %s159
      %p161 = scmp.eq.s32.totalorder %s30, 0
      %p162 = por %p160, %p161
      %s164 = sadd.s32 %s163, 1
      %p167 = scmp.eq.s32.totalorder %s24, 1
      %p168 = scmp.ne.s32.totalorder %s163, %s165
      %p169 = scmp.eq.s32.totalorder %s24, 0
      %p170 = por %p168, %p169
      %p171 = scmp.ne.s32.totalorder %s163, %s165
      %p172 = scmp.eq.s32.totalorder %s29, 1
      %p173 = por %p171, %p172
      %p174 = scmp.ne.s32.totalorder %s165, %s166
      %p175 = scmp.eq.s32.totalorder %s29, 0
      %p176 = por %p174, %p175
      %p177 = scmp.ne.s32.totalorder %s165, %s166
      %p178 = scmp.eq.s32.totalorder %s30, 1
      %p179 = por %p177, %p178
      %p181 = scmp.ne.s32.totalorder %s166, %s180
      %p182 = scmp.eq.s32.totalorder %s30, 0
      %p183 = por %p181, %p182
      %s185 = sadd.s32 %s184, 1
      %p188 = scmp.eq.s32.totalorder %s24, 1
      %p189 = scmp.ne.s32.totalorder %s184, %s186
      %p190 = scmp.eq.s32.totalorder %s24, 0
      %p191 = por %p189, %p190
      %p192 = scmp.ne.s32.totalorder %s184, %s186
      %p193 = scmp.eq.s32.totalorder %s29, 1
      %p194 = por %p192, %p193
      %p195 = scmp.ne.s32.totalorder %s186, %s187
      %p196 = scmp.eq.s32.totalorder %s29, 0
      %p197 = por %p195, %p196
      %p198 = scmp.ne.s32.totalorder %s186, %s187
      %p199 = scmp.eq.s32.totalorder %s30, 1
      %p200 = por %p198, %p199
      %p202 = scmp.ne.s32.totalorder %s187, %s201
      %p203 = scmp.eq.s32.totalorder %s30, 0
      %p204 = por %p202, %p203
      %s205 = ssub.s32 %s24, %s31
      %p206 = scmp.eq.s32.totalorder %s205, 0
      %s208 = sadd.s32 %s207, 1
      %s209 = scalar_select %p206, %s207, %s208
      %p212 = pneg %p206
      %p213 = scmp.eq.s32.totalorder %s24, 1
      %p214 = por %p212, %p213
      %p215 = scmp.ne.s32.totalorder %s207, %s210
      %p216 = scmp.eq.s32.totalorder %s24, 0
      %p217 = por %p215, %p216
      %p218 = scmp.ne.s32.totalorder %s207, %s210
      %p219 = scmp.eq.s32.totalorder %s29, 1
      %p220 = por %p218, %p219
      %p221 = scmp.ne.s32.totalorder %s210, %s211
      %p222 = scmp.eq.s32.totalorder %s29, 0
      %p223 = por %p221, %p222
      %p224 = scmp.ne.s32.totalorder %s210, %s211
      %p225 = scmp.eq.s32.totalorder %s30, 1
      %p226 = por %p224, %p225
      %p228 = scmp.ne.s32.totalorder %s211, %s227
      %p229 = scmp.eq.s32.totalorder %s30, 0
      %p230 = por %p228, %p229
      %p231 = scmp.le.s32.totalorder 1, %s24
      %p232 = scmp.lt.s32.totalorder %s24, 3
      %p233 = pnand %p231, %p232
      %p234 = pneg %p233
      // Predicated region
      $region9: #{tpu_custom_call.1} parent=5 // pred_check
        _
      $region10: #{tpu_custom_call.1} parent=5 // pred_check_branch
        %236 = sbr.rel (%p233) target = $region12
      $region11: #{tpu_custom_call.1} parent=5 // pred_region
        %s237 = ssub.s32 %s24, 1
        // Predicated region
        $region13: #{tpu_custom_call.1} parent=11 // pred_check
          %p238 = pneg %p71
        $region14: #{tpu_custom_call.1} parent=11 // pred_check_branch
          %240 = sbr.rel (%p238) target = $region16
        $region15: #{tpu_custom_call.1} parent=11 // pred_region
          %s242 = ssub.s32 1280, 1280
          %243 = vsyncadd [#allocation7], %s242
          %s244 = sshll.u32 [#allocation6], 4
          %s245 = int_to_ptr.vmem [resolvable:$true] %s244
          %250 = dma.hbm_to_vmem [thread:$0]  %s1, 1280, %s245, [#allocation7], 256, 256, 16
        $region16: #{tpu_custom_call.1} parent=11 // pred_fallthru
          _
        // Predicated region
        $region17: #{tpu_custom_call.1} parent=11 // pred_check
          %p251 = pneg %p92
        $region18: #{tpu_custom_call.1} parent=11 // pred_check_branch
          %253 = sbr.rel (%p251) target = $region20
        $region19: #{tpu_custom_call.1} parent=11 // pred_region
          %s255 = ssub.s32 3328, 3328
          %256 = vsyncadd [#allocation7], %s255
          %s257 = sshll.u32 [#allocation8], 4
          %s258 = int_to_ptr.vmem [resolvable:$true] %s257
          %263 = dma.hbm_to_vmem [thread:$0]  %s2, 3328, %s258, [#allocation7], 128, 128, 8
        $region20: #{tpu_custom_call.1} parent=11 // pred_fallthru
          _
        // Predicated region
        $region21: #{tpu_custom_call.1} parent=11 // pred_check
          %p264 = pneg %p113
        $region22: #{tpu_custom_call.1} parent=11 // pred_check_branch
          %266 = sbr.rel (%p264) target = $region24
        $region23: #{tpu_custom_call.1} parent=11 // pred_region
          %s268 = ssub.s32 3328, 3328
          %269 = vsyncadd [#allocation10], %s268
          %s270 = sshll.u32 [#allocation9], 4
          %s271 = int_to_ptr.vmem [resolvable:$true] %s270
          %276 = dma.hbm_to_vmem [thread:$0]  %s3, 3328, %s271, [#allocation10], 128, 128, 8
        $region24: #{tpu_custom_call.1} parent=11 // pred_fallthru
          _
        // Predicated region
        $region25: #{tpu_custom_call.1} parent=11 // pred_check
          %p277 = pneg %p134
        $region26: #{tpu_custom_call.1} parent=11 // pred_check_branch
          %279 = sbr.rel (%p277) target = $region28
        $region27: #{tpu_custom_call.1} parent=11 // pred_region
          %s281 = ssub.s32 640, 640
          %282 = vsyncadd [#allocation10], %s281
          %s283 = sshll.u32 [#allocation11], 4
          %s284 = int_to_ptr.vmem [resolvable:$true] %s283
          %289 = dma.hbm_to_vmem [thread:$0]  %s4, 640, %s284, [#allocation10], 128, 128, 8
        $region28: #{tpu_custom_call.1} parent=11 // pred_fallthru
          _
        // Predicated region
        $region29: #{tpu_custom_call.1} parent=11 // pred_check
          %p290 = pneg %p155
        $region30: #{tpu_custom_call.1} parent=11 // pred_check_branch
          %292 = sbr.rel (%p290) target = $region32
        $region31: #{tpu_custom_call.1} parent=11 // pred_region
          %s294 = ssub.s32 3328, 3328
          %295 = vsyncadd [#allocation13], %s294
          %s296 = sshll.u32 [#allocation12], 4
          %s297 = int_to_ptr.vmem [resolvable:$true] %s296
          %302 = dma.hbm_to_vmem [thread:$0]  %s5, 3328, %s297, [#allocation13], 128, 128, 8
        $region32: #{tpu_custom_call.1} parent=11 // pred_fallthru
          _
        // Predicated region
        $region33: #{tpu_custom_call.1} parent=11 // pred_check
          %p303 = pneg %p176
        $region34: #{tpu_custom_call.1} parent=11 // pred_check_branch
          %305 = sbr.rel (%p303) target = $region36
        $region35: #{tpu_custom_call.1} parent=11 // pred_region
          %s307 = ssub.s32 3328, 3328
          %308 = vsyncadd [#allocation13], %s307
          %s309 = sshll.u32 [#allocation14], 4
          %s310 = int_to_ptr.vmem [resolvable:$true] %s309
          %315 = dma.hbm_to_vmem [thread:$0]  %s6, 3328, %s310, [#allocation13], 128, 128, 8
        $region36: #{tpu_custom_call.1} parent=11 // pred_fallthru
          _
        // Predicated region
        $region37: #{tpu_custom_call.1} parent=11 // pred_check
          %p316 = pneg %p197
        $region38: #{tpu_custom_call.1} parent=11 // pred_check_branch
          %318 = sbr.rel (%p316) target = $region40
        $region39: #{tpu_custom_call.1} parent=11 // pred_region
          %s320 = ssub.s32 640, 640
          %321 = vsyncadd [#allocation16], %s320
          %s322 = sshll.u32 [#allocation15], 4
          %s323 = int_to_ptr.vmem [resolvable:$true] %s322
          %328 = dma.hbm_to_vmem [thread:$0]  %s7, 640, %s323, [#allocation16], 128, 128, 8
        $region40: #{tpu_custom_call.1} parent=11 // pred_fallthru
          _
      $region12: #{tpu_custom_call.1} parent=5 // pred_fallthru
        _
      %p329 = scmp.lt.s32.totalorder %s24, 2
      // Predicated region
      $region41: #{tpu_custom_call.1} parent=5 // pred_check
        %p330 = pneg %p329
      $region42: #{tpu_custom_call.1} parent=5 // pred_check_branch
        %332 = sbr.rel (%p330) target = $region44
      $region43: #{tpu_custom_call.1} parent=5 // pred_region
        // Predicated region
        $region45: #{tpu_custom_call.1} parent=43 // pred_check
          %p333 = pneg %p44
        $region46: #{tpu_custom_call.1} parent=43 // pred_check_branch
          %335 = sbr.rel (%p333) target = $region48
        $region47: #{tpu_custom_call.1} parent=43 // pred_region
          %s336 = sand.u32 %s34, 1
          %s337 = scalar_lea.sflag [#allocation4], %s336
          %s338 = sand.u32 %s34, 1
          %s339 = smul.addr %s338, 8
          %s340 = scalar_lea.vmem [#allocation3], %s339
          %s342 = ssub.s32 128, 128
          %343 = vsyncadd %s337, %s342
          %s344 = smul.addr %s24, 2
          %s345 = smul.addr %s344, 64
          %s346 = scalar_lea.hbm %s0, %s345
          %s348 = sshll.u32 %s340, 4
          %s349 = int_to_ptr.vmem [resolvable:$true] %s348
          %351 = dma.hbm_to_vmem [thread:$0]  %s346, 128, %s349, %s337
        $region48: #{tpu_custom_call.1} parent=43 // pred_fallthru
          _
      $region44: #{tpu_custom_call.1} parent=5 // pred_fallthru
        _
      %p352 = scmp.le.s32.totalorder 1, %s24
      %p353 = scmp.lt.s32.totalorder %s24, 3
      %p354 = pnand %p352, %p353
      %p355 = pneg %p354
      // Predicated region
      $region49: #{tpu_custom_call.1} parent=5 // pred_check
        _
      $region50: #{tpu_custom_call.1} parent=5 // pred_check_branch
        %357 = sbr.rel (%p354) target = $region52
      $region51: #{tpu_custom_call.1} parent=5 // pred_region
        %s358 = ssub.s32 %s24, 1
        %s359 = sand.u32 %s37, 1
        %s360 = scalar_lea.sflag [#allocation4], %s359
        %s361 = sand.u32 %s37, 1
        %s362 = smul.addr %s361, 8
        %s363 = scalar_lea.vmem [#allocation3], %s362
        // Predicated region
        $region53: #{tpu_custom_call.1} parent=51 // pred_check
          %p364 = pneg %p50
        $region54: #{tpu_custom_call.1} parent=51 // pred_check_branch
          %366 = sbr.rel (%p364) target = $region56
        $region55: #{tpu_custom_call.1} parent=51 // pred_region
          %367 = dma.done %s360, 128
        $region56: #{tpu_custom_call.1} parent=51 // pred_fallthru
          _
        // Predicated region
        $region57: #{tpu_custom_call.1} parent=51 // pred_check
          %p368 = pneg %p71
        $region58: #{tpu_custom_call.1} parent=51 // pred_check_branch
          %370 = sbr.rel (%p368) target = $region60
        $region59: #{tpu_custom_call.1} parent=51 // pred_region
          %371 = dma.done [#allocation7], 1280
        $region60: #{tpu_custom_call.1} parent=51 // pred_fallthru
          _
        // Predicated region
        $region61: #{tpu_custom_call.1} parent=51 // pred_check
          %p372 = pneg %p92
        $region62: #{tpu_custom_call.1} parent=51 // pred_check_branch
          %374 = sbr.rel (%p372) target = $region64
        $region63: #{tpu_custom_call.1} parent=51 // pred_region
          %375 = dma.done [#allocation7], 3328
        $region64: #{tpu_custom_call.1} parent=51 // pred_fallthru
          _
        // Predicated region
        $region65: #{tpu_custom_call.1} parent=51 // pred_check
          %p376 = pneg %p113
        $region66: #{tpu_custom_call.1} parent=51 // pred_check_branch
          %378 = sbr.rel (%p376) target = $region68
        $region67: #{tpu_custom_call.1} parent=51 // pred_region
          %379 = dma.done [#allocation10], 3328
        $region68: #{tpu_custom_call.1} parent=51 // pred_fallthru
          _
        // Predicated region
        $region69: #{tpu_custom_call.1} parent=51 // pred_check
          %p380 = pneg %p134
        $region70: #{tpu_custom_call.1} parent=51 // pred_check_branch
          %382 = sbr.rel (%p380) target = $region72
        $region71: #{tpu_custom_call.1} parent=51 // pred_region
          %383 = dma.done [#allocation10], 640
        $region72: #{tpu_custom_call.1} parent=51 // pred_fallthru
          _
        // Predicated region
        $region73: #{tpu_custom_call.1} parent=51 // pred_check
          %p384 = pneg %p155
        $region74: #{tpu_custom_call.1} parent=51 // pred_check_branch
          %386 = sbr.rel (%p384) target = $region76
        $region75: #{tpu_custom_call.1} parent=51 // pred_region
          %387 = dma.done [#allocation13], 3328
        $region76: #{tpu_custom_call.1} parent=51 // pred_fallthru
          _
        // Predicated region
        $region77: #{tpu_custom_call.1} parent=51 // pred_check
          %p388 = pneg %p176
        $region78: #{tpu_custom_call.1} parent=51 // pred_check_branch
          %390 = sbr.rel (%p388) target = $region80
        $region79: #{tpu_custom_call.1} parent=51 // pred_region
          %391 = dma.done [#allocation13], 3328
        $region80: #{tpu_custom_call.1} parent=51 // pred_fallthru
          _
        // Predicated region
        $region81: #{tpu_custom_call.1} parent=51 // pred_check
          %p392 = pneg %p197
        $region82: #{tpu_custom_call.1} parent=51 // pred_check_branch
          %394 = sbr.rel (%p392) target = $region84
        $region83: #{tpu_custom_call.1} parent=51 // pred_region
          %395 = dma.done [#allocation16], 640
        $region84: #{tpu_custom_call.1} parent=51 // pred_fallthru
          _
        %s396 = sand.u32 %s37, 1
        %s397 = scalar_lea.sflag [#allocation4], %s396
        %s398 = sand.u32 %s37, 1
        %s399 = smul.addr %s398, 8
        %s400 = scalar_lea.vmem [#allocation3], %s399
        %p401 = pneg %p50
        %p402 = pneg %p47
        %p403 = pneg %p71
        %p404 = pneg %p68
        %p405 = pneg %p92
        %p406 = pneg %p89
        %p407 = pneg %p113
        %p408 = pneg %p110
        %p409 = pneg %p134
        %p410 = pneg %p131
        %p411 = pneg %p155
        %p412 = pneg %p152
        %p413 = pneg %p176
        %p414 = pneg %p173
        %p415 = pneg %p197
        %p416 = pneg %p194
        %p417 = pneg %p223
        %p418 = pneg %p220
        %s419 = sand.u32 %s210, 1
        %s420 = scalar_lea.sflag [#allocation5], %s419
        %s421 = sand.u32 %s210, 1
        %s422 = smul.addr %s421, 64
        %s423 = scalar_lea.vmem [#allocation17], %s422
        %v424 = vld [vmem:[#allocation6] sm:$0xff]
        %v425 = vld [vmem:[#allocation6 + $0x8] sm:$0xff]
        %v426 = vld [vmem:[#allocation6 + $0x10] sm:$0xff]
        %v427 = vld [vmem:[#allocation6 + $0x18] sm:$0xff]
        %v428 = vld [vmem:[#allocation6 + $0x20] sm:$0xff]
        %v429 = vld [vmem:[#allocation6 + $0x28] sm:$0xff]
        %v430 = vld [vmem:[#allocation6 + $0x30] sm:$0xff]
        %v431 = vld [vmem:[#allocation6 + $0x38] sm:$0xff]
        %v432 = vld [vmem:[#allocation6 + $0x40] sm:$0xf]
        %v433 = vld [vmem:[#allocation6 + $0x48] sm:$0xf]
        %v434 = vld [vmem:[%s363] sm:$0xff]
        %v435 = vld [vmem:[#allocation8] sm:$0xff]
        %v436 = vld [vmem:[#allocation8 + $0x8] sm:$0xff]
        %v437 = vld [vmem:[#allocation8 + $0x10] sm:$0xff]
        %v438 = vld [vmem:[#allocation8 + $0x18] sm:$0xff]
        %v439 = vld [vmem:[#allocation8 + $0x20] sm:$0xff]
        %v440 = vld [vmem:[#allocation8 + $0x28] sm:$0xff]
        %v441 = vld [vmem:[#allocation8 + $0x30] sm:$0xff]
        %v442 = vld [vmem:[#allocation8 + $0x38] sm:$0xff]
        %v443 = vld [vmem:[#allocation8 + $0x40] sm:$0xff]
        %v444 = vld [vmem:[#allocation8 + $0x48] sm:$0xff]
        %v445 = vld [vmem:[#allocation8 + $0x50] sm:$0xff]
        %v446 = vld [vmem:[#allocation8 + $0x58] sm:$0xff]
        %v447 = vld [vmem:[#allocation8 + $0x60] sm:$0xff]
        %v448 = vld [vmem:[#allocation8 + $0x68] sm:$0xff]
        %v449 = vld [vmem:[#allocation8 + $0x70] sm:$0xff]
        %v450 = vld [vmem:[#allocation8 + $0x78] sm:$0xff]
        %v451 = vld [vmem:[#allocation8 + $0x80] sm:$0xff]
        %v452 = vld [vmem:[#allocation8 + $0x88] sm:$0xff]
        %v453 = vld [vmem:[#allocation8 + $0x90] sm:$0xff]
        %v454 = vld [vmem:[#allocation8 + $0x98] sm:$0xff]
        %v455 = vld [vmem:[#allocation8 + $0xa0] sm:$0xff]
        %v456 = vld [vmem:[#allocation8 + $0xa8] sm:$0xff]
        %v457 = vld [vmem:[#allocation8 + $0xb0] sm:$0xff]
        %v458 = vld [vmem:[#allocation8 + $0xb8] sm:$0xff]
        %v459 = vld [vmem:[#allocation8 + $0xc0] sm:$0xff]
        %v460 = vld [vmem:[#allocation8 + $0xc8] sm:$0xff]
        %v461 = vld [vmem:[#allocation9] sm:$0xff]
        %v462 = vld [vmem:[#allocation9 + $0x8] sm:$0xff]
        %v463 = vld [vmem:[#allocation9 + $0x10] sm:$0xff]
        %v464 = vld [vmem:[#allocation9 + $0x18] sm:$0xff]
        %v465 = vld [vmem:[#allocation9 + $0x20] sm:$0xff]
        %v466 = vld [vmem:[#allocation9 + $0x28] sm:$0xff]
        %v467 = vld [vmem:[#allocation9 + $0x30] sm:$0xff]
        %v468 = vld [vmem:[#allocation9 + $0x38] sm:$0xff]
        %v469 = vld [vmem:[#allocation9 + $0x40] sm:$0xff]
        %v470 = vld [vmem:[#allocation9 + $0x48] sm:$0xff]
        %v471 = vld [vmem:[#allocation9 + $0x50] sm:$0xff]
        %v472 = vld [vmem:[#allocation9 + $0x58] sm:$0xff]
        %v473 = vld [vmem:[#allocation9 + $0x60] sm:$0xff]
        %v474 = vld [vmem:[#allocation9 + $0x68] sm:$0xff]
        %v475 = vld [vmem:[#allocation9 + $0x70] sm:$0xff]
        %v476 = vld [vmem:[#allocation9 + $0x78] sm:$0xff]
        %v477 = vld [vmem:[#allocation9 + $0x80] sm:$0xff]
        %v478 = vld [vmem:[#allocation9 + $0x88] sm:$0xff]
        %v479 = vld [vmem:[#allocation9 + $0x90] sm:$0xff]
        %v480 = vld [vmem:[#allocation9 + $0x98] sm:$0xff]
        %v481 = vld [vmem:[#allocation9 + $0xa0] sm:$0xff]
        %v482 = vld [vmem:[#allocation9 + $0xa8] sm:$0xff]
        %v483 = vld [vmem:[#allocation9 + $0xb0] sm:$0xff]
        %v484 = vld [vmem:[#allocation9 + $0xb8] sm:$0xff]
        %v485 = vld [vmem:[#allocation9 + $0xc0] sm:$0xff]
        %v486 = vld [vmem:[#allocation9 + $0xc8] sm:$0xff]
        %v487 = vld [vmem:[#allocation11] sm:$0xff]
        %v488 = vld [vmem:[#allocation11 + $0x8] sm:$0xff]
        %v489 = vld [vmem:[#allocation11 + $0x10] sm:$0xff]
        %v490 = vld [vmem:[#allocation11 + $0x18] sm:$0xff]
        %v491 = vld [vmem:[#allocation11 + $0x20] sm:$0x1f]
        %493 = vset.pattern.permute.xlu0 0
        %494 = vperm.xlu0 %493, %v461
        %v495 = vpop.permute.xlu0 %494
        %498 = vset.pattern.permute.xlu0 0
        %499 = vperm.xlu0 %498, %v462
        %v500 = vpop.permute.xlu0 %499
        %503 = vset.pattern.permute.xlu0 0
        %504 = vperm.xlu0 %503, %v463
        %v505 = vpop.permute.xlu0 %504
        %508 = vset.pattern.permute.xlu0 0
        %509 = vperm.xlu0 %508, %v464
        %v510 = vpop.permute.xlu0 %509
        %513 = vset.pattern.permute.xlu0 0
        %514 = vperm.xlu0 %513, %v465
        %v515 = vpop.permute.xlu0 %514
        %518 = vset.pattern.permute.xlu0 0
        %519 = vperm.xlu0 %518, %v466
        %v520 = vpop.permute.xlu0 %519
        %523 = vset.pattern.permute.xlu0 0
        %524 = vperm.xlu0 %523, %v467
        %v525 = vpop.permute.xlu0 %524
        %528 = vset.pattern.permute.xlu0 0
        %529 = vperm.xlu0 %528, %v468
        %v530 = vpop.permute.xlu0 %529
        %533 = vset.pattern.permute.xlu0 0
        %534 = vperm.xlu0 %533, %v469
        %v535 = vpop.permute.xlu0 %534
        %538 = vset.pattern.permute.xlu0 0
        %539 = vperm.xlu0 %538, %v470
        %v540 = vpop.permute.xlu0 %539
        %543 = vset.pattern.permute.xlu0 0
        %544 = vperm.xlu0 %543, %v471
        %v545 = vpop.permute.xlu0 %544
        %548 = vset.pattern.permute.xlu0 0
        %549 = vperm.xlu0 %548, %v472
        %v550 = vpop.permute.xlu0 %549
        %553 = vset.pattern.permute.xlu0 0
        %554 = vperm.xlu0 %553, %v473
        %v555 = vpop.permute.xlu0 %554
        %558 = vset.pattern.permute.xlu0 0
        %559 = vperm.xlu0 %558, %v474
        %v560 = vpop.permute.xlu0 %559
        %563 = vset.pattern.permute.xlu0 0
        %564 = vperm.xlu0 %563, %v475
        %v565 = vpop.permute.xlu0 %564
        %568 = vset.pattern.permute.xlu0 0
        %569 = vperm.xlu0 %568, %v476
        %v570 = vpop.permute.xlu0 %569
        %573 = vset.pattern.permute.xlu0 0
        %574 = vperm.xlu0 %573, %v477
        %v575 = vpop.permute.xlu0 %574
        %578 = vset.pattern.permute.xlu0 0
        %579 = vperm.xlu0 %578, %v478
        %v580 = vpop.permute.xlu0 %579
        %583 = vset.pattern.permute.xlu0 0
        %584 = vperm.xlu0 %583, %v479
        %v585 = vpop.permute.xlu0 %584
        %588 = vset.pattern.permute.xlu0 0
        %589 = vperm.xlu0 %588, %v480
        %v590 = vpop.permute.xlu0 %589
        %593 = vset.pattern.permute.xlu0 0
        %594 = vperm.xlu0 %593, %v481
        %v595 = vpop.permute.xlu0 %594
        %598 = vset.pattern.permute.xlu0 0
        %599 = vperm.xlu0 %598, %v482
        %v600 = vpop.permute.xlu0 %599
        %603 = vset.pattern.permute.xlu0 0
        %604 = vperm.xlu0 %603, %v483
        %v605 = vpop.permute.xlu0 %604
        %608 = vset.pattern.permute.xlu0 0
        %609 = vperm.xlu0 %608, %v484
        %v610 = vpop.permute.xlu0 %609
        %613 = vset.pattern.permute.xlu0 0
        %614 = vperm.xlu0 %613, %v485
        %v615 = vpop.permute.xlu0 %614
        %618 = vset.pattern.permute.xlu0 0
        %619 = vperm.xlu0 %618, %v486
        %v620 = vpop.permute.xlu0 %619
        %v623 = vcombine.high %v434, %v434
        %vm624 = vcmask 31744
        %v626 = vsel %vm624, %v435, 0
        %v629 = vsel %vm624, %v436, 0
        %v632 = vsel %vm624, %v437, 0
        %v635 = vsel %vm624, %v438, 0
        %v638 = vsel %vm624, %v439, 0
        %v641 = vsel %vm624, %v440, 0
        %v644 = vsel %vm624, %v441, 0
        %v647 = vsel %vm624, %v442, 0
        %v650 = vsel %vm624, %v443, 0
        %v653 = vsel %vm624, %v444, 0
        %v656 = vsel %vm624, %v445, 0
        %v659 = vsel %vm624, %v446, 0
        %v662 = vsel %vm624, %v447, 0
        %v665 = vsel %vm624, %v448, 0
        %v668 = vsel %vm624, %v449, 0
        %v671 = vsel %vm624, %v450, 0
        %v674 = vsel %vm624, %v451, 0
        %v677 = vsel %vm624, %v452, 0
        %v680 = vsel %vm624, %v453, 0
        %v683 = vsel %vm624, %v454, 0
        %v686 = vsel %vm624, %v455, 0
        %v689 = vsel %vm624, %v456, 0
        %v692 = vsel %vm624, %v457, 0
        %v695 = vsel %vm624, %v458, 0
        %v698 = vsel %vm624, %v459, 0
        %v701 = vsel %vm624, %v460, 0
        %vm703 = vcmask 1043456
        %v704 = vsel %vm703, %v434, 0
        %v706 = vsel %vm703, %v623, 0
        %708 = vmatprep.subr.mxu0 %v706
        %709 = vmatpush1.msra.mxu0 %v704
        %710 = vmatprep.subr.mxu0 0.0
        %711 = vmatpush1.msra.mxu0 0.0
        %712 = vmatprep.subr.mxu0 0.0
        %713 = vmatpush1.msra.mxu0 0.0
        %714 = vmatprep.subr.mxu0 0.0
        %715 = vmatpush1.msra.mxu0 0.0
        %716 = vmatprep.subr.mxu0 0.0
        %717 = vmatpush1.msra.mxu0 0.0
        %718 = vmatprep.subr.mxu0 0.0
        %719 = vmatpush1.msra.mxu0 0.0
        %720 = vmatprep.subr.mxu0 0.0
        %721 = vmatpush1.msra.mxu0 0.0
        %722 = vmatprep.subr.mxu0 0.0
        %723 = vmatpush1.msra.mxu0 0.0
        %724 = vmatprep.subr.mxu0 0.0
        %725 = vmatpush1.msra.mxu0 0.0
        %726 = vmatprep.subr.mxu0 0.0
        %727 = vmatpush1.msra.mxu0 0.0
        %728 = vmatprep.subr.mxu0 0.0
        %729 = vmatpush1.msra.mxu0 0.0
        %730 = vmatprep.subr.mxu0 0.0
        %731 = vmatpush1.msra.mxu0 0.0
        %732 = vmatprep.subr.mxu0 0.0
        %733 = vmatpush1.msra.mxu0 0.0
        %734 = vmatprep.subr.mxu0 0.0
        %735 = vmatpush1.msra.mxu0 0.0
        %736 = vmatprep.subr.mxu0 0.0
        %737 = vmatpush1.msra.mxu0 0.0
        %738 = vmatprep.subr.mxu0 0.0
        %739 = vmatpush1.msra.mxu0 0.0
        %740 = vmatprep.subr.mxu0 0.0
        %741 = vmatpush1.msra.mxu0 0.0
        %742 = vmatprep.subr.mxu0 0.0
        %743 = vmatpush1.msra.mxu0 0.0
        %744 = vmatprep.subr.mxu0 0.0
        %745 = vmatpush1.msra.mxu0 0.0
        %746 = vmatprep.subr.mxu0 0.0
        %747 = vmatpush1.msra.mxu0 0.0
        %748 = vmatprep.subr.mxu0 0.0
        %749 = vmatpush1.msra.mxu0 0.0
        %750 = vmatprep.subr.mxu0 0.0
        %751 = vmatpush1.msra.mxu0 0.0
        %752 = vmatprep.subr.mxu0 0.0
        %753 = vmatpush1.msra.mxu0 0.0
        %754 = vmatprep.subr.mxu0 0.0
        %755 = vmatpush1.msra.mxu0 0.0
        %756 = vmatprep.subr.mxu0 0.0
        %757 = vmatpush1.msra.mxu0 0.0
        %758 = vmatprep.subr.mxu0 0.0
        %759 = vmatpush1.msra.mxu0 0.0
        %760 = vmatprep.subr.mxu0 0.0
        %761 = vmatpush1.msra.mxu0 0.0
        %762 = vmatprep.subr.mxu0 0.0
        %763 = vmatpush1.msra.mxu0 0.0
        %764 = vmatprep.subr.mxu0 0.0
        %765 = vmatpush1.msra.mxu0 0.0
        %766 = vmatprep.subr.mxu0 0.0
        %767 = vmatpush1.msra.mxu0 0.0
        %768 = vmatprep.subr.mxu0 0.0
        %769 = vmatpush1.msra.mxu0 0.0
        %770 = vmatprep.subr.mxu0 0.0
        %771 = vmatpush1.msra.mxu0 0.0
        %772 = vmatprep.mubr.f32.mxu0 0.0
        %773 = vmatmul.mubr.f32.gmra.mrb[0].mxu0 %v626
        %v774 = vpop.f32.mrb[0].mxu0
        %v775 = vadd.f32 %v495, %v774
        %v776 = vpop.f32.mrb[0].mxu0
        %v777 = vadd.f32 %v495, %v776
        %778 = vmatprep.mubr.f32.mxu0 0.0
        %779 = vmatmul.mubr.f32.gmra.mrb[0].mxu0 %v629
        %v780 = vpop.f32.mrb[0].mxu0
        %v781 = vadd.f32 %v500, %v780
        %v782 = vpop.f32.mrb[0].mxu0
        %v783 = vadd.f32 %v500, %v782
        %784 = vmatprep.mubr.f32.mxu0 0.0
        %785 = vmatmul.mubr.f32.gmra.mrb[0].mxu0 %v632
        %v786 = vpop.f32.mrb[0].mxu0
        %v787 = vadd.f32 %v505, %v786
        %v788 = vpop.f32.mrb[0].mxu0
        %v789 = vadd.f32 %v505, %v788
        %790 = vmatprep.mubr.f32.mxu0 0.0
        %791 = vmatmul.mubr.f32.gmra.mrb[0].mxu0 %v635
        %v792 = vpop.f32.mrb[0].mxu0
        %v793 = vadd.f32 %v510, %v792
        %v794 = vpop.f32.mrb[0].mxu0
        %v795 = vadd.f32 %v510, %v794
        %796 = vmatprep.mubr.f32.mxu0 0.0
        %797 = vmatmul.mubr.f32.gmra.mrb[0].mxu0 %v638
        %v798 = vpop.f32.mrb[0].mxu0
        %v799 = vadd.f32 %v515, %v798
        %v800 = vpop.f32.mrb[0].mxu0
        %v801 = vadd.f32 %v515, %v800
        %802 = vmatprep.mubr.f32.mxu0 0.0
        %803 = vmatmul.mubr.f32.gmra.mrb[0].mxu0 %v641
        %v804 = vpop.f32.mrb[0].mxu0
        %v805 = vadd.f32 %v520, %v804
        %v806 = vpop.f32.mrb[0].mxu0
        %v807 = vadd.f32 %v520, %v806
        %808 = vmatprep.mubr.f32.mxu0 0.0
        %809 = vmatmul.mubr.f32.gmra.mrb[0].mxu0 %v644
        %v810 = vpop.f32.mrb[0].mxu0
        %v811 = vadd.f32 %v525, %v810
        %v812 = vpop.f32.mrb[0].mxu0
        %v813 = vadd.f32 %v525, %v812
        %814 = vmatprep.mubr.f32.mxu0 0.0
        %815 = vmatmul.mubr.f32.gmra.mrb[0].mxu0 %v647
        %v816 = vpop.f32.mrb[0].mxu0
        %v817 = vadd.f32 %v530, %v816
        %v818 = vpop.f32.mrb[0].mxu0
        %v819 = vadd.f32 %v530, %v818
        %820 = vmatprep.mubr.f32.mxu0 0.0
        %821 = vmatmul.mubr.f32.gmra.mrb[0].mxu0 %v650
        %v822 = vpop.f32.mrb[0].mxu0
        %v823 = vadd.f32 %v535, %v822
        %v824 = vpop.f32.mrb[0].mxu0
        %v825 = vadd.f32 %v535, %v824
        %826 = vmatprep.mubr.f32.mxu0 0.0
        %827 = vmatmul.mubr.f32.gmra.mrb[0].mxu0 %v653
        %v828 = vpop.f32.mrb[0].mxu0
        %v829 = vadd.f32 %v540, %v828
        %v830 = vpop.f32.mrb[0].mxu0
        %v831 = vadd.f32 %v540, %v830
        %832 = vmatprep.mubr.f32.mxu0 0.0
        %833 = vmatmul.mubr.f32.gmra.mrb[0].mxu0 %v656
        %v834 = vpop.f32.mrb[0].mxu0
        %v835 = vadd.f32 %v545, %v834
        %v836 = vpop.f32.mrb[0].mxu0
        %v837 = vadd.f32 %v545, %v836
        %838 = vmatprep.mubr.f32.mxu0 0.0
        %839 = vmatmul.mubr.f32.gmra.mrb[0].mxu0 %v659
        %v840 = vpop.f32.mrb[0].mxu0
        %v841 = vadd.f32 %v550, %v840
        %v842 = vpop.f32.mrb[0].mxu0
        %v843 = vadd.f32 %v550, %v842
        %844 = vmatprep.mubr.f32.mxu0 0.0
        %845 = vmatmul.mubr.f32.gmra.mrb[0].mxu0 %v662
        %v846 = vpop.f32.mrb[0].mxu0
        %v847 = vadd.f32 %v555, %v846
        %v848 = vpop.f32.mrb[0].mxu0
        %v849 = vadd.f32 %v555, %v848
        %850 = vmatprep.mubr.f32.mxu0 0.0
        %851 = vmatmul.mubr.f32.gmra.mrb[0].mxu0 %v665
        %v852 = vpop.f32.mrb[0].mxu0
        %v853 = vadd.f32 %v560, %v852
        %v854 = vpop.f32.mrb[0].mxu0
        %v855 = vadd.f32 %v560, %v854
        %856 = vmatprep.mubr.f32.mxu0 0.0
        %857 = vmatmul.mubr.f32.gmra.mrb[0].mxu0 %v668
        %v858 = vpop.f32.mrb[0].mxu0
        %v859 = vadd.f32 %v565, %v858
        %v860 = vpop.f32.mrb[0].mxu0
        %v861 = vadd.f32 %v565, %v860
        %862 = vmatprep.mubr.f32.mxu0 0.0
        %863 = vmatmul.mubr.f32.gmra.mrb[0].mxu0 %v671
        %v864 = vpop.f32.mrb[0].mxu0
        %v865 = vadd.f32 %v570, %v864
        %v866 = vpop.f32.mrb[0].mxu0
        %v867 = vadd.f32 %v570, %v866
        %868 = vmatprep.mubr.f32.mxu0 0.0
        %869 = vmatmul.mubr.f32.gmra.mrb[0].mxu0 %v674
        %v870 = vpop.f32.mrb[0].mxu0
        %v871 = vadd.f32 %v575, %v870
        %v872 = vpop.f32.mrb[0].mxu0
        %v873 = vadd.f32 %v575, %v872
        %874 = vmatprep.mubr.f32.mxu0 0.0
        %875 = vmatmul.mubr.f32.gmra.mrb[0].mxu0 %v677
        %v876 = vpop.f32.mrb[0].mxu0
        %v877 = vadd.f32 %v580, %v876
        %v878 = vpop.f32.mrb[0].mxu0
        %v879 = vadd.f32 %v580, %v878
        %880 = vmatprep.mubr.f32.mxu0 0.0
        %881 = vmatmul.mubr.f32.gmra.mrb[0].mxu0 %v680
        %v882 = vpop.f32.mrb[0].mxu0
        %v883 = vadd.f32 %v585, %v882
        %v884 = vpop.f32.mrb[0].mxu0
        %v885 = vadd.f32 %v585, %v884
        %886 = vmatprep.mubr.f32.mxu0 0.0
        %887 = vmatmul.mubr.f32.gmra.mrb[0].mxu0 %v683
        %v888 = vpop.f32.mrb[0].mxu0
        %v889 = vadd.f32 %v590, %v888
        %v890 = vpop.f32.mrb[0].mxu0
        %v891 = vadd.f32 %v590, %v890
        %892 = vmatprep.mubr.f32.mxu0 0.0
        %893 = vmatmul.mubr.f32.gmra.mrb[0].mxu0 %v686
        %v894 = vpop.f32.mrb[0].mxu0
        %v895 = vadd.f32 %v595, %v894
        %v896 = vpop.f32.mrb[0].mxu0
        %v897 = vadd.f32 %v595, %v896
        %898 = vmatprep.mubr.f32.mxu0 0.0
        %899 = vmatmul.mubr.f32.gmra.mrb[0].mxu0 %v689
        %v900 = vpop.f32.mrb[0].mxu0
        %v901 = vadd.f32 %v600, %v900
        %v902 = vpop.f32.mrb[0].mxu0
        %v903 = vadd.f32 %v600, %v902
        %904 = vmatprep.mubr.f32.mxu0 0.0
        %905 = vmatmul.mubr.f32.gmra.mrb[0].mxu0 %v692
        %v906 = vpop.f32.mrb[0].mxu0
        %v907 = vadd.f32 %v605, %v906
        %v908 = vpop.f32.mrb[0].mxu0
        %v909 = vadd.f32 %v605, %v908
        %910 = vmatprep.mubr.f32.mxu0 0.0
        %911 = vmatmul.mubr.f32.gmra.mrb[0].mxu0 %v695
        %v912 = vpop.f32.mrb[0].mxu0
        %v913 = vadd.f32 %v610, %v912
        %v914 = vpop.f32.mrb[0].mxu0
        %v915 = vadd.f32 %v610, %v914
        %916 = vmatprep.mubr.f32.mxu0 0.0
        %917 = vmatmul.mubr.f32.gmra.mrb[0].mxu0 %v698
        %v918 = vpop.f32.mrb[0].mxu0
        %v919 = vadd.f32 %v615, %v918
        %v920 = vpop.f32.mrb[0].mxu0
        %v921 = vadd.f32 %v615, %v920
        %922 = vmatprep.mubr.f32.mxu0 0.0
        %923 = vmatmul.mubr.f32.gmra.mrb[0].mxu0 %v701
        %v924 = vpop.f32.mrb[0].mxu0
        %v925 = vadd.f32 %v620, %v924
        %v926 = vpop.f32.mrb[0].mxu0
        %v927 = vadd.f32 %v620, %v926
        %928 = vdwg.mxu0
        %929 = vst [vmem:[#allocation2] sm:$0xff] %v835
        %930 = vst [vmem:[#allocation2 + $0x8] sm:$0xff] %v837
        %931 = vst [vmem:[#allocation2 + $0x10] sm:$0xff] %v841
        %932 = vst [vmem:[#allocation2 + $0x18] sm:$0xff] %v843
        %933 = vst [vmem:[#allocation2 + $0x20] sm:$0xff] %v847
        %934 = vst [vmem:[#allocation2 + $0x28] sm:$0xff] %v849
        %935 = vst [vmem:[#allocation2 + $0x30] sm:$0xff] %v853
        %936 = vst [vmem:[#allocation2 + $0x38] sm:$0xff] %v855
        %937 = vst [vmem:[#allocation2 + $0x40] sm:$0xff] %v859
        %938 = vst [vmem:[#allocation2 + $0x48] sm:$0xff] %v861
        %939 = vst [vmem:[#allocation2 + $0x50] sm:$0xff] %v865
        %940 = vst [vmem:[#allocation2 + $0x58] sm:$0xff] %v867
        %941 = vst [vmem:[#allocation2 + $0x60] sm:$0xff] %v871
        %942 = vst [vmem:[#allocation2 + $0x68] sm:$0xff] %v873
        %943 = vst [vmem:[#allocation2 + $0x70] sm:$0xff] %v877
        %944 = vst [vmem:[#allocation2 + $0x78] sm:$0xff] %v879
        %945 = vst [vmem:[#allocation2 + $0x80] sm:$0xff] %v883
        %946 = vst [vmem:[#allocation2 + $0x88] sm:$0xff] %v885
        %947 = vst [vmem:[#allocation2 + $0x90] sm:$0xff] %v889
        %948 = vst [vmem:[#allocation2 + $0x98] sm:$0xff] %v891
        %949 = vst [vmem:[#allocation2 + $0xa0] sm:$0xff] %v895
        %950 = vst [vmem:[#allocation2 + $0xa8] sm:$0xff] %v897
        %951 = vst [vmem:[#allocation2 + $0xb0] sm:$0xff] %v901
        %952 = vst [vmem:[#allocation2 + $0xb8] sm:$0xff] %v903
        %953 = vst [vmem:[#allocation2 + $0xc0] sm:$0xff] %v907
        %954 = vst [vmem:[#allocation2 + $0xc8] sm:$0xff] %v909
        %955 = vst [vmem:[#allocation2 + $0xd0] sm:$0xff] %v913
        %956 = vst [vmem:[#allocation2 + $0xd8] sm:$0xff] %v915
        %957 = vst [vmem:[#allocation2 + $0xe0] sm:$0xff] %v919
        %958 = vst [vmem:[#allocation2 + $0xe8] sm:$0xff] %v921
        %959 = vst [vmem:[#allocation2 + $0xf0] sm:$0xff] %v925
        %960 = vst [vmem:[#allocation2 + $0xf8] sm:$0xff] %v927
        %v961 = vmax.f32 %v787, %v789
        %962 = vmax.xlane.f32.xlu0 %v961
        %v963 = vpop.xlane.xlu0 %962
        %v964 = vmax.f32 %v793, %v795
        %965 = vmax.xlane.f32.xlu0 %v964
        %v966 = vpop.xlane.xlu0 %965
        %v967 = vmax.f32 %v799, %v801
        %968 = vmax.xlane.f32.xlu0 %v967
        %v969 = vpop.xlane.xlu0 %968
        %v970 = vmax.f32 %v805, %v807
        %971 = vmax.xlane.f32.xlu0 %v970
        %v972 = vpop.xlane.xlu0 %971
        %v973 = vmax.f32 %v811, %v813
        %974 = vmax.xlane.f32.xlu0 %v973
        %v975 = vpop.xlane.xlu0 %974
        %v976 = vmax.f32 %v817, %v819
        %977 = vmax.xlane.f32.xlu0 %v976
        %v978 = vpop.xlane.xlu0 %977
        %v979 = vmax.f32 %v823, %v825
        %980 = vmax.xlane.f32.xlu0 %v979
        %v981 = vpop.xlane.xlu0 %980
        %v982 = vmax.f32 %v829, %v831
        %983 = vmax.xlane.f32.xlu0 %v982
        %v984 = vpop.xlane.xlu0 %983
        %v985 = vsub.f32 %v787, %v963
        %v986 = vsub.f32 %v789, %v963
        %v987 = vsub.f32 %v793, %v966
        %v988 = vsub.f32 %v795, %v966
        %v989 = vsub.f32 %v799, %v969
        %v990 = vsub.f32 %v801, %v969
        %v991 = vsub.f32 %v805, %v972
        %v992 = vsub.f32 %v807, %v972
        %v993 = vsub.f32 %v811, %v975
        %v994 = vsub.f32 %v813, %v975
        %v995 = vsub.f32 %v817, %v978
        %v996 = vsub.f32 %v819, %v978
        %v997 = vsub.f32 %v823, %v981
        %v998 = vsub.f32 %v825, %v981
        %v999 = vsub.f32 %v829, %v984
        %v1000 = vsub.f32 %v831, %v984
        %v1001 = vmul.f32 %v985, 1.442695
        %v1002 = vpow.pop %v1001
        %v1003 = vmul.f32 %v986, 1.442695
        %v1004 = vpow.pop %v1003
        %v1005 = vmul.f32 %v987, 1.442695
        %v1006 = vpow.pop %v1005
        %v1007 = vmul.f32 %v988, 1.442695
        %v1008 = vpow.pop %v1007
        %v1009 = vmul.f32 %v989, 1.442695
        %v1010 = vpow.pop %v1009
        %v1011 = vmul.f32 %v990, 1.442695
        %v1012 = vpow.pop %v1011
        %v1013 = vmul.f32 %v991, 1.442695
        %v1014 = vpow.pop %v1013
        %v1015 = vmul.f32 %v992, 1.442695
        %v1016 = vpow.pop %v1015
        %v1017 = vmul.f32 %v993, 1.442695
        %v1018 = vpow.pop %v1017
        %v1019 = vmul.f32 %v994, 1.442695
        %v1020 = vpow.pop %v1019
        %v1021 = vmul.f32 %v995, 1.442695
        %v1022 = vpow.pop %v1021
        %v1023 = vmul.f32 %v996, 1.442695
        %v1024 = vpow.pop %v1023
        %v1025 = vmul.f32 %v997, 1.442695
        %v1026 = vpow.pop %v1025
        %v1027 = vmul.f32 %v998, 1.442695
        %v1028 = vpow.pop %v1027
        %v1029 = vmul.f32 %v999, 1.442695
        %v1030 = vpow.pop %v1029
        %v1031 = vmul.f32 %v1000, 1.442695
        %v1032 = vpow.pop %v1031
        %v1033 = vadd.f32 %v1002, %v1004
        %1034 = vadd.xlane.f32.xlu0 %v1033
        %v1035 = vpop.xlane.xlu0 %1034
        %v1036 = vadd.f32 %v1006, %v1008
        %1037 = vadd.xlane.f32.xlu0 %v1036
        %v1038 = vpop.xlane.xlu0 %1037
        %v1039 = vadd.f32 %v1010, %v1012
        %1040 = vadd.xlane.f32.xlu0 %v1039
        %v1041 = vpop.xlane.xlu0 %1040
        %v1042 = vadd.f32 %v1014, %v1016
        %1043 = vadd.xlane.f32.xlu0 %v1042
        %v1044 = vpop.xlane.xlu0 %1043
        %v1045 = vadd.f32 %v1018, %v1020
        %1046 = vadd.xlane.f32.xlu0 %v1045
        %v1047 = vpop.xlane.xlu0 %1046
        %v1048 = vadd.f32 %v1022, %v1024
        %1049 = vadd.xlane.f32.xlu0 %v1048
        %v1050 = vpop.xlane.xlu0 %1049
        %v1051 = vadd.f32 %v1026, %v1028
        %1052 = vadd.xlane.f32.xlu0 %v1051
        %v1053 = vpop.xlane.xlu0 %1052
        %v1054 = vadd.f32 %v1030, %v1032
        %1055 = vadd.xlane.f32.xlu0 %v1054
        %v1056 = vpop.xlane.xlu0 %1055
        %v1057 = vrcp.pop %v1035
        %v1058 = vrcp.pop %v1038
        %v1059 = vrcp.pop %v1041
        %v1060 = vrcp.pop %v1044
        %v1061 = vrcp.pop %v1047
        %v1062 = vrcp.pop %v1050
        %v1063 = vrcp.pop %v1053
        %v1064 = vrcp.pop %v1056
        %v1065 = vmul.f32 %v1002, %v1057
        %v1066 = vmul.f32 %v1004, %v1057
        %v1067 = vmul.f32 %v1006, %v1058
        %v1068 = vmul.f32 %v1008, %v1058
        %v1069 = vmul.f32 %v1010, %v1059
        %v1070 = vmul.f32 %v1012, %v1059
        %v1071 = vmul.f32 %v1014, %v1060
        %v1072 = vmul.f32 %v1016, %v1060
        %v1073 = vmul.f32 %v1018, %v1061
        %v1074 = vmul.f32 %v1020, %v1061
        %v1075 = vmul.f32 %v1022, %v1062
        %v1076 = vmul.f32 %v1024, %v1062
        %v1077 = vmul.f32 %v1026, %v1063
        %v1078 = vmul.f32 %v1028, %v1063
        %v1079 = vmul.f32 %v1030, %v1064
        %v1080 = vmul.f32 %v1032, %v1064
        %v1081 = vld [vmem:[#allocation2] sm:$0xff]
        %v1082 = vld [vmem:[#allocation2 + $0x8] sm:$0xff]
        %v1083 = vld [vmem:[#allocation2 + $0x10] sm:$0xff]
        %v1084 = vld [vmem:[#allocation2 + $0x18] sm:$0xff]
        %v1085 = vld [vmem:[#allocation2 + $0x20] sm:$0xff]
        %v1086 = vld [vmem:[#allocation2 + $0x28] sm:$0xff]
        %v1087 = vld [vmem:[#allocation2 + $0x30] sm:$0xff]
        %v1088 = vld [vmem:[#allocation2 + $0x38] sm:$0xff]
        %v1089 = vld [vmem:[#allocation2 + $0x40] sm:$0xff]
        %v1090 = vld [vmem:[#allocation2 + $0x48] sm:$0xff]
        %v1091 = vld [vmem:[#allocation2 + $0x50] sm:$0xff]
        %v1092 = vld [vmem:[#allocation2 + $0x58] sm:$0xff]
        %v1093 = vld [vmem:[#allocation2 + $0x60] sm:$0xff]
        %v1094 = vld [vmem:[#allocation2 + $0x68] sm:$0xff]
        %v1095 = vld [vmem:[#allocation2 + $0x70] sm:$0xff]
        %v1096 = vld [vmem:[#allocation2 + $0x78] sm:$0xff]
        %1097 = vmatprep.subr.mxu0 %v1090
        %1098 = vmatpush1.xpose.msra.mxu0 %v1089
        %1099 = vmatprep.subr.mxu0 %v1092
        %1100 = vmatpush1.xpose.msra.mxu0 %v1091
        %1101 = vmatprep.subr.mxu0 %v1094
        %1102 = vmatpush1.xpose.msra.mxu0 %v1093
        %1103 = vmatprep.subr.mxu0 %v1096
        %1104 = vmatpush1.xpose.msra.mxu0 %v1095
        %1105 = vmatprep.subr.mxu0 0.0
        %1106 = vmatpush1.xpose.msra.mxu0 0.0
        %1107 = vmatprep.subr.mxu0 0.0
        %1108 = vmatpush1.xpose.msra.mxu0 0.0
        %1109 = vmatprep.subr.mxu0 0.0
        %1110 = vmatpush1.xpose.msra.mxu0 0.0
        %1111 = vmatprep.subr.mxu0 0.0
        %1112 = vmatpush1.xpose.msra.mxu0 0.0
        %1113 = vmatprep.subr.mxu0 0.0
        %1114 = vmatpush1.xpose.msra.mxu0 0.0
        %1115 = vmatprep.subr.mxu0 0.0
        %1116 = vmatpush1.xpose.msra.mxu0 0.0
        %1117 = vmatprep.subr.mxu0 0.0
        %1118 = vmatpush1.xpose.msra.mxu0 0.0
        %1119 = vmatprep.subr.mxu0 0.0
        %1120 = vmatpush1.xpose.msra.mxu0 0.0
        %1121 = vmatprep.subr.mxu0 0.0
        %1122 = vmatpush1.xpose.msra.mxu0 0.0
        %1123 = vmatprep.subr.mxu0 0.0
        %1124 = vmatpush1.xpose.msra.mxu0 0.0
        %1125 = vmatprep.subr.mxu0 0.0
        %1126 = vmatpush1.xpose.msra.mxu0 0.0
        %1127 = vmatprep.subr.mxu0 0.0
        %1128 = vmatpush1.xpose.msra.mxu0 0.0
        %1129 = vmatprep.subr.mxu0 0.0
        %1130 = vmatpush1.xpose.msra.mxu0 0.0
        %1131 = vmatprep.subr.mxu0 0.0
        %1132 = vmatpush1.xpose.msra.mxu0 0.0
        %1133 = vmatprep.subr.mxu0 0.0
        %1134 = vmatpush1.xpose.msra.mxu0 0.0
        %1135 = vmatprep.subr.mxu0 0.0
        %1136 = vmatpush1.xpose.msra.mxu0 0.0
        %1137 = vmatprep.subr.mxu0 0.0
        %1138 = vmatpush1.xpose.msra.mxu0 0.0
        %1139 = vmatprep.subr.mxu0 0.0
        %1140 = vmatpush1.xpose.msra.mxu0 0.0
        %1141 = vmatprep.subr.mxu0 0.0
        %1142 = vmatpush1.xpose.msra.mxu0 0.0
        %1143 = vmatprep.subr.mxu0 0.0
        %1144 = vmatpush1.xpose.msra.mxu0 0.0
        %1145 = vmatprep.subr.mxu0 0.0
        %1146 = vmatpush1.xpose.msra.mxu0 0.0
        %1147 = vmatprep.subr.mxu0 0.0
        %1148 = vmatpush1.xpose.msra.mxu0 0.0
        %1149 = vmatprep.subr.mxu0 0.0
        %1150 = vmatpush1.xpose.msra.mxu0 0.0
        %1151 = vmatprep.subr.mxu0 0.0
        %1152 = vmatpush1.xpose.msra.mxu0 0.0
        %1153 = vmatprep.subr.mxu0 0.0
        %1154 = vmatpush1.xpose.msra.mxu0 0.0
        %1155 = vmatprep.subr.mxu0 0.0
        %1156 = vmatpush1.xpose.msra.mxu0 0.0
        %1157 = vmatprep.subr.mxu0 0.0
        %1158 = vmatpush1.xpose.msra.mxu0 0.0
        %1159 = vmatprep.subr.mxu0 0.0
        %1160 = vmatpush1.xpose.msra.mxu0 0.0
        %1161 = vmatprep.mubr.f32.mxu0 %v1070
        %1162 = vmatmul.mubr.f32.gmra.mrb[0].mxu0 %v1069
        %v1163 = vpop.f32.mrb[0].mxu0
        %v1164 = vadd.f32 0.0, %v1163
        %v1165 = vpop.f32.mrb[0].mxu0
        %1166 = vmatprep.mubr.f32.mxu0 %v1072
        %1167 = vmatmul.mubr.f32.gmra.mrb[0].mxu0 %v1071
        %v1168 = vpop.f32.mrb[0].mxu0
        %v1169 = vadd.f32 0.0, %v1168
        %v1170 = vpop.f32.mrb[0].mxu0
        %1171 = vdwg.mxu0
        %1172 = vmatprep.subr.mxu0 %v1082
        %1173 = vmatpush1.xpose.msra.mxu0 %v1081
        %1174 = vmatprep.subr.mxu0 %v1084
        %1175 = vmatpush1.xpose.msra.mxu0 %v1083
        %1176 = vmatprep.subr.mxu0 %v1086
        %1177 = vmatpush1.xpose.msra.mxu0 %v1085
        %1178 = vmatprep.subr.mxu0 %v1088
        %1179 = vmatpush1.xpose.msra.mxu0 %v1087
        %1180 = vmatprep.subr.mxu0 0.0
        %1181 = vmatpush1.xpose.msra.mxu0 0.0
        %1182 = vmatprep.subr.mxu0 0.0
        %1183 = vmatpush1.xpose.msra.mxu0 0.0
        %1184 = vmatprep.subr.mxu0 0.0
        %1185 = vmatpush1.xpose.msra.mxu0 0.0
        %1186 = vmatprep.subr.mxu0 0.0
        %1187 = vmatpush1.xpose.msra.mxu0 0.0
        %1188 = vmatprep.subr.mxu0 0.0
        %1189 = vmatpush1.xpose.msra.mxu0 0.0
        %1190 = vmatprep.subr.mxu0 0.0
        %1191 = vmatpush1.xpose.msra.mxu0 0.0
        %1192 = vmatprep.subr.mxu0 0.0
        %1193 = vmatpush1.xpose.msra.mxu0 0.0
        %1194 = vmatprep.subr.mxu0 0.0
        %1195 = vmatpush1.xpose.msra.mxu0 0.0
        %1196 = vmatprep.subr.mxu0 0.0
        %1197 = vmatpush1.xpose.msra.mxu0 0.0
        %1198 = vmatprep.subr.mxu0 0.0
        %1199 = vmatpush1.xpose.msra.mxu0 0.0
        %1200 = vmatprep.subr.mxu0 0.0
        %1201 = vmatpush1.xpose.msra.mxu0 0.0
        %1202 = vmatprep.subr.mxu0 0.0
        %1203 = vmatpush1.xpose.msra.mxu0 0.0
        %1204 = vmatprep.subr.mxu0 0.0
        %1205 = vmatpush1.xpose.msra.mxu0 0.0
        %1206 = vmatprep.subr.mxu0 0.0
        %1207 = vmatpush1.xpose.msra.mxu0 0.0
        %1208 = vmatprep.subr.mxu0 0.0
        %1209 = vmatpush1.xpose.msra.mxu0 0.0
        %1210 = vmatprep.subr.mxu0 0.0
        %1211 = vmatpush1.xpose.msra.mxu0 0.0
        %1212 = vmatprep.subr.mxu0 0.0
        %1213 = vmatpush1.xpose.msra.mxu0 0.0
        %1214 = vmatprep.subr.mxu0 0.0
        %1215 = vmatpush1.xpose.msra.mxu0 0.0
        %1216 = vmatprep.subr.mxu0 0.0
        %1217 = vmatpush1.xpose.msra.mxu0 0.0
        %1218 = vmatprep.subr.mxu0 0.0
        %1219 = vmatpush1.xpose.msra.mxu0 0.0
        %1220 = vmatprep.subr.mxu0 0.0
        %1221 = vmatpush1.xpose.msra.mxu0 0.0
        %1222 = vmatprep.subr.mxu0 0.0
        %1223 = vmatpush1.xpose.msra.mxu0 0.0
        %1224 = vmatprep.subr.mxu0 0.0
        %1225 = vmatpush1.xpose.msra.mxu0 0.0
        %1226 = vmatprep.subr.mxu0 0.0
        %1227 = vmatpush1.xpose.msra.mxu0 0.0
        %1228 = vmatprep.subr.mxu0 0.0
        %1229 = vmatpush1.xpose.msra.mxu0 0.0
        %1230 = vmatprep.subr.mxu0 0.0
        %1231 = vmatpush1.xpose.msra.mxu0 0.0
        %1232 = vmatprep.subr.mxu0 0.0
        %1233 = vmatpush1.xpose.msra.mxu0 0.0
        %1234 = vmatprep.subr.mxu0 0.0
        %1235 = vmatpush1.xpose.msra.mxu0 0.0
        %1236 = vmatprep.mubr.f32.mxu0 %v1066
        %1237 = vmatmul.mubr.f32.gmra.mrb[0].mxu0 %v1065
        %v1238 = vpop.f32.mrb[0].mxu0
        %v1239 = vadd.f32 %v1164, %v1238
        %v1240 = vpop.f32.mrb[0].mxu0
        %1241 = vmatprep.mubr.f32.mxu0 %v1068
        %1242 = vmatmul.mubr.f32.gmra.mrb[0].mxu0 %v1067
        %v1243 = vpop.f32.mrb[0].mxu0
        %v1244 = vadd.f32 %v1169, %v1243
        %v1245 = vpop.f32.mrb[0].mxu0
        %1246 = vdwg.mxu0
        %v1247 = vld [vmem:[#allocation2 + $0x80] sm:$0xff]
        %v1248 = vld [vmem:[#allocation2 + $0x88] sm:$0xff]
        %v1249 = vld [vmem:[#allocation2 + $0x90] sm:$0xff]
        %v1250 = vld [vmem:[#allocation2 + $0x98] sm:$0xff]
        %v1251 = vld [vmem:[#allocation2 + $0xa0] sm:$0xff]
        %v1252 = vld [vmem:[#allocation2 + $0xa8] sm:$0xff]
        %v1253 = vld [vmem:[#allocation2 + $0xb0] sm:$0xff]
        %v1254 = vld [vmem:[#allocation2 + $0xb8] sm:$0xff]
        %1255 = vmatprep.subr.mxu0 %v1248
        %1256 = vmatpush1.xpose.msra.mxu0 %v1247
        %1257 = vmatprep.subr.mxu0 %v1250
        %1258 = vmatpush1.xpose.msra.mxu0 %v1249
        %1259 = vmatprep.subr.mxu0 %v1252
        %1260 = vmatpush1.xpose.msra.mxu0 %v1251
        %1261 = vmatprep.subr.mxu0 %v1254
        %1262 = vmatpush1.xpose.msra.mxu0 %v1253
        %1263 = vmatprep.subr.mxu0 0.0
        %1264 = vmatpush1.xpose.msra.mxu0 0.0
        %1265 = vmatprep.subr.mxu0 0.0
        %1266 = vmatpush1.xpose.msra.mxu0 0.0
        %1267 = vmatprep.subr.mxu0 0.0
        %1268 = vmatpush1.xpose.msra.mxu0 0.0
        %1269 = vmatprep.subr.mxu0 0.0
        %1270 = vmatpush1.xpose.msra.mxu0 0.0
        %1271 = vmatprep.subr.mxu0 0.0
        %1272 = vmatpush1.xpose.msra.mxu0 0.0
        %1273 = vmatprep.subr.mxu0 0.0
        %1274 = vmatpush1.xpose.msra.mxu0 0.0
        %1275 = vmatprep.subr.mxu0 0.0
        %1276 = vmatpush1.xpose.msra.mxu0 0.0
        %1277 = vmatprep.subr.mxu0 0.0
        %1278 = vmatpush1.xpose.msra.mxu0 0.0
        %1279 = vmatprep.subr.mxu0 0.0
        %1280 = vmatpush1.xpose.msra.mxu0 0.0
        %1281 = vmatprep.subr.mxu0 0.0
        %1282 = vmatpush1.xpose.msra.mxu0 0.0
        %1283 = vmatprep.subr.mxu0 0.0
        %1284 = vmatpush1.xpose.msra.mxu0 0.0
        %1285 = vmatprep.subr.mxu0 0.0
        %1286 = vmatpush1.xpose.msra.mxu0 0.0
        %1287 = vmatprep.subr.mxu0 0.0
        %1288 = vmatpush1.xpose.msra.mxu0 0.0
        %1289 = vmatprep.subr.mxu0 0.0
        %1290 = vmatpush1.xpose.msra.mxu0 0.0
        %1291 = vmatprep.subr.mxu0 0.0
        %1292 = vmatpush1.xpose.msra.mxu0 0.0
        %1293 = vmatprep.subr.mxu0 0.0
        %1294 = vmatpush1.xpose.msra.mxu0 0.0
        %1295 = vmatprep.subr.mxu0 0.0
        %1296 = vmatpush1.xpose.msra.mxu0 0.0
        %1297 = vmatprep.subr.mxu0 0.0
        %1298 = vmatpush1.xpose.msra.mxu0 0.0
        %1299 = vmatprep.subr.mxu0 0.0
        %1300 = vmatpush1.xpose.msra.mxu0 0.0
        %1301 = vmatprep.subr.mxu0 0.0
        %1302 = vmatpush1.xpose.msra.mxu0 0.0
        %1303 = vmatprep.subr.mxu0 0.0
        %1304 = vmatpush1.xpose.msra.mxu0 0.0
        %1305 = vmatprep.subr.mxu0 0.0
        %1306 = vmatpush1.xpose.msra.mxu0 0.0
        %1307 = vmatprep.subr.mxu0 0.0
        %1308 = vmatpush1.xpose.msra.mxu0 0.0
        %1309 = vmatprep.subr.mxu0 0.0
        %1310 = vmatpush1.xpose.msra.mxu0 0.0
        %1311 = vmatprep.subr.mxu0 0.0
        %1312 = vmatpush1.xpose.msra.mxu0 0.0
        %1313 = vmatprep.subr.mxu0 0.0
        %1314 = vmatpush1.xpose.msra.mxu0 0.0
        %1315 = vmatprep.subr.mxu0 0.0
        %1316 = vmatpush1.xpose.msra.mxu0 0.0
        %1317 = vmatprep.subr.mxu0 0.0
        %1318 = vmatpush1.xpose.msra.mxu0 0.0
        %1319 = vmatprep.mubr.f32.mxu0 %v1074
        %1320 = vmatmul.mubr.f32.gmra.mrb[0].mxu0 %v1073
        %v1321 = vpop.f32.mrb[0].mxu0
        %v1322 = vadd.f32 0.0, %v1321
        %v1323 = vpop.f32.mrb[0].mxu0
        %1324 = vmatprep.mubr.f32.mxu0 %v1076
        %1325 = vmatmul.mubr.f32.gmra.mrb[0].mxu0 %v1075
        %v1326 = vpop.f32.mrb[0].mxu0
        %v1327 = vadd.f32 0.0, %v1326
        %v1328 = vpop.f32.mrb[0].mxu0
        %1329 = vdwg.mxu0
        %v1330 = vadd.f32 %v1239, %v1322
        %v1331 = vadd.f32 %v1244, %v1327
        %v1332 = vld [vmem:[#allocation2 + $0xc0] sm:$0xff]
        %v1333 = vld [vmem:[#allocation2 + $0xc8] sm:$0xff]
        %v1334 = vld [vmem:[#allocation2 + $0xd0] sm:$0xff]
        %v1335 = vld [vmem:[#allocation2 + $0xd8] sm:$0xff]
        %v1336 = vld [vmem:[#allocation2 + $0xe0] sm:$0xff]
        %v1337 = vld [vmem:[#allocation2 + $0xe8] sm:$0xff]
        %v1338 = vld [vmem:[#allocation2 + $0xf0] sm:$0xff]
        %v1339 = vld [vmem:[#allocation2 + $0xf8] sm:$0xff]
        %1340 = vmatprep.subr.mxu0 %v1333
        %1341 = vmatpush1.xpose.msra.mxu0 %v1332
        %1342 = vmatprep.subr.mxu0 %v1335
        %1343 = vmatpush1.xpose.msra.mxu0 %v1334
        %1344 = vmatprep.subr.mxu0 %v1337
        %1345 = vmatpush1.xpose.msra.mxu0 %v1336
        %1346 = vmatprep.subr.mxu0 %v1339
        %1347 = vmatpush1.xpose.msra.mxu0 %v1338
        %1348 = vmatprep.subr.mxu0 0.0
        %1349 = vmatpush1.xpose.msra.mxu0 0.0
        %1350 = vmatprep.subr.mxu0 0.0
        %1351 = vmatpush1.xpose.msra.mxu0 0.0
        %1352 = vmatprep.subr.mxu0 0.0
        %1353 = vmatpush1.xpose.msra.mxu0 0.0
        %1354 = vmatprep.subr.mxu0 0.0
        %1355 = vmatpush1.xpose.msra.mxu0 0.0
        %1356 = vmatprep.subr.mxu0 0.0
        %1357 = vmatpush1.xpose.msra.mxu0 0.0
        %1358 = vmatprep.subr.mxu0 0.0
        %1359 = vmatpush1.xpose.msra.mxu0 0.0
        %1360 = vmatprep.subr.mxu0 0.0
        %1361 = vmatpush1.xpose.msra.mxu0 0.0
        %1362 = vmatprep.subr.mxu0 0.0
        %1363 = vmatpush1.xpose.msra.mxu0 0.0
        %1364 = vmatprep.subr.mxu0 0.0
        %1365 = vmatpush1.xpose.msra.mxu0 0.0
        %1366 = vmatprep.subr.mxu0 0.0
        %1367 = vmatpush1.xpose.msra.mxu0 0.0
        %1368 = vmatprep.subr.mxu0 0.0
        %1369 = vmatpush1.xpose.msra.mxu0 0.0
        %1370 = vmatprep.subr.mxu0 0.0
        %1371 = vmatpush1.xpose.msra.mxu0 0.0
        %1372 = vmatprep.subr.mxu0 0.0
        %1373 = vmatpush1.xpose.msra.mxu0 0.0
        %1374 = vmatprep.subr.mxu0 0.0
        %1375 = vmatpush1.xpose.msra.mxu0 0.0
        %1376 = vmatprep.subr.mxu0 0.0
        %1377 = vmatpush1.xpose.msra.mxu0 0.0
        %1378 = vmatprep.subr.mxu0 0.0
        %1379 = vmatpush1.xpose.msra.mxu0 0.0
        %1380 = vmatprep.subr.mxu0 0.0
        %1381 = vmatpush1.xpose.msra.mxu0 0.0
        %1382 = vmatprep.subr.mxu0 0.0
        %1383 = vmatpush1.xpose.msra.mxu0 0.0
        %1384 = vmatprep.subr.mxu0 0.0
        %1385 = vmatpush1.xpose.msra.mxu0 0.0
        %1386 = vmatprep.subr.mxu0 0.0
        %1387 = vmatpush1.xpose.msra.mxu0 0.0
        %1388 = vmatprep.subr.mxu0 0.0
        %1389 = vmatpush1.xpose.msra.mxu0 0.0
        %1390 = vmatprep.subr.mxu0 0.0
        %1391 = vmatpush1.xpose.msra.mxu0 0.0
        %1392 = vmatprep.subr.mxu0 0.0
        %1393 = vmatpush1.xpose.msra.mxu0 0.0
        %1394 = vmatprep.subr.mxu0 0.0
        %1395 = vmatpush1.xpose.msra.mxu0 0.0
        %1396 = vmatprep.subr.mxu0 0.0
        %1397 = vmatpush1.xpose.msra.mxu0 0.0
        %1398 = vmatprep.subr.mxu0 0.0
        %1399 = vmatpush1.xpose.msra.mxu0 0.0
        %1400 = vmatprep.subr.mxu0 0.0
        %1401 = vmatpush1.xpose.msra.mxu0 0.0
        %1402 = vmatprep.subr.mxu0 0.0
        %1403 = vmatpush1.xpose.msra.mxu0 0.0
        %1404 = vmatprep.mubr.f32.mxu0 %v1078
        %1405 = vmatmul.mubr.f32.gmra.mrb[0].mxu0 %v1077
        %v1406 = vpop.f32.mrb[0].mxu0
        %v1407 = vadd.f32 0.0, %v1406
        %v1408 = vpop.f32.mrb[0].mxu0
        %1409 = vmatprep.mubr.f32.mxu0 %v1080
        %1410 = vmatmul.mubr.f32.gmra.mrb[0].mxu0 %v1079
        %v1411 = vpop.f32.mrb[0].mxu0
        %v1412 = vadd.f32 0.0, %v1411
        %v1413 = vpop.f32.mrb[0].mxu0
        %1414 = vdwg.mxu0
        %v1415 = vadd.f32 %v1330, %v1407
        %v1416 = vadd.f32 %v1331, %v1412
        %vm1417 = vcmask 130048
        %v1419 = vsel %vm1417, %v487, 0
        %v1422 = vsel %vm1417, %v488, 0
        %v1425 = vsel %vm1417, %v489, 0
        %v1428 = vsel %vm1417, %v490, 0
        %v1431 = vsel %vm1417, %v491, 0
        %1433 = vmatprep.subr.mxu0 %v777
        %1434 = vmatpush1.msra.mxu0 %v775
        %1435 = vmatprep.subr.mxu0 %v783
        %1436 = vmatpush1.msra.mxu0 %v781
        %1437 = vmatprep.subr.mxu0 0.0
        %1438 = vmatpush1.msra.mxu0 0.0
        %1439 = vmatprep.subr.mxu0 0.0
        %1440 = vmatpush1.msra.mxu0 0.0
        %1441 = vmatprep.subr.mxu0 0.0
        %1442 = vmatpush1.msra.mxu0 0.0
        %1443 = vmatprep.subr.mxu0 0.0
        %1444 = vmatpush1.msra.mxu0 0.0
        %1445 = vmatprep.subr.mxu0 0.0
        %1446 = vmatpush1.msra.mxu0 0.0
        %1447 = vmatprep.subr.mxu0 0.0
        %1448 = vmatpush1.msra.mxu0 0.0
        %1449 = vmatprep.subr.mxu0 0.0
        %1450 = vmatpush1.msra.mxu0 0.0
        %1451 = vmatprep.subr.mxu0 0.0
        %1452 = vmatpush1.msra.mxu0 0.0
        %1453 = vmatprep.subr.mxu0 0.0
        %1454 = vmatpush1.msra.mxu0 0.0
        %1455 = vmatprep.subr.mxu0 0.0
        %1456 = vmatpush1.msra.mxu0 0.0
        %1457 = vmatprep.subr.mxu0 0.0
        %1458 = vmatpush1.msra.mxu0 0.0
        %1459 = vmatprep.subr.mxu0 0.0
        %1460 = vmatpush1.msra.mxu0 0.0
        %1461 = vmatprep.subr.mxu0 0.0
        %1462 = vmatpush1.msra.mxu0 0.0
        %1463 = vmatprep.subr.mxu0 0.0
        %1464 = vmatpush1.msra.mxu0 0.0
        %1465 = vmatprep.subr.mxu0 0.0
        %1466 = vmatpush1.msra.mxu0 0.0
        %1467 = vmatprep.subr.mxu0 0.0
        %1468 = vmatpush1.msra.mxu0 0.0
        %1469 = vmatprep.subr.mxu0 0.0
        %1470 = vmatpush1.msra.mxu0 0.0
        %1471 = vmatprep.subr.mxu0 0.0
        %1472 = vmatpush1.msra.mxu0 0.0
        %1473 = vmatprep.subr.mxu0 0.0
        %1474 = vmatpush1.msra.mxu0 0.0
        %1475 = vmatprep.subr.mxu0 0.0
        %1476 = vmatpush1.msra.mxu0 0.0
        %1477 = vmatprep.subr.mxu0 0.0
        %1478 = vmatpush1.msra.mxu0 0.0
        %1479 = vmatprep.subr.mxu0 0.0
        %1480 = vmatpush1.msra.mxu0 0.0
        %1481 = vmatprep.subr.mxu0 0.0
        %1482 = vmatpush1.msra.mxu0 0.0
        %1483 = vmatprep.subr.mxu0 0.0
        %1484 = vmatpush1.msra.mxu0 0.0
        %1485 = vmatprep.subr.mxu0 0.0
        %1486 = vmatpush1.msra.mxu0 0.0
        %1487 = vmatprep.subr.mxu0 0.0
        %1488 = vmatpush1.msra.mxu0 0.0
        %1489 = vmatprep.subr.mxu0 0.0
        %1490 = vmatpush1.msra.mxu0 0.0
        %1491 = vmatprep.subr.mxu0 0.0
        %1492 = vmatpush1.msra.mxu0 0.0
        %1493 = vmatprep.subr.mxu0 0.0
        %1494 = vmatpush1.msra.mxu0 0.0
        %1495 = vmatprep.subr.mxu0 0.0
        %1496 = vmatpush1.msra.mxu0 0.0
        %1497 = vmatprep.mubr.f32.mxu0 0.0
        %1498 = vmatmul.mubr.f32.gmra.mrb[0].mxu0 %v1419
        %v1499 = vpop.f32.mrb[0].mxu0
        %v1500 = vadd.f32 0.0, %v1499
        %v1501 = vpop.f32.mrb[0].mxu0
        %v1502 = vadd.f32 0.0, %v1501
        %1503 = vmatprep.mubr.f32.mxu0 0.0
        %1504 = vmatmul.mubr.f32.gmra.mrb[0].mxu0 %v1422
        %v1505 = vpop.f32.mrb[0].mxu0
        %v1506 = vadd.f32 0.0, %v1505
        %v1507 = vpop.f32.mrb[0].mxu0
        %v1508 = vadd.f32 0.0, %v1507
        %1509 = vmatprep.mubr.f32.mxu0 0.0
        %1510 = vmatmul.mubr.f32.gmra.mrb[0].mxu0 %v1425
        %v1511 = vpop.f32.mrb[0].mxu0
        %v1512 = vadd.f32 0.0, %v1511
        %v1513 = vpop.f32.mrb[0].mxu0
        %v1514 = vadd.f32 0.0, %v1513
        %1515 = vmatprep.mubr.f32.mxu0 0.0
        %1516 = vmatmul.mubr.f32.gmra.mrb[0].mxu0 %v1428
        %v1517 = vpop.f32.mrb[0].mxu0
        %v1518 = vadd.f32 0.0, %v1517
        %v1519 = vpop.f32.mrb[0].mxu0
        %v1520 = vadd.f32 0.0, %v1519
        %1521 = vmatprep.mubr.f32.mxu0 0.0
        %1522 = vmatmul.mubr.f32.gmra.mrb[0].mxu0 %v1431
        %v1523 = vpop.f32.mrb[0].mxu0
        %v1524 = vadd.f32 0.0, %v1523
        %v1525 = vpop.f32.mrb[0].mxu0
        %v1526 = vadd.f32 0.0, %v1525
        %1527 = vdwg.mxu0
        %v1528 = vmul.f32 %v1500, %v424
        %v1529 = vmul.f32 %v1502, %v425
        %v1530 = vmul.f32 %v1506, %v426
        %v1531 = vmul.f32 %v1508, %v427
        %v1532 = vmul.f32 %v1512, %v428
        %v1533 = vmul.f32 %v1514, %v429
        %v1534 = vmul.f32 %v1518, %v430
        %v1535 = vmul.f32 %v1520, %v431
        %v1536 = vmul.f32 %v1524, %v432
        %v1537 = vmul.f32 %v1526, %v433
        %v1538 = vlaneseq
        %v1539 = vshrl.u32 %v1538, 7
        %v1540 = vsub.s32 4, %v1539
        %v1541 = vrot.slane %v1524, %v1540
        %v1542 = vlaneseq
        %v1543 = vshrl.u32 %v1542, 7
        %v1544 = vsub.s32 4, %v1543
        %v1545 = vrot.slane %v1526, %v1544
        %1546 = vrot.lane.b32.xlu0 %v1081, 17
        %v1547 = vpop.permute.xlu0 %1546
        %1548 = vrot.lane.b32.xlu0 %v1083, 17
        %v1549 = vpop.permute.xlu0 %1548
        %1550 = vrot.lane.b32.xlu0 %v1085, 17
        %v1551 = vpop.permute.xlu0 %1550
        %1552 = vrot.lane.b32.xlu0 %v1087, 17
        %v1553 = vpop.permute.xlu0 %1552
        %1554 = vrot.lane.b32.xlu0 %v1082, 17
        %v1555 = vpop.permute.xlu0 %1554
        %1556 = vrot.lane.b32.xlu0 %v1084, 17
        %v1557 = vpop.permute.xlu0 %1556
        %1558 = vrot.lane.b32.xlu0 %v1086, 17
        %v1559 = vpop.permute.xlu0 %1558
        %1560 = vrot.lane.b32.xlu0 %v1088, 17
        %v1561 = vpop.permute.xlu0 %1560
        %v1562 = vlaneseq
        %v1563 = vand.u32 %v1562, 127
        %vm1564 = vcmp.lt.s32.totalorder %v1563, 17
        %v1565 = vsel %vm1564, %v1547, %v1555
        %v1566 = vsel %vm1564, %v1549, %v1557
        %v1567 = vsel %vm1564, %v1551, %v1559
        %v1568 = vsel %vm1564, %v1553, %v1561
        %v1569 = vsel %vm1564, %v1555, %v1547
        %v1570 = vsel %vm1564, %v1557, %v1549
        %v1571 = vsel %vm1564, %v1559, %v1551
        %v1572 = vsel %vm1564, %v1561, %v1553
        %v1573 = vlaneseq
        %v1574 = vshrl.u32 %v1573, 7
        %v1575 = vsub.s32 0, %v1574
        %v1576 = vrot.slane %v1528, %v1575
        %v1577 = vlaneseq
        %v1578 = vshrl.u32 %v1577, 7
        %v1579 = vsub.s32 0, %v1578
        %v1580 = vrot.slane %v1529, %v1579
        %v1581 = vmul.f32 %v1576, %v1569
        %v1582 = vmul.f32 %v1580, %v1565
        %v1583 = vmul.f32 %v1576, %v1570
        %v1584 = vmul.f32 %v1580, %v1566
        %v1585 = vmul.f32 %v1576, %v1571
        %v1586 = vmul.f32 %v1580, %v1567
        %v1587 = vmul.f32 %v1576, %v1572
        %v1588 = vmul.f32 %v1580, %v1568
        %v1589 = vadd.f32 %v1541, %v1581
        %v1590 = vadd.f32 %v1545, %v1582
        %v1591 = vadd.f32 %v1541, %v1583
        %v1592 = vadd.f32 %v1545, %v1584
        %v1593 = vadd.f32 %v1541, %v1585
        %v1594 = vadd.f32 %v1545, %v1586
        %v1595 = vadd.f32 %v1541, %v1587
        %v1596 = vadd.f32 %v1545, %v1588
        %1597 = vrot.lane.b32.xlu0 %v1081, 16
        %v1598 = vpop.permute.xlu0 %1597
        %1599 = vrot.lane.b32.xlu0 %v1083, 16
        %v1600 = vpop.permute.xlu0 %1599
        %1601 = vrot.lane.b32.xlu0 %v1085, 16
        %v1602 = vpop.permute.xlu0 %1601
        %1603 = vrot.lane.b32.xlu0 %v1087, 16
        %v1604 = vpop.permute.xlu0 %1603
        %1605 = vrot.lane.b32.xlu0 %v1082, 16
        %v1606 = vpop.permute.xlu0 %1605
        %1607 = vrot.lane.b32.xlu0 %v1084, 16
        %v1608 = vpop.permute.xlu0 %1607
        %1609 = vrot.lane.b32.xlu0 %v1086, 16
        %v1610 = vpop.permute.xlu0 %1609
        %1611 = vrot.lane.b32.xlu0 %v1088, 16
        %v1612 = vpop.permute.xlu0 %1611
        %vm1613 = vcmp.lt.s32.totalorder %v1563, 16
        %v1614 = vsel %vm1613, %v1598, %v1606
        %v1615 = vsel %vm1613, %v1600, %v1608
        %v1616 = vsel %vm1613, %v1602, %v1610
        %v1617 = vsel %vm1613, %v1604, %v1612
        %v1618 = vsel %vm1613, %v1606, %v1598
        %v1619 = vsel %vm1613, %v1608, %v1600
        %v1620 = vsel %vm1613, %v1610, %v1602
        %v1621 = vsel %vm1613, %v1612, %v1604
        %v1622 = vlaneseq
        %v1623 = vshrl.u32 %v1622, 7
        %v1624 = vsub.s32 1, %v1623
        %v1625 = vrot.slane %v1528, %v1624
        %v1626 = vlaneseq
        %v1627 = vshrl.u32 %v1626, 7
        %v1628 = vsub.s32 1, %v1627
        %v1629 = vrot.slane %v1529, %v1628
        %v1630 = vmul.f32 %v1625, %v1618
        %v1631 = vmul.f32 %v1629, %v1614
        %v1632 = vmul.f32 %v1625, %v1619
        %v1633 = vmul.f32 %v1629, %v1615
        %v1634 = vmul.f32 %v1625, %v1620
        %v1635 = vmul.f32 %v1629, %v1616
        %v1636 = vmul.f32 %v1625, %v1621
        %v1637 = vmul.f32 %v1629, %v1617
        %v1638 = vadd.f32 %v1589, %v1630
        %v1639 = vadd.f32 %v1590, %v1631
        %v1640 = vadd.f32 %v1591, %v1632
        %v1641 = vadd.f32 %v1592, %v1633
        %v1642 = vadd.f32 %v1593, %v1634
        %v1643 = vadd.f32 %v1594, %v1635
        %v1644 = vadd.f32 %v1595, %v1636
        %v1645 = vadd.f32 %v1596, %v1637
        %1646 = vrot.lane.b32.xlu0 %v1081, 15
        %v1647 = vpop.permute.xlu0 %1646
        %1648 = vrot.lane.b32.xlu0 %v1083, 15
        %v1649 = vpop.permute.xlu0 %1648
        %1650 = vrot.lane.b32.xlu0 %v1085, 15
        %v1651 = vpop.permute.xlu0 %1650
        %1652 = vrot.lane.b32.xlu0 %v1087, 15
        %v1653 = vpop.permute.xlu0 %1652
        %1654 = vrot.lane.b32.xlu0 %v1082, 15
        %v1655 = vpop.permute.xlu0 %1654
        %1656 = vrot.lane.b32.xlu0 %v1084, 15
        %v1657 = vpop.permute.xlu0 %1656
        %1658 = vrot.lane.b32.xlu0 %v1086, 15
        %v1659 = vpop.permute.xlu0 %1658
        %1660 = vrot.lane.b32.xlu0 %v1088, 15
        %v1661 = vpop.permute.xlu0 %1660
        %vm1662 = vcmp.lt.s32.totalorder %v1563, 15
        %v1663 = vsel %vm1662, %v1647, %v1655
        %v1664 = vsel %vm1662, %v1649, %v1657
        %v1665 = vsel %vm1662, %v1651, %v1659
        %v1666 = vsel %vm1662, %v1653, %v1661
        %v1667 = vsel %vm1662, %v1655, %v1647
        %v1668 = vsel %vm1662, %v1657, %v1649
        %v1669 = vsel %vm1662, %v1659, %v1651
        %v1670 = vsel %vm1662, %v1661, %v1653
        %v1671 = vlaneseq
        %v1672 = vshrl.u32 %v1671, 7
        %v1673 = vsub.s32 2, %v1672
        %v1674 = vrot.slane %v1528, %v1673
        %v1675 = vlaneseq
        %v1676 = vshrl.u32 %v1675, 7
        %v1677 = vsub.s32 2, %v1676
        %v1678 = vrot.slane %v1529, %v1677
        %v1679 = vmul.f32 %v1674, %v1667
        %v1680 = vmul.f32 %v1678, %v1663
        %v1681 = vmul.f32 %v1674, %v1668
        %v1682 = vmul.f32 %v1678, %v1664
        %v1683 = vmul.f32 %v1674, %v1669
        %v1684 = vmul.f32 %v1678, %v1665
        %v1685 = vmul.f32 %v1674, %v1670
        %v1686 = vmul.f32 %v1678, %v1666
        %v1687 = vadd.f32 %v1638, %v1679
        %v1688 = vadd.f32 %v1639, %v1680
        %v1689 = vadd.f32 %v1640, %v1681
        %v1690 = vadd.f32 %v1641, %v1682
        %v1691 = vadd.f32 %v1642, %v1683
        %v1692 = vadd.f32 %v1643, %v1684
        %v1693 = vadd.f32 %v1644, %v1685
        %v1694 = vadd.f32 %v1645, %v1686
        %1695 = vrot.lane.b32.xlu0 %v1081, 1
        %v1696 = vpop.permute.xlu0 %1695
        %1697 = vrot.lane.b32.xlu0 %v1083, 1
        %v1698 = vpop.permute.xlu0 %1697
        %1699 = vrot.lane.b32.xlu0 %v1085, 1
        %v1700 = vpop.permute.xlu0 %1699
        %1701 = vrot.lane.b32.xlu0 %v1087, 1
        %v1702 = vpop.permute.xlu0 %1701
        %1703 = vrot.lane.b32.xlu0 %v1082, 1
        %v1704 = vpop.permute.xlu0 %1703
        %1705 = vrot.lane.b32.xlu0 %v1084, 1
        %v1706 = vpop.permute.xlu0 %1705
        %1707 = vrot.lane.b32.xlu0 %v1086, 1
        %v1708 = vpop.permute.xlu0 %1707
        %1709 = vrot.lane.b32.xlu0 %v1088, 1
        %v1710 = vpop.permute.xlu0 %1709
        %vm1711 = vcmp.lt.s32.totalorder %v1563, 1
        %v1712 = vsel %vm1711, %v1696, %v1704
        %v1713 = vsel %vm1711, %v1698, %v1706
        %v1714 = vsel %vm1711, %v1700, %v1708
        %v1715 = vsel %vm1711, %v1702, %v1710
        %v1716 = vsel %vm1711, %v1704, %v1696
        %v1717 = vsel %vm1711, %v1706, %v1698
        %v1718 = vsel %vm1711, %v1708, %v1700
        %v1719 = vsel %vm1711, %v1710, %v1702
        %v1720 = vlaneseq
        %v1721 = vshrl.u32 %v1720, 7
        %v1722 = vsub.s32 3, %v1721
        %v1723 = vrot.slane %v1528, %v1722
        %v1724 = vlaneseq
        %v1725 = vshrl.u32 %v1724, 7
        %v1726 = vsub.s32 3, %v1725
        %v1727 = vrot.slane %v1529, %v1726
        %v1728 = vmul.f32 %v1723, %v1716
        %v1729 = vmul.f32 %v1727, %v1712
        %v1730 = vmul.f32 %v1723, %v1717
        %v1731 = vmul.f32 %v1727, %v1713
        %v1732 = vmul.f32 %v1723, %v1718
        %v1733 = vmul.f32 %v1727, %v1714
        %v1734 = vmul.f32 %v1723, %v1719
        %v1735 = vmul.f32 %v1727, %v1715
        %v1736 = vadd.f32 %v1687, %v1728
        %v1737 = vadd.f32 %v1688, %v1729
        %v1738 = vadd.f32 %v1689, %v1730
        %v1739 = vadd.f32 %v1690, %v1731
        %v1740 = vadd.f32 %v1691, %v1732
        %v1741 = vadd.f32 %v1692, %v1733
        %v1742 = vadd.f32 %v1693, %v1734
        %v1743 = vadd.f32 %v1694, %v1735
        %v1744 = vlaneseq
        %v1745 = vshrl.u32 %v1744, 7
        %v1746 = vsub.s32 4, %v1745
        %v1747 = vrot.slane %v1528, %v1746
        %v1748 = vlaneseq
        %v1749 = vshrl.u32 %v1748, 7
        %v1750 = vsub.s32 4, %v1749
        %v1751 = vrot.slane %v1529, %v1750
        %v1752 = vmul.f32 %v1747, %v1081
        %v1753 = vmul.f32 %v1751, %v1082
        %v1754 = vmul.f32 %v1747, %v1083
        %v1755 = vmul.f32 %v1751, %v1084
        %v1756 = vmul.f32 %v1747, %v1085
        %v1757 = vmul.f32 %v1751, %v1086
        %v1758 = vmul.f32 %v1747, %v1087
        %v1759 = vmul.f32 %v1751, %v1088
        %v1760 = vadd.f32 %v1736, %v1752
        %v1761 = vadd.f32 %v1737, %v1753
        %v1762 = vadd.f32 %v1738, %v1754
        %v1763 = vadd.f32 %v1739, %v1755
        %v1764 = vadd.f32 %v1740, %v1756
        %v1765 = vadd.f32 %v1741, %v1757
        %v1766 = vadd.f32 %v1742, %v1758
        %v1767 = vadd.f32 %v1743, %v1759
        %1768 = vrot.lane.b32.xlu0 %v1081, 127
        %v1769 = vpop.permute.xlu0 %1768
        %1770 = vrot.lane.b32.xlu0 %v1083, 127
        %v1771 = vpop.permute.xlu0 %1770
        %1772 = vrot.lane.b32.xlu0 %v1085, 127
        %v1773 = vpop.permute.xlu0 %1772
        %1774 = vrot.lane.b32.xlu0 %v1087, 127
        %v1775 = vpop.permute.xlu0 %1774
        %1776 = vrot.lane.b32.xlu0 %v1082, 127
        %v1777 = vpop.permute.xlu0 %1776
        %1778 = vrot.lane.b32.xlu0 %v1084, 127
        %v1779 = vpop.permute.xlu0 %1778
        %1780 = vrot.lane.b32.xlu0 %v1086, 127
        %v1781 = vpop.permute.xlu0 %1780
        %1782 = vrot.lane.b32.xlu0 %v1088, 127
        %v1783 = vpop.permute.xlu0 %1782
        %vm1784 = vcmp.lt.s32.totalorder %v1563, 127
        %v1785 = vsel %vm1784, %v1769, %v1777
        %v1786 = vsel %vm1784, %v1771, %v1779
        %v1787 = vsel %vm1784, %v1773, %v1781
        %v1788 = vsel %vm1784, %v1775, %v1783
        %v1789 = vsel %vm1784, %v1777, %v1769
        %v1790 = vsel %vm1784, %v1779, %v1771
        %v1791 = vsel %vm1784, %v1781, %v1773
        %v1792 = vsel %vm1784, %v1783, %v1775
        %v1793 = vlaneseq
        %v1794 = vshrl.u32 %v1793, 7
        %v1795 = vsub.s32 5, %v1794
        %v1796 = vrot.slane %v1528, %v1795
        %v1797 = vlaneseq
        %v1798 = vshrl.u32 %v1797, 7
        %v1799 = vsub.s32 5, %v1798
        %v1800 = vrot.slane %v1529, %v1799
        %v1801 = vmul.f32 %v1796, %v1785
        %v1802 = vmul.f32 %v1800, %v1789
        %v1803 = vmul.f32 %v1796, %v1786
        %v1804 = vmul.f32 %v1800, %v1790
        %v1805 = vmul.f32 %v1796, %v1787
        %v1806 = vmul.f32 %v1800, %v1791
        %v1807 = vmul.f32 %v1796, %v1788
        %v1808 = vmul.f32 %v1800, %v1792
        %v1809 = vadd.f32 %v1760, %v1801
        %v1810 = vadd.f32 %v1761, %v1802
        %v1811 = vadd.f32 %v1762, %v1803
        %v1812 = vadd.f32 %v1763, %v1804
        %v1813 = vadd.f32 %v1764, %v1805
        %v1814 = vadd.f32 %v1765, %v1806
        %v1815 = vadd.f32 %v1766, %v1807
        %v1816 = vadd.f32 %v1767, %v1808
        %1817 = vrot.lane.b32.xlu0 %v1081, 113
        %v1818 = vpop.permute.xlu0 %1817
        %1819 = vrot.lane.b32.xlu0 %v1083, 113
        %v1820 = vpop.permute.xlu0 %1819
        %1821 = vrot.lane.b32.xlu0 %v1085, 113
        %v1822 = vpop.permute.xlu0 %1821
        %1823 = vrot.lane.b32.xlu0 %v1087, 113
        %v1824 = vpop.permute.xlu0 %1823
        %1825 = vrot.lane.b32.xlu0 %v1082, 113
        %v1826 = vpop.permute.xlu0 %1825
        %1827 = vrot.lane.b32.xlu0 %v1084, 113
        %v1828 = vpop.permute.xlu0 %1827
        %1829 = vrot.lane.b32.xlu0 %v1086, 113
        %v1830 = vpop.permute.xlu0 %1829
        %1831 = vrot.lane.b32.xlu0 %v1088, 113
        %v1832 = vpop.permute.xlu0 %1831
        %vm1833 = vcmp.lt.s32.totalorder %v1563, 113
        %v1834 = vsel %vm1833, %v1818, %v1826
        %v1835 = vsel %vm1833, %v1820, %v1828
        %v1836 = vsel %vm1833, %v1822, %v1830
        %v1837 = vsel %vm1833, %v1824, %v1832
        %v1838 = vsel %vm1833, %v1826, %v1818
        %v1839 = vsel %vm1833, %v1828, %v1820
        %v1840 = vsel %vm1833, %v1830, %v1822
        %v1841 = vsel %vm1833, %v1832, %v1824
        %v1842 = vlaneseq
        %v1843 = vshrl.u32 %v1842, 7
        %v1844 = vsub.s32 6, %v1843
        %v1845 = vrot.slane %v1528, %v1844
        %v1846 = vlaneseq
        %v1847 = vshrl.u32 %v1846, 7
        %v1848 = vsub.s32 6, %v1847
        %v1849 = vrot.slane %v1529, %v1848
        %v1850 = vmul.f32 %v1845, %v1834
        %v1851 = vmul.f32 %v1849, %v1838
        %v1852 = vmul.f32 %v1845, %v1835
        %v1853 = vmul.f32 %v1849, %v1839
        %v1854 = vmul.f32 %v1845, %v1836
        %v1855 = vmul.f32 %v1849, %v1840
        %v1856 = vmul.f32 %v1845, %v1837
        %v1857 = vmul.f32 %v1849, %v1841
        %v1858 = vadd.f32 %v1809, %v1850
        %v1859 = vadd.f32 %v1810, %v1851
        %v1860 = vadd.f32 %v1811, %v1852
        %v1861 = vadd.f32 %v1812, %v1853
        %v1862 = vadd.f32 %v1813, %v1854
        %v1863 = vadd.f32 %v1814, %v1855
        %v1864 = vadd.f32 %v1815, %v1856
        %v1865 = vadd.f32 %v1816, %v1857
        %1866 = vrot.lane.b32.xlu0 %v1081, 112
        %v1867 = vpop.permute.xlu0 %1866
        %1868 = vrot.lane.b32.xlu0 %v1083, 112
        %v1869 = vpop.permute.xlu0 %1868
        %1870 = vrot.lane.b32.xlu0 %v1085, 112
        %v1871 = vpop.permute.xlu0 %1870
        %1872 = vrot.lane.b32.xlu0 %v1087, 112
        %v1873 = vpop.permute.xlu0 %1872
        %1874 = vrot.lane.b32.xlu0 %v1082, 112
        %v1875 = vpop.permute.xlu0 %1874
        %1876 = vrot.lane.b32.xlu0 %v1084, 112
        %v1877 = vpop.permute.xlu0 %1876
        %1878 = vrot.lane.b32.xlu0 %v1086, 112
        %v1879 = vpop.permute.xlu0 %1878
        %1880 = vrot.lane.b32.xlu0 %v1088, 112
        %v1881 = vpop.permute.xlu0 %1880
        %vm1882 = vcmp.lt.s32.totalorder %v1563, 112
        %v1883 = vsel %vm1882, %v1867, %v1875
        %v1884 = vsel %vm1882, %v1869, %v1877
        %v1885 = vsel %vm1882, %v1871, %v1879
        %v1886 = vsel %vm1882, %v1873, %v1881
        %v1887 = vsel %vm1882, %v1875, %v1867
        %v1888 = vsel %vm1882, %v1877, %v1869
        %v1889 = vsel %vm1882, %v1879, %v1871
        %v1890 = vsel %vm1882, %v1881, %v1873
        %v1891 = vlaneseq
        %v1892 = vshrl.u32 %v1891, 7
        %v1893 = vsub.s32 7, %v1892
        %v1894 = vrot.slane %v1528, %v1893
        %v1895 = vlaneseq
        %v1896 = vshrl.u32 %v1895, 7
        %v1897 = vsub.s32 7, %v1896
        %v1898 = vrot.slane %v1529, %v1897
        %v1899 = vmul.f32 %v1894, %v1883
        %v1900 = vmul.f32 %v1898, %v1887
        %v1901 = vmul.f32 %v1894, %v1884
        %v1902 = vmul.f32 %v1898, %v1888
        %v1903 = vmul.f32 %v1894, %v1885
        %v1904 = vmul.f32 %v1898, %v1889
        %v1905 = vmul.f32 %v1894, %v1886
        %v1906 = vmul.f32 %v1898, %v1890
        %v1907 = vadd.f32 %v1858, %v1899
        %v1908 = vadd.f32 %v1859, %v1900
        %v1909 = vadd.f32 %v1860, %v1901
        %v1910 = vadd.f32 %v1861, %v1902
        %v1911 = vadd.f32 %v1862, %v1903
        %v1912 = vadd.f32 %v1863, %v1904
        %v1913 = vadd.f32 %v1864, %v1905
        %v1914 = vadd.f32 %v1865, %v1906
        %1915 = vrot.lane.b32.xlu0 %v1081, 111
        %v1916 = vpop.permute.xlu0 %1915
        %1917 = vrot.lane.b32.xlu0 %v1083, 111
        %v1918 = vpop.permute.xlu0 %1917
        %1919 = vrot.lane.b32.xlu0 %v1085, 111
        %v1920 = vpop.permute.xlu0 %1919
        %1921 = vrot.lane.b32.xlu0 %v1087, 111
        %v1922 = vpop.permute.xlu0 %1921
        %1923 = vrot.lane.b32.xlu0 %v1082, 111
        %v1924 = vpop.permute.xlu0 %1923
        %1925 = vrot.lane.b32.xlu0 %v1084, 111
        %v1926 = vpop.permute.xlu0 %1925
        %1927 = vrot.lane.b32.xlu0 %v1086, 111
        %v1928 = vpop.permute.xlu0 %1927
        %1929 = vrot.lane.b32.xlu0 %v1088, 111
        %v1930 = vpop.permute.xlu0 %1929
        %vm1931 = vcmp.lt.s32.totalorder %v1563, 111
        %v1932 = vsel %vm1931, %v1916, %v1924
        %v1933 = vsel %vm1931, %v1918, %v1926
        %v1934 = vsel %vm1931, %v1920, %v1928
        %v1935 = vsel %vm1931, %v1922, %v1930
        %v1936 = vsel %vm1931, %v1924, %v1916
        %v1937 = vsel %vm1931, %v1926, %v1918
        %v1938 = vsel %vm1931, %v1928, %v1920
        %v1939 = vsel %vm1931, %v1930, %v1922
        %v1940 = vlaneseq
        %v1941 = vshrl.u32 %v1940, 7
        %v1942 = vsub.s32 0, %v1941
        %v1943 = vrot.slane %v1530, %v1942
        %v1944 = vlaneseq
        %v1945 = vshrl.u32 %v1944, 7
        %v1946 = vsub.s32 0, %v1945
        %v1947 = vrot.slane %v1531, %v1946
        %v1948 = vmul.f32 %v1943, %v1932
        %v1949 = vmul.f32 %v1947, %v1936
        %v1950 = vmul.f32 %v1943, %v1933
        %v1951 = vmul.f32 %v1947, %v1937
        %v1952 = vmul.f32 %v1943, %v1934
        %v1953 = vmul.f32 %v1947, %v1938
        %v1954 = vmul.f32 %v1943, %v1935
        %v1955 = vmul.f32 %v1947, %v1939
        %v1956 = vadd.f32 %v1907, %v1948
        %v1957 = vadd.f32 %v1908, %v1949
        %v1958 = vadd.f32 %v1909, %v1950
        %v1959 = vadd.f32 %v1910, %v1951
        %v1960 = vadd.f32 %v1911, %v1952
        %v1961 = vadd.f32 %v1912, %v1953
        %v1962 = vadd.f32 %v1913, %v1954
        %v1963 = vadd.f32 %v1914, %v1955
        %1964 = vrot.lane.b32.xlu0 %v1089, 17
        %v1965 = vpop.permute.xlu0 %1964
        %1966 = vrot.lane.b32.xlu0 %v1091, 17
        %v1967 = vpop.permute.xlu0 %1966
        %1968 = vrot.lane.b32.xlu0 %v1093, 17
        %v1969 = vpop.permute.xlu0 %1968
        %1970 = vrot.lane.b32.xlu0 %v1095, 17
        %v1971 = vpop.permute.xlu0 %1970
        %1972 = vrot.lane.b32.xlu0 %v1090, 17
        %v1973 = vpop.permute.xlu0 %1972
        %1974 = vrot.lane.b32.xlu0 %v1092, 17
        %v1975 = vpop.permute.xlu0 %1974
        %1976 = vrot.lane.b32.xlu0 %v1094, 17
        %v1977 = vpop.permute.xlu0 %1976
        %1978 = vrot.lane.b32.xlu0 %v1096, 17
        %v1979 = vpop.permute.xlu0 %1978
        %v1980 = vsel %vm1564, %v1965, %v1973
        %v1981 = vsel %vm1564, %v1967, %v1975
        %v1982 = vsel %vm1564, %v1969, %v1977
        %v1983 = vsel %vm1564, %v1971, %v1979
        %v1984 = vsel %vm1564, %v1973, %v1965
        %v1985 = vsel %vm1564, %v1975, %v1967
        %v1986 = vsel %vm1564, %v1977, %v1969
        %v1987 = vsel %vm1564, %v1979, %v1971
        %v1988 = vlaneseq
        %v1989 = vshrl.u32 %v1988, 7
        %v1990 = vsub.s32 1, %v1989
        %v1991 = vrot.slane %v1530, %v1990
        %v1992 = vlaneseq
        %v1993 = vshrl.u32 %v1992, 7
        %v1994 = vsub.s32 1, %v1993
        %v1995 = vrot.slane %v1531, %v1994
        %v1996 = vmul.f32 %v1991, %v1984
        %v1997 = vmul.f32 %v1995, %v1980
        %v1998 = vmul.f32 %v1991, %v1985
        %v1999 = vmul.f32 %v1995, %v1981
        %v2000 = vmul.f32 %v1991, %v1986
        %v2001 = vmul.f32 %v1995, %v1982
        %v2002 = vmul.f32 %v1991, %v1987
        %v2003 = vmul.f32 %v1995, %v1983
        %v2004 = vadd.f32 %v1956, %v1996
        %v2005 = vadd.f32 %v1957, %v1997
        %v2006 = vadd.f32 %v1958, %v1998
        %v2007 = vadd.f32 %v1959, %v1999
        %v2008 = vadd.f32 %v1960, %v2000
        %v2009 = vadd.f32 %v1961, %v2001
        %v2010 = vadd.f32 %v1962, %v2002
        %v2011 = vadd.f32 %v1963, %v2003
        %2012 = vrot.lane.b32.xlu0 %v1089, 16
        %v2013 = vpop.permute.xlu0 %2012
        %2014 = vrot.lane.b32.xlu0 %v1091, 16
        %v2015 = vpop.permute.xlu0 %2014
        %2016 = vrot.lane.b32.xlu0 %v1093, 16
        %v2017 = vpop.permute.xlu0 %2016
        %2018 = vrot.lane.b32.xlu0 %v1095, 16
        %v2019 = vpop.permute.xlu0 %2018
        %2020 = vrot.lane.b32.xlu0 %v1090, 16
        %v2021 = vpop.permute.xlu0 %2020
        %2022 = vrot.lane.b32.xlu0 %v1092, 16
        %v2023 = vpop.permute.xlu0 %2022
        %2024 = vrot.lane.b32.xlu0 %v1094, 16
        %v2025 = vpop.permute.xlu0 %2024
        %2026 = vrot.lane.b32.xlu0 %v1096, 16
        %v2027 = vpop.permute.xlu0 %2026
        %v2028 = vsel %vm1613, %v2013, %v2021
        %v2029 = vsel %vm1613, %v2015, %v2023
        %v2030 = vsel %vm1613, %v2017, %v2025
        %v2031 = vsel %vm1613, %v2019, %v2027
        %v2032 = vsel %vm1613, %v2021, %v2013
        %v2033 = vsel %vm1613, %v2023, %v2015
        %v2034 = vsel %vm1613, %v2025, %v2017
        %v2035 = vsel %vm1613, %v2027, %v2019
        %v2036 = vlaneseq
        %v2037 = vshrl.u32 %v2036, 7
        %v2038 = vsub.s32 2, %v2037
        %v2039 = vrot.slane %v1530, %v2038
        %v2040 = vlaneseq
        %v2041 = vshrl.u32 %v2040, 7
        %v2042 = vsub.s32 2, %v2041
        %v2043 = vrot.slane %v1531, %v2042
        %v2044 = vmul.f32 %v2039, %v2032
        %v2045 = vmul.f32 %v2043, %v2028
        %v2046 = vmul.f32 %v2039, %v2033
        %v2047 = vmul.f32 %v2043, %v2029
        %v2048 = vmul.f32 %v2039, %v2034
        %v2049 = vmul.f32 %v2043, %v2030
        %v2050 = vmul.f32 %v2039, %v2035
        %v2051 = vmul.f32 %v2043, %v2031
        %v2052 = vadd.f32 %v2004, %v2044
        %v2053 = vadd.f32 %v2005, %v2045
        %v2054 = vadd.f32 %v2006, %v2046
        %v2055 = vadd.f32 %v2007, %v2047
        %v2056 = vadd.f32 %v2008, %v2048
        %v2057 = vadd.f32 %v2009, %v2049
        %v2058 = vadd.f32 %v2010, %v2050
        %v2059 = vadd.f32 %v2011, %v2051
        %2060 = vrot.lane.b32.xlu0 %v1089, 15
        %v2061 = vpop.permute.xlu0 %2060
        %2062 = vrot.lane.b32.xlu0 %v1091, 15
        %v2063 = vpop.permute.xlu0 %2062
        %2064 = vrot.lane.b32.xlu0 %v1093, 15
        %v2065 = vpop.permute.xlu0 %2064
        %2066 = vrot.lane.b32.xlu0 %v1095, 15
        %v2067 = vpop.permute.xlu0 %2066
        %2068 = vrot.lane.b32.xlu0 %v1090, 15
        %v2069 = vpop.permute.xlu0 %2068
        %2070 = vrot.lane.b32.xlu0 %v1092, 15
        %v2071 = vpop.permute.xlu0 %2070
        %2072 = vrot.lane.b32.xlu0 %v1094, 15
        %v2073 = vpop.permute.xlu0 %2072
        %2074 = vrot.lane.b32.xlu0 %v1096, 15
        %v2075 = vpop.permute.xlu0 %2074
        %v2076 = vsel %vm1662, %v2061, %v2069
        %v2077 = vsel %vm1662, %v2063, %v2071
        %v2078 = vsel %vm1662, %v2065, %v2073
        %v2079 = vsel %vm1662, %v2067, %v2075
        %v2080 = vsel %vm1662, %v2069, %v2061
        %v2081 = vsel %vm1662, %v2071, %v2063
        %v2082 = vsel %vm1662, %v2073, %v2065
        %v2083 = vsel %vm1662, %v2075, %v2067
        %v2084 = vlaneseq
        %v2085 = vshrl.u32 %v2084, 7
        %v2086 = vsub.s32 3, %v2085
        %v2087 = vrot.slane %v1530, %v2086
        %v2088 = vlaneseq
        %v2089 = vshrl.u32 %v2088, 7
        %v2090 = vsub.s32 3, %v2089
        %v2091 = vrot.slane %v1531, %v2090
        %v2092 = vmul.f32 %v2087, %v2080
        %v2093 = vmul.f32 %v2091, %v2076
        %v2094 = vmul.f32 %v2087, %v2081
        %v2095 = vmul.f32 %v2091, %v2077
        %v2096 = vmul.f32 %v2087, %v2082
        %v2097 = vmul.f32 %v2091, %v2078
        %v2098 = vmul.f32 %v2087, %v2083
        %v2099 = vmul.f32 %v2091, %v2079
        %v2100 = vadd.f32 %v2052, %v2092
        %v2101 = vadd.f32 %v2053, %v2093
        %v2102 = vadd.f32 %v2054, %v2094
        %v2103 = vadd.f32 %v2055, %v2095
        %v2104 = vadd.f32 %v2056, %v2096
        %v2105 = vadd.f32 %v2057, %v2097
        %v2106 = vadd.f32 %v2058, %v2098
        %v2107 = vadd.f32 %v2059, %v2099
        %2108 = vrot.lane.b32.xlu0 %v1089, 1
        %v2109 = vpop.permute.xlu0 %2108
        %2110 = vrot.lane.b32.xlu0 %v1091, 1
        %v2111 = vpop.permute.xlu0 %2110
        %2112 = vrot.lane.b32.xlu0 %v1093, 1
        %v2113 = vpop.permute.xlu0 %2112
        %2114 = vrot.lane.b32.xlu0 %v1095, 1
        %v2115 = vpop.permute.xlu0 %2114
        %2116 = vrot.lane.b32.xlu0 %v1090, 1
        %v2117 = vpop.permute.xlu0 %2116
        %2118 = vrot.lane.b32.xlu0 %v1092, 1
        %v2119 = vpop.permute.xlu0 %2118
        %2120 = vrot.lane.b32.xlu0 %v1094, 1
        %v2121 = vpop.permute.xlu0 %2120
        %2122 = vrot.lane.b32.xlu0 %v1096, 1
        %v2123 = vpop.permute.xlu0 %2122
        %v2124 = vsel %vm1711, %v2109, %v2117
        %v2125 = vsel %vm1711, %v2111, %v2119
        %v2126 = vsel %vm1711, %v2113, %v2121
        %v2127 = vsel %vm1711, %v2115, %v2123
        %v2128 = vsel %vm1711, %v2117, %v2109
        %v2129 = vsel %vm1711, %v2119, %v2111
        %v2130 = vsel %vm1711, %v2121, %v2113
        %v2131 = vsel %vm1711, %v2123, %v2115
        %v2132 = vlaneseq
        %v2133 = vshrl.u32 %v2132, 7
        %v2134 = vsub.s32 4, %v2133
        %v2135 = vrot.slane %v1530, %v2134
        %v2136 = vlaneseq
        %v2137 = vshrl.u32 %v2136, 7
        %v2138 = vsub.s32 4, %v2137
        %v2139 = vrot.slane %v1531, %v2138
        %v2140 = vmul.f32 %v2135, %v2128
        %v2141 = vmul.f32 %v2139, %v2124
        %v2142 = vmul.f32 %v2135, %v2129
        %v2143 = vmul.f32 %v2139, %v2125
        %v2144 = vmul.f32 %v2135, %v2130
        %v2145 = vmul.f32 %v2139, %v2126
        %v2146 = vmul.f32 %v2135, %v2131
        %v2147 = vmul.f32 %v2139, %v2127
        %v2148 = vadd.f32 %v2100, %v2140
        %v2149 = vadd.f32 %v2101, %v2141
        %v2150 = vadd.f32 %v2102, %v2142
        %v2151 = vadd.f32 %v2103, %v2143
        %v2152 = vadd.f32 %v2104, %v2144
        %v2153 = vadd.f32 %v2105, %v2145
        %v2154 = vadd.f32 %v2106, %v2146
        %v2155 = vadd.f32 %v2107, %v2147
        %v2156 = vlaneseq
        %v2157 = vshrl.u32 %v2156, 7
        %v2158 = vsub.s32 5, %v2157
        %v2159 = vrot.slane %v1530, %v2158
        %v2160 = vlaneseq
        %v2161 = vshrl.u32 %v2160, 7
        %v2162 = vsub.s32 5, %v2161
        %v2163 = vrot.slane %v1531, %v2162
        %v2164 = vmul.f32 %v2159, %v1089
        %v2165 = vmul.f32 %v2163, %v1090
        %v2166 = vmul.f32 %v2159, %v1091
        %v2167 = vmul.f32 %v2163, %v1092
        %v2168 = vmul.f32 %v2159, %v1093
        %v2169 = vmul.f32 %v2163, %v1094
        %v2170 = vmul.f32 %v2159, %v1095
        %v2171 = vmul.f32 %v2163, %v1096
        %v2172 = vadd.f32 %v2148, %v2164
        %v2173 = vadd.f32 %v2149, %v2165
        %v2174 = vadd.f32 %v2150, %v2166
        %v2175 = vadd.f32 %v2151, %v2167
        %v2176 = vadd.f32 %v2152, %v2168
        %v2177 = vadd.f32 %v2153, %v2169
        %v2178 = vadd.f32 %v2154, %v2170
        %v2179 = vadd.f32 %v2155, %v2171
        %2180 = vrot.lane.b32.xlu0 %v1089, 127
        %v2181 = vpop.permute.xlu0 %2180
        %2182 = vrot.lane.b32.xlu0 %v1091, 127
        %v2183 = vpop.permute.xlu0 %2182
        %2184 = vrot.lane.b32.xlu0 %v1093, 127
        %v2185 = vpop.permute.xlu0 %2184
        %2186 = vrot.lane.b32.xlu0 %v1095, 127
        %v2187 = vpop.permute.xlu0 %2186
        %2188 = vrot.lane.b32.xlu0 %v1090, 127
        %v2189 = vpop.permute.xlu0 %2188
        %2190 = vrot.lane.b32.xlu0 %v1092, 127
        %v2191 = vpop.permute.xlu0 %2190
        %2192 = vrot.lane.b32.xlu0 %v1094, 127
        %v2193 = vpop.permute.xlu0 %2192
        %2194 = vrot.lane.b32.xlu0 %v1096, 127
        %v2195 = vpop.permute.xlu0 %2194
        %v2196 = vsel %vm1784, %v2181, %v2189
        %v2197 = vsel %vm1784, %v2183, %v2191
        %v2198 = vsel %vm1784, %v2185, %v2193
        %v2199 = vsel %vm1784, %v2187, %v2195
        %v2200 = vsel %vm1784, %v2189, %v2181
        %v2201 = vsel %vm1784, %v2191, %v2183
        %v2202 = vsel %vm1784, %v2193, %v2185
        %v2203 = vsel %vm1784, %v2195, %v2187
        %v2204 = vlaneseq
        %v2205 = vshrl.u32 %v2204, 7
        %v2206 = vsub.s32 6, %v2205
        %v2207 = vrot.slane %v1530, %v2206
        %v2208 = vlaneseq
        %v2209 = vshrl.u32 %v2208, 7
        %v2210 = vsub.s32 6, %v2209
        %v2211 = vrot.slane %v1531, %v2210
        %v2212 = vmul.f32 %v2207, %v2196
        %v2213 = vmul.f32 %v2211, %v2200
        %v2214 = vmul.f32 %v2207, %v2197
        %v2215 = vmul.f32 %v2211, %v2201
        %v2216 = vmul.f32 %v2207, %v2198
        %v2217 = vmul.f32 %v2211, %v2202
        %v2218 = vmul.f32 %v2207, %v2199
        %v2219 = vmul.f32 %v2211, %v2203
        %v2220 = vadd.f32 %v2172, %v2212
        %v2221 = vadd.f32 %v2173, %v2213
        %v2222 = vadd.f32 %v2174, %v2214
        %v2223 = vadd.f32 %v2175, %v2215
        %v2224 = vadd.f32 %v2176, %v2216
        %v2225 = vadd.f32 %v2177, %v2217
        %v2226 = vadd.f32 %v2178, %v2218
        %v2227 = vadd.f32 %v2179, %v2219
        %2228 = vrot.lane.b32.xlu0 %v1089, 113
        %v2229 = vpop.permute.xlu0 %2228
        %2230 = vrot.lane.b32.xlu0 %v1091, 113
        %v2231 = vpop.permute.xlu0 %2230
        %2232 = vrot.lane.b32.xlu0 %v1093, 113
        %v2233 = vpop.permute.xlu0 %2232
        %2234 = vrot.lane.b32.xlu0 %v1095, 113
        %v2235 = vpop.permute.xlu0 %2234
        %2236 = vrot.lane.b32.xlu0 %v1090, 113
        %v2237 = vpop.permute.xlu0 %2236
        %2238 = vrot.lane.b32.xlu0 %v1092, 113
        %v2239 = vpop.permute.xlu0 %2238
        %2240 = vrot.lane.b32.xlu0 %v1094, 113
        %v2241 = vpop.permute.xlu0 %2240
        %2242 = vrot.lane.b32.xlu0 %v1096, 113
        %v2243 = vpop.permute.xlu0 %2242
        %v2244 = vsel %vm1833, %v2229, %v2237
        %v2245 = vsel %vm1833, %v2231, %v2239
        %v2246 = vsel %vm1833, %v2233, %v2241
        %v2247 = vsel %vm1833, %v2235, %v2243
        %v2248 = vsel %vm1833, %v2237, %v2229
        %v2249 = vsel %vm1833, %v2239, %v2231
        %v2250 = vsel %vm1833, %v2241, %v2233
        %v2251 = vsel %vm1833, %v2243, %v2235
        %v2252 = vlaneseq
        %v2253 = vshrl.u32 %v2252, 7
        %v2254 = vsub.s32 7, %v2253
        %v2255 = vrot.slane %v1530, %v2254
        %v2256 = vlaneseq
        %v2257 = vshrl.u32 %v2256, 7
        %v2258 = vsub.s32 7, %v2257
        %v2259 = vrot.slane %v1531, %v2258
        %v2260 = vmul.f32 %v2255, %v2244
        %v2261 = vmul.f32 %v2259, %v2248
        %v2262 = vmul.f32 %v2255, %v2245
        %v2263 = vmul.f32 %v2259, %v2249
        %v2264 = vmul.f32 %v2255, %v2246
        %v2265 = vmul.f32 %v2259, %v2250
        %v2266 = vmul.f32 %v2255, %v2247
        %v2267 = vmul.f32 %v2259, %v2251
        %v2268 = vadd.f32 %v2220, %v2260
        %v2269 = vadd.f32 %v2221, %v2261
        %v2270 = vadd.f32 %v2222, %v2262
        %v2271 = vadd.f32 %v2223, %v2263
        %v2272 = vadd.f32 %v2224, %v2264
        %v2273 = vadd.f32 %v2225, %v2265
        %v2274 = vadd.f32 %v2226, %v2266
        %v2275 = vadd.f32 %v2227, %v2267
        %2276 = vrot.lane.b32.xlu0 %v1089, 112
        %v2277 = vpop.permute.xlu0 %2276
        %2278 = vrot.lane.b32.xlu0 %v1091, 112
        %v2279 = vpop.permute.xlu0 %2278
        %2280 = vrot.lane.b32.xlu0 %v1093, 112
        %v2281 = vpop.permute.xlu0 %2280
        %2282 = vrot.lane.b32.xlu0 %v1095, 112
        %v2283 = vpop.permute.xlu0 %2282
        %2284 = vrot.lane.b32.xlu0 %v1090, 112
        %v2285 = vpop.permute.xlu0 %2284
        %2286 = vrot.lane.b32.xlu0 %v1092, 112
        %v2287 = vpop.permute.xlu0 %2286
        %2288 = vrot.lane.b32.xlu0 %v1094, 112
        %v2289 = vpop.permute.xlu0 %2288
        %2290 = vrot.lane.b32.xlu0 %v1096, 112
        %v2291 = vpop.permute.xlu0 %2290
        %v2292 = vsel %vm1882, %v2277, %v2285
        %v2293 = vsel %vm1882, %v2279, %v2287
        %v2294 = vsel %vm1882, %v2281, %v2289
        %v2295 = vsel %vm1882, %v2283, %v2291
        %v2296 = vsel %vm1882, %v2285, %v2277
        %v2297 = vsel %vm1882, %v2287, %v2279
        %v2298 = vsel %vm1882, %v2289, %v2281
        %v2299 = vsel %vm1882, %v2291, %v2283
        %v2300 = vlaneseq
        %v2301 = vshrl.u32 %v2300, 7
        %v2302 = vsub.s32 0, %v2301
        %v2303 = vrot.slane %v1532, %v2302
        %v2304 = vlaneseq
        %v2305 = vshrl.u32 %v2304, 7
        %v2306 = vsub.s32 0, %v2305
        %v2307 = vrot.slane %v1533, %v2306
        %v2308 = vmul.f32 %v2303, %v2292
        %v2309 = vmul.f32 %v2307, %v2296
        %v2310 = vmul.f32 %v2303, %v2293
        %v2311 = vmul.f32 %v2307, %v2297
        %v2312 = vmul.f32 %v2303, %v2294
        %v2313 = vmul.f32 %v2307, %v2298
        %v2314 = vmul.f32 %v2303, %v2295
        %v2315 = vmul.f32 %v2307, %v2299
        %v2316 = vadd.f32 %v2268, %v2308
        %v2317 = vadd.f32 %v2269, %v2309
        %v2318 = vadd.f32 %v2270, %v2310
        %v2319 = vadd.f32 %v2271, %v2311
        %v2320 = vadd.f32 %v2272, %v2312
        %v2321 = vadd.f32 %v2273, %v2313
        %v2322 = vadd.f32 %v2274, %v2314
        %v2323 = vadd.f32 %v2275, %v2315
        %2324 = vrot.lane.b32.xlu0 %v1089, 111
        %v2325 = vpop.permute.xlu0 %2324
        %2326 = vrot.lane.b32.xlu0 %v1091, 111
        %v2327 = vpop.permute.xlu0 %2326
        %2328 = vrot.lane.b32.xlu0 %v1093, 111
        %v2329 = vpop.permute.xlu0 %2328
        %2330 = vrot.lane.b32.xlu0 %v1095, 111
        %v2331 = vpop.permute.xlu0 %2330
        %2332 = vrot.lane.b32.xlu0 %v1090, 111
        %v2333 = vpop.permute.xlu0 %2332
        %2334 = vrot.lane.b32.xlu0 %v1092, 111
        %v2335 = vpop.permute.xlu0 %2334
        %2336 = vrot.lane.b32.xlu0 %v1094, 111
        %v2337 = vpop.permute.xlu0 %2336
        %2338 = vrot.lane.b32.xlu0 %v1096, 111
        %v2339 = vpop.permute.xlu0 %2338
        %v2340 = vsel %vm1931, %v2325, %v2333
        %v2341 = vsel %vm1931, %v2327, %v2335
        %v2342 = vsel %vm1931, %v2329, %v2337
        %v2343 = vsel %vm1931, %v2331, %v2339
        %v2344 = vsel %vm1931, %v2333, %v2325
        %v2345 = vsel %vm1931, %v2335, %v2327
        %v2346 = vsel %vm1931, %v2337, %v2329
        %v2347 = vsel %vm1931, %v2339, %v2331
        %v2348 = vlaneseq
        %v2349 = vshrl.u32 %v2348, 7
        %v2350 = vsub.s32 1, %v2349
        %v2351 = vrot.slane %v1532, %v2350
        %v2352 = vlaneseq
        %v2353 = vshrl.u32 %v2352, 7
        %v2354 = vsub.s32 1, %v2353
        %v2355 = vrot.slane %v1533, %v2354
        %v2356 = vmul.f32 %v2351, %v2340
        %v2357 = vmul.f32 %v2355, %v2344
        %v2358 = vmul.f32 %v2351, %v2341
        %v2359 = vmul.f32 %v2355, %v2345
        %v2360 = vmul.f32 %v2351, %v2342
        %v2361 = vmul.f32 %v2355, %v2346
        %v2362 = vmul.f32 %v2351, %v2343
        %v2363 = vmul.f32 %v2355, %v2347
        %v2364 = vadd.f32 %v2316, %v2356
        %v2365 = vadd.f32 %v2317, %v2357
        %v2366 = vadd.f32 %v2318, %v2358
        %v2367 = vadd.f32 %v2319, %v2359
        %v2368 = vadd.f32 %v2320, %v2360
        %v2369 = vadd.f32 %v2321, %v2361
        %v2370 = vadd.f32 %v2322, %v2362
        %v2371 = vadd.f32 %v2323, %v2363
        %2372 = vrot.lane.b32.xlu0 %v1247, 17
        %v2373 = vpop.permute.xlu0 %2372
        %2374 = vrot.lane.b32.xlu0 %v1249, 17
        %v2375 = vpop.permute.xlu0 %2374
        %2376 = vrot.lane.b32.xlu0 %v1251, 17
        %v2377 = vpop.permute.xlu0 %2376
        %2378 = vrot.lane.b32.xlu0 %v1253, 17
        %v2379 = vpop.permute.xlu0 %2378
        %2380 = vrot.lane.b32.xlu0 %v1248, 17
        %v2381 = vpop.permute.xlu0 %2380
        %2382 = vrot.lane.b32.xlu0 %v1250, 17
        %v2383 = vpop.permute.xlu0 %2382
        %2384 = vrot.lane.b32.xlu0 %v1252, 17
        %v2385 = vpop.permute.xlu0 %2384
        %2386 = vrot.lane.b32.xlu0 %v1254, 17
        %v2387 = vpop.permute.xlu0 %2386
        %v2388 = vsel %vm1564, %v2373, %v2381
        %v2389 = vsel %vm1564, %v2375, %v2383
        %v2390 = vsel %vm1564, %v2377, %v2385
        %v2391 = vsel %vm1564, %v2379, %v2387
        %v2392 = vsel %vm1564, %v2381, %v2373
        %v2393 = vsel %vm1564, %v2383, %v2375
        %v2394 = vsel %vm1564, %v2385, %v2377
        %v2395 = vsel %vm1564, %v2387, %v2379
        %v2396 = vlaneseq
        %v2397 = vshrl.u32 %v2396, 7
        %v2398 = vsub.s32 2, %v2397
        %v2399 = vrot.slane %v1532, %v2398
        %v2400 = vlaneseq
        %v2401 = vshrl.u32 %v2400, 7
        %v2402 = vsub.s32 2, %v2401
        %v2403 = vrot.slane %v1533, %v2402
        %v2404 = vmul.f32 %v2399, %v2392
        %v2405 = vmul.f32 %v2403, %v2388
        %v2406 = vmul.f32 %v2399, %v2393
        %v2407 = vmul.f32 %v2403, %v2389
        %v2408 = vmul.f32 %v2399, %v2394
        %v2409 = vmul.f32 %v2403, %v2390
        %v2410 = vmul.f32 %v2399, %v2395
        %v2411 = vmul.f32 %v2403, %v2391
        %v2412 = vadd.f32 %v2364, %v2404
        %v2413 = vadd.f32 %v2365, %v2405
        %v2414 = vadd.f32 %v2366, %v2406
        %v2415 = vadd.f32 %v2367, %v2407
        %v2416 = vadd.f32 %v2368, %v2408
        %v2417 = vadd.f32 %v2369, %v2409
        %v2418 = vadd.f32 %v2370, %v2410
        %v2419 = vadd.f32 %v2371, %v2411
        %2420 = vrot.lane.b32.xlu0 %v1247, 16
        %v2421 = vpop.permute.xlu0 %2420
        %2422 = vrot.lane.b32.xlu0 %v1249, 16
        %v2423 = vpop.permute.xlu0 %2422
        %2424 = vrot.lane.b32.xlu0 %v1251, 16
        %v2425 = vpop.permute.xlu0 %2424
        %2426 = vrot.lane.b32.xlu0 %v1253, 16
        %v2427 = vpop.permute.xlu0 %2426
        %2428 = vrot.lane.b32.xlu0 %v1248, 16
        %v2429 = vpop.permute.xlu0 %2428
        %2430 = vrot.lane.b32.xlu0 %v1250, 16
        %v2431 = vpop.permute.xlu0 %2430
        %2432 = vrot.lane.b32.xlu0 %v1252, 16
        %v2433 = vpop.permute.xlu0 %2432
        %2434 = vrot.lane.b32.xlu0 %v1254, 16
        %v2435 = vpop.permute.xlu0 %2434
        %v2436 = vsel %vm1613, %v2421, %v2429
        %v2437 = vsel %vm1613, %v2423, %v2431
        %v2438 = vsel %vm1613, %v2425, %v2433
        %v2439 = vsel %vm1613, %v2427, %v2435
        %v2440 = vsel %vm1613, %v2429, %v2421
        %v2441 = vsel %vm1613, %v2431, %v2423
        %v2442 = vsel %vm1613, %v2433, %v2425
        %v2443 = vsel %vm1613, %v2435, %v2427
        %v2444 = vlaneseq
        %v2445 = vshrl.u32 %v2444, 7
        %v2446 = vsub.s32 3, %v2445
        %v2447 = vrot.slane %v1532, %v2446
        %v2448 = vlaneseq
        %v2449 = vshrl.u32 %v2448, 7
        %v2450 = vsub.s32 3, %v2449
        %v2451 = vrot.slane %v1533, %v2450
        %v2452 = vmul.f32 %v2447, %v2440
        %v2453 = vmul.f32 %v2451, %v2436
        %v2454 = vmul.f32 %v2447, %v2441
        %v2455 = vmul.f32 %v2451, %v2437
        %v2456 = vmul.f32 %v2447, %v2442
        %v2457 = vmul.f32 %v2451, %v2438
        %v2458 = vmul.f32 %v2447, %v2443
        %v2459 = vmul.f32 %v2451, %v2439
        %v2460 = vadd.f32 %v2412, %v2452
        %v2461 = vadd.f32 %v2413, %v2453
        %v2462 = vadd.f32 %v2414, %v2454
        %v2463 = vadd.f32 %v2415, %v2455
        %v2464 = vadd.f32 %v2416, %v2456
        %v2465 = vadd.f32 %v2417, %v2457
        %v2466 = vadd.f32 %v2418, %v2458
        %v2467 = vadd.f32 %v2419, %v2459
        %2468 = vrot.lane.b32.xlu0 %v1247, 15
        %v2469 = vpop.permute.xlu0 %2468
        %2470 = vrot.lane.b32.xlu0 %v1249, 15
        %v2471 = vpop.permute.xlu0 %2470
        %2472 = vrot.lane.b32.xlu0 %v1251, 15
        %v2473 = vpop.permute.xlu0 %2472
        %2474 = vrot.lane.b32.xlu0 %v1253, 15
        %v2475 = vpop.permute.xlu0 %2474
        %2476 = vrot.lane.b32.xlu0 %v1248, 15
        %v2477 = vpop.permute.xlu0 %2476
        %2478 = vrot.lane.b32.xlu0 %v1250, 15
        %v2479 = vpop.permute.xlu0 %2478
        %2480 = vrot.lane.b32.xlu0 %v1252, 15
        %v2481 = vpop.permute.xlu0 %2480
        %2482 = vrot.lane.b32.xlu0 %v1254, 15
        %v2483 = vpop.permute.xlu0 %2482
        %v2484 = vsel %vm1662, %v2469, %v2477
        %v2485 = vsel %vm1662, %v2471, %v2479
        %v2486 = vsel %vm1662, %v2473, %v2481
        %v2487 = vsel %vm1662, %v2475, %v2483
        %v2488 = vsel %vm1662, %v2477, %v2469
        %v2489 = vsel %vm1662, %v2479, %v2471
        %v2490 = vsel %vm1662, %v2481, %v2473
        %v2491 = vsel %vm1662, %v2483, %v2475
        %v2492 = vlaneseq
        %v2493 = vshrl.u32 %v2492, 7
        %v2494 = vsub.s32 4, %v2493
        %v2495 = vrot.slane %v1532, %v2494
        %v2496 = vlaneseq
        %v2497 = vshrl.u32 %v2496, 7
        %v2498 = vsub.s32 4, %v2497
        %v2499 = vrot.slane %v1533, %v2498
        %v2500 = vmul.f32 %v2495, %v2488
        %v2501 = vmul.f32 %v2499, %v2484
        %v2502 = vmul.f32 %v2495, %v2489
        %v2503 = vmul.f32 %v2499, %v2485
        %v2504 = vmul.f32 %v2495, %v2490
        %v2505 = vmul.f32 %v2499, %v2486
        %v2506 = vmul.f32 %v2495, %v2491
        %v2507 = vmul.f32 %v2499, %v2487
        %v2508 = vadd.f32 %v2460, %v2500
        %v2509 = vadd.f32 %v2461, %v2501
        %v2510 = vadd.f32 %v2462, %v2502
        %v2511 = vadd.f32 %v2463, %v2503
        %v2512 = vadd.f32 %v2464, %v2504
        %v2513 = vadd.f32 %v2465, %v2505
        %v2514 = vadd.f32 %v2466, %v2506
        %v2515 = vadd.f32 %v2467, %v2507
        %2516 = vrot.lane.b32.xlu0 %v1247, 1
        %v2517 = vpop.permute.xlu0 %2516
        %2518 = vrot.lane.b32.xlu0 %v1249, 1
        %v2519 = vpop.permute.xlu0 %2518
        %2520 = vrot.lane.b32.xlu0 %v1251, 1
        %v2521 = vpop.permute.xlu0 %2520
        %2522 = vrot.lane.b32.xlu0 %v1253, 1
        %v2523 = vpop.permute.xlu0 %2522
        %2524 = vrot.lane.b32.xlu0 %v1248, 1
        %v2525 = vpop.permute.xlu0 %2524
        %2526 = vrot.lane.b32.xlu0 %v1250, 1
        %v2527 = vpop.permute.xlu0 %2526
        %2528 = vrot.lane.b32.xlu0 %v1252, 1
        %v2529 = vpop.permute.xlu0 %2528
        %2530 = vrot.lane.b32.xlu0 %v1254, 1
        %v2531 = vpop.permute.xlu0 %2530
        %v2532 = vsel %vm1711, %v2517, %v2525
        %v2533 = vsel %vm1711, %v2519, %v2527
        %v2534 = vsel %vm1711, %v2521, %v2529
        %v2535 = vsel %vm1711, %v2523, %v2531
        %v2536 = vsel %vm1711, %v2525, %v2517
        %v2537 = vsel %vm1711, %v2527, %v2519
        %v2538 = vsel %vm1711, %v2529, %v2521
        %v2539 = vsel %vm1711, %v2531, %v2523
        %v2540 = vlaneseq
        %v2541 = vshrl.u32 %v2540, 7
        %v2542 = vsub.s32 5, %v2541
        %v2543 = vrot.slane %v1532, %v2542
        %v2544 = vlaneseq
        %v2545 = vshrl.u32 %v2544, 7
        %v2546 = vsub.s32 5, %v2545
        %v2547 = vrot.slane %v1533, %v2546
        %v2548 = vmul.f32 %v2543, %v2536
        %v2549 = vmul.f32 %v2547, %v2532
        %v2550 = vmul.f32 %v2543, %v2537
        %v2551 = vmul.f32 %v2547, %v2533
        %v2552 = vmul.f32 %v2543, %v2538
        %v2553 = vmul.f32 %v2547, %v2534
        %v2554 = vmul.f32 %v2543, %v2539
        %v2555 = vmul.f32 %v2547, %v2535
        %v2556 = vadd.f32 %v2508, %v2548
        %v2557 = vadd.f32 %v2509, %v2549
        %v2558 = vadd.f32 %v2510, %v2550
        %v2559 = vadd.f32 %v2511, %v2551
        %v2560 = vadd.f32 %v2512, %v2552
        %v2561 = vadd.f32 %v2513, %v2553
        %v2562 = vadd.f32 %v2514, %v2554
        %v2563 = vadd.f32 %v2515, %v2555
        %v2564 = vlaneseq
        %v2565 = vshrl.u32 %v2564, 7
        %v2566 = vsub.s32 6, %v2565
        %v2567 = vrot.slane %v1532, %v2566
        %v2568 = vlaneseq
        %v2569 = vshrl.u32 %v2568, 7
        %v2570 = vsub.s32 6, %v2569
        %v2571 = vrot.slane %v1533, %v2570
        %v2572 = vmul.f32 %v2567, %v1247
        %v2573 = vmul.f32 %v2571, %v1248
        %v2574 = vmul.f32 %v2567, %v1249
        %v2575 = vmul.f32 %v2571, %v1250
        %v2576 = vmul.f32 %v2567, %v1251
        %v2577 = vmul.f32 %v2571, %v1252
        %v2578 = vmul.f32 %v2567, %v1253
        %v2579 = vmul.f32 %v2571, %v1254
        %v2580 = vadd.f32 %v2556, %v2572
        %v2581 = vadd.f32 %v2557, %v2573
        %v2582 = vadd.f32 %v2558, %v2574
        %v2583 = vadd.f32 %v2559, %v2575
        %v2584 = vadd.f32 %v2560, %v2576
        %v2585 = vadd.f32 %v2561, %v2577
        %v2586 = vadd.f32 %v2562, %v2578
        %v2587 = vadd.f32 %v2563, %v2579
        %2588 = vrot.lane.b32.xlu0 %v1247, 127
        %v2589 = vpop.permute.xlu0 %2588
        %2590 = vrot.lane.b32.xlu0 %v1249, 127
        %v2591 = vpop.permute.xlu0 %2590
        %2592 = vrot.lane.b32.xlu0 %v1251, 127
        %v2593 = vpop.permute.xlu0 %2592
        %2594 = vrot.lane.b32.xlu0 %v1253, 127
        %v2595 = vpop.permute.xlu0 %2594
        %2596 = vrot.lane.b32.xlu0 %v1248, 127
        %v2597 = vpop.permute.xlu0 %2596
        %2598 = vrot.lane.b32.xlu0 %v1250, 127
        %v2599 = vpop.permute.xlu0 %2598
        %2600 = vrot.lane.b32.xlu0 %v1252, 127
        %v2601 = vpop.permute.xlu0 %2600
        %2602 = vrot.lane.b32.xlu0 %v1254, 127
        %v2603 = vpop.permute.xlu0 %2602
        %v2604 = vsel %vm1784, %v2589, %v2597
        %v2605 = vsel %vm1784, %v2591, %v2599
        %v2606 = vsel %vm1784, %v2593, %v2601
        %v2607 = vsel %vm1784, %v2595, %v2603
        %v2608 = vsel %vm1784, %v2597, %v2589
        %v2609 = vsel %vm1784, %v2599, %v2591
        %v2610 = vsel %vm1784, %v2601, %v2593
        %v2611 = vsel %vm1784, %v2603, %v2595
        %v2612 = vlaneseq
        %v2613 = vshrl.u32 %v2612, 7
        %v2614 = vsub.s32 7, %v2613
        %v2615 = vrot.slane %v1532, %v2614
        %v2616 = vlaneseq
        %v2617 = vshrl.u32 %v2616, 7
        %v2618 = vsub.s32 7, %v2617
        %v2619 = vrot.slane %v1533, %v2618
        %v2620 = vmul.f32 %v2615, %v2604
        %v2621 = vmul.f32 %v2619, %v2608
        %v2622 = vmul.f32 %v2615, %v2605
        %v2623 = vmul.f32 %v2619, %v2609
        %v2624 = vmul.f32 %v2615, %v2606
        %v2625 = vmul.f32 %v2619, %v2610
        %v2626 = vmul.f32 %v2615, %v2607
        %v2627 = vmul.f32 %v2619, %v2611
        %v2628 = vadd.f32 %v2580, %v2620
        %v2629 = vadd.f32 %v2581, %v2621
        %v2630 = vadd.f32 %v2582, %v2622
        %v2631 = vadd.f32 %v2583, %v2623
        %v2632 = vadd.f32 %v2584, %v2624
        %v2633 = vadd.f32 %v2585, %v2625
        %v2634 = vadd.f32 %v2586, %v2626
        %v2635 = vadd.f32 %v2587, %v2627
        %2636 = vrot.lane.b32.xlu0 %v1247, 113
        %v2637 = vpop.permute.xlu0 %2636
        %2638 = vrot.lane.b32.xlu0 %v1249, 113
        %v2639 = vpop.permute.xlu0 %2638
        %2640 = vrot.lane.b32.xlu0 %v1251, 113
        %v2641 = vpop.permute.xlu0 %2640
        %2642 = vrot.lane.b32.xlu0 %v1253, 113
        %v2643 = vpop.permute.xlu0 %2642
        %2644 = vrot.lane.b32.xlu0 %v1248, 113
        %v2645 = vpop.permute.xlu0 %2644
        %2646 = vrot.lane.b32.xlu0 %v1250, 113
        %v2647 = vpop.permute.xlu0 %2646
        %2648 = vrot.lane.b32.xlu0 %v1252, 113
        %v2649 = vpop.permute.xlu0 %2648
        %2650 = vrot.lane.b32.xlu0 %v1254, 113
        %v2651 = vpop.permute.xlu0 %2650
        %v2652 = vsel %vm1833, %v2637, %v2645
        %v2653 = vsel %vm1833, %v2639, %v2647
        %v2654 = vsel %vm1833, %v2641, %v2649
        %v2655 = vsel %vm1833, %v2643, %v2651
        %v2656 = vsel %vm1833, %v2645, %v2637
        %v2657 = vsel %vm1833, %v2647, %v2639
        %v2658 = vsel %vm1833, %v2649, %v2641
        %v2659 = vsel %vm1833, %v2651, %v2643
        %v2660 = vlaneseq
        %v2661 = vshrl.u32 %v2660, 7
        %v2662 = vsub.s32 0, %v2661
        %v2663 = vrot.slane %v1534, %v2662
        %v2664 = vlaneseq
        %v2665 = vshrl.u32 %v2664, 7
        %v2666 = vsub.s32 0, %v2665
        %v2667 = vrot.slane %v1535, %v2666
        %v2668 = vmul.f32 %v2663, %v2652
        %v2669 = vmul.f32 %v2667, %v2656
        %v2670 = vmul.f32 %v2663, %v2653
        %v2671 = vmul.f32 %v2667, %v2657
        %v2672 = vmul.f32 %v2663, %v2654
        %v2673 = vmul.f32 %v2667, %v2658
        %v2674 = vmul.f32 %v2663, %v2655
        %v2675 = vmul.f32 %v2667, %v2659
        %v2676 = vadd.f32 %v2628, %v2668
        %v2677 = vadd.f32 %v2629, %v2669
        %v2678 = vadd.f32 %v2630, %v2670
        %v2679 = vadd.f32 %v2631, %v2671
        %v2680 = vadd.f32 %v2632, %v2672
        %v2681 = vadd.f32 %v2633, %v2673
        %v2682 = vadd.f32 %v2634, %v2674
        %v2683 = vadd.f32 %v2635, %v2675
        %2684 = vrot.lane.b32.xlu0 %v1247, 112
        %v2685 = vpop.permute.xlu0 %2684
        %2686 = vrot.lane.b32.xlu0 %v1249, 112
        %v2687 = vpop.permute.xlu0 %2686
        %2688 = vrot.lane.b32.xlu0 %v1251, 112
        %v2689 = vpop.permute.xlu0 %2688
        %2690 = vrot.lane.b32.xlu0 %v1253, 112
        %v2691 = vpop.permute.xlu0 %2690
        %2692 = vrot.lane.b32.xlu0 %v1248, 112
        %v2693 = vpop.permute.xlu0 %2692
        %2694 = vrot.lane.b32.xlu0 %v1250, 112
        %v2695 = vpop.permute.xlu0 %2694
        %2696 = vrot.lane.b32.xlu0 %v1252, 112
        %v2697 = vpop.permute.xlu0 %2696
        %2698 = vrot.lane.b32.xlu0 %v1254, 112
        %v2699 = vpop.permute.xlu0 %2698
        %v2700 = vsel %vm1882, %v2685, %v2693
        %v2701 = vsel %vm1882, %v2687, %v2695
        %v2702 = vsel %vm1882, %v2689, %v2697
        %v2703 = vsel %vm1882, %v2691, %v2699
        %v2704 = vsel %vm1882, %v2693, %v2685
        %v2705 = vsel %vm1882, %v2695, %v2687
        %v2706 = vsel %vm1882, %v2697, %v2689
        %v2707 = vsel %vm1882, %v2699, %v2691
        %v2708 = vlaneseq
        %v2709 = vshrl.u32 %v2708, 7
        %v2710 = vsub.s32 1, %v2709
        %v2711 = vrot.slane %v1534, %v2710
        %v2712 = vlaneseq
        %v2713 = vshrl.u32 %v2712, 7
        %v2714 = vsub.s32 1, %v2713
        %v2715 = vrot.slane %v1535, %v2714
        %v2716 = vmul.f32 %v2711, %v2700
        %v2717 = vmul.f32 %v2715, %v2704
        %v2718 = vmul.f32 %v2711, %v2701
        %v2719 = vmul.f32 %v2715, %v2705
        %v2720 = vmul.f32 %v2711, %v2702
        %v2721 = vmul.f32 %v2715, %v2706
        %v2722 = vmul.f32 %v2711, %v2703
        %v2723 = vmul.f32 %v2715, %v2707
        %v2724 = vadd.f32 %v2676, %v2716
        %v2725 = vadd.f32 %v2677, %v2717
        %v2726 = vadd.f32 %v2678, %v2718
        %v2727 = vadd.f32 %v2679, %v2719
        %v2728 = vadd.f32 %v2680, %v2720
        %v2729 = vadd.f32 %v2681, %v2721
        %v2730 = vadd.f32 %v2682, %v2722
        %v2731 = vadd.f32 %v2683, %v2723
        %2732 = vrot.lane.b32.xlu0 %v1247, 111
        %v2733 = vpop.permute.xlu0 %2732
        %2734 = vrot.lane.b32.xlu0 %v1249, 111
        %v2735 = vpop.permute.xlu0 %2734
        %2736 = vrot.lane.b32.xlu0 %v1251, 111
        %v2737 = vpop.permute.xlu0 %2736
        %2738 = vrot.lane.b32.xlu0 %v1253, 111
        %v2739 = vpop.permute.xlu0 %2738
        %2740 = vrot.lane.b32.xlu0 %v1248, 111
        %v2741 = vpop.permute.xlu0 %2740
        %2742 = vrot.lane.b32.xlu0 %v1250, 111
        %v2743 = vpop.permute.xlu0 %2742
        %2744 = vrot.lane.b32.xlu0 %v1252, 111
        %v2745 = vpop.permute.xlu0 %2744
        %2746 = vrot.lane.b32.xlu0 %v1254, 111
        %v2747 = vpop.permute.xlu0 %2746
        %v2748 = vsel %vm1931, %v2733, %v2741
        %v2749 = vsel %vm1931, %v2735, %v2743
        %v2750 = vsel %vm1931, %v2737, %v2745
        %v2751 = vsel %vm1931, %v2739, %v2747
        %v2752 = vsel %vm1931, %v2741, %v2733
        %v2753 = vsel %vm1931, %v2743, %v2735
        %v2754 = vsel %vm1931, %v2745, %v2737
        %v2755 = vsel %vm1931, %v2747, %v2739
        %v2756 = vlaneseq
        %v2757 = vshrl.u32 %v2756, 7
        %v2758 = vsub.s32 2, %v2757
        %v2759 = vrot.slane %v1534, %v2758
        %v2760 = vlaneseq
        %v2761 = vshrl.u32 %v2760, 7
        %v2762 = vsub.s32 2, %v2761
        %v2763 = vrot.slane %v1535, %v2762
        %v2764 = vmul.f32 %v2759, %v2748
        %v2765 = vmul.f32 %v2763, %v2752
        %v2766 = vmul.f32 %v2759, %v2749
        %v2767 = vmul.f32 %v2763, %v2753
        %v2768 = vmul.f32 %v2759, %v2750
        %v2769 = vmul.f32 %v2763, %v2754
        %v2770 = vmul.f32 %v2759, %v2751
        %v2771 = vmul.f32 %v2763, %v2755
        %v2772 = vadd.f32 %v2724, %v2764
        %v2773 = vadd.f32 %v2725, %v2765
        %v2774 = vadd.f32 %v2726, %v2766
        %v2775 = vadd.f32 %v2727, %v2767
        %v2776 = vadd.f32 %v2728, %v2768
        %v2777 = vadd.f32 %v2729, %v2769
        %v2778 = vadd.f32 %v2730, %v2770
        %v2779 = vadd.f32 %v2731, %v2771
        %2780 = vrot.lane.b32.xlu0 %v1332, 17
        %v2781 = vpop.permute.xlu0 %2780
        %2782 = vrot.lane.b32.xlu0 %v1334, 17
        %v2783 = vpop.permute.xlu0 %2782
        %2784 = vrot.lane.b32.xlu0 %v1336, 17
        %v2785 = vpop.permute.xlu0 %2784
        %2786 = vrot.lane.b32.xlu0 %v1338, 17
        %v2787 = vpop.permute.xlu0 %2786
        %2788 = vrot.lane.b32.xlu0 %v1333, 17
        %v2789 = vpop.permute.xlu0 %2788
        %2790 = vrot.lane.b32.xlu0 %v1335, 17
        %v2791 = vpop.permute.xlu0 %2790
        %2792 = vrot.lane.b32.xlu0 %v1337, 17
        %v2793 = vpop.permute.xlu0 %2792
        %2794 = vrot.lane.b32.xlu0 %v1339, 17
        %v2795 = vpop.permute.xlu0 %2794
        %v2796 = vsel %vm1564, %v2781, %v2789
        %v2797 = vsel %vm1564, %v2783, %v2791
        %v2798 = vsel %vm1564, %v2785, %v2793
        %v2799 = vsel %vm1564, %v2787, %v2795
        %v2800 = vsel %vm1564, %v2789, %v2781
        %v2801 = vsel %vm1564, %v2791, %v2783
        %v2802 = vsel %vm1564, %v2793, %v2785
        %v2803 = vsel %vm1564, %v2795, %v2787
        %v2804 = vlaneseq
        %v2805 = vshrl.u32 %v2804, 7
        %v2806 = vsub.s32 3, %v2805
        %v2807 = vrot.slane %v1534, %v2806
        %v2808 = vlaneseq
        %v2809 = vshrl.u32 %v2808, 7
        %v2810 = vsub.s32 3, %v2809
        %v2811 = vrot.slane %v1535, %v2810
        %v2812 = vmul.f32 %v2807, %v2800
        %v2813 = vmul.f32 %v2811, %v2796
        %v2814 = vmul.f32 %v2807, %v2801
        %v2815 = vmul.f32 %v2811, %v2797
        %v2816 = vmul.f32 %v2807, %v2802
        %v2817 = vmul.f32 %v2811, %v2798
        %v2818 = vmul.f32 %v2807, %v2803
        %v2819 = vmul.f32 %v2811, %v2799
        %v2820 = vadd.f32 %v2772, %v2812
        %v2821 = vadd.f32 %v2773, %v2813
        %v2822 = vadd.f32 %v2774, %v2814
        %v2823 = vadd.f32 %v2775, %v2815
        %v2824 = vadd.f32 %v2776, %v2816
        %v2825 = vadd.f32 %v2777, %v2817
        %v2826 = vadd.f32 %v2778, %v2818
        %v2827 = vadd.f32 %v2779, %v2819
        %2828 = vrot.lane.b32.xlu0 %v1332, 16
        %v2829 = vpop.permute.xlu0 %2828
        %2830 = vrot.lane.b32.xlu0 %v1334, 16
        %v2831 = vpop.permute.xlu0 %2830
        %2832 = vrot.lane.b32.xlu0 %v1336, 16
        %v2833 = vpop.permute.xlu0 %2832
        %2834 = vrot.lane.b32.xlu0 %v1338, 16
        %v2835 = vpop.permute.xlu0 %2834
        %2836 = vrot.lane.b32.xlu0 %v1333, 16
        %v2837 = vpop.permute.xlu0 %2836
        %2838 = vrot.lane.b32.xlu0 %v1335, 16
        %v2839 = vpop.permute.xlu0 %2838
        %2840 = vrot.lane.b32.xlu0 %v1337, 16
        %v2841 = vpop.permute.xlu0 %2840
        %2842 = vrot.lane.b32.xlu0 %v1339, 16
        %v2843 = vpop.permute.xlu0 %2842
        %v2844 = vsel %vm1613, %v2829, %v2837
        %v2845 = vsel %vm1613, %v2831, %v2839
        %v2846 = vsel %vm1613, %v2833, %v2841
        %v2847 = vsel %vm1613, %v2835, %v2843
        %v2848 = vsel %vm1613, %v2837, %v2829
        %v2849 = vsel %vm1613, %v2839, %v2831
        %v2850 = vsel %vm1613, %v2841, %v2833
        %v2851 = vsel %vm1613, %v2843, %v2835
        %v2852 = vlaneseq
        %v2853 = vshrl.u32 %v2852, 7
        %v2854 = vsub.s32 4, %v2853
        %v2855 = vrot.slane %v1534, %v2854
        %v2856 = vlaneseq
        %v2857 = vshrl.u32 %v2856, 7
        %v2858 = vsub.s32 4, %v2857
        %v2859 = vrot.slane %v1535, %v2858
        %v2860 = vmul.f32 %v2855, %v2848
        %v2861 = vmul.f32 %v2859, %v2844
        %v2862 = vmul.f32 %v2855, %v2849
        %v2863 = vmul.f32 %v2859, %v2845
        %v2864 = vmul.f32 %v2855, %v2850
        %v2865 = vmul.f32 %v2859, %v2846
        %v2866 = vmul.f32 %v2855, %v2851
        %v2867 = vmul.f32 %v2859, %v2847
        %v2868 = vadd.f32 %v2820, %v2860
        %v2869 = vadd.f32 %v2821, %v2861
        %v2870 = vadd.f32 %v2822, %v2862
        %v2871 = vadd.f32 %v2823, %v2863
        %v2872 = vadd.f32 %v2824, %v2864
        %v2873 = vadd.f32 %v2825, %v2865
        %v2874 = vadd.f32 %v2826, %v2866
        %v2875 = vadd.f32 %v2827, %v2867
        %2876 = vrot.lane.b32.xlu0 %v1332, 15
        %v2877 = vpop.permute.xlu0 %2876
        %2878 = vrot.lane.b32.xlu0 %v1334, 15
        %v2879 = vpop.permute.xlu0 %2878
        %2880 = vrot.lane.b32.xlu0 %v1336, 15
        %v2881 = vpop.permute.xlu0 %2880
        %2882 = vrot.lane.b32.xlu0 %v1338, 15
        %v2883 = vpop.permute.xlu0 %2882
        %2884 = vrot.lane.b32.xlu0 %v1333, 15
        %v2885 = vpop.permute.xlu0 %2884
        %2886 = vrot.lane.b32.xlu0 %v1335, 15
        %v2887 = vpop.permute.xlu0 %2886
        %2888 = vrot.lane.b32.xlu0 %v1337, 15
        %v2889 = vpop.permute.xlu0 %2888
        %2890 = vrot.lane.b32.xlu0 %v1339, 15
        %v2891 = vpop.permute.xlu0 %2890
        %v2892 = vsel %vm1662, %v2877, %v2885
        %v2893 = vsel %vm1662, %v2879, %v2887
        %v2894 = vsel %vm1662, %v2881, %v2889
        %v2895 = vsel %vm1662, %v2883, %v2891
        %v2896 = vsel %vm1662, %v2885, %v2877
        %v2897 = vsel %vm1662, %v2887, %v2879
        %v2898 = vsel %vm1662, %v2889, %v2881
        %v2899 = vsel %vm1662, %v2891, %v2883
        %v2900 = vlaneseq
        %v2901 = vshrl.u32 %v2900, 7
        %v2902 = vsub.s32 5, %v2901
        %v2903 = vrot.slane %v1534, %v2902
        %v2904 = vlaneseq
        %v2905 = vshrl.u32 %v2904, 7
        %v2906 = vsub.s32 5, %v2905
        %v2907 = vrot.slane %v1535, %v2906
        %v2908 = vmul.f32 %v2903, %v2896
        %v2909 = vmul.f32 %v2907, %v2892
        %v2910 = vmul.f32 %v2903, %v2897
        %v2911 = vmul.f32 %v2907, %v2893
        %v2912 = vmul.f32 %v2903, %v2898
        %v2913 = vmul.f32 %v2907, %v2894
        %v2914 = vmul.f32 %v2903, %v2899
        %v2915 = vmul.f32 %v2907, %v2895
        %v2916 = vadd.f32 %v2868, %v2908
        %v2917 = vadd.f32 %v2869, %v2909
        %v2918 = vadd.f32 %v2870, %v2910
        %v2919 = vadd.f32 %v2871, %v2911
        %v2920 = vadd.f32 %v2872, %v2912
        %v2921 = vadd.f32 %v2873, %v2913
        %v2922 = vadd.f32 %v2874, %v2914
        %v2923 = vadd.f32 %v2875, %v2915
        %2924 = vrot.lane.b32.xlu0 %v1332, 1
        %v2925 = vpop.permute.xlu0 %2924
        %2926 = vrot.lane.b32.xlu0 %v1334, 1
        %v2927 = vpop.permute.xlu0 %2926
        %2928 = vrot.lane.b32.xlu0 %v1336, 1
        %v2929 = vpop.permute.xlu0 %2928
        %2930 = vrot.lane.b32.xlu0 %v1338, 1
        %v2931 = vpop.permute.xlu0 %2930
        %2932 = vrot.lane.b32.xlu0 %v1333, 1
        %v2933 = vpop.permute.xlu0 %2932
        %2934 = vrot.lane.b32.xlu0 %v1335, 1
        %v2935 = vpop.permute.xlu0 %2934
        %2936 = vrot.lane.b32.xlu0 %v1337, 1
        %v2937 = vpop.permute.xlu0 %2936
        %2938 = vrot.lane.b32.xlu0 %v1339, 1
        %v2939 = vpop.permute.xlu0 %2938
        %v2940 = vsel %vm1711, %v2925, %v2933
        %v2941 = vsel %vm1711, %v2927, %v2935
        %v2942 = vsel %vm1711, %v2929, %v2937
        %v2943 = vsel %vm1711, %v2931, %v2939
        %v2944 = vsel %vm1711, %v2933, %v2925
        %v2945 = vsel %vm1711, %v2935, %v2927
        %v2946 = vsel %vm1711, %v2937, %v2929
        %v2947 = vsel %vm1711, %v2939, %v2931
        %v2948 = vlaneseq
        %v2949 = vshrl.u32 %v2948, 7
        %v2950 = vsub.s32 6, %v2949
        %v2951 = vrot.slane %v1534, %v2950
        %v2952 = vlaneseq
        %v2953 = vshrl.u32 %v2952, 7
        %v2954 = vsub.s32 6, %v2953
        %v2955 = vrot.slane %v1535, %v2954
        %v2956 = vmul.f32 %v2951, %v2944
        %v2957 = vmul.f32 %v2955, %v2940
        %v2958 = vmul.f32 %v2951, %v2945
        %v2959 = vmul.f32 %v2955, %v2941
        %v2960 = vmul.f32 %v2951, %v2946
        %v2961 = vmul.f32 %v2955, %v2942
        %v2962 = vmul.f32 %v2951, %v2947
        %v2963 = vmul.f32 %v2955, %v2943
        %v2964 = vadd.f32 %v2916, %v2956
        %v2965 = vadd.f32 %v2917, %v2957
        %v2966 = vadd.f32 %v2918, %v2958
        %v2967 = vadd.f32 %v2919, %v2959
        %v2968 = vadd.f32 %v2920, %v2960
        %v2969 = vadd.f32 %v2921, %v2961
        %v2970 = vadd.f32 %v2922, %v2962
        %v2971 = vadd.f32 %v2923, %v2963
        %v2972 = vlaneseq
        %v2973 = vshrl.u32 %v2972, 7
        %v2974 = vsub.s32 7, %v2973
        %v2975 = vrot.slane %v1534, %v2974
        %v2976 = vlaneseq
        %v2977 = vshrl.u32 %v2976, 7
        %v2978 = vsub.s32 7, %v2977
        %v2979 = vrot.slane %v1535, %v2978
        %v2980 = vmul.f32 %v2975, %v1332
        %v2981 = vmul.f32 %v2979, %v1333
        %v2982 = vmul.f32 %v2975, %v1334
        %v2983 = vmul.f32 %v2979, %v1335
        %v2984 = vmul.f32 %v2975, %v1336
        %v2985 = vmul.f32 %v2979, %v1337
        %v2986 = vmul.f32 %v2975, %v1338
        %v2987 = vmul.f32 %v2979, %v1339
        %v2988 = vadd.f32 %v2964, %v2980
        %v2989 = vadd.f32 %v2965, %v2981
        %v2990 = vadd.f32 %v2966, %v2982
        %v2991 = vadd.f32 %v2967, %v2983
        %v2992 = vadd.f32 %v2968, %v2984
        %v2993 = vadd.f32 %v2969, %v2985
        %v2994 = vadd.f32 %v2970, %v2986
        %v2995 = vadd.f32 %v2971, %v2987
        %2996 = vrot.lane.b32.xlu0 %v1332, 127
        %v2997 = vpop.permute.xlu0 %2996
        %2998 = vrot.lane.b32.xlu0 %v1334, 127
        %v2999 = vpop.permute.xlu0 %2998
        %3000 = vrot.lane.b32.xlu0 %v1336, 127
        %v3001 = vpop.permute.xlu0 %3000
        %3002 = vrot.lane.b32.xlu0 %v1338, 127
        %v3003 = vpop.permute.xlu0 %3002
        %3004 = vrot.lane.b32.xlu0 %v1333, 127
        %v3005 = vpop.permute.xlu0 %3004
        %3006 = vrot.lane.b32.xlu0 %v1335, 127
        %v3007 = vpop.permute.xlu0 %3006
        %3008 = vrot.lane.b32.xlu0 %v1337, 127
        %v3009 = vpop.permute.xlu0 %3008
        %3010 = vrot.lane.b32.xlu0 %v1339, 127
        %v3011 = vpop.permute.xlu0 %3010
        %v3012 = vsel %vm1784, %v2997, %v3005
        %v3013 = vsel %vm1784, %v2999, %v3007
        %v3014 = vsel %vm1784, %v3001, %v3009
        %v3015 = vsel %vm1784, %v3003, %v3011
        %v3016 = vsel %vm1784, %v3005, %v2997
        %v3017 = vsel %vm1784, %v3007, %v2999
        %v3018 = vsel %vm1784, %v3009, %v3001
        %v3019 = vsel %vm1784, %v3011, %v3003
        %v3020 = vlaneseq
        %v3021 = vshrl.u32 %v3020, 7
        %v3022 = vsub.s32 0, %v3021
        %v3023 = vrot.slane %v1536, %v3022
        %v3024 = vlaneseq
        %v3025 = vshrl.u32 %v3024, 7
        %v3026 = vsub.s32 0, %v3025
        %v3027 = vrot.slane %v1537, %v3026
        %v3028 = vmul.f32 %v3023, %v3012
        %v3029 = vmul.f32 %v3027, %v3016
        %v3030 = vmul.f32 %v3023, %v3013
        %v3031 = vmul.f32 %v3027, %v3017
        %v3032 = vmul.f32 %v3023, %v3014
        %v3033 = vmul.f32 %v3027, %v3018
        %v3034 = vmul.f32 %v3023, %v3015
        %v3035 = vmul.f32 %v3027, %v3019
        %v3036 = vadd.f32 %v2988, %v3028
        %v3037 = vadd.f32 %v2989, %v3029
        %v3038 = vadd.f32 %v2990, %v3030
        %v3039 = vadd.f32 %v2991, %v3031
        %v3040 = vadd.f32 %v2992, %v3032
        %v3041 = vadd.f32 %v2993, %v3033
        %v3042 = vadd.f32 %v2994, %v3034
        %v3043 = vadd.f32 %v2995, %v3035
        %3044 = vrot.lane.b32.xlu0 %v1332, 113
        %v3045 = vpop.permute.xlu0 %3044
        %3046 = vrot.lane.b32.xlu0 %v1334, 113
        %v3047 = vpop.permute.xlu0 %3046
        %3048 = vrot.lane.b32.xlu0 %v1336, 113
        %v3049 = vpop.permute.xlu0 %3048
        %3050 = vrot.lane.b32.xlu0 %v1338, 113
        %v3051 = vpop.permute.xlu0 %3050
        %3052 = vrot.lane.b32.xlu0 %v1333, 113
        %v3053 = vpop.permute.xlu0 %3052
        %3054 = vrot.lane.b32.xlu0 %v1335, 113
        %v3055 = vpop.permute.xlu0 %3054
        %3056 = vrot.lane.b32.xlu0 %v1337, 113
        %v3057 = vpop.permute.xlu0 %3056
        %3058 = vrot.lane.b32.xlu0 %v1339, 113
        %v3059 = vpop.permute.xlu0 %3058
        %v3060 = vsel %vm1833, %v3045, %v3053
        %v3061 = vsel %vm1833, %v3047, %v3055
        %v3062 = vsel %vm1833, %v3049, %v3057
        %v3063 = vsel %vm1833, %v3051, %v3059
        %v3064 = vsel %vm1833, %v3053, %v3045
        %v3065 = vsel %vm1833, %v3055, %v3047
        %v3066 = vsel %vm1833, %v3057, %v3049
        %v3067 = vsel %vm1833, %v3059, %v3051
        %v3068 = vlaneseq
        %v3069 = vshrl.u32 %v3068, 7
        %v3070 = vsub.s32 1, %v3069
        %v3071 = vrot.slane %v1536, %v3070
        %v3072 = vlaneseq
        %v3073 = vshrl.u32 %v3072, 7
        %v3074 = vsub.s32 1, %v3073
        %v3075 = vrot.slane %v1537, %v3074
        %v3076 = vmul.f32 %v3071, %v3060
        %v3077 = vmul.f32 %v3075, %v3064
        %v3078 = vmul.f32 %v3071, %v3061
        %v3079 = vmul.f32 %v3075, %v3065
        %v3080 = vmul.f32 %v3071, %v3062
        %v3081 = vmul.f32 %v3075, %v3066
        %v3082 = vmul.f32 %v3071, %v3063
        %v3083 = vmul.f32 %v3075, %v3067
        %v3084 = vadd.f32 %v3036, %v3076
        %v3085 = vadd.f32 %v3037, %v3077
        %v3086 = vadd.f32 %v3038, %v3078
        %v3087 = vadd.f32 %v3039, %v3079
        %v3088 = vadd.f32 %v3040, %v3080
        %v3089 = vadd.f32 %v3041, %v3081
        %v3090 = vadd.f32 %v3042, %v3082
        %v3091 = vadd.f32 %v3043, %v3083
        %3092 = vrot.lane.b32.xlu0 %v1332, 112
        %v3093 = vpop.permute.xlu0 %3092
        %3094 = vrot.lane.b32.xlu0 %v1334, 112
        %v3095 = vpop.permute.xlu0 %3094
        %3096 = vrot.lane.b32.xlu0 %v1336, 112
        %v3097 = vpop.permute.xlu0 %3096
        %3098 = vrot.lane.b32.xlu0 %v1338, 112
        %v3099 = vpop.permute.xlu0 %3098
        %3100 = vrot.lane.b32.xlu0 %v1333, 112
        %v3101 = vpop.permute.xlu0 %3100
        %3102 = vrot.lane.b32.xlu0 %v1335, 112
        %v3103 = vpop.permute.xlu0 %3102
        %3104 = vrot.lane.b32.xlu0 %v1337, 112
        %v3105 = vpop.permute.xlu0 %3104
        %3106 = vrot.lane.b32.xlu0 %v1339, 112
        %v3107 = vpop.permute.xlu0 %3106
        %v3108 = vsel %vm1882, %v3093, %v3101
        %v3109 = vsel %vm1882, %v3095, %v3103
        %v3110 = vsel %vm1882, %v3097, %v3105
        %v3111 = vsel %vm1882, %v3099, %v3107
        %v3112 = vsel %vm1882, %v3101, %v3093
        %v3113 = vsel %vm1882, %v3103, %v3095
        %v3114 = vsel %vm1882, %v3105, %v3097
        %v3115 = vsel %vm1882, %v3107, %v3099
        %v3116 = vlaneseq
        %v3117 = vshrl.u32 %v3116, 7
        %v3118 = vsub.s32 2, %v3117
        %v3119 = vrot.slane %v1536, %v3118
        %v3120 = vlaneseq
        %v3121 = vshrl.u32 %v3120, 7
        %v3122 = vsub.s32 2, %v3121
        %v3123 = vrot.slane %v1537, %v3122
        %v3124 = vmul.f32 %v3119, %v3108
        %v3125 = vmul.f32 %v3123, %v3112
        %v3126 = vmul.f32 %v3119, %v3109
        %v3127 = vmul.f32 %v3123, %v3113
        %v3128 = vmul.f32 %v3119, %v3110
        %v3129 = vmul.f32 %v3123, %v3114
        %v3130 = vmul.f32 %v3119, %v3111
        %v3131 = vmul.f32 %v3123, %v3115
        %v3132 = vadd.f32 %v3084, %v3124
        %v3133 = vadd.f32 %v3085, %v3125
        %v3134 = vadd.f32 %v3086, %v3126
        %v3135 = vadd.f32 %v3087, %v3127
        %v3136 = vadd.f32 %v3088, %v3128
        %v3137 = vadd.f32 %v3089, %v3129
        %v3138 = vadd.f32 %v3090, %v3130
        %v3139 = vadd.f32 %v3091, %v3131
        %3140 = vrot.lane.b32.xlu0 %v1332, 111
        %v3141 = vpop.permute.xlu0 %3140
        %3142 = vrot.lane.b32.xlu0 %v1334, 111
        %v3143 = vpop.permute.xlu0 %3142
        %3144 = vrot.lane.b32.xlu0 %v1336, 111
        %v3145 = vpop.permute.xlu0 %3144
        %3146 = vrot.lane.b32.xlu0 %v1338, 111
        %v3147 = vpop.permute.xlu0 %3146
        %3148 = vrot.lane.b32.xlu0 %v1333, 111
        %v3149 = vpop.permute.xlu0 %3148
        %3150 = vrot.lane.b32.xlu0 %v1335, 111
        %v3151 = vpop.permute.xlu0 %3150
        %3152 = vrot.lane.b32.xlu0 %v1337, 111
        %v3153 = vpop.permute.xlu0 %3152
        %3154 = vrot.lane.b32.xlu0 %v1339, 111
        %v3155 = vpop.permute.xlu0 %3154
        %v3156 = vsel %vm1931, %v3141, %v3149
        %v3157 = vsel %vm1931, %v3143, %v3151
        %v3158 = vsel %vm1931, %v3145, %v3153
        %v3159 = vsel %vm1931, %v3147, %v3155
        %v3160 = vsel %vm1931, %v3149, %v3141
        %v3161 = vsel %vm1931, %v3151, %v3143
        %v3162 = vsel %vm1931, %v3153, %v3145
        %v3163 = vsel %vm1931, %v3155, %v3147
        %v3164 = vlaneseq
        %v3165 = vshrl.u32 %v3164, 7
        %v3166 = vsub.s32 3, %v3165
        %v3167 = vrot.slane %v1536, %v3166
        %v3168 = vlaneseq
        %v3169 = vshrl.u32 %v3168, 7
        %v3170 = vsub.s32 3, %v3169
        %v3171 = vrot.slane %v1537, %v3170
        %v3172 = vmul.f32 %v3167, %v3156
        %v3173 = vmul.f32 %v3171, %v3160
        %v3174 = vmul.f32 %v3167, %v3157
        %v3175 = vmul.f32 %v3171, %v3161
        %v3176 = vmul.f32 %v3167, %v3158
        %v3177 = vmul.f32 %v3171, %v3162
        %v3178 = vmul.f32 %v3167, %v3159
        %v3179 = vmul.f32 %v3171, %v3163
        %v3180 = vadd.f32 %v3132, %v3172
        %v3181 = vadd.f32 %v3133, %v3173
        %v3182 = vadd.f32 %v3134, %v3174
        %v3183 = vadd.f32 %v3135, %v3175
        %v3184 = vadd.f32 %v3136, %v3176
        %v3185 = vadd.f32 %v3137, %v3177
        %v3186 = vadd.f32 %v3138, %v3178
        %v3187 = vadd.f32 %v3139, %v3179
        %3188 = vxpose.xlu0.b32.start [1/16] %v1415, 128
        %3189 = vxpose.xlu0.b32.cont [2/16] %v1416, 128
        %3190 = vxpose.xlu0.b32.cont [3/16] 0.0, 128
        %3191 = vxpose.xlu0.b32.cont [4/16] 0.0, 128
        %3192 = vxpose.xlu0.b32.cont [5/16] 0.0, 128
        %3193 = vxpose.xlu0.b32.cont [6/16] 0.0, 128
        %3194 = vxpose.xlu0.b32.cont [7/16] 0.0, 128
        %3195 = vxpose.xlu0.b32.cont [8/16] 0.0, 128
        %3196 = vxpose.xlu0.b32.cont [9/16] 0.0, 128
        %3197 = vxpose.xlu0.b32.cont [10/16] 0.0, 128
        %3198 = vxpose.xlu0.b32.cont [11/16] 0.0, 128
        %3199 = vxpose.xlu0.b32.cont [12/16] 0.0, 128
        %3200 = vxpose.xlu0.b32.cont [13/16] 0.0, 128
        %3201 = vxpose.xlu0.b32.cont [14/16] 0.0, 128
        %3202 = vxpose.xlu0.b32.cont [15/16] 0.0, 128
        %3203 = vxpose.xlu0.b32.end [16/16] 0.0, 128
        %v3204 = vpop.trf.xlu0
        %v3205 = vpop.trf.xlu0
        %v3206 = vpop.trf.xlu0
        %v3207 = vpop.trf.xlu0
        %v3208 = vpop.trf.xlu0
        %v3209 = vpop.trf.xlu0
        %v3210 = vpop.trf.xlu0
        %v3211 = vpop.trf.xlu0
        %v3212 = vpop.trf.xlu0
        %v3213 = vpop.trf.xlu0
        %v3214 = vpop.trf.xlu0
        %v3215 = vpop.trf.xlu0
        %v3216 = vpop.trf.xlu0
        %v3217 = vpop.trf.xlu0
        %v3218 = vpop.trf.xlu0
        %v3219 = vpop.trf.xlu0
        %v3221 = vsel %vm1417, %v3204, 0
        %v3224 = vsel %vm1417, %v3205, 0
        %v3227 = vsel %vm1417, %v3206, 0
        %v3230 = vsel %vm1417, %v3207, 0
        %3232 = vmatprep.subr.mxu0 %v777
        %3233 = vmatpush1.msra.mxu0 %v775
        %3234 = vmatprep.subr.mxu0 %v783
        %3235 = vmatpush1.msra.mxu0 %v781
        %3236 = vmatprep.subr.mxu0 0.0
        %3237 = vmatpush1.msra.mxu0 0.0
        %3238 = vmatprep.subr.mxu0 0.0
        %3239 = vmatpush1.msra.mxu0 0.0
        %3240 = vmatprep.subr.mxu0 0.0
        %3241 = vmatpush1.msra.mxu0 0.0
        %3242 = vmatprep.subr.mxu0 0.0
        %3243 = vmatpush1.msra.mxu0 0.0
        %3244 = vmatprep.subr.mxu0 0.0
        %3245 = vmatpush1.msra.mxu0 0.0
        %3246 = vmatprep.subr.mxu0 0.0
        %3247 = vmatpush1.msra.mxu0 0.0
        %3248 = vmatprep.subr.mxu0 0.0
        %3249 = vmatpush1.msra.mxu0 0.0
        %3250 = vmatprep.subr.mxu0 0.0
        %3251 = vmatpush1.msra.mxu0 0.0
        %3252 = vmatprep.subr.mxu0 0.0
        %3253 = vmatpush1.msra.mxu0 0.0
        %3254 = vmatprep.subr.mxu0 0.0
        %3255 = vmatpush1.msra.mxu0 0.0
        %3256 = vmatprep.subr.mxu0 0.0
        %3257 = vmatpush1.msra.mxu0 0.0
        %3258 = vmatprep.subr.mxu0 0.0
        %3259 = vmatpush1.msra.mxu0 0.0
        %3260 = vmatprep.subr.mxu0 0.0
        %3261 = vmatpush1.msra.mxu0 0.0
        %3262 = vmatprep.subr.mxu0 0.0
        %3263 = vmatpush1.msra.mxu0 0.0
        %3264 = vmatprep.subr.mxu0 0.0
        %3265 = vmatpush1.msra.mxu0 0.0
        %3266 = vmatprep.subr.mxu0 0.0
        %3267 = vmatpush1.msra.mxu0 0.0
        %3268 = vmatprep.subr.mxu0 0.0
        %3269 = vmatpush1.msra.mxu0 0.0
        %3270 = vmatprep.subr.mxu0 0.0
        %3271 = vmatpush1.msra.mxu0 0.0
        %3272 = vmatprep.subr.mxu0 0.0
        %3273 = vmatpush1.msra.mxu0 0.0
        %3274 = vmatprep.subr.mxu0 0.0
        %3275 = vmatpush1.msra.mxu0 0.0
        %3276 = vmatprep.subr.mxu0 0.0
        %3277 = vmatpush1.msra.mxu0 0.0
        %3278 = vmatprep.subr.mxu0 0.0
        %3279 = vmatpush1.msra.mxu0 0.0
        %3280 = vmatprep.subr.mxu0 0.0
        %3281 = vmatpush1.msra.mxu0 0.0
        %3282 = vmatprep.subr.mxu0 0.0
        %3283 = vmatpush1.msra.mxu0 0.0
        %3284 = vmatprep.subr.mxu0 0.0
        %3285 = vmatpush1.msra.mxu0 0.0
        %3286 = vmatprep.subr.mxu0 0.0
        %3287 = vmatpush1.msra.mxu0 0.0
        %3288 = vmatprep.subr.mxu0 0.0
        %3289 = vmatpush1.msra.mxu0 0.0
        %3290 = vmatprep.subr.mxu0 0.0
        %3291 = vmatpush1.msra.mxu0 0.0
        %3292 = vmatprep.subr.mxu0 0.0
        %3293 = vmatpush1.msra.mxu0 0.0
        %3294 = vmatprep.subr.mxu0 0.0
        %3295 = vmatpush1.msra.mxu0 0.0
        %3296 = vmatprep.mubr.f32.mxu0 0.0
        %3297 = vmatmul.mubr.f32.gmra.mrb[0].mxu0 %v3221
        %v3298 = vpop.f32.mrb[0].mxu0
        %v3299 = vadd.f32 %v3180, %v3298
        %v3300 = vpop.f32.mrb[0].mxu0
        %v3301 = vadd.f32 %v3181, %v3300
        %3302 = vmatprep.mubr.f32.mxu0 0.0
        %3303 = vmatmul.mubr.f32.gmra.mrb[0].mxu0 %v3224
        %v3304 = vpop.f32.mrb[0].mxu0
        %v3305 = vadd.f32 %v3182, %v3304
        %v3306 = vpop.f32.mrb[0].mxu0
        %v3307 = vadd.f32 %v3183, %v3306
        %3308 = vmatprep.mubr.f32.mxu0 0.0
        %3309 = vmatmul.mubr.f32.gmra.mrb[0].mxu0 %v3227
        %v3310 = vpop.f32.mrb[0].mxu0
        %v3311 = vadd.f32 %v3184, %v3310
        %v3312 = vpop.f32.mrb[0].mxu0
        %v3313 = vadd.f32 %v3185, %v3312
        %3314 = vmatprep.mubr.f32.mxu0 0.0
        %3315 = vmatmul.mubr.f32.gmra.mrb[0].mxu0 %v3230
        %v3316 = vpop.f32.mrb[0].mxu0
        %v3317 = vadd.f32 %v3186, %v3316
        %v3318 = vpop.f32.mrb[0].mxu0
        %v3319 = vadd.f32 %v3187, %v3318
        %3320 = vdwg.mxu0
        %v3321 = vadd.f32 %v3299, %v3301
        %3322 = vadd.xlane.f32.xlu0 %v3321
        %v3323 = vpop.xlane.xlu0 %3322
        %v3324 = vadd.f32 %v3305, %v3307
        %3325 = vadd.xlane.f32.xlu0 %v3324
        %v3326 = vpop.xlane.xlu0 %3325
        %v3327 = vadd.f32 %v3311, %v3313
        %3328 = vadd.xlane.f32.xlu0 %v3327
        %v3329 = vpop.xlane.xlu0 %3328
        %v3330 = vadd.f32 %v3317, %v3319
        %3331 = vadd.xlane.f32.xlu0 %v3330
        %v3332 = vpop.xlane.xlu0 %3331
        %v3333 = vrcp.pop 256.0
        %v3334 = vmul.f32 %v3323, %v3333
        %v3335 = vmul.f32 %v3326, %v3333
        %v3336 = vmul.f32 %v3329, %v3333
        %v3337 = vmul.f32 %v3332, %v3333
        %v3338 = vsub.f32 %v3299, %v3334
        %v3339 = vsub.f32 %v3301, %v3334
        %v3340 = vsub.f32 %v3305, %v3335
        %v3341 = vsub.f32 %v3307, %v3335
        %v3342 = vsub.f32 %v3311, %v3336
        %v3343 = vsub.f32 %v3313, %v3336
        %v3344 = vsub.f32 %v3317, %v3337
        %v3345 = vsub.f32 %v3319, %v3337
        %v3346 = vmul.f32 %v3338, %v3338
        %v3347 = vmul.f32 %v3339, %v3339
        %v3348 = vmul.f32 %v3340, %v3340
        %v3349 = vmul.f32 %v3341, %v3341
        %v3350 = vmul.f32 %v3342, %v3342
        %v3351 = vmul.f32 %v3343, %v3343
        %v3352 = vmul.f32 %v3344, %v3344
        %v3353 = vmul.f32 %v3345, %v3345
        %v3354 = vadd.f32 %v3346, %v3347
        %3355 = vadd.xlane.f32.xlu0 %v3354
        %v3356 = vpop.xlane.xlu0 %3355
        %v3357 = vadd.f32 %v3348, %v3349
        %3358 = vadd.xlane.f32.xlu0 %v3357
        %v3359 = vpop.xlane.xlu0 %3358
        %v3360 = vadd.f32 %v3350, %v3351
        %3361 = vadd.xlane.f32.xlu0 %v3360
        %v3362 = vpop.xlane.xlu0 %3361
        %v3363 = vadd.f32 %v3352, %v3353
        %3364 = vadd.xlane.f32.xlu0 %v3363
        %v3365 = vpop.xlane.xlu0 %3364
        %v3366 = vmul.f32 %v3356, %v3333
        %v3367 = vmul.f32 %v3359, %v3333
        %v3368 = vmul.f32 %v3362, %v3333
        %v3369 = vmul.f32 %v3365, %v3333
        %v3370 = vadd.f32 %v3366, 1e-05
        %v3371 = vadd.f32 %v3367, 1e-05
        %v3372 = vadd.f32 %v3368, 1e-05
        %v3373 = vadd.f32 %v3369, 1e-05
        %v3374 = vrsqrt.pop %v3370
        %v3375 = vrsqrt.pop %v3371
        %v3376 = vrsqrt.pop %v3372
        %v3377 = vrsqrt.pop %v3373
        %v3378 = vmul.f32 %v3338, %v3374
        %v3379 = vmul.f32 %v3339, %v3374
        %v3380 = vmul.f32 %v3340, %v3375
        %v3381 = vmul.f32 %v3341, %v3375
        %v3382 = vmul.f32 %v3342, %v3376
        %v3383 = vmul.f32 %v3343, %v3376
        %v3384 = vmul.f32 %v3344, %v3377
        %v3385 = vmul.f32 %v3345, %v3377
        %vm3386 = vcmp.ge.f32.partialorder %v3378, 0.0
        %vm3387 = vcmp.ge.f32.partialorder %v3379, 0.0
        %vm3388 = vcmp.ge.f32.partialorder %v3380, 0.0
        %vm3389 = vcmp.ge.f32.partialorder %v3381, 0.0
        %vm3390 = vcmp.ge.f32.partialorder %v3382, 0.0
        %vm3391 = vcmp.ge.f32.partialorder %v3383, 0.0
        %vm3392 = vcmp.ge.f32.partialorder %v3384, 0.0
        %vm3393 = vcmp.ge.f32.partialorder %v3385, 0.0
        %v3394 = vmul.f32 %v3378, 0.2
        %v3395 = vmul.f32 %v3379, 0.2
        %v3396 = vmul.f32 %v3380, 0.2
        %v3397 = vmul.f32 %v3381, 0.2
        %v3398 = vmul.f32 %v3382, 0.2
        %v3399 = vmul.f32 %v3383, 0.2
        %v3400 = vmul.f32 %v3384, 0.2
        %v3401 = vmul.f32 %v3385, 0.2
        %v3402 = vsel %vm3386, %v3378, %v3394
        %v3403 = vsel %vm3387, %v3379, %v3395
        %v3404 = vsel %vm3388, %v3380, %v3396
        %v3405 = vsel %vm3389, %v3381, %v3397
        %v3406 = vsel %vm3390, %v3382, %v3398
        %v3407 = vsel %vm3391, %v3383, %v3399
        %v3408 = vsel %vm3392, %v3384, %v3400
        %v3409 = vsel %vm3393, %v3385, %v3401
        %v3410 = vld [vmem:[#allocation12] sm:$0xff]
        %v3411 = vld [vmem:[#allocation12 + $0x8] sm:$0xff]
        %v3412 = vld [vmem:[#allocation12 + $0x10] sm:$0xff]
        %v3413 = vld [vmem:[#allocation12 + $0x18] sm:$0xff]
        %v3414 = vld [vmem:[#allocation12 + $0x20] sm:$0xff]
        %v3415 = vld [vmem:[#allocation12 + $0x28] sm:$0xff]
        %v3416 = vld [vmem:[#allocation12 + $0x30] sm:$0xff]
        %v3417 = vld [vmem:[#allocation12 + $0x38] sm:$0xff]
        %v3418 = vld [vmem:[#allocation12 + $0x40] sm:$0xff]
        %v3419 = vld [vmem:[#allocation12 + $0x48] sm:$0xff]
        %v3420 = vld [vmem:[#allocation12 + $0x50] sm:$0xff]
        %v3421 = vld [vmem:[#allocation12 + $0x58] sm:$0xff]
        %v3422 = vld [vmem:[#allocation12 + $0x60] sm:$0xff]
        %v3423 = vld [vmem:[#allocation12 + $0x68] sm:$0xff]
        %v3424 = vld [vmem:[#allocation12 + $0x70] sm:$0xff]
        %v3425 = vld [vmem:[#allocation12 + $0x78] sm:$0xff]
        %v3426 = vld [vmem:[#allocation12 + $0x80] sm:$0xff]
        %v3427 = vld [vmem:[#allocation12 + $0x88] sm:$0xff]
        %v3428 = vld [vmem:[#allocation12 + $0x90] sm:$0xff]
        %v3429 = vld [vmem:[#allocation12 + $0x98] sm:$0xff]
        %v3430 = vld [vmem:[#allocation12 + $0xa0] sm:$0xff]
        %v3431 = vld [vmem:[#allocation12 + $0xa8] sm:$0xff]
        %v3432 = vld [vmem:[#allocation12 + $0xb0] sm:$0xff]
        %v3433 = vld [vmem:[#allocation12 + $0xb8] sm:$0xff]
        %v3434 = vld [vmem:[#allocation12 + $0xc0] sm:$0xff]
        %v3435 = vld [vmem:[#allocation12 + $0xc8] sm:$0xff]
        %v3436 = vld [vmem:[#allocation14] sm:$0xff]
        %v3437 = vld [vmem:[#allocation14 + $0x8] sm:$0xff]
        %v3438 = vld [vmem:[#allocation14 + $0x10] sm:$0xff]
        %v3439 = vld [vmem:[#allocation14 + $0x18] sm:$0xff]
        %v3440 = vld [vmem:[#allocation14 + $0x20] sm:$0xff]
        %v3441 = vld [vmem:[#allocation14 + $0x28] sm:$0xff]
        %v3442 = vld [vmem:[#allocation14 + $0x30] sm:$0xff]
        %v3443 = vld [vmem:[#allocation14 + $0x38] sm:$0xff]
        %v3444 = vld [vmem:[#allocation14 + $0x40] sm:$0xff]
        %v3445 = vld [vmem:[#allocation14 + $0x48] sm:$0xff]
        %v3446 = vld [vmem:[#allocation14 + $0x50] sm:$0xff]
        %v3447 = vld [vmem:[#allocation14 + $0x58] sm:$0xff]
        %v3448 = vld [vmem:[#allocation14 + $0x60] sm:$0xff]
        %v3449 = vld [vmem:[#allocation14 + $0x68] sm:$0xff]
        %v3450 = vld [vmem:[#allocation14 + $0x70] sm:$0xff]
        %v3451 = vld [vmem:[#allocation14 + $0x78] sm:$0xff]
        %v3452 = vld [vmem:[#allocation14 + $0x80] sm:$0xff]
        %v3453 = vld [vmem:[#allocation14 + $0x88] sm:$0xff]
        %v3454 = vld [vmem:[#allocation14 + $0x90] sm:$0xff]
        %v3455 = vld [vmem:[#allocation14 + $0x98] sm:$0xff]
        %v3456 = vld [vmem:[#allocation14 + $0xa0] sm:$0xff]
        %v3457 = vld [vmem:[#allocation14 + $0xa8] sm:$0xff]
        %v3458 = vld [vmem:[#allocation14 + $0xb0] sm:$0xff]
        %v3459 = vld [vmem:[#allocation14 + $0xb8] sm:$0xff]
        %v3460 = vld [vmem:[#allocation14 + $0xc0] sm:$0xff]
        %v3461 = vld [vmem:[#allocation14 + $0xc8] sm:$0xff]
        %v3462 = vld [vmem:[#allocation15] sm:$0xff]
        %v3463 = vld [vmem:[#allocation15 + $0x8] sm:$0xff]
        %v3464 = vld [vmem:[#allocation15 + $0x10] sm:$0xff]
        %v3465 = vld [vmem:[#allocation15 + $0x18] sm:$0xff]
        %v3466 = vld [vmem:[#allocation15 + $0x20] sm:$0x1f]
        %3468 = vset.pattern.permute.xlu0 0
        %3469 = vperm.xlu0 %3468, %v3436
        %v3470 = vpop.permute.xlu0 %3469
        %3473 = vset.pattern.permute.xlu0 0
        %3474 = vperm.xlu0 %3473, %v3437
        %v3475 = vpop.permute.xlu0 %3474
        %3478 = vset.pattern.permute.xlu0 0
        %3479 = vperm.xlu0 %3478, %v3438
        %v3480 = vpop.permute.xlu0 %3479
        %3483 = vset.pattern.permute.xlu0 0
        %3484 = vperm.xlu0 %3483, %v3439
        %v3485 = vpop.permute.xlu0 %3484
        %3488 = vset.pattern.permute.xlu0 0
        %3489 = vperm.xlu0 %3488, %v3440
        %v3490 = vpop.permute.xlu0 %3489
        %3493 = vset.pattern.permute.xlu0 0
        %3494 = vperm.xlu0 %3493, %v3441
        %v3495 = vpop.permute.xlu0 %3494
        %3498 = vset.pattern.permute.xlu0 0
        %3499 = vperm.xlu0 %3498, %v3442
        %v3500 = vpop.permute.xlu0 %3499
        %3503 = vset.pattern.permute.xlu0 0
        %3504 = vperm.xlu0 %3503, %v3443
        %v3505 = vpop.permute.xlu0 %3504
        %3508 = vset.pattern.permute.xlu0 0
        %3509 = vperm.xlu0 %3508, %v3444
        %v3510 = vpop.permute.xlu0 %3509
        %3513 = vset.pattern.permute.xlu0 0
        %3514 = vperm.xlu0 %3513, %v3445
        %v3515 = vpop.permute.xlu0 %3514
        %3518 = vset.pattern.permute.xlu0 0
        %3519 = vperm.xlu0 %3518, %v3446
        %v3520 = vpop.permute.xlu0 %3519
        %3523 = vset.pattern.permute.xlu0 0
        %3524 = vperm.xlu0 %3523, %v3447
        %v3525 = vpop.permute.xlu0 %3524
        %3528 = vset.pattern.permute.xlu0 0
        %3529 = vperm.xlu0 %3528, %v3448
        %v3530 = vpop.permute.xlu0 %3529
        %3533 = vset.pattern.permute.xlu0 0
        %3534 = vperm.xlu0 %3533, %v3449
        %v3535 = vpop.permute.xlu0 %3534
        %3538 = vset.pattern.permute.xlu0 0
        %3539 = vperm.xlu0 %3538, %v3450
        %v3540 = vpop.permute.xlu0 %3539
        %3543 = vset.pattern.permute.xlu0 0
        %3544 = vperm.xlu0 %3543, %v3451
        %v3545 = vpop.permute.xlu0 %3544
        %3548 = vset.pattern.permute.xlu0 0
        %3549 = vperm.xlu0 %3548, %v3452
        %v3550 = vpop.permute.xlu0 %3549
        %3553 = vset.pattern.permute.xlu0 0
        %3554 = vperm.xlu0 %3553, %v3453
        %v3555 = vpop.permute.xlu0 %3554
        %3558 = vset.pattern.permute.xlu0 0
        %3559 = vperm.xlu0 %3558, %v3454
        %v3560 = vpop.permute.xlu0 %3559
        %3563 = vset.pattern.permute.xlu0 0
        %3564 = vperm.xlu0 %3563, %v3455
        %v3565 = vpop.permute.xlu0 %3564
        %3568 = vset.pattern.permute.xlu0 0
        %3569 = vperm.xlu0 %3568, %v3456
        %v3570 = vpop.permute.xlu0 %3569
        %3573 = vset.pattern.permute.xlu0 0
        %3574 = vperm.xlu0 %3573, %v3457
        %v3575 = vpop.permute.xlu0 %3574
        %3578 = vset.pattern.permute.xlu0 0
        %3579 = vperm.xlu0 %3578, %v3458
        %v3580 = vpop.permute.xlu0 %3579
        %3583 = vset.pattern.permute.xlu0 0
        %3584 = vperm.xlu0 %3583, %v3459
        %v3585 = vpop.permute.xlu0 %3584
        %3588 = vset.pattern.permute.xlu0 0
        %3589 = vperm.xlu0 %3588, %v3460
        %v3590 = vpop.permute.xlu0 %3589
        %3593 = vset.pattern.permute.xlu0 0
        %3594 = vperm.xlu0 %3593, %v3461
        %v3595 = vpop.permute.xlu0 %3594
        %vm3597 = vcmask 261120
        %v3599 = vsel %vm3597, %v3410, 0
        %v3602 = vsel %vm3597, %v3411, 0
        %v3605 = vsel %vm3597, %v3412, 0
        %v3608 = vsel %vm3597, %v3413, 0
        %v3611 = vsel %vm3597, %v3414, 0
        %v3614 = vsel %vm3597, %v3415, 0
        %v3617 = vsel %vm3597, %v3416, 0
        %v3620 = vsel %vm3597, %v3417, 0
        %v3623 = vsel %vm3597, %v3418, 0
        %v3626 = vsel %vm3597, %v3419, 0
        %v3629 = vsel %vm3597, %v3420, 0
        %v3632 = vsel %vm3597, %v3421, 0
        %v3635 = vsel %vm3597, %v3422, 0
        %v3638 = vsel %vm3597, %v3423, 0
        %v3641 = vsel %vm3597, %v3424, 0
        %v3644 = vsel %vm3597, %v3425, 0
        %v3647 = vsel %vm3597, %v3426, 0
        %v3650 = vsel %vm3597, %v3427, 0
        %v3653 = vsel %vm3597, %v3428, 0
        %v3656 = vsel %vm3597, %v3429, 0
        %v3659 = vsel %vm3597, %v3430, 0
        %v3662 = vsel %vm3597, %v3431, 0
        %v3665 = vsel %vm3597, %v3432, 0
        %v3668 = vsel %vm3597, %v3433, 0
        %v3671 = vsel %vm3597, %v3434, 0
        %v3674 = vsel %vm3597, %v3435, 0
        %3676 = vmatprep.subr.mxu0 %v3403
        %3677 = vmatpush1.msra.mxu0 %v3402
        %3678 = vmatprep.subr.mxu0 %v3405
        %3679 = vmatpush1.msra.mxu0 %v3404
        %3680 = vmatprep.subr.mxu0 %v3407
        %3681 = vmatpush1.msra.mxu0 %v3406
        %3682 = vmatprep.subr.mxu0 %v3409
        %3683 = vmatpush1.msra.mxu0 %v3408
        %3684 = vmatprep.subr.mxu0 0.0
        %3685 = vmatpush1.msra.mxu0 0.0
        %3686 = vmatprep.subr.mxu0 0.0
        %3687 = vmatpush1.msra.mxu0 0.0
        %3688 = vmatprep.subr.mxu0 0.0
        %3689 = vmatpush1.msra.mxu0 0.0
        %3690 = vmatprep.subr.mxu0 0.0
        %3691 = vmatpush1.msra.mxu0 0.0
        %3692 = vmatprep.subr.mxu0 0.0
        %3693 = vmatpush1.msra.mxu0 0.0
        %3694 = vmatprep.subr.mxu0 0.0
        %3695 = vmatpush1.msra.mxu0 0.0
        %3696 = vmatprep.subr.mxu0 0.0
        %3697 = vmatpush1.msra.mxu0 0.0
        %3698 = vmatprep.subr.mxu0 0.0
        %3699 = vmatpush1.msra.mxu0 0.0
        %3700 = vmatprep.subr.mxu0 0.0
        %3701 = vmatpush1.msra.mxu0 0.0
        %3702 = vmatprep.subr.mxu0 0.0
        %3703 = vmatpush1.msra.mxu0 0.0
        %3704 = vmatprep.subr.mxu0 0.0
        %3705 = vmatpush1.msra.mxu0 0.0
        %3706 = vmatprep.subr.mxu0 0.0
        %3707 = vmatpush1.msra.mxu0 0.0
        %3708 = vmatprep.subr.mxu0 0.0
        %3709 = vmatpush1.msra.mxu0 0.0
        %3710 = vmatprep.subr.mxu0 0.0
        %3711 = vmatpush1.msra.mxu0 0.0
        %3712 = vmatprep.subr.mxu0 0.0
        %3713 = vmatpush1.msra.mxu0 0.0
        %3714 = vmatprep.subr.mxu0 0.0
        %3715 = vmatpush1.msra.mxu0 0.0
        %3716 = vmatprep.subr.mxu0 0.0
        %3717 = vmatpush1.msra.mxu0 0.0
        %3718 = vmatprep.subr.mxu0 0.0
        %3719 = vmatpush1.msra.mxu0 0.0
        %3720 = vmatprep.subr.mxu0 0.0
        %3721 = vmatpush1.msra.mxu0 0.0
        %3722 = vmatprep.subr.mxu0 0.0
        %3723 = vmatpush1.msra.mxu0 0.0
        %3724 = vmatprep.subr.mxu0 0.0
        %3725 = vmatpush1.msra.mxu0 0.0
        %3726 = vmatprep.subr.mxu0 0.0
        %3727 = vmatpush1.msra.mxu0 0.0
        %3728 = vmatprep.subr.mxu0 0.0
        %3729 = vmatpush1.msra.mxu0 0.0
        %3730 = vmatprep.subr.mxu0 0.0
        %3731 = vmatpush1.msra.mxu0 0.0
        %3732 = vmatprep.subr.mxu0 0.0
        %3733 = vmatpush1.msra.mxu0 0.0
        %3734 = vmatprep.subr.mxu0 0.0
        %3735 = vmatpush1.msra.mxu0 0.0
        %3736 = vmatprep.subr.mxu0 0.0
        %3737 = vmatpush1.msra.mxu0 0.0
        %3738 = vmatprep.subr.mxu0 0.0
        %3739 = vmatpush1.msra.mxu0 0.0
        %3740 = vmatprep.mubr.f32.mxu0 0.0
        %3741 = vmatmul.mubr.f32.gmra.mrb[0].mxu0 %v3599
        %v3742 = vpop.f32.mrb[0].mxu0
        %v3743 = vadd.f32 %v3470, %v3742
        %v3744 = vpop.f32.mrb[0].mxu0
        %v3745 = vadd.f32 %v3470, %v3744
        %3746 = vmatprep.mubr.f32.mxu0 0.0
        %3747 = vmatmul.mubr.f32.gmra.mrb[0].mxu0 %v3602
        %v3748 = vpop.f32.mrb[0].mxu0
        %v3749 = vadd.f32 %v3475, %v3748
        %v3750 = vpop.f32.mrb[0].mxu0
        %v3751 = vadd.f32 %v3475, %v3750
        %3752 = vmatprep.mubr.f32.mxu0 0.0
        %3753 = vmatmul.mubr.f32.gmra.mrb[0].mxu0 %v3605
        %v3754 = vpop.f32.mrb[0].mxu0
        %v3755 = vadd.f32 %v3480, %v3754
        %v3756 = vpop.f32.mrb[0].mxu0
        %v3757 = vadd.f32 %v3480, %v3756
        %3758 = vmatprep.mubr.f32.mxu0 0.0
        %3759 = vmatmul.mubr.f32.gmra.mrb[0].mxu0 %v3608
        %v3760 = vpop.f32.mrb[0].mxu0
        %v3761 = vadd.f32 %v3485, %v3760
        %v3762 = vpop.f32.mrb[0].mxu0
        %v3763 = vadd.f32 %v3485, %v3762
        %3764 = vmatprep.mubr.f32.mxu0 0.0
        %3765 = vmatmul.mubr.f32.gmra.mrb[0].mxu0 %v3611
        %v3766 = vpop.f32.mrb[0].mxu0
        %v3767 = vadd.f32 %v3490, %v3766
        %v3768 = vpop.f32.mrb[0].mxu0
        %v3769 = vadd.f32 %v3490, %v3768
        %3770 = vmatprep.mubr.f32.mxu0 0.0
        %3771 = vmatmul.mubr.f32.gmra.mrb[0].mxu0 %v3614
        %v3772 = vpop.f32.mrb[0].mxu0
        %v3773 = vadd.f32 %v3495, %v3772
        %v3774 = vpop.f32.mrb[0].mxu0
        %v3775 = vadd.f32 %v3495, %v3774
        %3776 = vmatprep.mubr.f32.mxu0 0.0
        %3777 = vmatmul.mubr.f32.gmra.mrb[0].mxu0 %v3617
        %v3778 = vpop.f32.mrb[0].mxu0
        %v3779 = vadd.f32 %v3500, %v3778
        %v3780 = vpop.f32.mrb[0].mxu0
        %v3781 = vadd.f32 %v3500, %v3780
        %3782 = vmatprep.mubr.f32.mxu0 0.0
        %3783 = vmatmul.mubr.f32.gmra.mrb[0].mxu0 %v3620
        %v3784 = vpop.f32.mrb[0].mxu0
        %v3785 = vadd.f32 %v3505, %v3784
        %v3786 = vpop.f32.mrb[0].mxu0
        %v3787 = vadd.f32 %v3505, %v3786
        %3788 = vmatprep.mubr.f32.mxu0 0.0
        %3789 = vmatmul.mubr.f32.gmra.mrb[0].mxu0 %v3623
        %v3790 = vpop.f32.mrb[0].mxu0
        %v3791 = vadd.f32 %v3510, %v3790
        %v3792 = vpop.f32.mrb[0].mxu0
        %v3793 = vadd.f32 %v3510, %v3792
        %3794 = vmatprep.mubr.f32.mxu0 0.0
        %3795 = vmatmul.mubr.f32.gmra.mrb[0].mxu0 %v3626
        %v3796 = vpop.f32.mrb[0].mxu0
        %v3797 = vadd.f32 %v3515, %v3796
        %v3798 = vpop.f32.mrb[0].mxu0
        %v3799 = vadd.f32 %v3515, %v3798
        %3800 = vmatprep.mubr.f32.mxu0 0.0
        %3801 = vmatmul.mubr.f32.gmra.mrb[0].mxu0 %v3629
        %v3802 = vpop.f32.mrb[0].mxu0
        %v3803 = vadd.f32 %v3520, %v3802
        %v3804 = vpop.f32.mrb[0].mxu0
        %v3805 = vadd.f32 %v3520, %v3804
        %3806 = vmatprep.mubr.f32.mxu0 0.0
        %3807 = vmatmul.mubr.f32.gmra.mrb[0].mxu0 %v3632
        %v3808 = vpop.f32.mrb[0].mxu0
        %v3809 = vadd.f32 %v3525, %v3808
        %v3810 = vpop.f32.mrb[0].mxu0
        %v3811 = vadd.f32 %v3525, %v3810
        %3812 = vmatprep.mubr.f32.mxu0 0.0
        %3813 = vmatmul.mubr.f32.gmra.mrb[0].mxu0 %v3635
        %v3814 = vpop.f32.mrb[0].mxu0
        %v3815 = vadd.f32 %v3530, %v3814
        %v3816 = vpop.f32.mrb[0].mxu0
        %v3817 = vadd.f32 %v3530, %v3816
        %3818 = vmatprep.mubr.f32.mxu0 0.0
        %3819 = vmatmul.mubr.f32.gmra.mrb[0].mxu0 %v3638
        %v3820 = vpop.f32.mrb[0].mxu0
        %v3821 = vadd.f32 %v3535, %v3820
        %v3822 = vpop.f32.mrb[0].mxu0
        %v3823 = vadd.f32 %v3535, %v3822
        %3824 = vmatprep.mubr.f32.mxu0 0.0
        %3825 = vmatmul.mubr.f32.gmra.mrb[0].mxu0 %v3641
        %v3826 = vpop.f32.mrb[0].mxu0
        %v3827 = vadd.f32 %v3540, %v3826
        %v3828 = vpop.f32.mrb[0].mxu0
        %v3829 = vadd.f32 %v3540, %v3828
        %3830 = vmatprep.mubr.f32.mxu0 0.0
        %3831 = vmatmul.mubr.f32.gmra.mrb[0].mxu0 %v3644
        %v3832 = vpop.f32.mrb[0].mxu0
        %v3833 = vadd.f32 %v3545, %v3832
        %v3834 = vpop.f32.mrb[0].mxu0
        %v3835 = vadd.f32 %v3545, %v3834
        %3836 = vmatprep.mubr.f32.mxu0 0.0
        %3837 = vmatmul.mubr.f32.gmra.mrb[0].mxu0 %v3647
        %v3838 = vpop.f32.mrb[0].mxu0
        %v3839 = vadd.f32 %v3550, %v3838
        %v3840 = vpop.f32.mrb[0].mxu0
        %v3841 = vadd.f32 %v3550, %v3840
        %3842 = vmatprep.mubr.f32.mxu0 0.0
        %3843 = vmatmul.mubr.f32.gmra.mrb[0].mxu0 %v3650
        %v3844 = vpop.f32.mrb[0].mxu0
        %v3845 = vadd.f32 %v3555, %v3844
        %v3846 = vpop.f32.mrb[0].mxu0
        %v3847 = vadd.f32 %v3555, %v3846
        %3848 = vmatprep.mubr.f32.mxu0 0.0
        %3849 = vmatmul.mubr.f32.gmra.mrb[0].mxu0 %v3653
        %v3850 = vpop.f32.mrb[0].mxu0
        %v3851 = vadd.f32 %v3560, %v3850
        %v3852 = vpop.f32.mrb[0].mxu0
        %v3853 = vadd.f32 %v3560, %v3852
        %3854 = vmatprep.mubr.f32.mxu0 0.0
        %3855 = vmatmul.mubr.f32.gmra.mrb[0].mxu0 %v3656
        %v3856 = vpop.f32.mrb[0].mxu0
        %v3857 = vadd.f32 %v3565, %v3856
        %v3858 = vpop.f32.mrb[0].mxu0
        %v3859 = vadd.f32 %v3565, %v3858
        %3860 = vmatprep.mubr.f32.mxu0 0.0
        %3861 = vmatmul.mubr.f32.gmra.mrb[0].mxu0 %v3659
        %v3862 = vpop.f32.mrb[0].mxu0
        %v3863 = vadd.f32 %v3570, %v3862
        %v3864 = vpop.f32.mrb[0].mxu0
        %v3865 = vadd.f32 %v3570, %v3864
        %3866 = vmatprep.mubr.f32.mxu0 0.0
        %3867 = vmatmul.mubr.f32.gmra.mrb[0].mxu0 %v3662
        %v3868 = vpop.f32.mrb[0].mxu0
        %v3869 = vadd.f32 %v3575, %v3868
        %v3870 = vpop.f32.mrb[0].mxu0
        %v3871 = vadd.f32 %v3575, %v3870
        %3872 = vmatprep.mubr.f32.mxu0 0.0
        %3873 = vmatmul.mubr.f32.gmra.mrb[0].mxu0 %v3665
        %v3874 = vpop.f32.mrb[0].mxu0
        %v3875 = vadd.f32 %v3580, %v3874
        %v3876 = vpop.f32.mrb[0].mxu0
        %v3877 = vadd.f32 %v3580, %v3876
        %3878 = vmatprep.mubr.f32.mxu0 0.0
        %3879 = vmatmul.mubr.f32.gmra.mrb[0].mxu0 %v3668
        %v3880 = vpop.f32.mrb[0].mxu0
        %v3881 = vadd.f32 %v3585, %v3880
        %v3882 = vpop.f32.mrb[0].mxu0
        %v3883 = vadd.f32 %v3585, %v3882
        %3884 = vmatprep.mubr.f32.mxu0 0.0
        %3885 = vmatmul.mubr.f32.gmra.mrb[0].mxu0 %v3671
        %v3886 = vpop.f32.mrb[0].mxu0
        %v3887 = vadd.f32 %v3590, %v3886
        %v3888 = vpop.f32.mrb[0].mxu0
        %v3889 = vadd.f32 %v3590, %v3888
        %3890 = vmatprep.mubr.f32.mxu0 0.0
        %3891 = vmatmul.mubr.f32.gmra.mrb[0].mxu0 %v3674
        %v3892 = vpop.f32.mrb[0].mxu0
        %v3893 = vadd.f32 %v3595, %v3892
        %v3894 = vpop.f32.mrb[0].mxu0
        %v3895 = vadd.f32 %v3595, %v3894
        %3896 = vdwg.mxu0
        %3897 = vst [vmem:[#allocation2] sm:$0xff] %v3803
        %3898 = vst [vmem:[#allocation2 + $0x8] sm:$0xff] %v3805
        %3899 = vst [vmem:[#allocation2 + $0x10] sm:$0xff] %v3809
        %3900 = vst [vmem:[#allocation2 + $0x18] sm:$0xff] %v3811
        %3901 = vst [vmem:[#allocation2 + $0x20] sm:$0xff] %v3815
        %3902 = vst [vmem:[#allocation2 + $0x28] sm:$0xff] %v3817
        %3903 = vst [vmem:[#allocation2 + $0x30] sm:$0xff] %v3821
        %3904 = vst [vmem:[#allocation2 + $0x38] sm:$0xff] %v3823
        %3905 = vst [vmem:[#allocation2 + $0x40] sm:$0xff] %v3827
        %3906 = vst [vmem:[#allocation2 + $0x48] sm:$0xff] %v3829
        %3907 = vst [vmem:[#allocation2 + $0x50] sm:$0xff] %v3833
        %3908 = vst [vmem:[#allocation2 + $0x58] sm:$0xff] %v3835
        %3909 = vst [vmem:[#allocation2 + $0x60] sm:$0xff] %v3839
        %3910 = vst [vmem:[#allocation2 + $0x68] sm:$0xff] %v3841
        %3911 = vst [vmem:[#allocation2 + $0x70] sm:$0xff] %v3845
        %3912 = vst [vmem:[#allocation2 + $0x78] sm:$0xff] %v3847
        %3913 = vst [vmem:[#allocation2 + $0x80] sm:$0xff] %v3851
        %3914 = vst [vmem:[#allocation2 + $0x88] sm:$0xff] %v3853
        %3915 = vst [vmem:[#allocation2 + $0x90] sm:$0xff] %v3857
        %3916 = vst [vmem:[#allocation2 + $0x98] sm:$0xff] %v3859
        %3917 = vst [vmem:[#allocation2 + $0xa0] sm:$0xff] %v3863
        %3918 = vst [vmem:[#allocation2 + $0xa8] sm:$0xff] %v3865
        %3919 = vst [vmem:[#allocation2 + $0xb0] sm:$0xff] %v3869
        %3920 = vst [vmem:[#allocation2 + $0xb8] sm:$0xff] %v3871
        %3921 = vst [vmem:[#allocation2 + $0xc0] sm:$0xff] %v3875
        %3922 = vst [vmem:[#allocation2 + $0xc8] sm:$0xff] %v3877
        %3923 = vst [vmem:[#allocation2 + $0xd0] sm:$0xff] %v3881
        %3924 = vst [vmem:[#allocation2 + $0xd8] sm:$0xff] %v3883
        %3925 = vst [vmem:[#allocation2 + $0xe0] sm:$0xff] %v3887
        %3926 = vst [vmem:[#allocation2 + $0xe8] sm:$0xff] %v3889
        %3927 = vst [vmem:[#allocation2 + $0xf0] sm:$0xff] %v3893
        %3928 = vst [vmem:[#allocation2 + $0xf8] sm:$0xff] %v3895
        %v3929 = vmax.f32 %v3755, %v3757
        %3930 = vmax.xlane.f32.xlu0 %v3929
        %v3931 = vpop.xlane.xlu0 %3930
        %v3932 = vmax.f32 %v3761, %v3763
        %3933 = vmax.xlane.f32.xlu0 %v3932
        %v3934 = vpop.xlane.xlu0 %3933
        %v3935 = vmax.f32 %v3767, %v3769
        %3936 = vmax.xlane.f32.xlu0 %v3935
        %v3937 = vpop.xlane.xlu0 %3936
        %v3938 = vmax.f32 %v3773, %v3775
        %3939 = vmax.xlane.f32.xlu0 %v3938
        %v3940 = vpop.xlane.xlu0 %3939
        %v3941 = vmax.f32 %v3779, %v3781
        %3942 = vmax.xlane.f32.xlu0 %v3941
        %v3943 = vpop.xlane.xlu0 %3942
        %v3944 = vmax.f32 %v3785, %v3787
        %3945 = vmax.xlane.f32.xlu0 %v3944
        %v3946 = vpop.xlane.xlu0 %3945
        %v3947 = vmax.f32 %v3791, %v3793
        %3948 = vmax.xlane.f32.xlu0 %v3947
        %v3949 = vpop.xlane.xlu0 %3948
        %v3950 = vmax.f32 %v3797, %v3799
        %3951 = vmax.xlane.f32.xlu0 %v3950
        %v3952 = vpop.xlane.xlu0 %3951
        %v3953 = vsub.f32 %v3755, %v3931
        %v3954 = vsub.f32 %v3757, %v3931
        %v3955 = vsub.f32 %v3761, %v3934
        %v3956 = vsub.f32 %v3763, %v3934
        %v3957 = vsub.f32 %v3767, %v3937
        %v3958 = vsub.f32 %v3769, %v3937
        %v3959 = vsub.f32 %v3773, %v3940
        %v3960 = vsub.f32 %v3775, %v3940
        %v3961 = vsub.f32 %v3779, %v3943
        %v3962 = vsub.f32 %v3781, %v3943
        %v3963 = vsub.f32 %v3785, %v3946
        %v3964 = vsub.f32 %v3787, %v3946
        %v3965 = vsub.f32 %v3791, %v3949
        %v3966 = vsub.f32 %v3793, %v3949
        %v3967 = vsub.f32 %v3797, %v3952
        %v3968 = vsub.f32 %v3799, %v3952
        %v3969 = vmul.f32 %v3953, 1.442695
        %v3970 = vpow.pop %v3969
        %v3971 = vmul.f32 %v3954, 1.442695
        %v3972 = vpow.pop %v3971
        %v3973 = vmul.f32 %v3955, 1.442695
        %v3974 = vpow.pop %v3973
        %v3975 = vmul.f32 %v3956, 1.442695
        %v3976 = vpow.pop %v3975
        %v3977 = vmul.f32 %v3957, 1.442695
        %v3978 = vpow.pop %v3977
        %v3979 = vmul.f32 %v3958, 1.442695
        %v3980 = vpow.pop %v3979
        %v3981 = vmul.f32 %v3959, 1.442695
        %v3982 = vpow.pop %v3981
        %v3983 = vmul.f32 %v3960, 1.442695
        %v3984 = vpow.pop %v3983
        %v3985 = vmul.f32 %v3961, 1.442695
        %v3986 = vpow.pop %v3985
        %v3987 = vmul.f32 %v3962, 1.442695
        %v3988 = vpow.pop %v3987
        %v3989 = vmul.f32 %v3963, 1.442695
        %v3990 = vpow.pop %v3989
        %v3991 = vmul.f32 %v3964, 1.442695
        %v3992 = vpow.pop %v3991
        %v3993 = vmul.f32 %v3965, 1.442695
        %v3994 = vpow.pop %v3993
        %v3995 = vmul.f32 %v3966, 1.442695
        %v3996 = vpow.pop %v3995
        %v3997 = vmul.f32 %v3967, 1.442695
        %v3998 = vpow.pop %v3997
        %v3999 = vmul.f32 %v3968, 1.442695
        %v4000 = vpow.pop %v3999
        %v4001 = vadd.f32 %v3970, %v3972
        %4002 = vadd.xlane.f32.xlu0 %v4001
        %v4003 = vpop.xlane.xlu0 %4002
        %v4004 = vadd.f32 %v3974, %v3976
        %4005 = vadd.xlane.f32.xlu0 %v4004
        %v4006 = vpop.xlane.xlu0 %4005
        %v4007 = vadd.f32 %v3978, %v3980
        %4008 = vadd.xlane.f32.xlu0 %v4007
        %v4009 = vpop.xlane.xlu0 %4008
        %v4010 = vadd.f32 %v3982, %v3984
        %4011 = vadd.xlane.f32.xlu0 %v4010
        %v4012 = vpop.xlane.xlu0 %4011
        %v4013 = vadd.f32 %v3986, %v3988
        %4014 = vadd.xlane.f32.xlu0 %v4013
        %v4015 = vpop.xlane.xlu0 %4014
        %v4016 = vadd.f32 %v3990, %v3992
        %4017 = vadd.xlane.f32.xlu0 %v4016
        %v4018 = vpop.xlane.xlu0 %4017
        %v4019 = vadd.f32 %v3994, %v3996
        %4020 = vadd.xlane.f32.xlu0 %v4019
        %v4021 = vpop.xlane.xlu0 %4020
        %v4022 = vadd.f32 %v3998, %v4000
        %4023 = vadd.xlane.f32.xlu0 %v4022
        %v4024 = vpop.xlane.xlu0 %4023
        %v4025 = vrcp.pop %v4003
        %v4026 = vrcp.pop %v4006
        %v4027 = vrcp.pop %v4009
        %v4028 = vrcp.pop %v4012
        %v4029 = vrcp.pop %v4015
        %v4030 = vrcp.pop %v4018
        %v4031 = vrcp.pop %v4021
        %v4032 = vrcp.pop %v4024
        %v4033 = vmul.f32 %v3970, %v4025
        %v4034 = vmul.f32 %v3972, %v4025
        %v4035 = vmul.f32 %v3974, %v4026
        %v4036 = vmul.f32 %v3976, %v4026
        %v4037 = vmul.f32 %v3978, %v4027
        %v4038 = vmul.f32 %v3980, %v4027
        %v4039 = vmul.f32 %v3982, %v4028
        %v4040 = vmul.f32 %v3984, %v4028
        %v4041 = vmul.f32 %v3986, %v4029
        %v4042 = vmul.f32 %v3988, %v4029
        %v4043 = vmul.f32 %v3990, %v4030
        %v4044 = vmul.f32 %v3992, %v4030
        %v4045 = vmul.f32 %v3994, %v4031
        %v4046 = vmul.f32 %v3996, %v4031
        %v4047 = vmul.f32 %v3998, %v4032
        %v4048 = vmul.f32 %v4000, %v4032
        %v4049 = vld [vmem:[#allocation2] sm:$0xff]
        %v4050 = vld [vmem:[#allocation2 + $0x8] sm:$0xff]
        %v4051 = vld [vmem:[#allocation2 + $0x10] sm:$0xff]
        %v4052 = vld [vmem:[#allocation2 + $0x18] sm:$0xff]
        %v4053 = vld [vmem:[#allocation2 + $0x20] sm:$0xff]
        %v4054 = vld [vmem:[#allocation2 + $0x28] sm:$0xff]
        %v4055 = vld [vmem:[#allocation2 + $0x30] sm:$0xff]
        %v4056 = vld [vmem:[#allocation2 + $0x38] sm:$0xff]
        %v4057 = vld [vmem:[#allocation2 + $0x40] sm:$0xff]
        %v4058 = vld [vmem:[#allocation2 + $0x48] sm:$0xff]
        %v4059 = vld [vmem:[#allocation2 + $0x50] sm:$0xff]
        %v4060 = vld [vmem:[#allocation2 + $0x58] sm:$0xff]
        %v4061 = vld [vmem:[#allocation2 + $0x60] sm:$0xff]
        %v4062 = vld [vmem:[#allocation2 + $0x68] sm:$0xff]
        %v4063 = vld [vmem:[#allocation2 + $0x70] sm:$0xff]
        %v4064 = vld [vmem:[#allocation2 + $0x78] sm:$0xff]
        %4065 = vmatprep.subr.mxu0 %v4058
        %4066 = vmatpush1.xpose.msra.mxu0 %v4057
        %4067 = vmatprep.subr.mxu0 %v4060
        %4068 = vmatpush1.xpose.msra.mxu0 %v4059
        %4069 = vmatprep.subr.mxu0 %v4062
        %4070 = vmatpush1.xpose.msra.mxu0 %v4061
        %4071 = vmatprep.subr.mxu0 %v4064
        %4072 = vmatpush1.xpose.msra.mxu0 %v4063
        %4073 = vmatprep.subr.mxu0 0.0
        %4074 = vmatpush1.xpose.msra.mxu0 0.0
        %4075 = vmatprep.subr.mxu0 0.0
        %4076 = vmatpush1.xpose.msra.mxu0 0.0
        %4077 = vmatprep.subr.mxu0 0.0
        %4078 = vmatpush1.xpose.msra.mxu0 0.0
        %4079 = vmatprep.subr.mxu0 0.0
        %4080 = vmatpush1.xpose.msra.mxu0 0.0
        %4081 = vmatprep.subr.mxu0 0.0
        %4082 = vmatpush1.xpose.msra.mxu0 0.0
        %4083 = vmatprep.subr.mxu0 0.0
        %4084 = vmatpush1.xpose.msra.mxu0 0.0
        %4085 = vmatprep.subr.mxu0 0.0
        %4086 = vmatpush1.xpose.msra.mxu0 0.0
        %4087 = vmatprep.subr.mxu0 0.0
        %4088 = vmatpush1.xpose.msra.mxu0 0.0
        %4089 = vmatprep.subr.mxu0 0.0
        %4090 = vmatpush1.xpose.msra.mxu0 0.0
        %4091 = vmatprep.subr.mxu0 0.0
        %4092 = vmatpush1.xpose.msra.mxu0 0.0
        %4093 = vmatprep.subr.mxu0 0.0
        %4094 = vmatpush1.xpose.msra.mxu0 0.0
        %4095 = vmatprep.subr.mxu0 0.0
        %4096 = vmatpush1.xpose.msra.mxu0 0.0
        %4097 = vmatprep.subr.mxu0 0.0
        %4098 = vmatpush1.xpose.msra.mxu0 0.0
        %4099 = vmatprep.subr.mxu0 0.0
        %4100 = vmatpush1.xpose.msra.mxu0 0.0
        %4101 = vmatprep.subr.mxu0 0.0
        %4102 = vmatpush1.xpose.msra.mxu0 0.0
        %4103 = vmatprep.subr.mxu0 0.0
        %4104 = vmatpush1.xpose.msra.mxu0 0.0
        %4105 = vmatprep.subr.mxu0 0.0
        %4106 = vmatpush1.xpose.msra.mxu0 0.0
        %4107 = vmatprep.subr.mxu0 0.0
        %4108 = vmatpush1.xpose.msra.mxu0 0.0
        %4109 = vmatprep.subr.mxu0 0.0
        %4110 = vmatpush1.xpose.msra.mxu0 0.0
        %4111 = vmatprep.subr.mxu0 0.0
        %4112 = vmatpush1.xpose.msra.mxu0 0.0
        %4113 = vmatprep.subr.mxu0 0.0
        %4114 = vmatpush1.xpose.msra.mxu0 0.0
        %4115 = vmatprep.subr.mxu0 0.0
        %4116 = vmatpush1.xpose.msra.mxu0 0.0
        %4117 = vmatprep.subr.mxu0 0.0
        %4118 = vmatpush1.xpose.msra.mxu0 0.0
        %4119 = vmatprep.subr.mxu0 0.0
        %4120 = vmatpush1.xpose.msra.mxu0 0.0
        %4121 = vmatprep.subr.mxu0 0.0
        %4122 = vmatpush1.xpose.msra.mxu0 0.0
        %4123 = vmatprep.subr.mxu0 0.0
        %4124 = vmatpush1.xpose.msra.mxu0 0.0
        %4125 = vmatprep.subr.mxu0 0.0
        %4126 = vmatpush1.xpose.msra.mxu0 0.0
        %4127 = vmatprep.subr.mxu0 0.0
        %4128 = vmatpush1.xpose.msra.mxu0 0.0
        %4129 = vmatprep.mubr.f32.mxu0 %v4038
        %4130 = vmatmul.mubr.f32.gmra.mrb[0].mxu0 %v4037
        %v4131 = vpop.f32.mrb[0].mxu0
        %v4132 = vadd.f32 0.0, %v4131
        %v4133 = vpop.f32.mrb[0].mxu0
        %4134 = vmatprep.mubr.f32.mxu0 %v4040
        %4135 = vmatmul.mubr.f32.gmra.mrb[0].mxu0 %v4039
        %v4136 = vpop.f32.mrb[0].mxu0
        %v4137 = vadd.f32 0.0, %v4136
        %v4138 = vpop.f32.mrb[0].mxu0
        %4139 = vdwg.mxu0
        %4140 = vmatprep.subr.mxu0 %v4050
        %4141 = vmatpush1.xpose.msra.mxu0 %v4049
        %4142 = vmatprep.subr.mxu0 %v4052
        %4143 = vmatpush1.xpose.msra.mxu0 %v4051
        %4144 = vmatprep.subr.mxu0 %v4054
        %4145 = vmatpush1.xpose.msra.mxu0 %v4053
        %4146 = vmatprep.subr.mxu0 %v4056
        %4147 = vmatpush1.xpose.msra.mxu0 %v4055
        %4148 = vmatprep.subr.mxu0 0.0
        %4149 = vmatpush1.xpose.msra.mxu0 0.0
        %4150 = vmatprep.subr.mxu0 0.0
        %4151 = vmatpush1.xpose.msra.mxu0 0.0
        %4152 = vmatprep.subr.mxu0 0.0
        %4153 = vmatpush1.xpose.msra.mxu0 0.0
        %4154 = vmatprep.subr.mxu0 0.0
        %4155 = vmatpush1.xpose.msra.mxu0 0.0
        %4156 = vmatprep.subr.mxu0 0.0
        %4157 = vmatpush1.xpose.msra.mxu0 0.0
        %4158 = vmatprep.subr.mxu0 0.0
        %4159 = vmatpush1.xpose.msra.mxu0 0.0
        %4160 = vmatprep.subr.mxu0 0.0
        %4161 = vmatpush1.xpose.msra.mxu0 0.0
        %4162 = vmatprep.subr.mxu0 0.0
        %4163 = vmatpush1.xpose.msra.mxu0 0.0
        %4164 = vmatprep.subr.mxu0 0.0
        %4165 = vmatpush1.xpose.msra.mxu0 0.0
        %4166 = vmatprep.subr.mxu0 0.0
        %4167 = vmatpush1.xpose.msra.mxu0 0.0
        %4168 = vmatprep.subr.mxu0 0.0
        %4169 = vmatpush1.xpose.msra.mxu0 0.0
        %4170 = vmatprep.subr.mxu0 0.0
        %4171 = vmatpush1.xpose.msra.mxu0 0.0
        %4172 = vmatprep.subr.mxu0 0.0
        %4173 = vmatpush1.xpose.msra.mxu0 0.0
        %4174 = vmatprep.subr.mxu0 0.0
        %4175 = vmatpush1.xpose.msra.mxu0 0.0
        %4176 = vmatprep.subr.mxu0 0.0
        %4177 = vmatpush1.xpose.msra.mxu0 0.0
        %4178 = vmatprep.subr.mxu0 0.0
        %4179 = vmatpush1.xpose.msra.mxu0 0.0
        %4180 = vmatprep.subr.mxu0 0.0
        %4181 = vmatpush1.xpose.msra.mxu0 0.0
        %4182 = vmatprep.subr.mxu0 0.0
        %4183 = vmatpush1.xpose.msra.mxu0 0.0
        %4184 = vmatprep.subr.mxu0 0.0
        %4185 = vmatpush1.xpose.msra.mxu0 0.0
        %4186 = vmatprep.subr.mxu0 0.0
        %4187 = vmatpush1.xpose.msra.mxu0 0.0
        %4188 = vmatprep.subr.mxu0 0.0
        %4189 = vmatpush1.xpose.msra.mxu0 0.0
        %4190 = vmatprep.subr.mxu0 0.0
        %4191 = vmatpush1.xpose.msra.mxu0 0.0
        %4192 = vmatprep.subr.mxu0 0.0
        %4193 = vmatpush1.xpose.msra.mxu0 0.0
        %4194 = vmatprep.subr.mxu0 0.0
        %4195 = vmatpush1.xpose.msra.mxu0 0.0
        %4196 = vmatprep.subr.mxu0 0.0
        %4197 = vmatpush1.xpose.msra.mxu0 0.0
        %4198 = vmatprep.subr.mxu0 0.0
        %4199 = vmatpush1.xpose.msra.mxu0 0.0
        %4200 = vmatprep.subr.mxu0 0.0
        %4201 = vmatpush1.xpose.msra.mxu0 0.0
        %4202 = vmatprep.subr.mxu0 0.0
        %4203 = vmatpush1.xpose.msra.mxu0 0.0
        %4204 = vmatprep.mubr.f32.mxu0 %v4034
        %4205 = vmatmul.mubr.f32.gmra.mrb[0].mxu0 %v4033
        %v4206 = vpop.f32.mrb[0].mxu0
        %v4207 = vadd.f32 %v4132, %v4206
        %v4208 = vpop.f32.mrb[0].mxu0
        %4209 = vmatprep.mubr.f32.mxu0 %v4036
        %4210 = vmatmul.mubr.f32.gmra.mrb[0].mxu0 %v4035
        %v4211 = vpop.f32.mrb[0].mxu0
        %v4212 = vadd.f32 %v4137, %v4211
        %v4213 = vpop.f32.mrb[0].mxu0
        %4214 = vdwg.mxu0
        %v4215 = vld [vmem:[#allocation2 + $0x80] sm:$0xff]
        %v4216 = vld [vmem:[#allocation2 + $0x88] sm:$0xff]
        %v4217 = vld [vmem:[#allocation2 + $0x90] sm:$0xff]
        %v4218 = vld [vmem:[#allocation2 + $0x98] sm:$0xff]
        %v4219 = vld [vmem:[#allocation2 + $0xa0] sm:$0xff]
        %v4220 = vld [vmem:[#allocation2 + $0xa8] sm:$0xff]
        %v4221 = vld [vmem:[#allocation2 + $0xb0] sm:$0xff]
        %v4222 = vld [vmem:[#allocation2 + $0xb8] sm:$0xff]
        %4223 = vmatprep.subr.mxu0 %v4216
        %4224 = vmatpush1.xpose.msra.mxu0 %v4215
        %4225 = vmatprep.subr.mxu0 %v4218
        %4226 = vmatpush1.xpose.msra.mxu0 %v4217
        %4227 = vmatprep.subr.mxu0 %v4220
        %4228 = vmatpush1.xpose.msra.mxu0 %v4219
        %4229 = vmatprep.subr.mxu0 %v4222
        %4230 = vmatpush1.xpose.msra.mxu0 %v4221
        %4231 = vmatprep.subr.mxu0 0.0
        %4232 = vmatpush1.xpose.msra.mxu0 0.0
        %4233 = vmatprep.subr.mxu0 0.0
        %4234 = vmatpush1.xpose.msra.mxu0 0.0
        %4235 = vmatprep.subr.mxu0 0.0
        %4236 = vmatpush1.xpose.msra.mxu0 0.0
        %4237 = vmatprep.subr.mxu0 0.0
        %4238 = vmatpush1.xpose.msra.mxu0 0.0
        %4239 = vmatprep.subr.mxu0 0.0
        %4240 = vmatpush1.xpose.msra.mxu0 0.0
        %4241 = vmatprep.subr.mxu0 0.0
        %4242 = vmatpush1.xpose.msra.mxu0 0.0
        %4243 = vmatprep.subr.mxu0 0.0
        %4244 = vmatpush1.xpose.msra.mxu0 0.0
        %4245 = vmatprep.subr.mxu0 0.0
        %4246 = vmatpush1.xpose.msra.mxu0 0.0
        %4247 = vmatprep.subr.mxu0 0.0
        %4248 = vmatpush1.xpose.msra.mxu0 0.0
        %4249 = vmatprep.subr.mxu0 0.0
        %4250 = vmatpush1.xpose.msra.mxu0 0.0
        %4251 = vmatprep.subr.mxu0 0.0
        %4252 = vmatpush1.xpose.msra.mxu0 0.0
        %4253 = vmatprep.subr.mxu0 0.0
        %4254 = vmatpush1.xpose.msra.mxu0 0.0
        %4255 = vmatprep.subr.mxu0 0.0
        %4256 = vmatpush1.xpose.msra.mxu0 0.0
        %4257 = vmatprep.subr.mxu0 0.0
        %4258 = vmatpush1.xpose.msra.mxu0 0.0
        %4259 = vmatprep.subr.mxu0 0.0
        %4260 = vmatpush1.xpose.msra.mxu0 0.0
        %4261 = vmatprep.subr.mxu0 0.0
        %4262 = vmatpush1.xpose.msra.mxu0 0.0
        %4263 = vmatprep.subr.mxu0 0.0
        %4264 = vmatpush1.xpose.msra.mxu0 0.0
        %4265 = vmatprep.subr.mxu0 0.0
        %4266 = vmatpush1.xpose.msra.mxu0 0.0
        %4267 = vmatprep.subr.mxu0 0.0
        %4268 = vmatpush1.xpose.msra.mxu0 0.0
        %4269 = vmatprep.subr.mxu0 0.0
        %4270 = vmatpush1.xpose.msra.mxu0 0.0
        %4271 = vmatprep.subr.mxu0 0.0
        %4272 = vmatpush1.xpose.msra.mxu0 0.0
        %4273 = vmatprep.subr.mxu0 0.0
        %4274 = vmatpush1.xpose.msra.mxu0 0.0
        %4275 = vmatprep.subr.mxu0 0.0
        %4276 = vmatpush1.xpose.msra.mxu0 0.0
        %4277 = vmatprep.subr.mxu0 0.0
        %4278 = vmatpush1.xpose.msra.mxu0 0.0
        %4279 = vmatprep.subr.mxu0 0.0
        %4280 = vmatpush1.xpose.msra.mxu0 0.0
        %4281 = vmatprep.subr.mxu0 0.0
        %4282 = vmatpush1.xpose.msra.mxu0 0.0
        %4283 = vmatprep.subr.mxu0 0.0
        %4284 = vmatpush1.xpose.msra.mxu0 0.0
        %4285 = vmatprep.subr.mxu0 0.0
        %4286 = vmatpush1.xpose.msra.mxu0 0.0
        %4287 = vmatprep.mubr.f32.mxu0 %v4042
        %4288 = vmatmul.mubr.f32.gmra.mrb[0].mxu0 %v4041
        %v4289 = vpop.f32.mrb[0].mxu0
        %v4290 = vadd.f32 0.0, %v4289
        %v4291 = vpop.f32.mrb[0].mxu0
        %4292 = vmatprep.mubr.f32.mxu0 %v4044
        %4293 = vmatmul.mubr.f32.gmra.mrb[0].mxu0 %v4043
        %v4294 = vpop.f32.mrb[0].mxu0
        %v4295 = vadd.f32 0.0, %v4294
        %v4296 = vpop.f32.mrb[0].mxu0
        %4297 = vdwg.mxu0
        %v4298 = vadd.f32 %v4207, %v4290
        %v4299 = vadd.f32 %v4212, %v4295
        %v4300 = vld [vmem:[#allocation2 + $0xc0] sm:$0xff]
        %v4301 = vld [vmem:[#allocation2 + $0xc8] sm:$0xff]
        %v4302 = vld [vmem:[#allocation2 + $0xd0] sm:$0xff]
        %v4303 = vld [vmem:[#allocation2 + $0xd8] sm:$0xff]
        %v4304 = vld [vmem:[#allocation2 + $0xe0] sm:$0xff]
        %v4305 = vld [vmem:[#allocation2 + $0xe8] sm:$0xff]
        %v4306 = vld [vmem:[#allocation2 + $0xf0] sm:$0xff]
        %v4307 = vld [vmem:[#allocation2 + $0xf8] sm:$0xff]
        %4308 = vmatprep.subr.mxu0 %v4301
        %4309 = vmatpush1.xpose.msra.mxu0 %v4300
        %4310 = vmatprep.subr.mxu0 %v4303
        %4311 = vmatpush1.xpose.msra.mxu0 %v4302
        %4312 = vmatprep.subr.mxu0 %v4305
        %4313 = vmatpush1.xpose.msra.mxu0 %v4304
        %4314 = vmatprep.subr.mxu0 %v4307
        %4315 = vmatpush1.xpose.msra.mxu0 %v4306
        %4316 = vmatprep.subr.mxu0 0.0
        %4317 = vmatpush1.xpose.msra.mxu0 0.0
        %4318 = vmatprep.subr.mxu0 0.0
        %4319 = vmatpush1.xpose.msra.mxu0 0.0
        %4320 = vmatprep.subr.mxu0 0.0
        %4321 = vmatpush1.xpose.msra.mxu0 0.0
        %4322 = vmatprep.subr.mxu0 0.0
        %4323 = vmatpush1.xpose.msra.mxu0 0.0
        %4324 = vmatprep.subr.mxu0 0.0
        %4325 = vmatpush1.xpose.msra.mxu0 0.0
        %4326 = vmatprep.subr.mxu0 0.0
        %4327 = vmatpush1.xpose.msra.mxu0 0.0
        %4328 = vmatprep.subr.mxu0 0.0
        %4329 = vmatpush1.xpose.msra.mxu0 0.0
        %4330 = vmatprep.subr.mxu0 0.0
        %4331 = vmatpush1.xpose.msra.mxu0 0.0
        %4332 = vmatprep.subr.mxu0 0.0
        %4333 = vmatpush1.xpose.msra.mxu0 0.0
        %4334 = vmatprep.subr.mxu0 0.0
        %4335 = vmatpush1.xpose.msra.mxu0 0.0
        %4336 = vmatprep.subr.mxu0 0.0
        %4337 = vmatpush1.xpose.msra.mxu0 0.0
        %4338 = vmatprep.subr.mxu0 0.0
        %4339 = vmatpush1.xpose.msra.mxu0 0.0
        %4340 = vmatprep.subr.mxu0 0.0
        %4341 = vmatpush1.xpose.msra.mxu0 0.0
        %4342 = vmatprep.subr.mxu0 0.0
        %4343 = vmatpush1.xpose.msra.mxu0 0.0
        %4344 = vmatprep.subr.mxu0 0.0
        %4345 = vmatpush1.xpose.msra.mxu0 0.0
        %4346 = vmatprep.subr.mxu0 0.0
        %4347 = vmatpush1.xpose.msra.mxu0 0.0
        %4348 = vmatprep.subr.mxu0 0.0
        %4349 = vmatpush1.xpose.msra.mxu0 0.0
        %4350 = vmatprep.subr.mxu0 0.0
        %4351 = vmatpush1.xpose.msra.mxu0 0.0
        %4352 = vmatprep.subr.mxu0 0.0
        %4353 = vmatpush1.xpose.msra.mxu0 0.0
        %4354 = vmatprep.subr.mxu0 0.0
        %4355 = vmatpush1.xpose.msra.mxu0 0.0
        %4356 = vmatprep.subr.mxu0 0.0
        %4357 = vmatpush1.xpose.msra.mxu0 0.0
        %4358 = vmatprep.subr.mxu0 0.0
        %4359 = vmatpush1.xpose.msra.mxu0 0.0
        %4360 = vmatprep.subr.mxu0 0.0
        %4361 = vmatpush1.xpose.msra.mxu0 0.0
        %4362 = vmatprep.subr.mxu0 0.0
        %4363 = vmatpush1.xpose.msra.mxu0 0.0
        %4364 = vmatprep.subr.mxu0 0.0
        %4365 = vmatpush1.xpose.msra.mxu0 0.0
        %4366 = vmatprep.subr.mxu0 0.0
        %4367 = vmatpush1.xpose.msra.mxu0 0.0
        %4368 = vmatprep.subr.mxu0 0.0
        %4369 = vmatpush1.xpose.msra.mxu0 0.0
        %4370 = vmatprep.subr.mxu0 0.0
        %4371 = vmatpush1.xpose.msra.mxu0 0.0
        %4372 = vmatprep.mubr.f32.mxu0 %v4046
        %4373 = vmatmul.mubr.f32.gmra.mrb[0].mxu0 %v4045
        %v4374 = vpop.f32.mrb[0].mxu0
        %v4375 = vadd.f32 0.0, %v4374
        %v4376 = vpop.f32.mrb[0].mxu0
        %4377 = vmatprep.mubr.f32.mxu0 %v4048
        %4378 = vmatmul.mubr.f32.gmra.mrb[0].mxu0 %v4047
        %v4379 = vpop.f32.mrb[0].mxu0
        %v4380 = vadd.f32 0.0, %v4379
        %v4381 = vpop.f32.mrb[0].mxu0
        %4382 = vdwg.mxu0
        %v4383 = vadd.f32 %v4298, %v4375
        %v4384 = vadd.f32 %v4299, %v4380
        %v4386 = vsel %vm1417, %v3462, 0
        %v4389 = vsel %vm1417, %v3463, 0
        %v4392 = vsel %vm1417, %v3464, 0
        %v4395 = vsel %vm1417, %v3465, 0
        %v4398 = vsel %vm1417, %v3466, 0
        %4400 = vmatprep.subr.mxu0 %v3745
        %4401 = vmatpush1.msra.mxu0 %v3743
        %4402 = vmatprep.subr.mxu0 %v3751
        %4403 = vmatpush1.msra.mxu0 %v3749
        %4404 = vmatprep.subr.mxu0 0.0
        %4405 = vmatpush1.msra.mxu0 0.0
        %4406 = vmatprep.subr.mxu0 0.0
        %4407 = vmatpush1.msra.mxu0 0.0
        %4408 = vmatprep.subr.mxu0 0.0
        %4409 = vmatpush1.msra.mxu0 0.0
        %4410 = vmatprep.subr.mxu0 0.0
        %4411 = vmatpush1.msra.mxu0 0.0
        %4412 = vmatprep.subr.mxu0 0.0
        %4413 = vmatpush1.msra.mxu0 0.0
        %4414 = vmatprep.subr.mxu0 0.0
        %4415 = vmatpush1.msra.mxu0 0.0
        %4416 = vmatprep.subr.mxu0 0.0
        %4417 = vmatpush1.msra.mxu0 0.0
        %4418 = vmatprep.subr.mxu0 0.0
        %4419 = vmatpush1.msra.mxu0 0.0
        %4420 = vmatprep.subr.mxu0 0.0
        %4421 = vmatpush1.msra.mxu0 0.0
        %4422 = vmatprep.subr.mxu0 0.0
        %4423 = vmatpush1.msra.mxu0 0.0
        %4424 = vmatprep.subr.mxu0 0.0
        %4425 = vmatpush1.msra.mxu0 0.0
        %4426 = vmatprep.subr.mxu0 0.0
        %4427 = vmatpush1.msra.mxu0 0.0
        %4428 = vmatprep.subr.mxu0 0.0
        %4429 = vmatpush1.msra.mxu0 0.0
        %4430 = vmatprep.subr.mxu0 0.0
        %4431 = vmatpush1.msra.mxu0 0.0
        %4432 = vmatprep.subr.mxu0 0.0
        %4433 = vmatpush1.msra.mxu0 0.0
        %4434 = vmatprep.subr.mxu0 0.0
        %4435 = vmatpush1.msra.mxu0 0.0
        %4436 = vmatprep.subr.mxu0 0.0
        %4437 = vmatpush1.msra.mxu0 0.0
        %4438 = vmatprep.subr.mxu0 0.0
        %4439 = vmatpush1.msra.mxu0 0.0
        %4440 = vmatprep.subr.mxu0 0.0
        %4441 = vmatpush1.msra.mxu0 0.0
        %4442 = vmatprep.subr.mxu0 0.0
        %4443 = vmatpush1.msra.mxu0 0.0
        %4444 = vmatprep.subr.mxu0 0.0
        %4445 = vmatpush1.msra.mxu0 0.0
        %4446 = vmatprep.subr.mxu0 0.0
        %4447 = vmatpush1.msra.mxu0 0.0
        %4448 = vmatprep.subr.mxu0 0.0
        %4449 = vmatpush1.msra.mxu0 0.0
        %4450 = vmatprep.subr.mxu0 0.0
        %4451 = vmatpush1.msra.mxu0 0.0
        %4452 = vmatprep.subr.mxu0 0.0
        %4453 = vmatpush1.msra.mxu0 0.0
        %4454 = vmatprep.subr.mxu0 0.0
        %4455 = vmatpush1.msra.mxu0 0.0
        %4456 = vmatprep.subr.mxu0 0.0
        %4457 = vmatpush1.msra.mxu0 0.0
        %4458 = vmatprep.subr.mxu0 0.0
        %4459 = vmatpush1.msra.mxu0 0.0
        %4460 = vmatprep.subr.mxu0 0.0
        %4461 = vmatpush1.msra.mxu0 0.0
        %4462 = vmatprep.subr.mxu0 0.0
        %4463 = vmatpush1.msra.mxu0 0.0
        %4464 = vmatprep.mubr.f32.mxu0 0.0
        %4465 = vmatmul.mubr.f32.gmra.mrb[0].mxu0 %v4386
        %v4466 = vpop.f32.mrb[0].mxu0
        %v4467 = vadd.f32 0.0, %v4466
        %v4468 = vpop.f32.mrb[0].mxu0
        %v4469 = vadd.f32 0.0, %v4468
        %4470 = vmatprep.mubr.f32.mxu0 0.0
        %4471 = vmatmul.mubr.f32.gmra.mrb[0].mxu0 %v4389
        %v4472 = vpop.f32.mrb[0].mxu0
        %v4473 = vadd.f32 0.0, %v4472
        %v4474 = vpop.f32.mrb[0].mxu0
        %v4475 = vadd.f32 0.0, %v4474
        %4476 = vmatprep.mubr.f32.mxu0 0.0
        %4477 = vmatmul.mubr.f32.gmra.mrb[0].mxu0 %v4392
        %v4478 = vpop.f32.mrb[0].mxu0
        %v4479 = vadd.f32 0.0, %v4478
        %v4480 = vpop.f32.mrb[0].mxu0
        %v4481 = vadd.f32 0.0, %v4480
        %4482 = vmatprep.mubr.f32.mxu0 0.0
        %4483 = vmatmul.mubr.f32.gmra.mrb[0].mxu0 %v4395
        %v4484 = vpop.f32.mrb[0].mxu0
        %v4485 = vadd.f32 0.0, %v4484
        %v4486 = vpop.f32.mrb[0].mxu0
        %v4487 = vadd.f32 0.0, %v4486
        %4488 = vmatprep.mubr.f32.mxu0 0.0
        %4489 = vmatmul.mubr.f32.gmra.mrb[0].mxu0 %v4398
        %v4490 = vpop.f32.mrb[0].mxu0
        %v4491 = vadd.f32 0.0, %v4490
        %v4492 = vpop.f32.mrb[0].mxu0
        %v4493 = vadd.f32 0.0, %v4492
        %4494 = vdwg.mxu0
        %v4495 = vmul.f32 %v4467, %v424
        %v4496 = vmul.f32 %v4469, %v425
        %v4497 = vmul.f32 %v4473, %v426
        %v4498 = vmul.f32 %v4475, %v427
        %v4499 = vmul.f32 %v4479, %v428
        %v4500 = vmul.f32 %v4481, %v429
        %v4501 = vmul.f32 %v4485, %v430
        %v4502 = vmul.f32 %v4487, %v431
        %v4503 = vmul.f32 %v4491, %v432
        %v4504 = vmul.f32 %v4493, %v433
        %v4505 = vlaneseq
        %v4506 = vshrl.u32 %v4505, 7
        %v4507 = vsub.s32 4, %v4506
        %v4508 = vrot.slane %v4491, %v4507
        %v4509 = vlaneseq
        %v4510 = vshrl.u32 %v4509, 7
        %v4511 = vsub.s32 4, %v4510
        %v4512 = vrot.slane %v4493, %v4511
        %4513 = vrot.lane.b32.xlu0 %v4049, 17
        %v4514 = vpop.permute.xlu0 %4513
        %4515 = vrot.lane.b32.xlu0 %v4051, 17
        %v4516 = vpop.permute.xlu0 %4515
        %4517 = vrot.lane.b32.xlu0 %v4053, 17
        %v4518 = vpop.permute.xlu0 %4517
        %4519 = vrot.lane.b32.xlu0 %v4055, 17
        %v4520 = vpop.permute.xlu0 %4519
        %4521 = vrot.lane.b32.xlu0 %v4050, 17
        %v4522 = vpop.permute.xlu0 %4521
        %4523 = vrot.lane.b32.xlu0 %v4052, 17
        %v4524 = vpop.permute.xlu0 %4523
        %4525 = vrot.lane.b32.xlu0 %v4054, 17
        %v4526 = vpop.permute.xlu0 %4525
        %4527 = vrot.lane.b32.xlu0 %v4056, 17
        %v4528 = vpop.permute.xlu0 %4527
        %v4529 = vsel %vm1564, %v4514, %v4522
        %v4530 = vsel %vm1564, %v4516, %v4524
        %v4531 = vsel %vm1564, %v4518, %v4526
        %v4532 = vsel %vm1564, %v4520, %v4528
        %v4533 = vsel %vm1564, %v4522, %v4514
        %v4534 = vsel %vm1564, %v4524, %v4516
        %v4535 = vsel %vm1564, %v4526, %v4518
        %v4536 = vsel %vm1564, %v4528, %v4520
        %v4537 = vlaneseq
        %v4538 = vshrl.u32 %v4537, 7
        %v4539 = vsub.s32 0, %v4538
        %v4540 = vrot.slane %v4495, %v4539
        %v4541 = vlaneseq
        %v4542 = vshrl.u32 %v4541, 7
        %v4543 = vsub.s32 0, %v4542
        %v4544 = vrot.slane %v4496, %v4543
        %v4545 = vmul.f32 %v4540, %v4533
        %v4546 = vmul.f32 %v4544, %v4529
        %v4547 = vmul.f32 %v4540, %v4534
        %v4548 = vmul.f32 %v4544, %v4530
        %v4549 = vmul.f32 %v4540, %v4535
        %v4550 = vmul.f32 %v4544, %v4531
        %v4551 = vmul.f32 %v4540, %v4536
        %v4552 = vmul.f32 %v4544, %v4532
        %v4553 = vadd.f32 %v4508, %v4545
        %v4554 = vadd.f32 %v4512, %v4546
        %v4555 = vadd.f32 %v4508, %v4547
        %v4556 = vadd.f32 %v4512, %v4548
        %v4557 = vadd.f32 %v4508, %v4549
        %v4558 = vadd.f32 %v4512, %v4550
        %v4559 = vadd.f32 %v4508, %v4551
        %v4560 = vadd.f32 %v4512, %v4552
        %4561 = vrot.lane.b32.xlu0 %v4049, 16
        %v4562 = vpop.permute.xlu0 %4561
        %4563 = vrot.lane.b32.xlu0 %v4051, 16
        %v4564 = vpop.permute.xlu0 %4563
        %4565 = vrot.lane.b32.xlu0 %v4053, 16
        %v4566 = vpop.permute.xlu0 %4565
        %4567 = vrot.lane.b32.xlu0 %v4055, 16
        %v4568 = vpop.permute.xlu0 %4567
        %4569 = vrot.lane.b32.xlu0 %v4050, 16
        %v4570 = vpop.permute.xlu0 %4569
        %4571 = vrot.lane.b32.xlu0 %v4052, 16
        %v4572 = vpop.permute.xlu0 %4571
        %4573 = vrot.lane.b32.xlu0 %v4054, 16
        %v4574 = vpop.permute.xlu0 %4573
        %4575 = vrot.lane.b32.xlu0 %v4056, 16
        %v4576 = vpop.permute.xlu0 %4575
        %v4577 = vsel %vm1613, %v4562, %v4570
        %v4578 = vsel %vm1613, %v4564, %v4572
        %v4579 = vsel %vm1613, %v4566, %v4574
        %v4580 = vsel %vm1613, %v4568, %v4576
        %v4581 = vsel %vm1613, %v4570, %v4562
        %v4582 = vsel %vm1613, %v4572, %v4564
        %v4583 = vsel %vm1613, %v4574, %v4566
        %v4584 = vsel %vm1613, %v4576, %v4568
        %v4585 = vlaneseq
        %v4586 = vshrl.u32 %v4585, 7
        %v4587 = vsub.s32 1, %v4586
        %v4588 = vrot.slane %v4495, %v4587
        %v4589 = vlaneseq
        %v4590 = vshrl.u32 %v4589, 7
        %v4591 = vsub.s32 1, %v4590
        %v4592 = vrot.slane %v4496, %v4591
        %v4593 = vmul.f32 %v4588, %v4581
        %v4594 = vmul.f32 %v4592, %v4577
        %v4595 = vmul.f32 %v4588, %v4582
        %v4596 = vmul.f32 %v4592, %v4578
        %v4597 = vmul.f32 %v4588, %v4583
        %v4598 = vmul.f32 %v4592, %v4579
        %v4599 = vmul.f32 %v4588, %v4584
        %v4600 = vmul.f32 %v4592, %v4580
        %v4601 = vadd.f32 %v4553, %v4593
        %v4602 = vadd.f32 %v4554, %v4594
        %v4603 = vadd.f32 %v4555, %v4595
        %v4604 = vadd.f32 %v4556, %v4596
        %v4605 = vadd.f32 %v4557, %v4597
        %v4606 = vadd.f32 %v4558, %v4598
        %v4607 = vadd.f32 %v4559, %v4599
        %v4608 = vadd.f32 %v4560, %v4600
        %4609 = vrot.lane.b32.xlu0 %v4049, 15
        %v4610 = vpop.permute.xlu0 %4609
        %4611 = vrot.lane.b32.xlu0 %v4051, 15
        %v4612 = vpop.permute.xlu0 %4611
        %4613 = vrot.lane.b32.xlu0 %v4053, 15
        %v4614 = vpop.permute.xlu0 %4613
        %4615 = vrot.lane.b32.xlu0 %v4055, 15
        %v4616 = vpop.permute.xlu0 %4615
        %4617 = vrot.lane.b32.xlu0 %v4050, 15
        %v4618 = vpop.permute.xlu0 %4617
        %4619 = vrot.lane.b32.xlu0 %v4052, 15
        %v4620 = vpop.permute.xlu0 %4619
        %4621 = vrot.lane.b32.xlu0 %v4054, 15
        %v4622 = vpop.permute.xlu0 %4621
        %4623 = vrot.lane.b32.xlu0 %v4056, 15
        %v4624 = vpop.permute.xlu0 %4623
        %v4625 = vsel %vm1662, %v4610, %v4618
        %v4626 = vsel %vm1662, %v4612, %v4620
        %v4627 = vsel %vm1662, %v4614, %v4622
        %v4628 = vsel %vm1662, %v4616, %v4624
        %v4629 = vsel %vm1662, %v4618, %v4610
        %v4630 = vsel %vm1662, %v4620, %v4612
        %v4631 = vsel %vm1662, %v4622, %v4614
        %v4632 = vsel %vm1662, %v4624, %v4616
        %v4633 = vlaneseq
        %v4634 = vshrl.u32 %v4633, 7
        %v4635 = vsub.s32 2, %v4634
        %v4636 = vrot.slane %v4495, %v4635
        %v4637 = vlaneseq
        %v4638 = vshrl.u32 %v4637, 7
        %v4639 = vsub.s32 2, %v4638
        %v4640 = vrot.slane %v4496, %v4639
        %v4641 = vmul.f32 %v4636, %v4629
        %v4642 = vmul.f32 %v4640, %v4625
        %v4643 = vmul.f32 %v4636, %v4630
        %v4644 = vmul.f32 %v4640, %v4626
        %v4645 = vmul.f32 %v4636, %v4631
        %v4646 = vmul.f32 %v4640, %v4627
        %v4647 = vmul.f32 %v4636, %v4632
        %v4648 = vmul.f32 %v4640, %v4628
        %v4649 = vadd.f32 %v4601, %v4641
        %v4650 = vadd.f32 %v4602, %v4642
        %v4651 = vadd.f32 %v4603, %v4643
        %v4652 = vadd.f32 %v4604, %v4644
        %v4653 = vadd.f32 %v4605, %v4645
        %v4654 = vadd.f32 %v4606, %v4646
        %v4655 = vadd.f32 %v4607, %v4647
        %v4656 = vadd.f32 %v4608, %v4648
        %4657 = vrot.lane.b32.xlu0 %v4049, 1
        %v4658 = vpop.permute.xlu0 %4657
        %4659 = vrot.lane.b32.xlu0 %v4051, 1
        %v4660 = vpop.permute.xlu0 %4659
        %4661 = vrot.lane.b32.xlu0 %v4053, 1
        %v4662 = vpop.permute.xlu0 %4661
        %4663 = vrot.lane.b32.xlu0 %v4055, 1
        %v4664 = vpop.permute.xlu0 %4663
        %4665 = vrot.lane.b32.xlu0 %v4050, 1
        %v4666 = vpop.permute.xlu0 %4665
        %4667 = vrot.lane.b32.xlu0 %v4052, 1
        %v4668 = vpop.permute.xlu0 %4667
        %4669 = vrot.lane.b32.xlu0 %v4054, 1
        %v4670 = vpop.permute.xlu0 %4669
        %4671 = vrot.lane.b32.xlu0 %v4056, 1
        %v4672 = vpop.permute.xlu0 %4671
        %v4673 = vsel %vm1711, %v4658, %v4666
        %v4674 = vsel %vm1711, %v4660, %v4668
        %v4675 = vsel %vm1711, %v4662, %v4670
        %v4676 = vsel %vm1711, %v4664, %v4672
        %v4677 = vsel %vm1711, %v4666, %v4658
        %v4678 = vsel %vm1711, %v4668, %v4660
        %v4679 = vsel %vm1711, %v4670, %v4662
        %v4680 = vsel %vm1711, %v4672, %v4664
        %v4681 = vlaneseq
        %v4682 = vshrl.u32 %v4681, 7
        %v4683 = vsub.s32 3, %v4682
        %v4684 = vrot.slane %v4495, %v4683
        %v4685 = vlaneseq
        %v4686 = vshrl.u32 %v4685, 7
        %v4687 = vsub.s32 3, %v4686
        %v4688 = vrot.slane %v4496, %v4687
        %v4689 = vmul.f32 %v4684, %v4677
        %v4690 = vmul.f32 %v4688, %v4673
        %v4691 = vmul.f32 %v4684, %v4678
        %v4692 = vmul.f32 %v4688, %v4674
        %v4693 = vmul.f32 %v4684, %v4679
        %v4694 = vmul.f32 %v4688, %v4675
        %v4695 = vmul.f32 %v4684, %v4680
        %v4696 = vmul.f32 %v4688, %v4676
        %v4697 = vadd.f32 %v4649, %v4689
        %v4698 = vadd.f32 %v4650, %v4690
        %v4699 = vadd.f32 %v4651, %v4691
        %v4700 = vadd.f32 %v4652, %v4692
        %v4701 = vadd.f32 %v4653, %v4693
        %v4702 = vadd.f32 %v4654, %v4694
        %v4703 = vadd.f32 %v4655, %v4695
        %v4704 = vadd.f32 %v4656, %v4696
        %v4705 = vlaneseq
        %v4706 = vshrl.u32 %v4705, 7
        %v4707 = vsub.s32 4, %v4706
        %v4708 = vrot.slane %v4495, %v4707
        %v4709 = vlaneseq
        %v4710 = vshrl.u32 %v4709, 7
        %v4711 = vsub.s32 4, %v4710
        %v4712 = vrot.slane %v4496, %v4711
        %v4713 = vmul.f32 %v4708, %v4049
        %v4714 = vmul.f32 %v4712, %v4050
        %v4715 = vmul.f32 %v4708, %v4051
        %v4716 = vmul.f32 %v4712, %v4052
        %v4717 = vmul.f32 %v4708, %v4053
        %v4718 = vmul.f32 %v4712, %v4054
        %v4719 = vmul.f32 %v4708, %v4055
        %v4720 = vmul.f32 %v4712, %v4056
        %v4721 = vadd.f32 %v4697, %v4713
        %v4722 = vadd.f32 %v4698, %v4714
        %v4723 = vadd.f32 %v4699, %v4715
        %v4724 = vadd.f32 %v4700, %v4716
        %v4725 = vadd.f32 %v4701, %v4717
        %v4726 = vadd.f32 %v4702, %v4718
        %v4727 = vadd.f32 %v4703, %v4719
        %v4728 = vadd.f32 %v4704, %v4720
        %4729 = vrot.lane.b32.xlu0 %v4049, 127
        %v4730 = vpop.permute.xlu0 %4729
        %4731 = vrot.lane.b32.xlu0 %v4051, 127
        %v4732 = vpop.permute.xlu0 %4731
        %4733 = vrot.lane.b32.xlu0 %v4053, 127
        %v4734 = vpop.permute.xlu0 %4733
        %4735 = vrot.lane.b32.xlu0 %v4055, 127
        %v4736 = vpop.permute.xlu0 %4735
        %4737 = vrot.lane.b32.xlu0 %v4050, 127
        %v4738 = vpop.permute.xlu0 %4737
        %4739 = vrot.lane.b32.xlu0 %v4052, 127
        %v4740 = vpop.permute.xlu0 %4739
        %4741 = vrot.lane.b32.xlu0 %v4054, 127
        %v4742 = vpop.permute.xlu0 %4741
        %4743 = vrot.lane.b32.xlu0 %v4056, 127
        %v4744 = vpop.permute.xlu0 %4743
        %v4745 = vsel %vm1784, %v4730, %v4738
        %v4746 = vsel %vm1784, %v4732, %v4740
        %v4747 = vsel %vm1784, %v4734, %v4742
        %v4748 = vsel %vm1784, %v4736, %v4744
        %v4749 = vsel %vm1784, %v4738, %v4730
        %v4750 = vsel %vm1784, %v4740, %v4732
        %v4751 = vsel %vm1784, %v4742, %v4734
        %v4752 = vsel %vm1784, %v4744, %v4736
        %v4753 = vlaneseq
        %v4754 = vshrl.u32 %v4753, 7
        %v4755 = vsub.s32 5, %v4754
        %v4756 = vrot.slane %v4495, %v4755
        %v4757 = vlaneseq
        %v4758 = vshrl.u32 %v4757, 7
        %v4759 = vsub.s32 5, %v4758
        %v4760 = vrot.slane %v4496, %v4759
        %v4761 = vmul.f32 %v4756, %v4745
        %v4762 = vmul.f32 %v4760, %v4749
        %v4763 = vmul.f32 %v4756, %v4746
        %v4764 = vmul.f32 %v4760, %v4750
        %v4765 = vmul.f32 %v4756, %v4747
        %v4766 = vmul.f32 %v4760, %v4751
        %v4767 = vmul.f32 %v4756, %v4748
        %v4768 = vmul.f32 %v4760, %v4752
        %v4769 = vadd.f32 %v4721, %v4761
        %v4770 = vadd.f32 %v4722, %v4762
        %v4771 = vadd.f32 %v4723, %v4763
        %v4772 = vadd.f32 %v4724, %v4764
        %v4773 = vadd.f32 %v4725, %v4765
        %v4774 = vadd.f32 %v4726, %v4766
        %v4775 = vadd.f32 %v4727, %v4767
        %v4776 = vadd.f32 %v4728, %v4768
        %4777 = vrot.lane.b32.xlu0 %v4049, 113
        %v4778 = vpop.permute.xlu0 %4777
        %4779 = vrot.lane.b32.xlu0 %v4051, 113
        %v4780 = vpop.permute.xlu0 %4779
        %4781 = vrot.lane.b32.xlu0 %v4053, 113
        %v4782 = vpop.permute.xlu0 %4781
        %4783 = vrot.lane.b32.xlu0 %v4055, 113
        %v4784 = vpop.permute.xlu0 %4783
        %4785 = vrot.lane.b32.xlu0 %v4050, 113
        %v4786 = vpop.permute.xlu0 %4785
        %4787 = vrot.lane.b32.xlu0 %v4052, 113
        %v4788 = vpop.permute.xlu0 %4787
        %4789 = vrot.lane.b32.xlu0 %v4054, 113
        %v4790 = vpop.permute.xlu0 %4789
        %4791 = vrot.lane.b32.xlu0 %v4056, 113
        %v4792 = vpop.permute.xlu0 %4791
        %v4793 = vsel %vm1833, %v4778, %v4786
        %v4794 = vsel %vm1833, %v4780, %v4788
        %v4795 = vsel %vm1833, %v4782, %v4790
        %v4796 = vsel %vm1833, %v4784, %v4792
        %v4797 = vsel %vm1833, %v4786, %v4778
        %v4798 = vsel %vm1833, %v4788, %v4780
        %v4799 = vsel %vm1833, %v4790, %v4782
        %v4800 = vsel %vm1833, %v4792, %v4784
        %v4801 = vlaneseq
        %v4802 = vshrl.u32 %v4801, 7
        %v4803 = vsub.s32 6, %v4802
        %v4804 = vrot.slane %v4495, %v4803
        %v4805 = vlaneseq
        %v4806 = vshrl.u32 %v4805, 7
        %v4807 = vsub.s32 6, %v4806
        %v4808 = vrot.slane %v4496, %v4807
        %v4809 = vmul.f32 %v4804, %v4793
        %v4810 = vmul.f32 %v4808, %v4797
        %v4811 = vmul.f32 %v4804, %v4794
        %v4812 = vmul.f32 %v4808, %v4798
        %v4813 = vmul.f32 %v4804, %v4795
        %v4814 = vmul.f32 %v4808, %v4799
        %v4815 = vmul.f32 %v4804, %v4796
        %v4816 = vmul.f32 %v4808, %v4800
        %v4817 = vadd.f32 %v4769, %v4809
        %v4818 = vadd.f32 %v4770, %v4810
        %v4819 = vadd.f32 %v4771, %v4811
        %v4820 = vadd.f32 %v4772, %v4812
        %v4821 = vadd.f32 %v4773, %v4813
        %v4822 = vadd.f32 %v4774, %v4814
        %v4823 = vadd.f32 %v4775, %v4815
        %v4824 = vadd.f32 %v4776, %v4816
        %4825 = vrot.lane.b32.xlu0 %v4049, 112
        %v4826 = vpop.permute.xlu0 %4825
        %4827 = vrot.lane.b32.xlu0 %v4051, 112
        %v4828 = vpop.permute.xlu0 %4827
        %4829 = vrot.lane.b32.xlu0 %v4053, 112
        %v4830 = vpop.permute.xlu0 %4829
        %4831 = vrot.lane.b32.xlu0 %v4055, 112
        %v4832 = vpop.permute.xlu0 %4831
        %4833 = vrot.lane.b32.xlu0 %v4050, 112
        %v4834 = vpop.permute.xlu0 %4833
        %4835 = vrot.lane.b32.xlu0 %v4052, 112
        %v4836 = vpop.permute.xlu0 %4835
        %4837 = vrot.lane.b32.xlu0 %v4054, 112
        %v4838 = vpop.permute.xlu0 %4837
        %4839 = vrot.lane.b32.xlu0 %v4056, 112
        %v4840 = vpop.permute.xlu0 %4839
        %v4841 = vsel %vm1882, %v4826, %v4834
        %v4842 = vsel %vm1882, %v4828, %v4836
        %v4843 = vsel %vm1882, %v4830, %v4838
        %v4844 = vsel %vm1882, %v4832, %v4840
        %v4845 = vsel %vm1882, %v4834, %v4826
        %v4846 = vsel %vm1882, %v4836, %v4828
        %v4847 = vsel %vm1882, %v4838, %v4830
        %v4848 = vsel %vm1882, %v4840, %v4832
        %v4849 = vlaneseq
        %v4850 = vshrl.u32 %v4849, 7
        %v4851 = vsub.s32 7, %v4850
        %v4852 = vrot.slane %v4495, %v4851
        %v4853 = vlaneseq
        %v4854 = vshrl.u32 %v4853, 7
        %v4855 = vsub.s32 7, %v4854
        %v4856 = vrot.slane %v4496, %v4855
        %v4857 = vmul.f32 %v4852, %v4841
        %v4858 = vmul.f32 %v4856, %v4845
        %v4859 = vmul.f32 %v4852, %v4842
        %v4860 = vmul.f32 %v4856, %v4846
        %v4861 = vmul.f32 %v4852, %v4843
        %v4862 = vmul.f32 %v4856, %v4847
        %v4863 = vmul.f32 %v4852, %v4844
        %v4864 = vmul.f32 %v4856, %v4848
        %v4865 = vadd.f32 %v4817, %v4857
        %v4866 = vadd.f32 %v4818, %v4858
        %v4867 = vadd.f32 %v4819, %v4859
        %v4868 = vadd.f32 %v4820, %v4860
        %v4869 = vadd.f32 %v4821, %v4861
        %v4870 = vadd.f32 %v4822, %v4862
        %v4871 = vadd.f32 %v4823, %v4863
        %v4872 = vadd.f32 %v4824, %v4864
        %4873 = vrot.lane.b32.xlu0 %v4049, 111
        %v4874 = vpop.permute.xlu0 %4873
        %4875 = vrot.lane.b32.xlu0 %v4051, 111
        %v4876 = vpop.permute.xlu0 %4875
        %4877 = vrot.lane.b32.xlu0 %v4053, 111
        %v4878 = vpop.permute.xlu0 %4877
        %4879 = vrot.lane.b32.xlu0 %v4055, 111
        %v4880 = vpop.permute.xlu0 %4879
        %4881 = vrot.lane.b32.xlu0 %v4050, 111
        %v4882 = vpop.permute.xlu0 %4881
        %4883 = vrot.lane.b32.xlu0 %v4052, 111
        %v4884 = vpop.permute.xlu0 %4883
        %4885 = vrot.lane.b32.xlu0 %v4054, 111
        %v4886 = vpop.permute.xlu0 %4885
        %4887 = vrot.lane.b32.xlu0 %v4056, 111
        %v4888 = vpop.permute.xlu0 %4887
        %v4889 = vsel %vm1931, %v4874, %v4882
        %v4890 = vsel %vm1931, %v4876, %v4884
        %v4891 = vsel %vm1931, %v4878, %v4886
        %v4892 = vsel %vm1931, %v4880, %v4888
        %v4893 = vsel %vm1931, %v4882, %v4874
        %v4894 = vsel %vm1931, %v4884, %v4876
        %v4895 = vsel %vm1931, %v4886, %v4878
        %v4896 = vsel %vm1931, %v4888, %v4880
        %v4897 = vlaneseq
        %v4898 = vshrl.u32 %v4897, 7
        %v4899 = vsub.s32 0, %v4898
        %v4900 = vrot.slane %v4497, %v4899
        %v4901 = vlaneseq
        %v4902 = vshrl.u32 %v4901, 7
        %v4903 = vsub.s32 0, %v4902
        %v4904 = vrot.slane %v4498, %v4903
        %v4905 = vmul.f32 %v4900, %v4889
        %v4906 = vmul.f32 %v4904, %v4893
        %v4907 = vmul.f32 %v4900, %v4890
        %v4908 = vmul.f32 %v4904, %v4894
        %v4909 = vmul.f32 %v4900, %v4891
        %v4910 = vmul.f32 %v4904, %v4895
        %v4911 = vmul.f32 %v4900, %v4892
        %v4912 = vmul.f32 %v4904, %v4896
        %v4913 = vadd.f32 %v4865, %v4905
        %v4914 = vadd.f32 %v4866, %v4906
        %v4915 = vadd.f32 %v4867, %v4907
        %v4916 = vadd.f32 %v4868, %v4908
        %v4917 = vadd.f32 %v4869, %v4909
        %v4918 = vadd.f32 %v4870, %v4910
        %v4919 = vadd.f32 %v4871, %v4911
        %v4920 = vadd.f32 %v4872, %v4912
        %4921 = vrot.lane.b32.xlu0 %v4057, 17
        %v4922 = vpop.permute.xlu0 %4921
        %4923 = vrot.lane.b32.xlu0 %v4059, 17
        %v4924 = vpop.permute.xlu0 %4923
        %4925 = vrot.lane.b32.xlu0 %v4061, 17
        %v4926 = vpop.permute.xlu0 %4925
        %4927 = vrot.lane.b32.xlu0 %v4063, 17
        %v4928 = vpop.permute.xlu0 %4927
        %4929 = vrot.lane.b32.xlu0 %v4058, 17
        %v4930 = vpop.permute.xlu0 %4929
        %4931 = vrot.lane.b32.xlu0 %v4060, 17
        %v4932 = vpop.permute.xlu0 %4931
        %4933 = vrot.lane.b32.xlu0 %v4062, 17
        %v4934 = vpop.permute.xlu0 %4933
        %4935 = vrot.lane.b32.xlu0 %v4064, 17
        %v4936 = vpop.permute.xlu0 %4935
        %v4937 = vsel %vm1564, %v4922, %v4930
        %v4938 = vsel %vm1564, %v4924, %v4932
        %v4939 = vsel %vm1564, %v4926, %v4934
        %v4940 = vsel %vm1564, %v4928, %v4936
        %v4941 = vsel %vm1564, %v4930, %v4922
        %v4942 = vsel %vm1564, %v4932, %v4924
        %v4943 = vsel %vm1564, %v4934, %v4926
        %v4944 = vsel %vm1564, %v4936, %v4928
        %v4945 = vlaneseq
        %v4946 = vshrl.u32 %v4945, 7
        %v4947 = vsub.s32 1, %v4946
        %v4948 = vrot.slane %v4497, %v4947
        %v4949 = vlaneseq
        %v4950 = vshrl.u32 %v4949, 7
        %v4951 = vsub.s32 1, %v4950
        %v4952 = vrot.slane %v4498, %v4951
        %v4953 = vmul.f32 %v4948, %v4941
        %v4954 = vmul.f32 %v4952, %v4937
        %v4955 = vmul.f32 %v4948, %v4942
        %v4956 = vmul.f32 %v4952, %v4938
        %v4957 = vmul.f32 %v4948, %v4943
        %v4958 = vmul.f32 %v4952, %v4939
        %v4959 = vmul.f32 %v4948, %v4944
        %v4960 = vmul.f32 %v4952, %v4940
        %v4961 = vadd.f32 %v4913, %v4953
        %v4962 = vadd.f32 %v4914, %v4954
        %v4963 = vadd.f32 %v4915, %v4955
        %v4964 = vadd.f32 %v4916, %v4956
        %v4965 = vadd.f32 %v4917, %v4957
        %v4966 = vadd.f32 %v4918, %v4958
        %v4967 = vadd.f32 %v4919, %v4959
        %v4968 = vadd.f32 %v4920, %v4960
        %4969 = vrot.lane.b32.xlu0 %v4057, 16
        %v4970 = vpop.permute.xlu0 %4969
        %4971 = vrot.lane.b32.xlu0 %v4059, 16
        %v4972 = vpop.permute.xlu0 %4971
        %4973 = vrot.lane.b32.xlu0 %v4061, 16
        %v4974 = vpop.permute.xlu0 %4973
        %4975 = vrot.lane.b32.xlu0 %v4063, 16
        %v4976 = vpop.permute.xlu0 %4975
        %4977 = vrot.lane.b32.xlu0 %v4058, 16
        %v4978 = vpop.permute.xlu0 %4977
        %4979 = vrot.lane.b32.xlu0 %v4060, 16
        %v4980 = vpop.permute.xlu0 %4979
        %4981 = vrot.lane.b32.xlu0 %v4062, 16
        %v4982 = vpop.permute.xlu0 %4981
        %4983 = vrot.lane.b32.xlu0 %v4064, 16
        %v4984 = vpop.permute.xlu0 %4983
        %v4985 = vsel %vm1613, %v4970, %v4978
        %v4986 = vsel %vm1613, %v4972, %v4980
        %v4987 = vsel %vm1613, %v4974, %v4982
        %v4988 = vsel %vm1613, %v4976, %v4984
        %v4989 = vsel %vm1613, %v4978, %v4970
        %v4990 = vsel %vm1613, %v4980, %v4972
        %v4991 = vsel %vm1613, %v4982, %v4974
        %v4992 = vsel %vm1613, %v4984, %v4976
        %v4993 = vlaneseq
        %v4994 = vshrl.u32 %v4993, 7
        %v4995 = vsub.s32 2, %v4994
        %v4996 = vrot.slane %v4497, %v4995
        %v4997 = vlaneseq
        %v4998 = vshrl.u32 %v4997, 7
        %v4999 = vsub.s32 2, %v4998
        %v5000 = vrot.slane %v4498, %v4999
        %v5001 = vmul.f32 %v4996, %v4989
        %v5002 = vmul.f32 %v5000, %v4985
        %v5003 = vmul.f32 %v4996, %v4990
        %v5004 = vmul.f32 %v5000, %v4986
        %v5005 = vmul.f32 %v4996, %v4991
        %v5006 = vmul.f32 %v5000, %v4987
        %v5007 = vmul.f32 %v4996, %v4992
        %v5008 = vmul.f32 %v5000, %v4988
        %v5009 = vadd.f32 %v4961, %v5001
        %v5010 = vadd.f32 %v4962, %v5002
        %v5011 = vadd.f32 %v4963, %v5003
        %v5012 = vadd.f32 %v4964, %v5004
        %v5013 = vadd.f32 %v4965, %v5005
        %v5014 = vadd.f32 %v4966, %v5006
        %v5015 = vadd.f32 %v4967, %v5007
        %v5016 = vadd.f32 %v4968, %v5008
        %5017 = vrot.lane.b32.xlu0 %v4057, 15
        %v5018 = vpop.permute.xlu0 %5017
        %5019 = vrot.lane.b32.xlu0 %v4059, 15
        %v5020 = vpop.permute.xlu0 %5019
        %5021 = vrot.lane.b32.xlu0 %v4061, 15
        %v5022 = vpop.permute.xlu0 %5021
        %5023 = vrot.lane.b32.xlu0 %v4063, 15
        %v5024 = vpop.permute.xlu0 %5023
        %5025 = vrot.lane.b32.xlu0 %v4058, 15
        %v5026 = vpop.permute.xlu0 %5025
        %5027 = vrot.lane.b32.xlu0 %v4060, 15
        %v5028 = vpop.permute.xlu0 %5027
        %5029 = vrot.lane.b32.xlu0 %v4062, 15
        %v5030 = vpop.permute.xlu0 %5029
        %5031 = vrot.lane.b32.xlu0 %v4064, 15
        %v5032 = vpop.permute.xlu0 %5031
        %v5033 = vsel %vm1662, %v5018, %v5026
        %v5034 = vsel %vm1662, %v5020, %v5028
        %v5035 = vsel %vm1662, %v5022, %v5030
        %v5036 = vsel %vm1662, %v5024, %v5032
        %v5037 = vsel %vm1662, %v5026, %v5018
        %v5038 = vsel %vm1662, %v5028, %v5020
        %v5039 = vsel %vm1662, %v5030, %v5022
        %v5040 = vsel %vm1662, %v5032, %v5024
        %v5041 = vlaneseq
        %v5042 = vshrl.u32 %v5041, 7
        %v5043 = vsub.s32 3, %v5042
        %v5044 = vrot.slane %v4497, %v5043
        %v5045 = vlaneseq
        %v5046 = vshrl.u32 %v5045, 7
        %v5047 = vsub.s32 3, %v5046
        %v5048 = vrot.slane %v4498, %v5047
        %v5049 = vmul.f32 %v5044, %v5037
        %v5050 = vmul.f32 %v5048, %v5033
        %v5051 = vmul.f32 %v5044, %v5038
        %v5052 = vmul.f32 %v5048, %v5034
        %v5053 = vmul.f32 %v5044, %v5039
        %v5054 = vmul.f32 %v5048, %v5035
        %v5055 = vmul.f32 %v5044, %v5040
        %v5056 = vmul.f32 %v5048, %v5036
        %v5057 = vadd.f32 %v5009, %v5049
        %v5058 = vadd.f32 %v5010, %v5050
        %v5059 = vadd.f32 %v5011, %v5051
        %v5060 = vadd.f32 %v5012, %v5052
        %v5061 = vadd.f32 %v5013, %v5053
        %v5062 = vadd.f32 %v5014, %v5054
        %v5063 = vadd.f32 %v5015, %v5055
        %v5064 = vadd.f32 %v5016, %v5056
        %5065 = vrot.lane.b32.xlu0 %v4057, 1
        %v5066 = vpop.permute.xlu0 %5065
        %5067 = vrot.lane.b32.xlu0 %v4059, 1
        %v5068 = vpop.permute.xlu0 %5067
        %5069 = vrot.lane.b32.xlu0 %v4061, 1
        %v5070 = vpop.permute.xlu0 %5069
        %5071 = vrot.lane.b32.xlu0 %v4063, 1
        %v5072 = vpop.permute.xlu0 %5071
        %5073 = vrot.lane.b32.xlu0 %v4058, 1
        %v5074 = vpop.permute.xlu0 %5073
        %5075 = vrot.lane.b32.xlu0 %v4060, 1
        %v5076 = vpop.permute.xlu0 %5075
        %5077 = vrot.lane.b32.xlu0 %v4062, 1
        %v5078 = vpop.permute.xlu0 %5077
        %5079 = vrot.lane.b32.xlu0 %v4064, 1
        %v5080 = vpop.permute.xlu0 %5079
        %v5081 = vsel %vm1711, %v5066, %v5074
        %v5082 = vsel %vm1711, %v5068, %v5076
        %v5083 = vsel %vm1711, %v5070, %v5078
        %v5084 = vsel %vm1711, %v5072, %v5080
        %v5085 = vsel %vm1711, %v5074, %v5066
        %v5086 = vsel %vm1711, %v5076, %v5068
        %v5087 = vsel %vm1711, %v5078, %v5070
        %v5088 = vsel %vm1711, %v5080, %v5072
        %v5089 = vlaneseq
        %v5090 = vshrl.u32 %v5089, 7
        %v5091 = vsub.s32 4, %v5090
        %v5092 = vrot.slane %v4497, %v5091
        %v5093 = vlaneseq
        %v5094 = vshrl.u32 %v5093, 7
        %v5095 = vsub.s32 4, %v5094
        %v5096 = vrot.slane %v4498, %v5095
        %v5097 = vmul.f32 %v5092, %v5085
        %v5098 = vmul.f32 %v5096, %v5081
        %v5099 = vmul.f32 %v5092, %v5086
        %v5100 = vmul.f32 %v5096, %v5082
        %v5101 = vmul.f32 %v5092, %v5087
        %v5102 = vmul.f32 %v5096, %v5083
        %v5103 = vmul.f32 %v5092, %v5088
        %v5104 = vmul.f32 %v5096, %v5084
        %v5105 = vadd.f32 %v5057, %v5097
        %v5106 = vadd.f32 %v5058, %v5098
        %v5107 = vadd.f32 %v5059, %v5099
        %v5108 = vadd.f32 %v5060, %v5100
        %v5109 = vadd.f32 %v5061, %v5101
        %v5110 = vadd.f32 %v5062, %v5102
        %v5111 = vadd.f32 %v5063, %v5103
        %v5112 = vadd.f32 %v5064, %v5104
        %v5113 = vlaneseq
        %v5114 = vshrl.u32 %v5113, 7
        %v5115 = vsub.s32 5, %v5114
        %v5116 = vrot.slane %v4497, %v5115
        %v5117 = vlaneseq
        %v5118 = vshrl.u32 %v5117, 7
        %v5119 = vsub.s32 5, %v5118
        %v5120 = vrot.slane %v4498, %v5119
        %v5121 = vmul.f32 %v5116, %v4057
        %v5122 = vmul.f32 %v5120, %v4058
        %v5123 = vmul.f32 %v5116, %v4059
        %v5124 = vmul.f32 %v5120, %v4060
        %v5125 = vmul.f32 %v5116, %v4061
        %v5126 = vmul.f32 %v5120, %v4062
        %v5127 = vmul.f32 %v5116, %v4063
        %v5128 = vmul.f32 %v5120, %v4064
        %v5129 = vadd.f32 %v5105, %v5121
        %v5130 = vadd.f32 %v5106, %v5122
        %v5131 = vadd.f32 %v5107, %v5123
        %v5132 = vadd.f32 %v5108, %v5124
        %v5133 = vadd.f32 %v5109, %v5125
        %v5134 = vadd.f32 %v5110, %v5126
        %v5135 = vadd.f32 %v5111, %v5127
        %v5136 = vadd.f32 %v5112, %v5128
        %5137 = vrot.lane.b32.xlu0 %v4057, 127
        %v5138 = vpop.permute.xlu0 %5137
        %5139 = vrot.lane.b32.xlu0 %v4059, 127
        %v5140 = vpop.permute.xlu0 %5139
        %5141 = vrot.lane.b32.xlu0 %v4061, 127
        %v5142 = vpop.permute.xlu0 %5141
        %5143 = vrot.lane.b32.xlu0 %v4063, 127
        %v5144 = vpop.permute.xlu0 %5143
        %5145 = vrot.lane.b32.xlu0 %v4058, 127
        %v5146 = vpop.permute.xlu0 %5145
        %5147 = vrot.lane.b32.xlu0 %v4060, 127
        %v5148 = vpop.permute.xlu0 %5147
        %5149 = vrot.lane.b32.xlu0 %v4062, 127
        %v5150 = vpop.permute.xlu0 %5149
        %5151 = vrot.lane.b32.xlu0 %v4064, 127
        %v5152 = vpop.permute.xlu0 %5151
        %v5153 = vsel %vm1784, %v5138, %v5146
        %v5154 = vsel %vm1784, %v5140, %v5148
        %v5155 = vsel %vm1784, %v5142, %v5150
        %v5156 = vsel %vm1784, %v5144, %v5152
        %v5157 = vsel %vm1784, %v5146, %v5138
        %v5158 = vsel %vm1784, %v5148, %v5140
        %v5159 = vsel %vm1784, %v5150, %v5142
        %v5160 = vsel %vm1784, %v5152, %v5144
        %v5161 = vlaneseq
        %v5162 = vshrl.u32 %v5161, 7
        %v5163 = vsub.s32 6, %v5162
        %v5164 = vrot.slane %v4497, %v5163
        %v5165 = vlaneseq
        %v5166 = vshrl.u32 %v5165, 7
        %v5167 = vsub.s32 6, %v5166
        %v5168 = vrot.slane %v4498, %v5167
        %v5169 = vmul.f32 %v5164, %v5153
        %v5170 = vmul.f32 %v5168, %v5157
        %v5171 = vmul.f32 %v5164, %v5154
        %v5172 = vmul.f32 %v5168, %v5158
        %v5173 = vmul.f32 %v5164, %v5155
        %v5174 = vmul.f32 %v5168, %v5159
        %v5175 = vmul.f32 %v5164, %v5156
        %v5176 = vmul.f32 %v5168, %v5160
        %v5177 = vadd.f32 %v5129, %v5169
        %v5178 = vadd.f32 %v5130, %v5170
        %v5179 = vadd.f32 %v5131, %v5171
        %v5180 = vadd.f32 %v5132, %v5172
        %v5181 = vadd.f32 %v5133, %v5173
        %v5182 = vadd.f32 %v5134, %v5174
        %v5183 = vadd.f32 %v5135, %v5175
        %v5184 = vadd.f32 %v5136, %v5176
        %5185 = vrot.lane.b32.xlu0 %v4057, 113
        %v5186 = vpop.permute.xlu0 %5185
        %5187 = vrot.lane.b32.xlu0 %v4059, 113
        %v5188 = vpop.permute.xlu0 %5187
        %5189 = vrot.lane.b32.xlu0 %v4061, 113
        %v5190 = vpop.permute.xlu0 %5189
        %5191 = vrot.lane.b32.xlu0 %v4063, 113
        %v5192 = vpop.permute.xlu0 %5191
        %5193 = vrot.lane.b32.xlu0 %v4058, 113
        %v5194 = vpop.permute.xlu0 %5193
        %5195 = vrot.lane.b32.xlu0 %v4060, 113
        %v5196 = vpop.permute.xlu0 %5195
        %5197 = vrot.lane.b32.xlu0 %v4062, 113
        %v5198 = vpop.permute.xlu0 %5197
        %5199 = vrot.lane.b32.xlu0 %v4064, 113
        %v5200 = vpop.permute.xlu0 %5199
        %v5201 = vsel %vm1833, %v5186, %v5194
        %v5202 = vsel %vm1833, %v5188, %v5196
        %v5203 = vsel %vm1833, %v5190, %v5198
        %v5204 = vsel %vm1833, %v5192, %v5200
        %v5205 = vsel %vm1833, %v5194, %v5186
        %v5206 = vsel %vm1833, %v5196, %v5188
        %v5207 = vsel %vm1833, %v5198, %v5190
        %v5208 = vsel %vm1833, %v5200, %v5192
        %v5209 = vlaneseq
        %v5210 = vshrl.u32 %v5209, 7
        %v5211 = vsub.s32 7, %v5210
        %v5212 = vrot.slane %v4497, %v5211
        %v5213 = vlaneseq
        %v5214 = vshrl.u32 %v5213, 7
        %v5215 = vsub.s32 7, %v5214
        %v5216 = vrot.slane %v4498, %v5215
        %v5217 = vmul.f32 %v5212, %v5201
        %v5218 = vmul.f32 %v5216, %v5205
        %v5219 = vmul.f32 %v5212, %v5202
        %v5220 = vmul.f32 %v5216, %v5206
        %v5221 = vmul.f32 %v5212, %v5203
        %v5222 = vmul.f32 %v5216, %v5207
        %v5223 = vmul.f32 %v5212, %v5204
        %v5224 = vmul.f32 %v5216, %v5208
        %v5225 = vadd.f32 %v5177, %v5217
        %v5226 = vadd.f32 %v5178, %v5218
        %v5227 = vadd.f32 %v5179, %v5219
        %v5228 = vadd.f32 %v5180, %v5220
        %v5229 = vadd.f32 %v5181, %v5221
        %v5230 = vadd.f32 %v5182, %v5222
        %v5231 = vadd.f32 %v5183, %v5223
        %v5232 = vadd.f32 %v5184, %v5224
        %5233 = vrot.lane.b32.xlu0 %v4057, 112
        %v5234 = vpop.permute.xlu0 %5233
        %5235 = vrot.lane.b32.xlu0 %v4059, 112
        %v5236 = vpop.permute.xlu0 %5235
        %5237 = vrot.lane.b32.xlu0 %v4061, 112
        %v5238 = vpop.permute.xlu0 %5237
        %5239 = vrot.lane.b32.xlu0 %v4063, 112
        %v5240 = vpop.permute.xlu0 %5239
        %5241 = vrot.lane.b32.xlu0 %v4058, 112
        %v5242 = vpop.permute.xlu0 %5241
        %5243 = vrot.lane.b32.xlu0 %v4060, 112
        %v5244 = vpop.permute.xlu0 %5243
        %5245 = vrot.lane.b32.xlu0 %v4062, 112
        %v5246 = vpop.permute.xlu0 %5245
        %5247 = vrot.lane.b32.xlu0 %v4064, 112
        %v5248 = vpop.permute.xlu0 %5247
        %v5249 = vsel %vm1882, %v5234, %v5242
        %v5250 = vsel %vm1882, %v5236, %v5244
        %v5251 = vsel %vm1882, %v5238, %v5246
        %v5252 = vsel %vm1882, %v5240, %v5248
        %v5253 = vsel %vm1882, %v5242, %v5234
        %v5254 = vsel %vm1882, %v5244, %v5236
        %v5255 = vsel %vm1882, %v5246, %v5238
        %v5256 = vsel %vm1882, %v5248, %v5240
        %v5257 = vlaneseq
        %v5258 = vshrl.u32 %v5257, 7
        %v5259 = vsub.s32 0, %v5258
        %v5260 = vrot.slane %v4499, %v5259
        %v5261 = vlaneseq
        %v5262 = vshrl.u32 %v5261, 7
        %v5263 = vsub.s32 0, %v5262
        %v5264 = vrot.slane %v4500, %v5263
        %v5265 = vmul.f32 %v5260, %v5249
        %v5266 = vmul.f32 %v5264, %v5253
        %v5267 = vmul.f32 %v5260, %v5250
        %v5268 = vmul.f32 %v5264, %v5254
        %v5269 = vmul.f32 %v5260, %v5251
        %v5270 = vmul.f32 %v5264, %v5255
        %v5271 = vmul.f32 %v5260, %v5252
        %v5272 = vmul.f32 %v5264, %v5256
        %v5273 = vadd.f32 %v5225, %v5265
        %v5274 = vadd.f32 %v5226, %v5266
        %v5275 = vadd.f32 %v5227, %v5267
        %v5276 = vadd.f32 %v5228, %v5268
        %v5277 = vadd.f32 %v5229, %v5269
        %v5278 = vadd.f32 %v5230, %v5270
        %v5279 = vadd.f32 %v5231, %v5271
        %v5280 = vadd.f32 %v5232, %v5272
        %5281 = vrot.lane.b32.xlu0 %v4057, 111
        %v5282 = vpop.permute.xlu0 %5281
        %5283 = vrot.lane.b32.xlu0 %v4059, 111
        %v5284 = vpop.permute.xlu0 %5283
        %5285 = vrot.lane.b32.xlu0 %v4061, 111
        %v5286 = vpop.permute.xlu0 %5285
        %5287 = vrot.lane.b32.xlu0 %v4063, 111
        %v5288 = vpop.permute.xlu0 %5287
        %5289 = vrot.lane.b32.xlu0 %v4058, 111
        %v5290 = vpop.permute.xlu0 %5289
        %5291 = vrot.lane.b32.xlu0 %v4060, 111
        %v5292 = vpop.permute.xlu0 %5291
        %5293 = vrot.lane.b32.xlu0 %v4062, 111
        %v5294 = vpop.permute.xlu0 %5293
        %5295 = vrot.lane.b32.xlu0 %v4064, 111
        %v5296 = vpop.permute.xlu0 %5295
        %v5297 = vsel %vm1931, %v5282, %v5290
        %v5298 = vsel %vm1931, %v5284, %v5292
        %v5299 = vsel %vm1931, %v5286, %v5294
        %v5300 = vsel %vm1931, %v5288, %v5296
        %v5301 = vsel %vm1931, %v5290, %v5282
        %v5302 = vsel %vm1931, %v5292, %v5284
        %v5303 = vsel %vm1931, %v5294, %v5286
        %v5304 = vsel %vm1931, %v5296, %v5288
        %v5305 = vlaneseq
        %v5306 = vshrl.u32 %v5305, 7
        %v5307 = vsub.s32 1, %v5306
        %v5308 = vrot.slane %v4499, %v5307
        %v5309 = vlaneseq
        %v5310 = vshrl.u32 %v5309, 7
        %v5311 = vsub.s32 1, %v5310
        %v5312 = vrot.slane %v4500, %v5311
        %v5313 = vmul.f32 %v5308, %v5297
        %v5314 = vmul.f32 %v5312, %v5301
        %v5315 = vmul.f32 %v5308, %v5298
        %v5316 = vmul.f32 %v5312, %v5302
        %v5317 = vmul.f32 %v5308, %v5299
        %v5318 = vmul.f32 %v5312, %v5303
        %v5319 = vmul.f32 %v5308, %v5300
        %v5320 = vmul.f32 %v5312, %v5304
        %v5321 = vadd.f32 %v5273, %v5313
        %v5322 = vadd.f32 %v5274, %v5314
        %v5323 = vadd.f32 %v5275, %v5315
        %v5324 = vadd.f32 %v5276, %v5316
        %v5325 = vadd.f32 %v5277, %v5317
        %v5326 = vadd.f32 %v5278, %v5318
        %v5327 = vadd.f32 %v5279, %v5319
        %v5328 = vadd.f32 %v5280, %v5320
        %5329 = vrot.lane.b32.xlu0 %v4215, 17
        %v5330 = vpop.permute.xlu0 %5329
        %5331 = vrot.lane.b32.xlu0 %v4217, 17
        %v5332 = vpop.permute.xlu0 %5331
        %5333 = vrot.lane.b32.xlu0 %v4219, 17
        %v5334 = vpop.permute.xlu0 %5333
        %5335 = vrot.lane.b32.xlu0 %v4221, 17
        %v5336 = vpop.permute.xlu0 %5335
        %5337 = vrot.lane.b32.xlu0 %v4216, 17
        %v5338 = vpop.permute.xlu0 %5337
        %5339 = vrot.lane.b32.xlu0 %v4218, 17
        %v5340 = vpop.permute.xlu0 %5339
        %5341 = vrot.lane.b32.xlu0 %v4220, 17
        %v5342 = vpop.permute.xlu0 %5341
        %5343 = vrot.lane.b32.xlu0 %v4222, 17
        %v5344 = vpop.permute.xlu0 %5343
        %v5345 = vsel %vm1564, %v5330, %v5338
        %v5346 = vsel %vm1564, %v5332, %v5340
        %v5347 = vsel %vm1564, %v5334, %v5342
        %v5348 = vsel %vm1564, %v5336, %v5344
        %v5349 = vsel %vm1564, %v5338, %v5330
        %v5350 = vsel %vm1564, %v5340, %v5332
        %v5351 = vsel %vm1564, %v5342, %v5334
        %v5352 = vsel %vm1564, %v5344, %v5336
        %v5353 = vlaneseq
        %v5354 = vshrl.u32 %v5353, 7
        %v5355 = vsub.s32 2, %v5354
        %v5356 = vrot.slane %v4499, %v5355
        %v5357 = vlaneseq
        %v5358 = vshrl.u32 %v5357, 7
        %v5359 = vsub.s32 2, %v5358
        %v5360 = vrot.slane %v4500, %v5359
        %v5361 = vmul.f32 %v5356, %v5349
        %v5362 = vmul.f32 %v5360, %v5345
        %v5363 = vmul.f32 %v5356, %v5350
        %v5364 = vmul.f32 %v5360, %v5346
        %v5365 = vmul.f32 %v5356, %v5351
        %v5366 = vmul.f32 %v5360, %v5347
        %v5367 = vmul.f32 %v5356, %v5352
        %v5368 = vmul.f32 %v5360, %v5348
        %v5369 = vadd.f32 %v5321, %v5361
        %v5370 = vadd.f32 %v5322, %v5362
        %v5371 = vadd.f32 %v5323, %v5363
        %v5372 = vadd.f32 %v5324, %v5364
        %v5373 = vadd.f32 %v5325, %v5365
        %v5374 = vadd.f32 %v5326, %v5366
        %v5375 = vadd.f32 %v5327, %v5367
        %v5376 = vadd.f32 %v5328, %v5368
        %5377 = vrot.lane.b32.xlu0 %v4215, 16
        %v5378 = vpop.permute.xlu0 %5377
        %5379 = vrot.lane.b32.xlu0 %v4217, 16
        %v5380 = vpop.permute.xlu0 %5379
        %5381 = vrot.lane.b32.xlu0 %v4219, 16
        %v5382 = vpop.permute.xlu0 %5381
        %5383 = vrot.lane.b32.xlu0 %v4221, 16
        %v5384 = vpop.permute.xlu0 %5383
        %5385 = vrot.lane.b32.xlu0 %v4216, 16
        %v5386 = vpop.permute.xlu0 %5385
        %5387 = vrot.lane.b32.xlu0 %v4218, 16
        %v5388 = vpop.permute.xlu0 %5387
        %5389 = vrot.lane.b32.xlu0 %v4220, 16
        %v5390 = vpop.permute.xlu0 %5389
        %5391 = vrot.lane.b32.xlu0 %v4222, 16
        %v5392 = vpop.permute.xlu0 %5391
        %v5393 = vsel %vm1613, %v5378, %v5386
        %v5394 = vsel %vm1613, %v5380, %v5388
        %v5395 = vsel %vm1613, %v5382, %v5390
        %v5396 = vsel %vm1613, %v5384, %v5392
        %v5397 = vsel %vm1613, %v5386, %v5378
        %v5398 = vsel %vm1613, %v5388, %v5380
        %v5399 = vsel %vm1613, %v5390, %v5382
        %v5400 = vsel %vm1613, %v5392, %v5384
        %v5401 = vlaneseq
        %v5402 = vshrl.u32 %v5401, 7
        %v5403 = vsub.s32 3, %v5402
        %v5404 = vrot.slane %v4499, %v5403
        %v5405 = vlaneseq
        %v5406 = vshrl.u32 %v5405, 7
        %v5407 = vsub.s32 3, %v5406
        %v5408 = vrot.slane %v4500, %v5407
        %v5409 = vmul.f32 %v5404, %v5397
        %v5410 = vmul.f32 %v5408, %v5393
        %v5411 = vmul.f32 %v5404, %v5398
        %v5412 = vmul.f32 %v5408, %v5394
        %v5413 = vmul.f32 %v5404, %v5399
        %v5414 = vmul.f32 %v5408, %v5395
        %v5415 = vmul.f32 %v5404, %v5400
        %v5416 = vmul.f32 %v5408, %v5396
        %v5417 = vadd.f32 %v5369, %v5409
        %v5418 = vadd.f32 %v5370, %v5410
        %v5419 = vadd.f32 %v5371, %v5411
        %v5420 = vadd.f32 %v5372, %v5412
        %v5421 = vadd.f32 %v5373, %v5413
        %v5422 = vadd.f32 %v5374, %v5414
        %v5423 = vadd.f32 %v5375, %v5415
        %v5424 = vadd.f32 %v5376, %v5416
        %5425 = vrot.lane.b32.xlu0 %v4215, 15
        %v5426 = vpop.permute.xlu0 %5425
        %5427 = vrot.lane.b32.xlu0 %v4217, 15
        %v5428 = vpop.permute.xlu0 %5427
        %5429 = vrot.lane.b32.xlu0 %v4219, 15
        %v5430 = vpop.permute.xlu0 %5429
        %5431 = vrot.lane.b32.xlu0 %v4221, 15
        %v5432 = vpop.permute.xlu0 %5431
        %5433 = vrot.lane.b32.xlu0 %v4216, 15
        %v5434 = vpop.permute.xlu0 %5433
        %5435 = vrot.lane.b32.xlu0 %v4218, 15
        %v5436 = vpop.permute.xlu0 %5435
        %5437 = vrot.lane.b32.xlu0 %v4220, 15
        %v5438 = vpop.permute.xlu0 %5437
        %5439 = vrot.lane.b32.xlu0 %v4222, 15
        %v5440 = vpop.permute.xlu0 %5439
        %v5441 = vsel %vm1662, %v5426, %v5434
        %v5442 = vsel %vm1662, %v5428, %v5436
        %v5443 = vsel %vm1662, %v5430, %v5438
        %v5444 = vsel %vm1662, %v5432, %v5440
        %v5445 = vsel %vm1662, %v5434, %v5426
        %v5446 = vsel %vm1662, %v5436, %v5428
        %v5447 = vsel %vm1662, %v5438, %v5430
        %v5448 = vsel %vm1662, %v5440, %v5432
        %v5449 = vlaneseq
        %v5450 = vshrl.u32 %v5449, 7
        %v5451 = vsub.s32 4, %v5450
        %v5452 = vrot.slane %v4499, %v5451
        %v5453 = vlaneseq
        %v5454 = vshrl.u32 %v5453, 7
        %v5455 = vsub.s32 4, %v5454
        %v5456 = vrot.slane %v4500, %v5455
        %v5457 = vmul.f32 %v5452, %v5445
        %v5458 = vmul.f32 %v5456, %v5441
        %v5459 = vmul.f32 %v5452, %v5446
        %v5460 = vmul.f32 %v5456, %v5442
        %v5461 = vmul.f32 %v5452, %v5447
        %v5462 = vmul.f32 %v5456, %v5443
        %v5463 = vmul.f32 %v5452, %v5448
        %v5464 = vmul.f32 %v5456, %v5444
        %v5465 = vadd.f32 %v5417, %v5457
        %v5466 = vadd.f32 %v5418, %v5458
        %v5467 = vadd.f32 %v5419, %v5459
        %v5468 = vadd.f32 %v5420, %v5460
        %v5469 = vadd.f32 %v5421, %v5461
        %v5470 = vadd.f32 %v5422, %v5462
        %v5471 = vadd.f32 %v5423, %v5463
        %v5472 = vadd.f32 %v5424, %v5464
        %5473 = vrot.lane.b32.xlu0 %v4215, 1
        %v5474 = vpop.permute.xlu0 %5473
        %5475 = vrot.lane.b32.xlu0 %v4217, 1
        %v5476 = vpop.permute.xlu0 %5475
        %5477 = vrot.lane.b32.xlu0 %v4219, 1
        %v5478 = vpop.permute.xlu0 %5477
        %5479 = vrot.lane.b32.xlu0 %v4221, 1
        %v5480 = vpop.permute.xlu0 %5479
        %5481 = vrot.lane.b32.xlu0 %v4216, 1
        %v5482 = vpop.permute.xlu0 %5481
        %5483 = vrot.lane.b32.xlu0 %v4218, 1
        %v5484 = vpop.permute.xlu0 %5483
        %5485 = vrot.lane.b32.xlu0 %v4220, 1
        %v5486 = vpop.permute.xlu0 %5485
        %5487 = vrot.lane.b32.xlu0 %v4222, 1
        %v5488 = vpop.permute.xlu0 %5487
        %v5489 = vsel %vm1711, %v5474, %v5482
        %v5490 = vsel %vm1711, %v5476, %v5484
        %v5491 = vsel %vm1711, %v5478, %v5486
        %v5492 = vsel %vm1711, %v5480, %v5488
        %v5493 = vsel %vm1711, %v5482, %v5474
        %v5494 = vsel %vm1711, %v5484, %v5476
        %v5495 = vsel %vm1711, %v5486, %v5478
        %v5496 = vsel %vm1711, %v5488, %v5480
        %v5497 = vlaneseq
        %v5498 = vshrl.u32 %v5497, 7
        %v5499 = vsub.s32 5, %v5498
        %v5500 = vrot.slane %v4499, %v5499
        %v5501 = vlaneseq
        %v5502 = vshrl.u32 %v5501, 7
        %v5503 = vsub.s32 5, %v5502
        %v5504 = vrot.slane %v4500, %v5503
        %v5505 = vmul.f32 %v5500, %v5493
        %v5506 = vmul.f32 %v5504, %v5489
        %v5507 = vmul.f32 %v5500, %v5494
        %v5508 = vmul.f32 %v5504, %v5490
        %v5509 = vmul.f32 %v5500, %v5495
        %v5510 = vmul.f32 %v5504, %v5491
        %v5511 = vmul.f32 %v5500, %v5496
        %v5512 = vmul.f32 %v5504, %v5492
        %v5513 = vadd.f32 %v5465, %v5505
        %v5514 = vadd.f32 %v5466, %v5506
        %v5515 = vadd.f32 %v5467, %v5507
        %v5516 = vadd.f32 %v5468, %v5508
        %v5517 = vadd.f32 %v5469, %v5509
        %v5518 = vadd.f32 %v5470, %v5510
        %v5519 = vadd.f32 %v5471, %v5511
        %v5520 = vadd.f32 %v5472, %v5512
        %v5521 = vlaneseq
        %v5522 = vshrl.u32 %v5521, 7
        %v5523 = vsub.s32 6, %v5522
        %v5524 = vrot.slane %v4499, %v5523
        %v5525 = vlaneseq
        %v5526 = vshrl.u32 %v5525, 7
        %v5527 = vsub.s32 6, %v5526
        %v5528 = vrot.slane %v4500, %v5527
        %v5529 = vmul.f32 %v5524, %v4215
        %v5530 = vmul.f32 %v5528, %v4216
        %v5531 = vmul.f32 %v5524, %v4217
        %v5532 = vmul.f32 %v5528, %v4218
        %v5533 = vmul.f32 %v5524, %v4219
        %v5534 = vmul.f32 %v5528, %v4220
        %v5535 = vmul.f32 %v5524, %v4221
        %v5536 = vmul.f32 %v5528, %v4222
        %v5537 = vadd.f32 %v5513, %v5529
        %v5538 = vadd.f32 %v5514, %v5530
        %v5539 = vadd.f32 %v5515, %v5531
        %v5540 = vadd.f32 %v5516, %v5532
        %v5541 = vadd.f32 %v5517, %v5533
        %v5542 = vadd.f32 %v5518, %v5534
        %v5543 = vadd.f32 %v5519, %v5535
        %v5544 = vadd.f32 %v5520, %v5536
        %5545 = vrot.lane.b32.xlu0 %v4215, 127
        %v5546 = vpop.permute.xlu0 %5545
        %5547 = vrot.lane.b32.xlu0 %v4217, 127
        %v5548 = vpop.permute.xlu0 %5547
        %5549 = vrot.lane.b32.xlu0 %v4219, 127
        %v5550 = vpop.permute.xlu0 %5549
        %5551 = vrot.lane.b32.xlu0 %v4221, 127
        %v5552 = vpop.permute.xlu0 %5551
        %5553 = vrot.lane.b32.xlu0 %v4216, 127
        %v5554 = vpop.permute.xlu0 %5553
        %5555 = vrot.lane.b32.xlu0 %v4218, 127
        %v5556 = vpop.permute.xlu0 %5555
        %5557 = vrot.lane.b32.xlu0 %v4220, 127
        %v5558 = vpop.permute.xlu0 %5557
        %5559 = vrot.lane.b32.xlu0 %v4222, 127
        %v5560 = vpop.permute.xlu0 %5559
        %v5561 = vsel %vm1784, %v5546, %v5554
        %v5562 = vsel %vm1784, %v5548, %v5556
        %v5563 = vsel %vm1784, %v5550, %v5558
        %v5564 = vsel %vm1784, %v5552, %v5560
        %v5565 = vsel %vm1784, %v5554, %v5546
        %v5566 = vsel %vm1784, %v5556, %v5548
        %v5567 = vsel %vm1784, %v5558, %v5550
        %v5568 = vsel %vm1784, %v5560, %v5552
        %v5569 = vlaneseq
        %v5570 = vshrl.u32 %v5569, 7
        %v5571 = vsub.s32 7, %v5570
        %v5572 = vrot.slane %v4499, %v5571
        %v5573 = vlaneseq
        %v5574 = vshrl.u32 %v5573, 7
        %v5575 = vsub.s32 7, %v5574
        %v5576 = vrot.slane %v4500, %v5575
        %v5577 = vmul.f32 %v5572, %v5561
        %v5578 = vmul.f32 %v5576, %v5565
        %v5579 = vmul.f32 %v5572, %v5562
        %v5580 = vmul.f32 %v5576, %v5566
        %v5581 = vmul.f32 %v5572, %v5563
        %v5582 = vmul.f32 %v5576, %v5567
        %v5583 = vmul.f32 %v5572, %v5564
        %v5584 = vmul.f32 %v5576, %v5568
        %v5585 = vadd.f32 %v5537, %v5577
        %v5586 = vadd.f32 %v5538, %v5578
        %v5587 = vadd.f32 %v5539, %v5579
        %v5588 = vadd.f32 %v5540, %v5580
        %v5589 = vadd.f32 %v5541, %v5581
        %v5590 = vadd.f32 %v5542, %v5582
        %v5591 = vadd.f32 %v5543, %v5583
        %v5592 = vadd.f32 %v5544, %v5584
        %5593 = vrot.lane.b32.xlu0 %v4215, 113
        %v5594 = vpop.permute.xlu0 %5593
        %5595 = vrot.lane.b32.xlu0 %v4217, 113
        %v5596 = vpop.permute.xlu0 %5595
        %5597 = vrot.lane.b32.xlu0 %v4219, 113
        %v5598 = vpop.permute.xlu0 %5597
        %5599 = vrot.lane.b32.xlu0 %v4221, 113
        %v5600 = vpop.permute.xlu0 %5599
        %5601 = vrot.lane.b32.xlu0 %v4216, 113
        %v5602 = vpop.permute.xlu0 %5601
        %5603 = vrot.lane.b32.xlu0 %v4218, 113
        %v5604 = vpop.permute.xlu0 %5603
        %5605 = vrot.lane.b32.xlu0 %v4220, 113
        %v5606 = vpop.permute.xlu0 %5605
        %5607 = vrot.lane.b32.xlu0 %v4222, 113
        %v5608 = vpop.permute.xlu0 %5607
        %v5609 = vsel %vm1833, %v5594, %v5602
        %v5610 = vsel %vm1833, %v5596, %v5604
        %v5611 = vsel %vm1833, %v5598, %v5606
        %v5612 = vsel %vm1833, %v5600, %v5608
        %v5613 = vsel %vm1833, %v5602, %v5594
        %v5614 = vsel %vm1833, %v5604, %v5596
        %v5615 = vsel %vm1833, %v5606, %v5598
        %v5616 = vsel %vm1833, %v5608, %v5600
        %v5617 = vlaneseq
        %v5618 = vshrl.u32 %v5617, 7
        %v5619 = vsub.s32 0, %v5618
        %v5620 = vrot.slane %v4501, %v5619
        %v5621 = vlaneseq
        %v5622 = vshrl.u32 %v5621, 7
        %v5623 = vsub.s32 0, %v5622
        %v5624 = vrot.slane %v4502, %v5623
        %v5625 = vmul.f32 %v5620, %v5609
        %v5626 = vmul.f32 %v5624, %v5613
        %v5627 = vmul.f32 %v5620, %v5610
        %v5628 = vmul.f32 %v5624, %v5614
        %v5629 = vmul.f32 %v5620, %v5611
        %v5630 = vmul.f32 %v5624, %v5615
        %v5631 = vmul.f32 %v5620, %v5612
        %v5632 = vmul.f32 %v5624, %v5616
        %v5633 = vadd.f32 %v5585, %v5625
        %v5634 = vadd.f32 %v5586, %v5626
        %v5635 = vadd.f32 %v5587, %v5627
        %v5636 = vadd.f32 %v5588, %v5628
        %v5637 = vadd.f32 %v5589, %v5629
        %v5638 = vadd.f32 %v5590, %v5630
        %v5639 = vadd.f32 %v5591, %v5631
        %v5640 = vadd.f32 %v5592, %v5632
        %5641 = vrot.lane.b32.xlu0 %v4215, 112
        %v5642 = vpop.permute.xlu0 %5641
        %5643 = vrot.lane.b32.xlu0 %v4217, 112
        %v5644 = vpop.permute.xlu0 %5643
        %5645 = vrot.lane.b32.xlu0 %v4219, 112
        %v5646 = vpop.permute.xlu0 %5645
        %5647 = vrot.lane.b32.xlu0 %v4221, 112
        %v5648 = vpop.permute.xlu0 %5647
        %5649 = vrot.lane.b32.xlu0 %v4216, 112
        %v5650 = vpop.permute.xlu0 %5649
        %5651 = vrot.lane.b32.xlu0 %v4218, 112
        %v5652 = vpop.permute.xlu0 %5651
        %5653 = vrot.lane.b32.xlu0 %v4220, 112
        %v5654 = vpop.permute.xlu0 %5653
        %5655 = vrot.lane.b32.xlu0 %v4222, 112
        %v5656 = vpop.permute.xlu0 %5655
        %v5657 = vsel %vm1882, %v5642, %v5650
        %v5658 = vsel %vm1882, %v5644, %v5652
        %v5659 = vsel %vm1882, %v5646, %v5654
        %v5660 = vsel %vm1882, %v5648, %v5656
        %v5661 = vsel %vm1882, %v5650, %v5642
        %v5662 = vsel %vm1882, %v5652, %v5644
        %v5663 = vsel %vm1882, %v5654, %v5646
        %v5664 = vsel %vm1882, %v5656, %v5648
        %v5665 = vlaneseq
        %v5666 = vshrl.u32 %v5665, 7
        %v5667 = vsub.s32 1, %v5666
        %v5668 = vrot.slane %v4501, %v5667
        %v5669 = vlaneseq
        %v5670 = vshrl.u32 %v5669, 7
        %v5671 = vsub.s32 1, %v5670
        %v5672 = vrot.slane %v4502, %v5671
        %v5673 = vmul.f32 %v5668, %v5657
        %v5674 = vmul.f32 %v5672, %v5661
        %v5675 = vmul.f32 %v5668, %v5658
        %v5676 = vmul.f32 %v5672, %v5662
        %v5677 = vmul.f32 %v5668, %v5659
        %v5678 = vmul.f32 %v5672, %v5663
        %v5679 = vmul.f32 %v5668, %v5660
        %v5680 = vmul.f32 %v5672, %v5664
        %v5681 = vadd.f32 %v5633, %v5673
        %v5682 = vadd.f32 %v5634, %v5674
        %v5683 = vadd.f32 %v5635, %v5675
        %v5684 = vadd.f32 %v5636, %v5676
        %v5685 = vadd.f32 %v5637, %v5677
        %v5686 = vadd.f32 %v5638, %v5678
        %v5687 = vadd.f32 %v5639, %v5679
        %v5688 = vadd.f32 %v5640, %v5680
        %5689 = vrot.lane.b32.xlu0 %v4215, 111
        %v5690 = vpop.permute.xlu0 %5689
        %5691 = vrot.lane.b32.xlu0 %v4217, 111
        %v5692 = vpop.permute.xlu0 %5691
        %5693 = vrot.lane.b32.xlu0 %v4219, 111
        %v5694 = vpop.permute.xlu0 %5693
        %5695 = vrot.lane.b32.xlu0 %v4221, 111
        %v5696 = vpop.permute.xlu0 %5695
        %5697 = vrot.lane.b32.xlu0 %v4216, 111
        %v5698 = vpop.permute.xlu0 %5697
        %5699 = vrot.lane.b32.xlu0 %v4218, 111
        %v5700 = vpop.permute.xlu0 %5699
        %5701 = vrot.lane.b32.xlu0 %v4220, 111
        %v5702 = vpop.permute.xlu0 %5701
        %5703 = vrot.lane.b32.xlu0 %v4222, 111
        %v5704 = vpop.permute.xlu0 %5703
        %v5705 = vsel %vm1931, %v5690, %v5698
        %v5706 = vsel %vm1931, %v5692, %v5700
        %v5707 = vsel %vm1931, %v5694, %v5702
        %v5708 = vsel %vm1931, %v5696, %v5704
        %v5709 = vsel %vm1931, %v5698, %v5690
        %v5710 = vsel %vm1931, %v5700, %v5692
        %v5711 = vsel %vm1931, %v5702, %v5694
        %v5712 = vsel %vm1931, %v5704, %v5696
        %v5713 = vlaneseq
        %v5714 = vshrl.u32 %v5713, 7
        %v5715 = vsub.s32 2, %v5714
        %v5716 = vrot.slane %v4501, %v5715
        %v5717 = vlaneseq
        %v5718 = vshrl.u32 %v5717, 7
        %v5719 = vsub.s32 2, %v5718
        %v5720 = vrot.slane %v4502, %v5719
        %v5721 = vmul.f32 %v5716, %v5705
        %v5722 = vmul.f32 %v5720, %v5709
        %v5723 = vmul.f32 %v5716, %v5706
        %v5724 = vmul.f32 %v5720, %v5710
        %v5725 = vmul.f32 %v5716, %v5707
        %v5726 = vmul.f32 %v5720, %v5711
        %v5727 = vmul.f32 %v5716, %v5708
        %v5728 = vmul.f32 %v5720, %v5712
        %v5729 = vadd.f32 %v5681, %v5721
        %v5730 = vadd.f32 %v5682, %v5722
        %v5731 = vadd.f32 %v5683, %v5723
        %v5732 = vadd.f32 %v5684, %v5724
        %v5733 = vadd.f32 %v5685, %v5725
        %v5734 = vadd.f32 %v5686, %v5726
        %v5735 = vadd.f32 %v5687, %v5727
        %v5736 = vadd.f32 %v5688, %v5728
        %5737 = vrot.lane.b32.xlu0 %v4300, 17
        %v5738 = vpop.permute.xlu0 %5737
        %5739 = vrot.lane.b32.xlu0 %v4302, 17
        %v5740 = vpop.permute.xlu0 %5739
        %5741 = vrot.lane.b32.xlu0 %v4304, 17
        %v5742 = vpop.permute.xlu0 %5741
        %5743 = vrot.lane.b32.xlu0 %v4306, 17
        %v5744 = vpop.permute.xlu0 %5743
        %5745 = vrot.lane.b32.xlu0 %v4301, 17
        %v5746 = vpop.permute.xlu0 %5745
        %5747 = vrot.lane.b32.xlu0 %v4303, 17
        %v5748 = vpop.permute.xlu0 %5747
        %5749 = vrot.lane.b32.xlu0 %v4305, 17
        %v5750 = vpop.permute.xlu0 %5749
        %5751 = vrot.lane.b32.xlu0 %v4307, 17
        %v5752 = vpop.permute.xlu0 %5751
        %v5753 = vsel %vm1564, %v5738, %v5746
        %v5754 = vsel %vm1564, %v5740, %v5748
        %v5755 = vsel %vm1564, %v5742, %v5750
        %v5756 = vsel %vm1564, %v5744, %v5752
        %v5757 = vsel %vm1564, %v5746, %v5738
        %v5758 = vsel %vm1564, %v5748, %v5740
        %v5759 = vsel %vm1564, %v5750, %v5742
        %v5760 = vsel %vm1564, %v5752, %v5744
        %v5761 = vlaneseq
        %v5762 = vshrl.u32 %v5761, 7
        %v5763 = vsub.s32 3, %v5762
        %v5764 = vrot.slane %v4501, %v5763
        %v5765 = vlaneseq
        %v5766 = vshrl.u32 %v5765, 7
        %v5767 = vsub.s32 3, %v5766
        %v5768 = vrot.slane %v4502, %v5767
        %v5769 = vmul.f32 %v5764, %v5757
        %v5770 = vmul.f32 %v5768, %v5753
        %v5771 = vmul.f32 %v5764, %v5758
        %v5772 = vmul.f32 %v5768, %v5754
        %v5773 = vmul.f32 %v5764, %v5759
        %v5774 = vmul.f32 %v5768, %v5755
        %v5775 = vmul.f32 %v5764, %v5760
        %v5776 = vmul.f32 %v5768, %v5756
        %v5777 = vadd.f32 %v5729, %v5769
        %v5778 = vadd.f32 %v5730, %v5770
        %v5779 = vadd.f32 %v5731, %v5771
        %v5780 = vadd.f32 %v5732, %v5772
        %v5781 = vadd.f32 %v5733, %v5773
        %v5782 = vadd.f32 %v5734, %v5774
        %v5783 = vadd.f32 %v5735, %v5775
        %v5784 = vadd.f32 %v5736, %v5776
        %5785 = vrot.lane.b32.xlu0 %v4300, 16
        %v5786 = vpop.permute.xlu0 %5785
        %5787 = vrot.lane.b32.xlu0 %v4302, 16
        %v5788 = vpop.permute.xlu0 %5787
        %5789 = vrot.lane.b32.xlu0 %v4304, 16
        %v5790 = vpop.permute.xlu0 %5789
        %5791 = vrot.lane.b32.xlu0 %v4306, 16
        %v5792 = vpop.permute.xlu0 %5791
        %5793 = vrot.lane.b32.xlu0 %v4301, 16
        %v5794 = vpop.permute.xlu0 %5793
        %5795 = vrot.lane.b32.xlu0 %v4303, 16
        %v5796 = vpop.permute.xlu0 %5795
        %5797 = vrot.lane.b32.xlu0 %v4305, 16
        %v5798 = vpop.permute.xlu0 %5797
        %5799 = vrot.lane.b32.xlu0 %v4307, 16
        %v5800 = vpop.permute.xlu0 %5799
        %v5801 = vsel %vm1613, %v5786, %v5794
        %v5802 = vsel %vm1613, %v5788, %v5796
        %v5803 = vsel %vm1613, %v5790, %v5798
        %v5804 = vsel %vm1613, %v5792, %v5800
        %v5805 = vsel %vm1613, %v5794, %v5786
        %v5806 = vsel %vm1613, %v5796, %v5788
        %v5807 = vsel %vm1613, %v5798, %v5790
        %v5808 = vsel %vm1613, %v5800, %v5792
        %v5809 = vlaneseq
        %v5810 = vshrl.u32 %v5809, 7
        %v5811 = vsub.s32 4, %v5810
        %v5812 = vrot.slane %v4501, %v5811
        %v5813 = vlaneseq
        %v5814 = vshrl.u32 %v5813, 7
        %v5815 = vsub.s32 4, %v5814
        %v5816 = vrot.slane %v4502, %v5815
        %v5817 = vmul.f32 %v5812, %v5805
        %v5818 = vmul.f32 %v5816, %v5801
        %v5819 = vmul.f32 %v5812, %v5806
        %v5820 = vmul.f32 %v5816, %v5802
        %v5821 = vmul.f32 %v5812, %v5807
        %v5822 = vmul.f32 %v5816, %v5803
        %v5823 = vmul.f32 %v5812, %v5808
        %v5824 = vmul.f32 %v5816, %v5804
        %v5825 = vadd.f32 %v5777, %v5817
        %v5826 = vadd.f32 %v5778, %v5818
        %v5827 = vadd.f32 %v5779, %v5819
        %v5828 = vadd.f32 %v5780, %v5820
        %v5829 = vadd.f32 %v5781, %v5821
        %v5830 = vadd.f32 %v5782, %v5822
        %v5831 = vadd.f32 %v5783, %v5823
        %v5832 = vadd.f32 %v5784, %v5824
        %5833 = vrot.lane.b32.xlu0 %v4300, 15
        %v5834 = vpop.permute.xlu0 %5833
        %5835 = vrot.lane.b32.xlu0 %v4302, 15
        %v5836 = vpop.permute.xlu0 %5835
        %5837 = vrot.lane.b32.xlu0 %v4304, 15
        %v5838 = vpop.permute.xlu0 %5837
        %5839 = vrot.lane.b32.xlu0 %v4306, 15
        %v5840 = vpop.permute.xlu0 %5839
        %5841 = vrot.lane.b32.xlu0 %v4301, 15
        %v5842 = vpop.permute.xlu0 %5841
        %5843 = vrot.lane.b32.xlu0 %v4303, 15
        %v5844 = vpop.permute.xlu0 %5843
        %5845 = vrot.lane.b32.xlu0 %v4305, 15
        %v5846 = vpop.permute.xlu0 %5845
        %5847 = vrot.lane.b32.xlu0 %v4307, 15
        %v5848 = vpop.permute.xlu0 %5847
        %v5849 = vsel %vm1662, %v5834, %v5842
        %v5850 = vsel %vm1662, %v5836, %v5844
        %v5851 = vsel %vm1662, %v5838, %v5846
        %v5852 = vsel %vm1662, %v5840, %v5848
        %v5853 = vsel %vm1662, %v5842, %v5834
        %v5854 = vsel %vm1662, %v5844, %v5836
        %v5855 = vsel %vm1662, %v5846, %v5838
        %v5856 = vsel %vm1662, %v5848, %v5840
        %v5857 = vlaneseq
        %v5858 = vshrl.u32 %v5857, 7
        %v5859 = vsub.s32 5, %v5858
        %v5860 = vrot.slane %v4501, %v5859
        %v5861 = vlaneseq
        %v5862 = vshrl.u32 %v5861, 7
        %v5863 = vsub.s32 5, %v5862
        %v5864 = vrot.slane %v4502, %v5863
        %v5865 = vmul.f32 %v5860, %v5853
        %v5866 = vmul.f32 %v5864, %v5849
        %v5867 = vmul.f32 %v5860, %v5854
        %v5868 = vmul.f32 %v5864, %v5850
        %v5869 = vmul.f32 %v5860, %v5855
        %v5870 = vmul.f32 %v5864, %v5851
        %v5871 = vmul.f32 %v5860, %v5856
        %v5872 = vmul.f32 %v5864, %v5852
        %v5873 = vadd.f32 %v5825, %v5865
        %v5874 = vadd.f32 %v5826, %v5866
        %v5875 = vadd.f32 %v5827, %v5867
        %v5876 = vadd.f32 %v5828, %v5868
        %v5877 = vadd.f32 %v5829, %v5869
        %v5878 = vadd.f32 %v5830, %v5870
        %v5879 = vadd.f32 %v5831, %v5871
        %v5880 = vadd.f32 %v5832, %v5872
        %5881 = vrot.lane.b32.xlu0 %v4300, 1
        %v5882 = vpop.permute.xlu0 %5881
        %5883 = vrot.lane.b32.xlu0 %v4302, 1
        %v5884 = vpop.permute.xlu0 %5883
        %5885 = vrot.lane.b32.xlu0 %v4304, 1
        %v5886 = vpop.permute.xlu0 %5885
        %5887 = vrot.lane.b32.xlu0 %v4306, 1
        %v5888 = vpop.permute.xlu0 %5887
        %5889 = vrot.lane.b32.xlu0 %v4301, 1
        %v5890 = vpop.permute.xlu0 %5889
        %5891 = vrot.lane.b32.xlu0 %v4303, 1
        %v5892 = vpop.permute.xlu0 %5891
        %5893 = vrot.lane.b32.xlu0 %v4305, 1
        %v5894 = vpop.permute.xlu0 %5893
        %5895 = vrot.lane.b32.xlu0 %v4307, 1
        %v5896 = vpop.permute.xlu0 %5895
        %v5897 = vsel %vm1711, %v5882, %v5890
        %v5898 = vsel %vm1711, %v5884, %v5892
        %v5899 = vsel %vm1711, %v5886, %v5894
        %v5900 = vsel %vm1711, %v5888, %v5896
        %v5901 = vsel %vm1711, %v5890, %v5882
        %v5902 = vsel %vm1711, %v5892, %v5884
        %v5903 = vsel %vm1711, %v5894, %v5886
        %v5904 = vsel %vm1711, %v5896, %v5888
        %v5905 = vlaneseq
        %v5906 = vshrl.u32 %v5905, 7
        %v5907 = vsub.s32 6, %v5906
        %v5908 = vrot.slane %v4501, %v5907
        %v5909 = vlaneseq
        %v5910 = vshrl.u32 %v5909, 7
        %v5911 = vsub.s32 6, %v5910
        %v5912 = vrot.slane %v4502, %v5911
        %v5913 = vmul.f32 %v5908, %v5901
        %v5914 = vmul.f32 %v5912, %v5897
        %v5915 = vmul.f32 %v5908, %v5902
        %v5916 = vmul.f32 %v5912, %v5898
        %v5917 = vmul.f32 %v5908, %v5903
        %v5918 = vmul.f32 %v5912, %v5899
        %v5919 = vmul.f32 %v5908, %v5904
        %v5920 = vmul.f32 %v5912, %v5900
        %v5921 = vadd.f32 %v5873, %v5913
        %v5922 = vadd.f32 %v5874, %v5914
        %v5923 = vadd.f32 %v5875, %v5915
        %v5924 = vadd.f32 %v5876, %v5916
        %v5925 = vadd.f32 %v5877, %v5917
        %v5926 = vadd.f32 %v5878, %v5918
        %v5927 = vadd.f32 %v5879, %v5919
        %v5928 = vadd.f32 %v5880, %v5920
        %v5929 = vlaneseq
        %v5930 = vshrl.u32 %v5929, 7
        %v5931 = vsub.s32 7, %v5930
        %v5932 = vrot.slane %v4501, %v5931
        %v5933 = vlaneseq
        %v5934 = vshrl.u32 %v5933, 7
        %v5935 = vsub.s32 7, %v5934
        %v5936 = vrot.slane %v4502, %v5935
        %v5937 = vmul.f32 %v5932, %v4300
        %v5938 = vmul.f32 %v5936, %v4301
        %v5939 = vmul.f32 %v5932, %v4302
        %v5940 = vmul.f32 %v5936, %v4303
        %v5941 = vmul.f32 %v5932, %v4304
        %v5942 = vmul.f32 %v5936, %v4305
        %v5943 = vmul.f32 %v5932, %v4306
        %v5944 = vmul.f32 %v5936, %v4307
        %v5945 = vadd.f32 %v5921, %v5937
        %v5946 = vadd.f32 %v5922, %v5938
        %v5947 = vadd.f32 %v5923, %v5939
        %v5948 = vadd.f32 %v5924, %v5940
        %v5949 = vadd.f32 %v5925, %v5941
        %v5950 = vadd.f32 %v5926, %v5942
        %v5951 = vadd.f32 %v5927, %v5943
        %v5952 = vadd.f32 %v5928, %v5944
        %5953 = vrot.lane.b32.xlu0 %v4300, 127
        %v5954 = vpop.permute.xlu0 %5953
        %5955 = vrot.lane.b32.xlu0 %v4302, 127
        %v5956 = vpop.permute.xlu0 %5955
        %5957 = vrot.lane.b32.xlu0 %v4304, 127
        %v5958 = vpop.permute.xlu0 %5957
        %5959 = vrot.lane.b32.xlu0 %v4306, 127
        %v5960 = vpop.permute.xlu0 %5959
        %5961 = vrot.lane.b32.xlu0 %v4301, 127
        %v5962 = vpop.permute.xlu0 %5961
        %5963 = vrot.lane.b32.xlu0 %v4303, 127
        %v5964 = vpop.permute.xlu0 %5963
        %5965 = vrot.lane.b32.xlu0 %v4305, 127
        %v5966 = vpop.permute.xlu0 %5965
        %5967 = vrot.lane.b32.xlu0 %v4307, 127
        %v5968 = vpop.permute.xlu0 %5967
        %v5969 = vsel %vm1784, %v5954, %v5962
        %v5970 = vsel %vm1784, %v5956, %v5964
        %v5971 = vsel %vm1784, %v5958, %v5966
        %v5972 = vsel %vm1784, %v5960, %v5968
        %v5973 = vsel %vm1784, %v5962, %v5954
        %v5974 = vsel %vm1784, %v5964, %v5956
        %v5975 = vsel %vm1784, %v5966, %v5958
        %v5976 = vsel %vm1784, %v5968, %v5960
        %v5977 = vlaneseq
        %v5978 = vshrl.u32 %v5977, 7
        %v5979 = vsub.s32 0, %v5978
        %v5980 = vrot.slane %v4503, %v5979
        %v5981 = vlaneseq
        %v5982 = vshrl.u32 %v5981, 7
        %v5983 = vsub.s32 0, %v5982
        %v5984 = vrot.slane %v4504, %v5983
        %v5985 = vmul.f32 %v5980, %v5969
        %v5986 = vmul.f32 %v5984, %v5973
        %v5987 = vmul.f32 %v5980, %v5970
        %v5988 = vmul.f32 %v5984, %v5974
        %v5989 = vmul.f32 %v5980, %v5971
        %v5990 = vmul.f32 %v5984, %v5975
        %v5991 = vmul.f32 %v5980, %v5972
        %v5992 = vmul.f32 %v5984, %v5976
        %v5993 = vadd.f32 %v5945, %v5985
        %v5994 = vadd.f32 %v5946, %v5986
        %v5995 = vadd.f32 %v5947, %v5987
        %v5996 = vadd.f32 %v5948, %v5988
        %v5997 = vadd.f32 %v5949, %v5989
        %v5998 = vadd.f32 %v5950, %v5990
        %v5999 = vadd.f32 %v5951, %v5991
        %v6000 = vadd.f32 %v5952, %v5992
        %6001 = vrot.lane.b32.xlu0 %v4300, 113
        %v6002 = vpop.permute.xlu0 %6001
        %6003 = vrot.lane.b32.xlu0 %v4302, 113
        %v6004 = vpop.permute.xlu0 %6003
        %6005 = vrot.lane.b32.xlu0 %v4304, 113
        %v6006 = vpop.permute.xlu0 %6005
        %6007 = vrot.lane.b32.xlu0 %v4306, 113
        %v6008 = vpop.permute.xlu0 %6007
        %6009 = vrot.lane.b32.xlu0 %v4301, 113
        %v6010 = vpop.permute.xlu0 %6009
        %6011 = vrot.lane.b32.xlu0 %v4303, 113
        %v6012 = vpop.permute.xlu0 %6011
        %6013 = vrot.lane.b32.xlu0 %v4305, 113
        %v6014 = vpop.permute.xlu0 %6013
        %6015 = vrot.lane.b32.xlu0 %v4307, 113
        %v6016 = vpop.permute.xlu0 %6015
        %v6017 = vsel %vm1833, %v6002, %v6010
        %v6018 = vsel %vm1833, %v6004, %v6012
        %v6019 = vsel %vm1833, %v6006, %v6014
        %v6020 = vsel %vm1833, %v6008, %v6016
        %v6021 = vsel %vm1833, %v6010, %v6002
        %v6022 = vsel %vm1833, %v6012, %v6004
        %v6023 = vsel %vm1833, %v6014, %v6006
        %v6024 = vsel %vm1833, %v6016, %v6008
        %v6025 = vlaneseq
        %v6026 = vshrl.u32 %v6025, 7
        %v6027 = vsub.s32 1, %v6026
        %v6028 = vrot.slane %v4503, %v6027
        %v6029 = vlaneseq
        %v6030 = vshrl.u32 %v6029, 7
        %v6031 = vsub.s32 1, %v6030
        %v6032 = vrot.slane %v4504, %v6031
        %v6033 = vmul.f32 %v6028, %v6017
        %v6034 = vmul.f32 %v6032, %v6021
        %v6035 = vmul.f32 %v6028, %v6018
        %v6036 = vmul.f32 %v6032, %v6022
        %v6037 = vmul.f32 %v6028, %v6019
        %v6038 = vmul.f32 %v6032, %v6023
        %v6039 = vmul.f32 %v6028, %v6020
        %v6040 = vmul.f32 %v6032, %v6024
        %v6041 = vadd.f32 %v5993, %v6033
        %v6042 = vadd.f32 %v5994, %v6034
        %v6043 = vadd.f32 %v5995, %v6035
        %v6044 = vadd.f32 %v5996, %v6036
        %v6045 = vadd.f32 %v5997, %v6037
        %v6046 = vadd.f32 %v5998, %v6038
        %v6047 = vadd.f32 %v5999, %v6039
        %v6048 = vadd.f32 %v6000, %v6040
        %6049 = vrot.lane.b32.xlu0 %v4300, 112
        %v6050 = vpop.permute.xlu0 %6049
        %6051 = vrot.lane.b32.xlu0 %v4302, 112
        %v6052 = vpop.permute.xlu0 %6051
        %6053 = vrot.lane.b32.xlu0 %v4304, 112
        %v6054 = vpop.permute.xlu0 %6053
        %6055 = vrot.lane.b32.xlu0 %v4306, 112
        %v6056 = vpop.permute.xlu0 %6055
        %6057 = vrot.lane.b32.xlu0 %v4301, 112
        %v6058 = vpop.permute.xlu0 %6057
        %6059 = vrot.lane.b32.xlu0 %v4303, 112
        %v6060 = vpop.permute.xlu0 %6059
        %6061 = vrot.lane.b32.xlu0 %v4305, 112
        %v6062 = vpop.permute.xlu0 %6061
        %6063 = vrot.lane.b32.xlu0 %v4307, 112
        %v6064 = vpop.permute.xlu0 %6063
        %v6065 = vsel %vm1882, %v6050, %v6058
        %v6066 = vsel %vm1882, %v6052, %v6060
        %v6067 = vsel %vm1882, %v6054, %v6062
        %v6068 = vsel %vm1882, %v6056, %v6064
        %v6069 = vsel %vm1882, %v6058, %v6050
        %v6070 = vsel %vm1882, %v6060, %v6052
        %v6071 = vsel %vm1882, %v6062, %v6054
        %v6072 = vsel %vm1882, %v6064, %v6056
        %v6073 = vlaneseq
        %v6074 = vshrl.u32 %v6073, 7
        %v6075 = vsub.s32 2, %v6074
        %v6076 = vrot.slane %v4503, %v6075
        %v6077 = vlaneseq
        %v6078 = vshrl.u32 %v6077, 7
        %v6079 = vsub.s32 2, %v6078
        %v6080 = vrot.slane %v4504, %v6079
        %v6081 = vmul.f32 %v6076, %v6065
        %v6082 = vmul.f32 %v6080, %v6069
        %v6083 = vmul.f32 %v6076, %v6066
        %v6084 = vmul.f32 %v6080, %v6070
        %v6085 = vmul.f32 %v6076, %v6067
        %v6086 = vmul.f32 %v6080, %v6071
        %v6087 = vmul.f32 %v6076, %v6068
        %v6088 = vmul.f32 %v6080, %v6072
        %v6089 = vadd.f32 %v6041, %v6081
        %v6090 = vadd.f32 %v6042, %v6082
        %v6091 = vadd.f32 %v6043, %v6083
        %v6092 = vadd.f32 %v6044, %v6084
        %v6093 = vadd.f32 %v6045, %v6085
        %v6094 = vadd.f32 %v6046, %v6086
        %v6095 = vadd.f32 %v6047, %v6087
        %v6096 = vadd.f32 %v6048, %v6088
        %6097 = vrot.lane.b32.xlu0 %v4300, 111
        %v6098 = vpop.permute.xlu0 %6097
        %6099 = vrot.lane.b32.xlu0 %v4302, 111
        %v6100 = vpop.permute.xlu0 %6099
        %6101 = vrot.lane.b32.xlu0 %v4304, 111
        %v6102 = vpop.permute.xlu0 %6101
        %6103 = vrot.lane.b32.xlu0 %v4306, 111
        %v6104 = vpop.permute.xlu0 %6103
        %6105 = vrot.lane.b32.xlu0 %v4301, 111
        %v6106 = vpop.permute.xlu0 %6105
        %6107 = vrot.lane.b32.xlu0 %v4303, 111
        %v6108 = vpop.permute.xlu0 %6107
        %6109 = vrot.lane.b32.xlu0 %v4305, 111
        %v6110 = vpop.permute.xlu0 %6109
        %6111 = vrot.lane.b32.xlu0 %v4307, 111
        %v6112 = vpop.permute.xlu0 %6111
        %v6113 = vsel %vm1931, %v6098, %v6106
        %v6114 = vsel %vm1931, %v6100, %v6108
        %v6115 = vsel %vm1931, %v6102, %v6110
        %v6116 = vsel %vm1931, %v6104, %v6112
        %v6117 = vsel %vm1931, %v6106, %v6098
        %v6118 = vsel %vm1931, %v6108, %v6100
        %v6119 = vsel %vm1931, %v6110, %v6102
        %v6120 = vsel %vm1931, %v6112, %v6104
        %v6121 = vlaneseq
        %v6122 = vshrl.u32 %v6121, 7
        %v6123 = vsub.s32 3, %v6122
        %v6124 = vrot.slane %v4503, %v6123
        %v6125 = vlaneseq
        %v6126 = vshrl.u32 %v6125, 7
        %v6127 = vsub.s32 3, %v6126
        %v6128 = vrot.slane %v4504, %v6127
        %v6129 = vmul.f32 %v6124, %v6113
        %v6130 = vmul.f32 %v6128, %v6117
        %v6131 = vmul.f32 %v6124, %v6114
        %v6132 = vmul.f32 %v6128, %v6118
        %v6133 = vmul.f32 %v6124, %v6115
        %v6134 = vmul.f32 %v6128, %v6119
        %v6135 = vmul.f32 %v6124, %v6116
        %v6136 = vmul.f32 %v6128, %v6120
        %v6137 = vadd.f32 %v6089, %v6129
        %v6138 = vadd.f32 %v6090, %v6130
        %v6139 = vadd.f32 %v6091, %v6131
        %v6140 = vadd.f32 %v6092, %v6132
        %v6141 = vadd.f32 %v6093, %v6133
        %v6142 = vadd.f32 %v6094, %v6134
        %v6143 = vadd.f32 %v6095, %v6135
        %v6144 = vadd.f32 %v6096, %v6136
        %6145 = vxpose.xlu0.b32.start [1/16] %v4383, 128
        %6146 = vxpose.xlu0.b32.cont [2/16] %v4384, 128
        %6147 = vxpose.xlu0.b32.cont [3/16] 0.0, 128
        %6148 = vxpose.xlu0.b32.cont [4/16] 0.0, 128
        %6149 = vxpose.xlu0.b32.cont [5/16] 0.0, 128
        %6150 = vxpose.xlu0.b32.cont [6/16] 0.0, 128
        %6151 = vxpose.xlu0.b32.cont [7/16] 0.0, 128
        %6152 = vxpose.xlu0.b32.cont [8/16] 0.0, 128
        %6153 = vxpose.xlu0.b32.cont [9/16] 0.0, 128
        %6154 = vxpose.xlu0.b32.cont [10/16] 0.0, 128
        %6155 = vxpose.xlu0.b32.cont [11/16] 0.0, 128
        %6156 = vxpose.xlu0.b32.cont [12/16] 0.0, 128
        %6157 = vxpose.xlu0.b32.cont [13/16] 0.0, 128
        %6158 = vxpose.xlu0.b32.cont [14/16] 0.0, 128
        %6159 = vxpose.xlu0.b32.cont [15/16] 0.0, 128
        %6160 = vxpose.xlu0.b32.end [16/16] 0.0, 128
        %v6161 = vpop.trf.xlu0
        %v6162 = vpop.trf.xlu0
        %v6163 = vpop.trf.xlu0
        %v6164 = vpop.trf.xlu0
        %v6165 = vpop.trf.xlu0
        %v6166 = vpop.trf.xlu0
        %v6167 = vpop.trf.xlu0
        %v6168 = vpop.trf.xlu0
        %v6169 = vpop.trf.xlu0
        %v6170 = vpop.trf.xlu0
        %v6171 = vpop.trf.xlu0
        %v6172 = vpop.trf.xlu0
        %v6173 = vpop.trf.xlu0
        %v6174 = vpop.trf.xlu0
        %v6175 = vpop.trf.xlu0
        %v6176 = vpop.trf.xlu0
        %v6178 = vsel %vm1417, %v6161, 0
        %v6181 = vsel %vm1417, %v6162, 0
        %v6184 = vsel %vm1417, %v6163, 0
        %v6187 = vsel %vm1417, %v6164, 0
        %6189 = vmatprep.subr.mxu0 %v3745
        %6190 = vmatpush1.msra.mxu0 %v3743
        %6191 = vmatprep.subr.mxu0 %v3751
        %6192 = vmatpush1.msra.mxu0 %v3749
        %6193 = vmatprep.subr.mxu0 0.0
        %6194 = vmatpush1.msra.mxu0 0.0
        %6195 = vmatprep.subr.mxu0 0.0
        %6196 = vmatpush1.msra.mxu0 0.0
        %6197 = vmatprep.subr.mxu0 0.0
        %6198 = vmatpush1.msra.mxu0 0.0
        %6199 = vmatprep.subr.mxu0 0.0
        %6200 = vmatpush1.msra.mxu0 0.0
        %6201 = vmatprep.subr.mxu0 0.0
        %6202 = vmatpush1.msra.mxu0 0.0
        %6203 = vmatprep.subr.mxu0 0.0
        %6204 = vmatpush1.msra.mxu0 0.0
        %6205 = vmatprep.subr.mxu0 0.0
        %6206 = vmatpush1.msra.mxu0 0.0
        %6207 = vmatprep.subr.mxu0 0.0
        %6208 = vmatpush1.msra.mxu0 0.0
        %6209 = vmatprep.subr.mxu0 0.0
        %6210 = vmatpush1.msra.mxu0 0.0
        %6211 = vmatprep.subr.mxu0 0.0
        %6212 = vmatpush1.msra.mxu0 0.0
        %6213 = vmatprep.subr.mxu0 0.0
        %6214 = vmatpush1.msra.mxu0 0.0
        %6215 = vmatprep.subr.mxu0 0.0
        %6216 = vmatpush1.msra.mxu0 0.0
        %6217 = vmatprep.subr.mxu0 0.0
        %6218 = vmatpush1.msra.mxu0 0.0
        %6219 = vmatprep.subr.mxu0 0.0
        %6220 = vmatpush1.msra.mxu0 0.0
        %6221 = vmatprep.subr.mxu0 0.0
        %6222 = vmatpush1.msra.mxu0 0.0
        %6223 = vmatprep.subr.mxu0 0.0
        %6224 = vmatpush1.msra.mxu0 0.0
        %6225 = vmatprep.subr.mxu0 0.0
        %6226 = vmatpush1.msra.mxu0 0.0
        %6227 = vmatprep.subr.mxu0 0.0
        %6228 = vmatpush1.msra.mxu0 0.0
        %6229 = vmatprep.subr.mxu0 0.0
        %6230 = vmatpush1.msra.mxu0 0.0
        %6231 = vmatprep.subr.mxu0 0.0
        %6232 = vmatpush1.msra.mxu0 0.0
        %6233 = vmatprep.subr.mxu0 0.0
        %6234 = vmatpush1.msra.mxu0 0.0
        %6235 = vmatprep.subr.mxu0 0.0
        %6236 = vmatpush1.msra.mxu0 0.0
        %6237 = vmatprep.subr.mxu0 0.0
        %6238 = vmatpush1.msra.mxu0 0.0
        %6239 = vmatprep.subr.mxu0 0.0
        %6240 = vmatpush1.msra.mxu0 0.0
        %6241 = vmatprep.subr.mxu0 0.0
        %6242 = vmatpush1.msra.mxu0 0.0
        %6243 = vmatprep.subr.mxu0 0.0
        %6244 = vmatpush1.msra.mxu0 0.0
        %6245 = vmatprep.subr.mxu0 0.0
        %6246 = vmatpush1.msra.mxu0 0.0
        %6247 = vmatprep.subr.mxu0 0.0
        %6248 = vmatpush1.msra.mxu0 0.0
        %6249 = vmatprep.subr.mxu0 0.0
        %6250 = vmatpush1.msra.mxu0 0.0
        %6251 = vmatprep.subr.mxu0 0.0
        %6252 = vmatpush1.msra.mxu0 0.0
        %6253 = vmatprep.mubr.f32.mxu0 0.0
        %6254 = vmatmul.mubr.f32.gmra.mrb[0].mxu0 %v6178
        %v6255 = vpop.f32.mrb[0].mxu0
        %v6256 = vadd.f32 %v6137, %v6255
        %v6257 = vpop.f32.mrb[0].mxu0
        %v6258 = vadd.f32 %v6138, %v6257
        %6259 = vmatprep.mubr.f32.mxu0 0.0
        %6260 = vmatmul.mubr.f32.gmra.mrb[0].mxu0 %v6181
        %v6261 = vpop.f32.mrb[0].mxu0
        %v6262 = vadd.f32 %v6139, %v6261
        %v6263 = vpop.f32.mrb[0].mxu0
        %v6264 = vadd.f32 %v6140, %v6263
        %6265 = vmatprep.mubr.f32.mxu0 0.0
        %6266 = vmatmul.mubr.f32.gmra.mrb[0].mxu0 %v6184
        %v6267 = vpop.f32.mrb[0].mxu0
        %v6268 = vadd.f32 %v6141, %v6267
        %v6269 = vpop.f32.mrb[0].mxu0
        %v6270 = vadd.f32 %v6142, %v6269
        %6271 = vmatprep.mubr.f32.mxu0 0.0
        %6272 = vmatmul.mubr.f32.gmra.mrb[0].mxu0 %v6187
        %v6273 = vpop.f32.mrb[0].mxu0
        %v6274 = vadd.f32 %v6143, %v6273
        %v6275 = vpop.f32.mrb[0].mxu0
        %v6276 = vadd.f32 %v6144, %v6275
        %6277 = vdwg.mxu0
        %v6278 = vadd.f32 %v6256, %v6258
        %6279 = vadd.xlane.f32.xlu0 %v6278
        %v6280 = vpop.xlane.xlu0 %6279
        %v6281 = vadd.f32 %v6262, %v6264
        %6282 = vadd.xlane.f32.xlu0 %v6281
        %v6283 = vpop.xlane.xlu0 %6282
        %v6284 = vadd.f32 %v6268, %v6270
        %6285 = vadd.xlane.f32.xlu0 %v6284
        %v6286 = vpop.xlane.xlu0 %6285
        %v6287 = vadd.f32 %v6274, %v6276
        %6288 = vadd.xlane.f32.xlu0 %v6287
        %v6289 = vpop.xlane.xlu0 %6288
        %v6290 = vmul.f32 %v6280, %v3333
        %v6291 = vmul.f32 %v6283, %v3333
        %v6292 = vmul.f32 %v6286, %v3333
        %v6293 = vmul.f32 %v6289, %v3333
        %v6294 = vsub.f32 %v6256, %v6290
        %v6295 = vsub.f32 %v6258, %v6290
        %v6296 = vsub.f32 %v6262, %v6291
        %v6297 = vsub.f32 %v6264, %v6291
        %v6298 = vsub.f32 %v6268, %v6292
        %v6299 = vsub.f32 %v6270, %v6292
        %v6300 = vsub.f32 %v6274, %v6293
        %v6301 = vsub.f32 %v6276, %v6293
        %v6302 = vmul.f32 %v6294, %v6294
        %v6303 = vmul.f32 %v6295, %v6295
        %v6304 = vmul.f32 %v6296, %v6296
        %v6305 = vmul.f32 %v6297, %v6297
        %v6306 = vmul.f32 %v6298, %v6298
        %v6307 = vmul.f32 %v6299, %v6299
        %v6308 = vmul.f32 %v6300, %v6300
        %v6309 = vmul.f32 %v6301, %v6301
        %v6310 = vadd.f32 %v6302, %v6303
        %6311 = vadd.xlane.f32.xlu0 %v6310
        %v6312 = vpop.xlane.xlu0 %6311
        %v6313 = vadd.f32 %v6304, %v6305
        %6314 = vadd.xlane.f32.xlu0 %v6313
        %v6315 = vpop.xlane.xlu0 %6314
        %v6316 = vadd.f32 %v6306, %v6307
        %6317 = vadd.xlane.f32.xlu0 %v6316
        %v6318 = vpop.xlane.xlu0 %6317
        %v6319 = vadd.f32 %v6308, %v6309
        %6320 = vadd.xlane.f32.xlu0 %v6319
        %v6321 = vpop.xlane.xlu0 %6320
        %v6322 = vmul.f32 %v6312, %v3333
        %v6323 = vmul.f32 %v6315, %v3333
        %v6324 = vmul.f32 %v6318, %v3333
        %v6325 = vmul.f32 %v6321, %v3333
        %v6326 = vadd.f32 %v6322, 1e-05
        %v6327 = vadd.f32 %v6323, 1e-05
        %v6328 = vadd.f32 %v6324, 1e-05
        %v6329 = vadd.f32 %v6325, 1e-05
        %v6330 = vrsqrt.pop %v6326
        %v6331 = vrsqrt.pop %v6327
        %v6332 = vrsqrt.pop %v6328
        %v6333 = vrsqrt.pop %v6329
        %v6334 = vmul.f32 %v6294, %v6330
        %v6335 = vmul.f32 %v6295, %v6330
        %v6336 = vmul.f32 %v6296, %v6331
        %v6337 = vmul.f32 %v6297, %v6331
        %v6338 = vmul.f32 %v6298, %v6332
        %v6339 = vmul.f32 %v6299, %v6332
        %v6340 = vmul.f32 %v6300, %v6333
        %v6341 = vmul.f32 %v6301, %v6333
        %vm6342 = vcmp.ge.f32.partialorder %v6334, 0.0
        %vm6343 = vcmp.ge.f32.partialorder %v6335, 0.0
        %vm6344 = vcmp.ge.f32.partialorder %v6336, 0.0
        %vm6345 = vcmp.ge.f32.partialorder %v6337, 0.0
        %vm6346 = vcmp.ge.f32.partialorder %v6338, 0.0
        %vm6347 = vcmp.ge.f32.partialorder %v6339, 0.0
        %vm6348 = vcmp.ge.f32.partialorder %v6340, 0.0
        %vm6349 = vcmp.ge.f32.partialorder %v6341, 0.0
        %v6350 = vmul.f32 %v6334, 0.2
        %v6351 = vmul.f32 %v6335, 0.2
        %v6352 = vmul.f32 %v6336, 0.2
        %v6353 = vmul.f32 %v6337, 0.2
        %v6354 = vmul.f32 %v6338, 0.2
        %v6355 = vmul.f32 %v6339, 0.2
        %v6356 = vmul.f32 %v6340, 0.2
        %v6357 = vmul.f32 %v6341, 0.2
        %v6358 = vsel %vm6342, %v6334, %v6350
        %v6359 = vsel %vm6343, %v6335, %v6351
        %v6360 = vsel %vm6344, %v6336, %v6352
        %v6361 = vsel %vm6345, %v6337, %v6353
        %v6362 = vsel %vm6346, %v6338, %v6354
        %v6363 = vsel %vm6347, %v6339, %v6355
        %v6364 = vsel %vm6348, %v6340, %v6356
        %v6365 = vsel %vm6349, %v6341, %v6357
        %6366 = vst [vmem:[%s423] sm:$0xff] %v6358
        %6367 = vst [vmem:[%s423 + $0x8] sm:$0xff] %v6359
        %6368 = vst [vmem:[%s423 + $0x10] sm:$0xff] %v6360
        %6369 = vst [vmem:[%s423 + $0x18] sm:$0xff] %v6361
        %6370 = vst [vmem:[%s423 + $0x20] sm:$0xff] %v6362
        %6371 = vst [vmem:[%s423 + $0x28] sm:$0xff] %v6363
        %6372 = vst [vmem:[%s423 + $0x30] sm:$0xff] %v6364
        %6373 = vst [vmem:[%s423 + $0x38] sm:$0xff] %v6365
        %s6374 = sand.u32 %s210, 1
        %s6375 = scalar_lea.sflag [#allocation5], %s6374
        %s6376 = sand.u32 %s210, 1
        %s6377 = smul.addr %s6376, 64
        %s6378 = scalar_lea.vmem [#allocation17], %s6377
        // Predicated region
        $region85: #{tpu_custom_call.1} parent=51 // pred_check
          %p6379 = pneg %p220
        $region86: #{tpu_custom_call.1} parent=51 // pred_check_branch
          %6381 = sbr.rel (%p6379) target = $region88
        $region87: #{tpu_custom_call.1} parent=51 // pred_region
          %s6383 = ssub.s32 1024, 1024
          %6384 = vsyncadd %s6375, %s6383
          %s6385 = smul.addr %s29, 8
          %s6386 = smul.addr %s6385, 128
          %s6387 = scalar_lea.hbm %s8, %s6386
          %s6388 = sshll.u32 %s6378, 4
          %s6389 = int_to_ptr.vmem [resolvable:$true] %s6388
          %6394 = dma.vmem_to_hbm [thread:$0]  %s6389, 1024, %s6387, %s6375, 256, 256, 16
        $region88: #{tpu_custom_call.1} parent=51 // pred_fallthru
          _
      $region52: #{tpu_custom_call.1} parent=5 // pred_fallthru
        _
      %p6395 = scmp.le.s32.totalorder 2, %s24
      // Predicated region
      $region89: #{tpu_custom_call.1} parent=5 // pred_check
        %p6396 = pneg %p6395
      $region90: #{tpu_custom_call.1} parent=5 // pred_check_branch
        %6398 = sbr.rel (%p6396) target = $region92
      $region91: #{tpu_custom_call.1} parent=5 // pred_region
        %s6399 = ssub.s32 %s24, 2
        // Predicated region
        $region93: #{tpu_custom_call.1} parent=91 // pred_check
          %p6400 = pneg %p226
        $region94: #{tpu_custom_call.1} parent=91 // pred_check_branch
          %6402 = sbr.rel (%p6400) target = $region96
        $region95: #{tpu_custom_call.1} parent=91 // pred_region
          %s6403 = sand.u32 %s211, 1
          %s6404 = scalar_lea.sflag [#allocation5], %s6403
          %s6405 = sand.u32 %s211, 1
          %s6406 = smul.addr %s6405, 64
          %s6407 = scalar_lea.vmem [#allocation17], %s6406
          %6408 = dma.done %s6404, 1024
        $region96: #{tpu_custom_call.1} parent=91 // pred_fallthru
          _
      $region92: #{tpu_custom_call.1} parent=5 // pred_fallthru
        _
    $region6: #{tpu_custom_call.1} parent=1 // loop_footer
      %s28 = sadd.s32 1, %s24
    $region7: #{tpu_custom_call.1} parent=1 // loop_footer_branch
      %23 = sbr.rel target = $region3
    $region8: #{tpu_custom_call.1} parent=1 // loop_exit
      _
    %6409 = vsyncpa [#allocation4], 1
    %s6410 = scalar_lea.sflag [#allocation4], 1
    %6411 = vsyncpa %s6410, 1
    %6412 = vsyncpa [#allocation7], 1
    %6413 = vsyncpa [#allocation10], 1
    %6414 = vsyncpa [#allocation13], 1
    %6415 = vsyncpa [#allocation16], 1
    %6416 = vsyncpa [#allocation5], 1
    %s6417 = scalar_lea.sflag [#allocation5], 1
    %6418 = vsyncpa %s6417, 1

</llo_original>
